<compile_context>
chip_gen: v7x
topology: tpu7x:2x2x1
jax: 0.10.0
libtpu: 0.0.40
codegen_flags: <defaults>
</compile_context>

<pallas_src>
import functools
import numpy as np
import jax
import jax.numpy as jnp
from jax.experimental import pallas as pl
from jax.experimental.pallas import tpu as pltpu

_BN_EPS = 1e-5
_BF16 = jnp.bfloat16
_F32 = jnp.float32
_SLAB_W = 128

CFG = dict(B=2, T=16, text_channels=32, in_channels=64, out_feats=16,
           num_clusters=4, style_dim=8, num_speakers=4, lambda_id=1.0)


# ----------------------------- in-kernel helpers -----------------------------

def _leaky(y):
    return jnp.where(y > 0, y, 0.2 * y)          # LeakyReLU(0.2)


def _im2col(x, K, pad_l, pad_r):
    """x: (L, Cin) time-major -> (L + pad_l + pad_r - K + 1, K*Cin), stride 1."""
    L0, Cin = x.shape
    parts = []
    if pad_l:
        parts.append(jnp.zeros((pad_l, Cin), x.dtype))
    parts.append(x)
    if pad_r:
        parts.append(jnp.zeros((pad_r, Cin), x.dtype))
    xp = jnp.concatenate(parts, axis=0) if len(parts) > 1 else x
    L = L0 + pad_l + pad_r - K + 1
    if K == 1:
        return xp[:L]
    return jnp.concatenate([xp[dk:dk + L, :] for dk in range(K)], axis=-1)


def _im2col_b(x, K, pad_l, pad_r, B, L):
    """Per-batch im2col of a batch-row-stacked (B*L, Cin) activation."""
    parts = [_im2col(x[b * L:(b + 1) * L, :], K, pad_l, pad_r) for b in range(B)]
    return parts[0] if B == 1 else jnp.concatenate(parts, axis=0)


# ----------------------------- fused Pallas kernel -----------------------------

def _fused_kernel(xt_ref, y_ref, w64_ref, b64_ref, wd_ref, b256_ref,
                  w44_ref, bs_ref, wlg_ref, blg_ref, emb_ref, sel_ref,
                  out_ref, *, B, T, C, SD, NC, F, NS):
    H, Q = T // 2, T // 4

    def cnr64(x, idx, K, cin, L, sel=None, act=True):
        """Stride-1 ConvNormRelu (eval-mode BN folded), Cout = C.
           `sel` folds stride-2 down / nearest-x2 up sampling as a precomputed 0/1
           row-selection applied to the im2col before the conv dot."""
        im = _im2col_b(x.astype(_BF16), K, 1, K - 2, B, L)          # (B*L, K*cin)
        if sel is not None:
            im = jnp.dot(sel, im, preferred_element_type=_F32).astype(_BF16)
        y = jnp.dot(im, w64_ref[idx, :K * cin, :],
                    preferred_element_type=_F32) + b64_ref[idx]
        return _leaky(y) if act else y

    sel_a = sel_ref[0, :B * H, :B * T]     # stride-2 select, len T   -> T/2
    sel_b = sel_ref[1, :B * H, :B * H]     # stride-2 + x2-upsample fold, len T/2
    sel_c1 = sel_ref[2, :B * Q, :B * H]    # stride-2 select, len T/2 -> T/4
    sel_u = sel_ref[3, :B * T, :B * H]     # nearest x2 upsample fold, T/2 -> T

    # ---------------- TextEncoder1D + UNet1D (batch folded into rows) ----------
    # TODO(synk): exact TextEncoder1D / UNet1D depths approximated (depth=2 for T=16).
    xt = xt_ref[...]
    x = cnr64(xt, 0, 3, xt.shape[-1], T)   # text conv 0
    x = cnr64(x, 1, 3, C, T)               # text conv 1
    x = cnr64(x, 2, 3, C, T)               # unet pre 0
    x = cnr64(x, 3, 3, C, T)               # unet pre 1
    res0 = x
    x = cnr64(x, 4, 4, C, T, sel=sel_a)    # down 0: T -> T/2
    res1 = x
    x = cnr64(x, 5, 4, C, H, sel=sel_b)    # down 1 + nearest up (folded)
    x = x + res1
    x = cnr64(x, 6, 3, C, H, sel=sel_u)    # up conv 0 + nearest up (folded)
    x = x + res0
    x_unet = cnr64(x, 7, 3, C, T)          # up conv 1

    # ---------------- PoseStyleEncoder (shared weights, used twice) -------------
    # TODO(synk): exact PoseStyleEncoder architecture approximated
    #             (2 downsampling CNR + 1x1 logits + temporal mean pool).
    def pose_style(z):
        h = cnr64(z, 8, 4, F, T, sel=sel_a)                    # (B*T/2, C)
        h = cnr64(h, 9, 4, C, H, sel=sel_c1)                   # (B*T/4, C)
        lg = jnp.dot(h.astype(_BF16), w44_ref[:, :NS],
                     preferred_element_type=_F32) + bs_ref[:, :NS]
        return jnp.concatenate(
            [jnp.mean(lg[b * Q:(b + 1) * Q, :], axis=0, keepdims=True)
             for b in range(B)], axis=0)                       # (B, NS)

    score_in = pose_style(y_ref[...])

    # EmbLin 'lin' mode on softmax(scores) -> per-sample style vector
    m = jnp.max(score_in, axis=-1, keepdims=True)
    e = jnp.exp(score_in - m)
    soft_in = e / jnp.sum(e, axis=-1, keepdims=True)
    sty = jnp.dot(soft_in.astype(_BF16), emb_ref[...],
                  preferred_element_type=_F32)                 # (B, SD)
    sty_rows = jnp.concatenate(
        [jnp.broadcast_to(sty[b:b + 1, :], (T, SD)) for b in range(B)], axis=0)

    # ---------------- ClusterClassify ----------------
    # TODO(synk): exact ClusterClassify depth approximated (2 CNR + 1x1 logits).
    xc = jnp.concatenate([x_unet, sty_rows], axis=-1)          # (B*T, C+SD)
    im_xc = _im2col_b(xc.astype(_BF16), 3, 1, 1, B, T)         # (B*T, 3*(C+SD))
    h = _leaky(jnp.dot(im_xc, w64_ref[10, :3 * (C + SD), :],
                       preferred_element_type=_F32) + b64_ref[10])
    h = cnr64(h, 11, 3, C, T)
    ls = jnp.dot(h.astype(_BF16), w44_ref[:, NS:NS + NC],
                 preferred_element_type=_F32) + bs_ref[:, NS:NS + NC]   # labels_score

    mm = jnp.max(ls, axis=-1, keepdims=True)
    ee = jnp.exp(ls - mm)
    soft = ee / jnp.sum(ee, axis=-1, keepdims=True)            # labels_cap_soft

    # ---------------- grouped decoder (groups collapsed to wide matmuls) --------
    # layer 0: all groups read the same xc im2col (replaces torch.cat([x]*NC)).
    hw = _leaky(jnp.dot(im_xc, wd_ref[0, :3 * (C + SD), :],
                        preferred_element_type=_F32) + b256_ref[0])     # (B*T, NC*C)
    # layers 1..3: grouped conv as one block-diagonal contraction each.
    for li in range(1, 4):
        imw = _im2col_b(hw.astype(_BF16), 3, 1, 1, B, T)                # (B*T, 3*NC*C)
        hw = _leaky(jnp.dot(imw, wd_ref[li],
                            preferred_element_type=_F32) + b256_ref[li])

    # grouped 1x1 logits + soft-cluster weighted sum, folded into one wide dot:
    #   sum_g (h_g @ W_g + b_g) * s_g == ((h * s_expanded) @ W_cat) + s @ B_stack
    soft_exp = jnp.concatenate(
        [jnp.broadcast_to(soft[:, g:g + 1], (B * T, C)) for g in range(NC)], axis=-1)
    out = jnp.dot((hw * soft_exp).astype(_BF16), wlg_ref[...],
                  preferred_element_type=_F32)
    out = out + jnp.dot(soft, blg_ref[...], preferred_element_type=_F32)  # (B*T, F)

    # second pose-style pass on the generated poses (id_out path), fully in-kernel
    score_out = pose_style(out)

    # ---------------- lane-dense packed output slab ----------------
    si_rows = jnp.concatenate(
        [jnp.broadcast_to(score_in[b:b + 1, :], (T, NS)) for b in range(B)], axis=0)
    so_rows = jnp.concatenate(
        [jnp.broadcast_to(score_out[b:b + 1, :], (T, NS)) for b in range(B)], axis=0)
    pad_w = out_ref.shape[-1] - (F + NC + 2 * NS)
    out_ref[...] = jnp.concatenate(
        [out, ls, si_rows, so_rows, jnp.zeros((B * T, pad_w), _F32)], axis=-1)


# ----------------------------- Pallas wrapper -----------------------------

def _full_spec(shape):
    nd = len(shape)
    return pl.BlockSpec(tuple(shape), lambda i, _nd=nd: (0,) * _nd)


def fused_forward(P, cfg, x_text, y):
    B, T, _ = x_text.shape
    C, SD, NC = cfg["in_channels"], cfg["style_dim"], cfg["num_clusters"]
    F, NS = cfg["out_feats"], cfg["num_speakers"]
    ins = (x_text.reshape(B * T, -1), y.reshape(B * T, -1),
           P["W64"], P["B64"], P["WD"], P["B256"],
           P["W44"], P["BS"], P["WLG"], P["BLG"], P["EMB"], P["SEL"])
    slab = pl.pallas_call(
        functools.partial(_fused_kernel, B=B, T=T, C=C, SD=SD, NC=NC, F=F, NS=NS),
        out_shape=jax.ShapeDtypeStruct((B * T, _SLAB_W), jnp.float32),
        grid=(1,),   # TODO(synk): single fused step; v7x second TensorCore left idle.
        in_specs=[_full_spec(a.shape) for a in ins],
        out_specs=_full_spec((B * T, _SLAB_W)),
        compiler_params=pltpu.CompilerParams(dimension_semantics=("arbitrary",)),
    )(*ins)
    slab = slab.reshape(B, T, _SLAB_W)
    out = slab[:, :, :F]
    labels_score = slab[:, :, F:F + NC]
    score_in = slab[:, 0, F + NC:F + NC + NS]
    score_out = slab[:, 0, F + NC + NS:F + NC + 2 * NS]
    return out, labels_score, score_in, score_out


# ----------------------------- parameters -----------------------------

def _conv_params(key, cin, cout, K, groups=1, with_bn=True):
    """PyTorch-style Conv1d(+eval BN folded) -> time-major folded layout:
       weight (G, K*Cin_g, Cout_g), bias (G, Cout_g)."""
    ks = jax.random.split(key, 4)
    cin_g, cout_g = cin // groups, cout // groups
    fan_in = cin_g * K
    w = jax.random.normal(ks[0], (cout, cin_g, K), jnp.float32) / np.sqrt(fan_in)
    b = 0.01 * jax.random.normal(ks[1], (cout,), jnp.float32)
    if with_bn:
        gamma = 1.0 + 0.1 * jax.random.normal(ks[2], (cout,), jnp.float32)
        beta = 0.1 * jax.random.normal(ks[3], (cout,), jnp.float32)
        # TODO(synk): eval-mode BN folded assuming running_mean=0, running_var=1.
        scale = gamma / jnp.sqrt(1.0 + _BN_EPS)
        w = w * scale[:, None, None]
        b = b * scale + beta
    w4 = w.reshape(groups, cout_g, cin_g, K)
    w2 = jnp.transpose(w4, (0, 3, 2, 1)).reshape(groups, K * cin_g, cout_g)
    return np.asarray(w2), np.asarray(b.reshape(groups, cout_g))


def init_params(key, cfg):
    C, SD, NC = cfg["in_channels"], cfg["style_dim"], cfg["num_clusters"]
    F, NS, TC = cfg["out_feats"], cfg["num_speakers"], cfg["text_channels"]
    B, T = cfg["B"], cfg["T"]
    keys = iter(jax.random.split(key, 24))

    # All Cout=C conv layers packed into one stacked weight / bias pair.
    specs64 = [(TC, 3), (C, 3), (C, 3), (C, 3),      # text 0/1, unet pre 0/1
               (C, 4), (C, 4), (C, 3), (C, 3),       # unet down 0/1, up 0/1
               (F, 4), (C, 4),                       # pose-style c0, c1
               (C + SD, 3), (C, 3)]                  # cluster-classify 0, 1
    rows = max(K * cin for cin, K in specs64)
    W64 = np.zeros((len(specs64), rows, C), np.float32)
    B64 = np.zeros((len(specs64), 1, C), np.float32)
    for i, (cin, K) in enumerate(specs64):
        w2, b2 = _conv_params(next(keys), cin, C, K)
        W64[i, :K * cin, :] = w2[0]
        B64[i, 0, :] = b2[0]

    # Grouped decoder: layer0 concat along Cout (shared input), layers 1-3 block-diag.
    WD = np.zeros((4, 3 * NC * C, NC * C), np.float32)
    B256 = np.zeros((4, 1, NC * C), np.float32)
    w2, b2 = _conv_params(next(keys), (C + SD) * NC, C * NC, 3, groups=NC)
    for g in range(NC):
        WD[0, :3 * (C + SD), g * C:(g + 1) * C] = w2[g]
        B256[0, 0, g * C:(g + 1) * C] = b2[g]
    for li in range(1, 4):
        w2, b2 = _conv_params(next(keys), C * NC, C * NC, 3, groups=NC)
        for g in range(NC):
            for k in range(3):
                WD[li, k * NC * C + g * C: k * NC * C + (g + 1) * C,
                   g * C:(g + 1) * C] = w2[g][k * C:(k + 1) * C, :]
            B256[li, 0, g * C:(g + 1) * C] = b2[g]

    # Grouped 1x1 logits (C -> F per cluster group), concatenated along K.
    w2, b2 = _conv_params(next(keys), C * NC, F * NC, 1, groups=NC, with_bn=False)
    WLG = np.zeros((NC * C, F), np.float32)
    BLG = np.zeros((NC, F), np.float32)
    for g in range(NC):
        WLG[g * C:(g + 1) * C, :] = w2[g]
        BLG[g, :] = b2[g]

    # 1x1 heads: pose-style logits (C->NS) and cluster-classify logits (C->NC).
    wps, bps = _conv_params(next(keys), C, NS, 1, with_bn=False)
    wcl, bcl = _conv_params(next(keys), C, NC, 1, with_bn=False)
    W44 = np.zeros((C, NS + NC), np.float32)
    W44[:, :NS], W44[:, NS:] = wps[0], wcl[0]
    BS = np.zeros((1, NS + NC), np.float32)
    BS[0, :NS], BS[0, NS:] = bps[0], bcl[0]

    EMB = 0.1 * np.asarray(jax.random.normal(next(keys), (NS, SD), jnp.float32))

    # Host-precomputed 0/1 selection matrices (fold stride-2 down / nearest-up).
    def s2(L):                       # even-row select of an L-row stride-1 im2col
        M = np.zeros((L // 2, L), np.float32)
        M[np.arange(L // 2), 2 * np.arange(L // 2)] = 1.0
        return M

    def up2(L):                      # nearest-neighbour x2 row duplication
        M = np.zeros((2 * L, L), np.float32)
        M[np.arange(2 * L), np.arange(2 * L) // 2] = 1.0
        return M

    def blockdiag(M):
        R, Cc = M.shape
        out = np.zeros((B * R, B * Cc), np.float32)
        for b in range(B):
            out[b * R:(b + 1) * R, b * Cc:(b + 1) * Cc] = M
        return out

    SEL = np.zeros((4, B * T, B * T), np.float32)
    A = blockdiag(s2(T))                          # (B*T/2, B*T)
    Bm = blockdiag(up2(T // 4) @ s2(T // 2))      # (B*T/2, B*T/2)
    C1 = blockdiag(s2(T // 2))                    # (B*T/4, B*T/2)
    U = blockdiag(up2(T // 2))                    # (B*T,   B*T/2)
    SEL[0, :A.shape[0], :A.shape[1]] = A
    SEL[1, :Bm.shape[0], :Bm.shape[1]] = Bm
    SEL[2, :C1.shape[0], :C1.shape[1]] = C1
    SEL[3, :U.shape[0], :U.shape[1]] = U

    return {
        "W64": jnp.asarray(W64, _BF16), "B64": jnp.asarray(B64, _F32),
        "WD": jnp.asarray(WD, _BF16), "B256": jnp.asarray(B256, _F32),
        "W44": jnp.asarray(W44, _BF16), "BS": jnp.asarray(BS, _F32),
        "WLG": jnp.asarray(WLG, _BF16), "BLG": jnp.asarray(BLG, _F32),
        "EMB": jnp.asarray(EMB, _BF16), "SEL": jnp.asarray(SEL, _BF16),
    }


# ----------------------------- forward (glue) -----------------------------

def cross_entropy(logits, targets):
    logits = logits.astype(jnp.float32)
    lse = jax.nn.logsumexp(logits, axis=-1)
    picked = jnp.take_along_axis(logits, targets[:, None].astype(jnp.int32), axis=-1)[:, 0]
    return jnp.mean(lse - picked)


def forward(P, cfg, x_text, labels, y, style):
    """Mirrors JointLateClusterSoftStyle4_G.forward for input_modalities=['text/w2v'],
       sample_flag=False, description='train', softmax=1, argmax=0 (eval path)."""
    # TODO(synk): training-time Curriculum / torch.rand() teacher forcing and dropout
    #             (p=0) are not implemented (eval path only).
    NC = cfg["num_clusters"]
    out, labels_score, score_in, score_out = fused_forward(P, cfg, x_text, y)

    internal_losses = [
        cross_entropy(labels_score.reshape(-1, NC), labels.reshape(-1))]
    id_in_loss = cross_entropy(score_in, style[:, 0])
    id_out_loss = cross_entropy(score_out, style[:, 0])
    internal_losses.append(id_in_loss * cfg["lambda_id"])
    internal_losses.append(id_out_loss * cfg["lambda_id"])
    return out, internal_losses


# ----------------------------- main -----------------------------

if __name__ == "__main__":
    cfg = CFG
    key = jax.random.PRNGKey(0)
    kp, kt, ky, kl, ks = jax.random.split(key, 5)
    P = init_params(kp, cfg)

    B, T = cfg["B"], cfg["T"]
    x_text = jax.random.normal(kt, (B, T, cfg["text_channels"]), jnp.float32)  # text/w2v
    y = jax.random.normal(ky, (B, T, cfg["out_feats"]), jnp.float32)           # poses
    labels = jax.random.randint(kl, (B, T), 0, cfg["num_clusters"], dtype=jnp.int32)
    style = jax.random.randint(ks, (B, T), 0, cfg["num_speakers"], dtype=jnp.int32)

    fwd = jax.jit(lambda P_, xt, lb, y_, st: forward(P_, cfg, xt, lb, y_, st))
    out, losses = fwd(P, x_text, labels, y, style)
    jax.block_until_ready(out)
    for l in losses:
        jax.block_until_ready(l)

    assert out.shape == (B, T, cfg["out_feats"])
    assert all(bool(jnp.isfinite(l)) for l in losses) and bool(jnp.all(jnp.isfinite(out)))
    print("KERNEL_OK")
</pallas_src>

<mosaic_0001>
module attributes {stable_mosaic.version = 11 : i64} {
  func.func @_fused_kernel(%arg0: i32, %arg1: memref<32x32xf32, #tpu.memory_space<vmem>>, %arg2: memref<32x16xf32, #tpu.memory_space<vmem>>, %arg3: memref<12x256x64xbf16, #tpu.memory_space<vmem>>, %arg4: memref<12x1x64xf32, #tpu.memory_space<vmem>>, %arg5: memref<4x768x256xbf16, #tpu.memory_space<vmem>>, %arg6: memref<4x1x256xf32, #tpu.memory_space<vmem>>, %arg7: memref<64x8xbf16, #tpu.memory_space<vmem>>, %arg8: memref<1x8xf32, #tpu.memory_space<vmem>>, %arg9: memref<256x16xbf16, #tpu.memory_space<vmem>>, %arg10: memref<4x16xf32, #tpu.memory_space<vmem>>, %arg11: memref<4x8xbf16, #tpu.memory_space<vmem>>, %arg12: memref<4x32x32xbf16, #tpu.memory_space<vmem>>, %arg13: memref<32x128xf32, #tpu.memory_space<vmem>>) attributes {dimension_semantics = [#tpu.dimension_semantics<arbitrary>], iteration_bounds = array<i64: 1>, scalar_prefetch = 0 : i64, scratch_operands = 0 : i64, tpu.core_type = #tpu.core_type<tc>, window_params = [{pipeline_mode = #tpu.pipeline_mode<synchronous>, transform_indices = @transform_0, window_bounds = array<i64: 32, 32>}, {pipeline_mode = #tpu.pipeline_mode<synchronous>, transform_indices = @transform_1, window_bounds = array<i64: 32, 16>}, {pipeline_mode = #tpu.pipeline_mode<synchronous>, transform_indices = @transform_2, window_bounds = array<i64: 12, 256, 64>}, {pipeline_mode = #tpu.pipeline_mode<synchronous>, transform_indices = @transform_3, window_bounds = array<i64: 12, 1, 64>}, {pipeline_mode = #tpu.pipeline_mode<synchronous>, transform_indices = @transform_4, window_bounds = array<i64: 4, 768, 256>}, {pipeline_mode = #tpu.pipeline_mode<synchronous>, transform_indices = @transform_5, window_bounds = array<i64: 4, 1, 256>}, {pipeline_mode = #tpu.pipeline_mode<synchronous>, transform_indices = @transform_6, window_bounds = array<i64: 64, 8>}, {pipeline_mode = #tpu.pipeline_mode<synchronous>, transform_indices = @transform_7, window_bounds = array<i64: 1, 8>}, {pipeline_mode = #tpu.pipeline_mode<synchronous>, transform_indices = @transform_8, window_bounds = array<i64: 256, 16>}, {pipeline_mode = #tpu.pipeline_mode<synchronous>, transform_indices = @transform_9, window_bounds = array<i64: 4, 16>}, {pipeline_mode = #tpu.pipeline_mode<synchronous>, transform_indices = @transform_10, window_bounds = array<i64: 4, 8>}, {pipeline_mode = #tpu.pipeline_mode<synchronous>, transform_indices = @transform_11, window_bounds = array<i64: 4, 32, 32>}, {pipeline_mode = #tpu.pipeline_mode<synchronous>, transform_indices = @transform_12, window_bounds = array<i64: 32, 128>}]} {
    %c0 = arith.constant 0 : index
    %c0_0 = arith.constant 0 : index
    %c0_1 = arith.constant 0 : index
    %0 = vector.load %arg12[%c0, %c0_0, %c0_1] : memref<4x32x32xbf16, #tpu.memory_space<vmem>>, vector<1x16x32xbf16>
    %1 = vector.shape_cast %0 : vector<1x16x32xbf16> to vector<16x32xbf16>
    %c1 = arith.constant 1 : index
    %c0_2 = arith.constant 0 : index
    %c0_3 = arith.constant 0 : index
    %2 = vector.load %arg12[%c1, %c0_2, %c0_3] : memref<4x32x32xbf16, #tpu.memory_space<vmem>>, vector<1x16x16xbf16>
    %3 = vector.shape_cast %2 : vector<1x16x16xbf16> to vector<16x16xbf16>
    %c2 = arith.constant 2 : index
    %c0_4 = arith.constant 0 : index
    %c0_5 = arith.constant 0 : index
    %4 = vector.load %arg12[%c2, %c0_4, %c0_5] : memref<4x32x32xbf16, #tpu.memory_space<vmem>>, vector<1x8x16xbf16>
    %5 = vector.shape_cast %4 : vector<1x8x16xbf16> to vector<8x16xbf16>
    %c3 = arith.constant 3 : index
    %c0_6 = arith.constant 0 : index
    %c0_7 = arith.constant 0 : index
    %6 = vector.load %arg12[%c3, %c0_6, %c0_7] : memref<4x32x32xbf16, #tpu.memory_space<vmem>>, vector<1x32x16xbf16>
    %7 = vector.shape_cast %6 : vector<1x32x16xbf16> to vector<32x16xbf16>
    %c0_8 = arith.constant 0 : index
    %c0_9 = arith.constant 0 : index
    %8 = vector.load %arg1[%c0_8, %c0_9] : memref<32x32xf32, #tpu.memory_space<vmem>>, vector<32x32xf32>
    %9 = arith.truncf %8 : vector<32x32xf32> to vector<32x32xbf16>
    %10 = vector.extract_strided_slice %9 {offsets = [0, 0], sizes = [16, 32], strides = [1, 1]} : vector<32x32xbf16> to vector<16x32xbf16>
    %cst = arith.constant 0.000000e+00 : bf16
    %11 = vector.broadcast %cst : bf16 to vector<1x32xbf16>
    %cst_10 = arith.constant 0.000000e+00 : bf16
    %12 = vector.broadcast %cst_10 : bf16 to vector<1x32xbf16>
    %13 = tpu.concatenate %11, %10, %12 in 0 : vector<1x32xbf16>, vector<16x32xbf16>, vector<1x32xbf16> -> vector<18x32xbf16>
    %14 = vector.extract_strided_slice %13 {offsets = [0, 0], sizes = [16, 32], strides = [1, 1]} : vector<18x32xbf16> to vector<16x32xbf16>
    %15 = vector.extract_strided_slice %13 {offsets = [1, 0], sizes = [16, 32], strides = [1, 1]} : vector<18x32xbf16> to vector<16x32xbf16>
    %16 = vector.extract_strided_slice %13 {offsets = [2, 0], sizes = [16, 32], strides = [1, 1]} : vector<18x32xbf16> to vector<16x32xbf16>
    %17 = tpu.concatenate %14, %15, %16 in 1 : vector<16x32xbf16>, vector<16x32xbf16>, vector<16x32xbf16> -> vector<16x96xbf16>
    %18 = vector.extract_strided_slice %9 {offsets = [16, 0], sizes = [16, 32], strides = [1, 1]} : vector<32x32xbf16> to vector<16x32xbf16>
    %cst_11 = arith.constant 0.000000e+00 : bf16
    %19 = vector.broadcast %cst_11 : bf16 to vector<1x32xbf16>
    %cst_12 = arith.constant 0.000000e+00 : bf16
    %20 = vector.broadcast %cst_12 : bf16 to vector<1x32xbf16>
    %21 = tpu.concatenate %19, %18, %20 in 0 : vector<1x32xbf16>, vector<16x32xbf16>, vector<1x32xbf16> -> vector<18x32xbf16>
    %22 = vector.extract_strided_slice %21 {offsets = [0, 0], sizes = [16, 32], strides = [1, 1]} : vector<18x32xbf16> to vector<16x32xbf16>
    %23 = vector.extract_strided_slice %21 {offsets = [1, 0], sizes = [16, 32], strides = [1, 1]} : vector<18x32xbf16> to vector<16x32xbf16>
    %24 = vector.extract_strided_slice %21 {offsets = [2, 0], sizes = [16, 32], strides = [1, 1]} : vector<18x32xbf16> to vector<16x32xbf16>
    %25 = tpu.concatenate %22, %23, %24 in 1 : vector<16x32xbf16>, vector<16x32xbf16>, vector<16x32xbf16> -> vector<16x96xbf16>
    %26 = tpu.concatenate %17, %25 in 0 : vector<16x96xbf16>, vector<16x96xbf16> -> vector<32x96xbf16>
    %c0_13 = arith.constant 0 : index
    %c0_14 = arith.constant 0 : index
    %c0_15 = arith.constant 0 : index
    %27 = vector.load %arg3[%c0_13, %c0_14, %c0_15] : memref<12x256x64xbf16, #tpu.memory_space<vmem>>, vector<1x96x64xbf16>
    %28 = vector.shape_cast %27 : vector<1x96x64xbf16> to vector<96x64xbf16>
    %cst_16 = arith.constant dense<0.000000e+00> : vector<32x64xf32>
    %29 = tpu.matmul %26, %28, %cst_16 {dimension_numbers = #tpu.dot_dimension_numbers<[1], [0], [0], [1], [0, 0, 1, 1], [], []>} : vector<32x96xbf16>, vector<96x64xbf16>, vector<32x64xf32> -> vector<32x64xf32>
    %c0_17 = arith.constant 0 : index
    %c0_18 = arith.constant 0 : index
    %c0_19 = arith.constant 0 : index
    %30 = vector.load %arg4[%c0_17, %c0_18, %c0_19] : memref<12x1x64xf32, #tpu.memory_space<vmem>>, vector<1x1x64xf32>
    %31 = vector.shape_cast %30 : vector<1x1x64xf32> to vector<1x64xf32>
    %32 = vector.broadcast %31 : vector<1x64xf32> to vector<32x64xf32>
    %33 = arith.addf %29, %32 : vector<32x64xf32>
    %cst_20 = arith.constant 0.000000e+00 : f32
    %34 = vector.broadcast %cst_20 : f32 to vector<32x64xf32>
    %35 = arith.cmpf ogt, %33, %34 : vector<32x64xf32>
    %cst_21 = arith.constant 2.000000e-01 : f32
    %36 = vector.broadcast %cst_21 : f32 to vector<32x64xf32>
    %37 = arith.mulf %36, %33 : vector<32x64xf32>
    %38 = arith.select %35, %33, %37 : vector<32x64xi1>, vector<32x64xf32>
    %39 = arith.truncf %38 : vector<32x64xf32> to vector<32x64xbf16>
    %40 = vector.extract_strided_slice %39 {offsets = [0, 0], sizes = [16, 64], strides = [1, 1]} : vector<32x64xbf16> to vector<16x64xbf16>
    %cst_22 = arith.constant 0.000000e+00 : bf16
    %41 = vector.broadcast %cst_22 : bf16 to vector<1x64xbf16>
    %cst_23 = arith.constant 0.000000e+00 : bf16
    %42 = vector.broadcast %cst_23 : bf16 to vector<1x64xbf16>
    %43 = tpu.concatenate %41, %40, %42 in 0 : vector<1x64xbf16>, vector<16x64xbf16>, vector<1x64xbf16> -> vector<18x64xbf16>
    %44 = vector.extract_strided_slice %43 {offsets = [0, 0], sizes = [16, 64], strides = [1, 1]} : vector<18x64xbf16> to vector<16x64xbf16>
    %45 = vector.extract_strided_slice %43 {offsets = [1, 0], sizes = [16, 64], strides = [1, 1]} : vector<18x64xbf16> to vector<16x64xbf16>
    %46 = vector.extract_strided_slice %43 {offsets = [2, 0], sizes = [16, 64], strides = [1, 1]} : vector<18x64xbf16> to vector<16x64xbf16>
    %47 = tpu.concatenate %44, %45, %46 in 1 : vector<16x64xbf16>, vector<16x64xbf16>, vector<16x64xbf16> -> vector<16x192xbf16>
    %48 = vector.extract_strided_slice %39 {offsets = [16, 0], sizes = [16, 64], strides = [1, 1]} : vector<32x64xbf16> to vector<16x64xbf16>
    %cst_24 = arith.constant 0.000000e+00 : bf16
    %49 = vector.broadcast %cst_24 : bf16 to vector<1x64xbf16>
    %cst_25 = arith.constant 0.000000e+00 : bf16
    %50 = vector.broadcast %cst_25 : bf16 to vector<1x64xbf16>
    %51 = tpu.concatenate %49, %48, %50 in 0 : vector<1x64xbf16>, vector<16x64xbf16>, vector<1x64xbf16> -> vector<18x64xbf16>
    %52 = vector.extract_strided_slice %51 {offsets = [0, 0], sizes = [16, 64], strides = [1, 1]} : vector<18x64xbf16> to vector<16x64xbf16>
    %53 = vector.extract_strided_slice %51 {offsets = [1, 0], sizes = [16, 64], strides = [1, 1]} : vector<18x64xbf16> to vector<16x64xbf16>
    %54 = vector.extract_strided_slice %51 {offsets = [2, 0], sizes = [16, 64], strides = [1, 1]} : vector<18x64xbf16> to vector<16x64xbf16>
    %55 = tpu.concatenate %52, %53, %54 in 1 : vector<16x64xbf16>, vector<16x64xbf16>, vector<16x64xbf16> -> vector<16x192xbf16>
    %56 = tpu.concatenate %47, %55 in 0 : vector<16x192xbf16>, vector<16x192xbf16> -> vector<32x192xbf16>
    %c1_26 = arith.constant 1 : index
    %c0_27 = arith.constant 0 : index
    %c0_28 = arith.constant 0 : index
    %57 = vector.load %arg3[%c1_26, %c0_27, %c0_28] : memref<12x256x64xbf16, #tpu.memory_space<vmem>>, vector<1x192x64xbf16>
    %58 = vector.shape_cast %57 : vector<1x192x64xbf16> to vector<192x64xbf16>
    %cst_29 = arith.constant dense<0.000000e+00> : vector<32x64xf32>
    %59 = tpu.matmul %56, %58, %cst_29 {dimension_numbers = #tpu.dot_dimension_numbers<[1], [0], [0], [1], [0, 0, 1, 1], [], []>} : vector<32x192xbf16>, vector<192x64xbf16>, vector<32x64xf32> -> vector<32x64xf32>
    %c1_30 = arith.constant 1 : index
    %c0_31 = arith.constant 0 : index
    %c0_32 = arith.constant 0 : index
    %60 = vector.load %arg4[%c1_30, %c0_31, %c0_32] : memref<12x1x64xf32, #tpu.memory_space<vmem>>, vector<1x1x64xf32>
    %61 = vector.shape_cast %60 : vector<1x1x64xf32> to vector<1x64xf32>
    %62 = vector.broadcast %61 : vector<1x64xf32> to vector<32x64xf32>
    %63 = arith.addf %59, %62 : vector<32x64xf32>
    %cst_33 = arith.constant 0.000000e+00 : f32
    %64 = vector.broadcast %cst_33 : f32 to vector<32x64xf32>
    %65 = arith.cmpf ogt, %63, %64 : vector<32x64xf32>
    %cst_34 = arith.constant 2.000000e-01 : f32
    %66 = vector.broadcast %cst_34 : f32 to vector<32x64xf32>
    %67 = arith.mulf %66, %63 : vector<32x64xf32>
    %68 = arith.select %65, %63, %67 : vector<32x64xi1>, vector<32x64xf32>
    %69 = arith.truncf %68 : vector<32x64xf32> to vector<32x64xbf16>
    %70 = vector.extract_strided_slice %69 {offsets = [0, 0], sizes = [16, 64], strides = [1, 1]} : vector<32x64xbf16> to vector<16x64xbf16>
    %cst_35 = arith.constant 0.000000e+00 : bf16
    %71 = vector.broadcast %cst_35 : bf16 to vector<1x64xbf16>
    %cst_36 = arith.constant 0.000000e+00 : bf16
    %72 = vector.broadcast %cst_36 : bf16 to vector<1x64xbf16>
    %73 = tpu.concatenate %71, %70, %72 in 0 : vector<1x64xbf16>, vector<16x64xbf16>, vector<1x64xbf16> -> vector<18x64xbf16>
    %74 = vector.extract_strided_slice %73 {offsets = [0, 0], sizes = [16, 64], strides = [1, 1]} : vector<18x64xbf16> to vector<16x64xbf16>
    %75 = vector.extract_strided_slice %73 {offsets = [1, 0], sizes = [16, 64], strides = [1, 1]} : vector<18x64xbf16> to vector<16x64xbf16>
    %76 = vector.extract_strided_slice %73 {offsets = [2, 0], sizes = [16, 64], strides = [1, 1]} : vector<18x64xbf16> to vector<16x64xbf16>
    %77 = tpu.concatenate %74, %75, %76 in 1 : vector<16x64xbf16>, vector<16x64xbf16>, vector<16x64xbf16> -> vector<16x192xbf16>
    %78 = vector.extract_strided_slice %69 {offsets = [16, 0], sizes = [16, 64], strides = [1, 1]} : vector<32x64xbf16> to vector<16x64xbf16>
    %cst_37 = arith.constant 0.000000e+00 : bf16
    %79 = vector.broadcast %cst_37 : bf16 to vector<1x64xbf16>
    %cst_38 = arith.constant 0.000000e+00 : bf16
    %80 = vector.broadcast %cst_38 : bf16 to vector<1x64xbf16>
    %81 = tpu.concatenate %79, %78, %80 in 0 : vector<1x64xbf16>, vector<16x64xbf16>, vector<1x64xbf16> -> vector<18x64xbf16>
    %82 = vector.extract_strided_slice %81 {offsets = [0, 0], sizes = [16, 64], strides = [1, 1]} : vector<18x64xbf16> to vector<16x64xbf16>
    %83 = vector.extract_strided_slice %81 {offsets = [1, 0], sizes = [16, 64], strides = [1, 1]} : vector<18x64xbf16> to vector<16x64xbf16>
    %84 = vector.extract_strided_slice %81 {offsets = [2, 0], sizes = [16, 64], strides = [1, 1]} : vector<18x64xbf16> to vector<16x64xbf16>
    %85 = tpu.concatenate %82, %83, %84 in 1 : vector<16x64xbf16>, vector<16x64xbf16>, vector<16x64xbf16> -> vector<16x192xbf16>
    %86 = tpu.concatenate %77, %85 in 0 : vector<16x192xbf16>, vector<16x192xbf16> -> vector<32x192xbf16>
    %c2_39 = arith.constant 2 : index
    %c0_40 = arith.constant 0 : index
    %c0_41 = arith.constant 0 : index
    %87 = vector.load %arg3[%c2_39, %c0_40, %c0_41] : memref<12x256x64xbf16, #tpu.memory_space<vmem>>, vector<1x192x64xbf16>
    %88 = vector.shape_cast %87 : vector<1x192x64xbf16> to vector<192x64xbf16>
    %cst_42 = arith.constant dense<0.000000e+00> : vector<32x64xf32>
    %89 = tpu.matmul %86, %88, %cst_42 {dimension_numbers = #tpu.dot_dimension_numbers<[1], [0], [0], [1], [0, 0, 1, 1], [], []>} : vector<32x192xbf16>, vector<192x64xbf16>, vector<32x64xf32> -> vector<32x64xf32>
    %c2_43 = arith.constant 2 : index
    %c0_44 = arith.constant 0 : index
    %c0_45 = arith.constant 0 : index
    %90 = vector.load %arg4[%c2_43, %c0_44, %c0_45] : memref<12x1x64xf32, #tpu.memory_space<vmem>>, vector<1x1x64xf32>
    %91 = vector.shape_cast %90 : vector<1x1x64xf32> to vector<1x64xf32>
    %92 = vector.broadcast %91 : vector<1x64xf32> to vector<32x64xf32>
    %93 = arith.addf %89, %92 : vector<32x64xf32>
    %cst_46 = arith.constant 0.000000e+00 : f32
    %94 = vector.broadcast %cst_46 : f32 to vector<32x64xf32>
    %95 = arith.cmpf ogt, %93, %94 : vector<32x64xf32>
    %cst_47 = arith.constant 2.000000e-01 : f32
    %96 = vector.broadcast %cst_47 : f32 to vector<32x64xf32>
    %97 = arith.mulf %96, %93 : vector<32x64xf32>
    %98 = arith.select %95, %93, %97 : vector<32x64xi1>, vector<32x64xf32>
    %99 = arith.truncf %98 : vector<32x64xf32> to vector<32x64xbf16>
    %100 = vector.extract_strided_slice %99 {offsets = [0, 0], sizes = [16, 64], strides = [1, 1]} : vector<32x64xbf16> to vector<16x64xbf16>
    %cst_48 = arith.constant 0.000000e+00 : bf16
    %101 = vector.broadcast %cst_48 : bf16 to vector<1x64xbf16>
    %cst_49 = arith.constant 0.000000e+00 : bf16
    %102 = vector.broadcast %cst_49 : bf16 to vector<1x64xbf16>
    %103 = tpu.concatenate %101, %100, %102 in 0 : vector<1x64xbf16>, vector<16x64xbf16>, vector<1x64xbf16> -> vector<18x64xbf16>
    %104 = vector.extract_strided_slice %103 {offsets = [0, 0], sizes = [16, 64], strides = [1, 1]} : vector<18x64xbf16> to vector<16x64xbf16>
    %105 = vector.extract_strided_slice %103 {offsets = [1, 0], sizes = [16, 64], strides = [1, 1]} : vector<18x64xbf16> to vector<16x64xbf16>
    %106 = vector.extract_strided_slice %103 {offsets = [2, 0], sizes = [16, 64], strides = [1, 1]} : vector<18x64xbf16> to vector<16x64xbf16>
    %107 = tpu.concatenate %104, %105, %106 in 1 : vector<16x64xbf16>, vector<16x64xbf16>, vector<16x64xbf16> -> vector<16x192xbf16>
    %108 = vector.extract_strided_slice %99 {offsets = [16, 0], sizes = [16, 64], strides = [1, 1]} : vector<32x64xbf16> to vector<16x64xbf16>
    %cst_50 = arith.constant 0.000000e+00 : bf16
    %109 = vector.broadcast %cst_50 : bf16 to vector<1x64xbf16>
    %cst_51 = arith.constant 0.000000e+00 : bf16
    %110 = vector.broadcast %cst_51 : bf16 to vector<1x64xbf16>
    %111 = tpu.concatenate %109, %108, %110 in 0 : vector<1x64xbf16>, vector<16x64xbf16>, vector<1x64xbf16> -> vector<18x64xbf16>
    %112 = vector.extract_strided_slice %111 {offsets = [0, 0], sizes = [16, 64], strides = [1, 1]} : vector<18x64xbf16> to vector<16x64xbf16>
    %113 = vector.extract_strided_slice %111 {offsets = [1, 0], sizes = [16, 64], strides = [1, 1]} : vector<18x64xbf16> to vector<16x64xbf16>
    %114 = vector.extract_strided_slice %111 {offsets = [2, 0], sizes = [16, 64], strides = [1, 1]} : vector<18x64xbf16> to vector<16x64xbf16>
    %115 = tpu.concatenate %112, %113, %114 in 1 : vector<16x64xbf16>, vector<16x64xbf16>, vector<16x64xbf16> -> vector<16x192xbf16>
    %116 = tpu.concatenate %107, %115 in 0 : vector<16x192xbf16>, vector<16x192xbf16> -> vector<32x192xbf16>
    %c3_52 = arith.constant 3 : index
    %c0_53 = arith.constant 0 : index
    %c0_54 = arith.constant 0 : index
    %117 = vector.load %arg3[%c3_52, %c0_53, %c0_54] : memref<12x256x64xbf16, #tpu.memory_space<vmem>>, vector<1x192x64xbf16>
    %118 = vector.shape_cast %117 : vector<1x192x64xbf16> to vector<192x64xbf16>
    %cst_55 = arith.constant dense<0.000000e+00> : vector<32x64xf32>
    %119 = tpu.matmul %116, %118, %cst_55 {dimension_numbers = #tpu.dot_dimension_numbers<[1], [0], [0], [1], [0, 0, 1, 1], [], []>} : vector<32x192xbf16>, vector<192x64xbf16>, vector<32x64xf32> -> vector<32x64xf32>
    %c3_56 = arith.constant 3 : index
    %c0_57 = arith.constant 0 : index
    %c0_58 = arith.constant 0 : index
    %120 = vector.load %arg4[%c3_56, %c0_57, %c0_58] : memref<12x1x64xf32, #tpu.memory_space<vmem>>, vector<1x1x64xf32>
    %121 = vector.shape_cast %120 : vector<1x1x64xf32> to vector<1x64xf32>
    %122 = vector.broadcast %121 : vector<1x64xf32> to vector<32x64xf32>
    %123 = arith.addf %119, %122 : vector<32x64xf32>
    %cst_59 = arith.constant 0.000000e+00 : f32
    %124 = vector.broadcast %cst_59 : f32 to vector<32x64xf32>
    %125 = arith.cmpf ogt, %123, %124 : vector<32x64xf32>
    %cst_60 = arith.constant 2.000000e-01 : f32
    %126 = vector.broadcast %cst_60 : f32 to vector<32x64xf32>
    %127 = arith.mulf %126, %123 : vector<32x64xf32>
    %128 = arith.select %125, %123, %127 : vector<32x64xi1>, vector<32x64xf32>
    %129 = arith.truncf %128 : vector<32x64xf32> to vector<32x64xbf16>
    %130 = vector.extract_strided_slice %129 {offsets = [0, 0], sizes = [16, 64], strides = [1, 1]} : vector<32x64xbf16> to vector<16x64xbf16>
    %cst_61 = arith.constant 0.000000e+00 : bf16
    %131 = vector.broadcast %cst_61 : bf16 to vector<1x64xbf16>
    %cst_62 = arith.constant 0.000000e+00 : bf16
    %132 = vector.broadcast %cst_62 : bf16 to vector<2x64xbf16>
    %133 = tpu.concatenate %131, %130, %132 in 0 : vector<1x64xbf16>, vector<16x64xbf16>, vector<2x64xbf16> -> vector<19x64xbf16>
    %134 = vector.extract_strided_slice %133 {offsets = [0, 0], sizes = [16, 64], strides = [1, 1]} : vector<19x64xbf16> to vector<16x64xbf16>
    %135 = vector.extract_strided_slice %133 {offsets = [1, 0], sizes = [16, 64], strides = [1, 1]} : vector<19x64xbf16> to vector<16x64xbf16>
    %136 = vector.extract_strided_slice %133 {offsets = [2, 0], sizes = [16, 64], strides = [1, 1]} : vector<19x64xbf16> to vector<16x64xbf16>
    %137 = vector.extract_strided_slice %133 {offsets = [3, 0], sizes = [16, 64], strides = [1, 1]} : vector<19x64xbf16> to vector<16x64xbf16>
    %138 = tpu.concatenate %134, %135, %136, %137 in 1 : vector<16x64xbf16>, vector<16x64xbf16>, vector<16x64xbf16>, vector<16x64xbf16> -> vector<16x256xbf16>
    %139 = vector.extract_strided_slice %129 {offsets = [16, 0], sizes = [16, 64], strides = [1, 1]} : vector<32x64xbf16> to vector<16x64xbf16>
    %cst_63 = arith.constant 0.000000e+00 : bf16
    %140 = vector.broadcast %cst_63 : bf16 to vector<1x64xbf16>
    %cst_64 = arith.constant 0.000000e+00 : bf16
    %141 = vector.broadcast %cst_64 : bf16 to vector<2x64xbf16>
    %142 = tpu.concatenate %140, %139, %141 in 0 : vector<1x64xbf16>, vector<16x64xbf16>, vector<2x64xbf16> -> vector<19x64xbf16>
    %143 = vector.extract_strided_slice %142 {offsets = [0, 0], sizes = [16, 64], strides = [1, 1]} : vector<19x64xbf16> to vector<16x64xbf16>
    %144 = vector.extract_strided_slice %142 {offsets = [1, 0], sizes = [16, 64], strides = [1, 1]} : vector<19x64xbf16> to vector<16x64xbf16>
    %145 = vector.extract_strided_slice %142 {offsets = [2, 0], sizes = [16, 64], strides = [1, 1]} : vector<19x64xbf16> to vector<16x64xbf16>
    %146 = vector.extract_strided_slice %142 {offsets = [3, 0], sizes = [16, 64], strides = [1, 1]} : vector<19x64xbf16> to vector<16x64xbf16>
    %147 = tpu.concatenate %143, %144, %145, %146 in 1 : vector<16x64xbf16>, vector<16x64xbf16>, vector<16x64xbf16>, vector<16x64xbf16> -> vector<16x256xbf16>
    %148 = tpu.concatenate %138, %147 in 0 : vector<16x256xbf16>, vector<16x256xbf16> -> vector<32x256xbf16>
    %cst_65 = arith.constant dense<0.000000e+00> : vector<16x256xf32>
    %149 = tpu.matmul %1, %148, %cst_65 {dimension_numbers = #tpu.dot_dimension_numbers<[1], [0], [0], [1], [0, 0, 1, 1], [], []>} : vector<16x32xbf16>, vector<32x256xbf16>, vector<16x256xf32> -> vector<16x256xf32>
    %150 = arith.truncf %149 : vector<16x256xf32> to vector<16x256xbf16>
    %c4 = arith.constant 4 : index
    %c0_66 = arith.constant 0 : index
    %c0_67 = arith.constant 0 : index
    %151 = vector.load %arg3[%c4, %c0_66, %c0_67] : memref<12x256x64xbf16, #tpu.memory_space<vmem>>, vector<1x256x64xbf16>
    %152 = vector.shape_cast %151 : vector<1x256x64xbf16> to vector<256x64xbf16>
    %cst_68 = arith.constant dense<0.000000e+00> : vector<16x64xf32>
    %153 = tpu.matmul %150, %152, %cst_68 {dimension_numbers = #tpu.dot_dimension_numbers<[1], [0], [0], [1], [0, 0, 1, 1], [], []>} : vector<16x256xbf16>, vector<256x64xbf16>, vector<16x64xf32> -> vector<16x64xf32>
    %c4_69 = arith.constant 4 : index
    %c0_70 = arith.constant 0 : index
    %c0_71 = arith.constant 0 : index
    %154 = vector.load %arg4[%c4_69, %c0_70, %c0_71] : memref<12x1x64xf32, #tpu.memory_space<vmem>>, vector<1x1x64xf32>
    %155 = vector.shape_cast %154 : vector<1x1x64xf32> to vector<1x64xf32>
    %156 = vector.broadcast %155 : vector<1x64xf32> to vector<16x64xf32>
    %157 = arith.addf %153, %156 : vector<16x64xf32>
    %cst_72 = arith.constant 0.000000e+00 : f32
    %158 = vector.broadcast %cst_72 : f32 to vector<16x64xf32>
    %159 = arith.cmpf ogt, %157, %158 : vector<16x64xf32>
    %cst_73 = arith.constant 2.000000e-01 : f32
    %160 = vector.broadcast %cst_73 : f32 to vector<16x64xf32>
    %161 = arith.mulf %160, %157 : vector<16x64xf32>
    %162 = arith.select %159, %157, %161 : vector<16x64xi1>, vector<16x64xf32>
    %163 = arith.truncf %162 : vector<16x64xf32> to vector<16x64xbf16>
    %164 = vector.extract_strided_slice %163 {offsets = [0, 0], sizes = [8, 64], strides = [1, 1]} : vector<16x64xbf16> to vector<8x64xbf16>
    %cst_74 = arith.constant 0.000000e+00 : bf16
    %165 = vector.broadcast %cst_74 : bf16 to vector<1x64xbf16>
    %cst_75 = arith.constant 0.000000e+00 : bf16
    %166 = vector.broadcast %cst_75 : bf16 to vector<2x64xbf16>
    %167 = tpu.concatenate %165, %164, %166 in 0 : vector<1x64xbf16>, vector<8x64xbf16>, vector<2x64xbf16> -> vector<11x64xbf16>
    %168 = vector.extract_strided_slice %167 {offsets = [0, 0], sizes = [8, 64], strides = [1, 1]} : vector<11x64xbf16> to vector<8x64xbf16>
    %169 = vector.extract_strided_slice %167 {offsets = [1, 0], sizes = [8, 64], strides = [1, 1]} : vector<11x64xbf16> to vector<8x64xbf16>
    %170 = vector.extract_strided_slice %167 {offsets = [2, 0], sizes = [8, 64], strides = [1, 1]} : vector<11x64xbf16> to vector<8x64xbf16>
    %171 = vector.extract_strided_slice %167 {offsets = [3, 0], sizes = [8, 64], strides = [1, 1]} : vector<11x64xbf16> to vector<8x64xbf16>
    %172 = tpu.concatenate %168, %169, %170, %171 in 1 : vector<8x64xbf16>, vector<8x64xbf16>, vector<8x64xbf16>, vector<8x64xbf16> -> vector<8x256xbf16>
    %173 = vector.extract_strided_slice %163 {offsets = [8, 0], sizes = [8, 64], strides = [1, 1]} : vector<16x64xbf16> to vector<8x64xbf16>
    %cst_76 = arith.constant 0.000000e+00 : bf16
    %174 = vector.broadcast %cst_76 : bf16 to vector<1x64xbf16>
    %cst_77 = arith.constant 0.000000e+00 : bf16
    %175 = vector.broadcast %cst_77 : bf16 to vector<2x64xbf16>
    %176 = tpu.concatenate %174, %173, %175 in 0 : vector<1x64xbf16>, vector<8x64xbf16>, vector<2x64xbf16> -> vector<11x64xbf16>
    %177 = vector.extract_strided_slice %176 {offsets = [0, 0], sizes = [8, 64], strides = [1, 1]} : vector<11x64xbf16> to vector<8x64xbf16>
    %178 = vector.extract_strided_slice %176 {offsets = [1, 0], sizes = [8, 64], strides = [1, 1]} : vector<11x64xbf16> to vector<8x64xbf16>
    %179 = vector.extract_strided_slice %176 {offsets = [2, 0], sizes = [8, 64], strides = [1, 1]} : vector<11x64xbf16> to vector<8x64xbf16>
    %180 = vector.extract_strided_slice %176 {offsets = [3, 0], sizes = [8, 64], strides = [1, 1]} : vector<11x64xbf16> to vector<8x64xbf16>
    %181 = tpu.concatenate %177, %178, %179, %180 in 1 : vector<8x64xbf16>, vector<8x64xbf16>, vector<8x64xbf16>, vector<8x64xbf16> -> vector<8x256xbf16>
    %182 = tpu.concatenate %172, %181 in 0 : vector<8x256xbf16>, vector<8x256xbf16> -> vector<16x256xbf16>
    %cst_78 = arith.constant dense<0.000000e+00> : vector<16x256xf32>
    %183 = tpu.matmul %3, %182, %cst_78 {dimension_numbers = #tpu.dot_dimension_numbers<[1], [0], [0], [1], [0, 0, 1, 1], [], []>} : vector<16x16xbf16>, vector<16x256xbf16>, vector<16x256xf32> -> vector<16x256xf32>
    %184 = arith.truncf %183 : vector<16x256xf32> to vector<16x256xbf16>
    %c5 = arith.constant 5 : index
    %c0_79 = arith.constant 0 : index
    %c0_80 = arith.constant 0 : index
    %185 = vector.load %arg3[%c5, %c0_79, %c0_80] : memref<12x256x64xbf16, #tpu.memory_space<vmem>>, vector<1x256x64xbf16>
    %186 = vector.shape_cast %185 : vector<1x256x64xbf16> to vector<256x64xbf16>
    %cst_81 = arith.constant dense<0.000000e+00> : vector<16x64xf32>
    %187 = tpu.matmul %184, %186, %cst_81 {dimension_numbers = #tpu.dot_dimension_numbers<[1], [0], [0], [1], [0, 0, 1, 1], [], []>} : vector<16x256xbf16>, vector<256x64xbf16>, vector<16x64xf32> -> vector<16x64xf32>
    %c5_82 = arith.constant 5 : index
    %c0_83 = arith.constant 0 : index
    %c0_84 = arith.constant 0 : index
    %188 = vector.load %arg4[%c5_82, %c0_83, %c0_84] : memref<12x1x64xf32, #tpu.memory_space<vmem>>, vector<1x1x64xf32>
    %189 = vector.shape_cast %188 : vector<1x1x64xf32> to vector<1x64xf32>
    %190 = vector.broadcast %189 : vector<1x64xf32> to vector<16x64xf32>
    %191 = arith.addf %187, %190 : vector<16x64xf32>
    %cst_85 = arith.constant 0.000000e+00 : f32
    %192 = vector.broadcast %cst_85 : f32 to vector<16x64xf32>
    %193 = arith.cmpf ogt, %191, %192 : vector<16x64xf32>
    %cst_86 = arith.constant 2.000000e-01 : f32
    %194 = vector.broadcast %cst_86 : f32 to vector<16x64xf32>
    %195 = arith.mulf %194, %191 : vector<16x64xf32>
    %196 = arith.select %193, %191, %195 : vector<16x64xi1>, vector<16x64xf32>
    %197 = arith.addf %196, %162 : vector<16x64xf32>
    %198 = arith.truncf %197 : vector<16x64xf32> to vector<16x64xbf16>
    %199 = vector.extract_strided_slice %198 {offsets = [0, 0], sizes = [8, 64], strides = [1, 1]} : vector<16x64xbf16> to vector<8x64xbf16>
    %cst_87 = arith.constant 0.000000e+00 : bf16
    %200 = vector.broadcast %cst_87 : bf16 to vector<1x64xbf16>
    %cst_88 = arith.constant 0.000000e+00 : bf16
    %201 = vector.broadcast %cst_88 : bf16 to vector<1x64xbf16>
    %202 = tpu.concatenate %200, %199, %201 in 0 : vector<1x64xbf16>, vector<8x64xbf16>, vector<1x64xbf16> -> vector<10x64xbf16>
    %203 = vector.extract_strided_slice %202 {offsets = [0, 0], sizes = [8, 64], strides = [1, 1]} : vector<10x64xbf16> to vector<8x64xbf16>
    %204 = vector.extract_strided_slice %202 {offsets = [1, 0], sizes = [8, 64], strides = [1, 1]} : vector<10x64xbf16> to vector<8x64xbf16>
    %205 = vector.extract_strided_slice %202 {offsets = [2, 0], sizes = [8, 64], strides = [1, 1]} : vector<10x64xbf16> to vector<8x64xbf16>
    %206 = tpu.concatenate %203, %204, %205 in 1 : vector<8x64xbf16>, vector<8x64xbf16>, vector<8x64xbf16> -> vector<8x192xbf16>
    %207 = vector.extract_strided_slice %198 {offsets = [8, 0], sizes = [8, 64], strides = [1, 1]} : vector<16x64xbf16> to vector<8x64xbf16>
    %cst_89 = arith.constant 0.000000e+00 : bf16
    %208 = vector.broadcast %cst_89 : bf16 to vector<1x64xbf16>
    %cst_90 = arith.constant 0.000000e+00 : bf16
    %209 = vector.broadcast %cst_90 : bf16 to vector<1x64xbf16>
    %210 = tpu.concatenate %208, %207, %209 in 0 : vector<1x64xbf16>, vector<8x64xbf16>, vector<1x64xbf16> -> vector<10x64xbf16>
    %211 = vector.extract_strided_slice %210 {offsets = [0, 0], sizes = [8, 64], strides = [1, 1]} : vector<10x64xbf16> to vector<8x64xbf16>
    %212 = vector.extract_strided_slice %210 {offsets = [1, 0], sizes = [8, 64], strides = [1, 1]} : vector<10x64xbf16> to vector<8x64xbf16>
    %213 = vector.extract_strided_slice %210 {offsets = [2, 0], sizes = [8, 64], strides = [1, 1]} : vector<10x64xbf16> to vector<8x64xbf16>
    %214 = tpu.concatenate %211, %212, %213 in 1 : vector<8x64xbf16>, vector<8x64xbf16>, vector<8x64xbf16> -> vector<8x192xbf16>
    %215 = tpu.concatenate %206, %214 in 0 : vector<8x192xbf16>, vector<8x192xbf16> -> vector<16x192xbf16>
    %cst_91 = arith.constant dense<0.000000e+00> : vector<32x192xf32>
    %216 = tpu.matmul %7, %215, %cst_91 {dimension_numbers = #tpu.dot_dimension_numbers<[1], [0], [0], [1], [0, 0, 1, 1], [], []>} : vector<32x16xbf16>, vector<16x192xbf16>, vector<32x192xf32> -> vector<32x192xf32>
    %217 = arith.truncf %216 : vector<32x192xf32> to vector<32x192xbf16>
    %c6 = arith.constant 6 : index
    %c0_92 = arith.constant 0 : index
    %c0_93 = arith.constant 0 : index
    %218 = vector.load %arg3[%c6, %c0_92, %c0_93] : memref<12x256x64xbf16, #tpu.memory_space<vmem>>, vector<1x192x64xbf16>
    %219 = vector.shape_cast %218 : vector<1x192x64xbf16> to vector<192x64xbf16>
    %cst_94 = arith.constant dense<0.000000e+00> : vector<32x64xf32>
    %220 = tpu.matmul %217, %219, %cst_94 {dimension_numbers = #tpu.dot_dimension_numbers<[1], [0], [0], [1], [0, 0, 1, 1], [], []>} : vector<32x192xbf16>, vector<192x64xbf16>, vector<32x64xf32> -> vector<32x64xf32>
    %c6_95 = arith.constant 6 : index
    %c0_96 = arith.constant 0 : index
    %c0_97 = arith.constant 0 : index
    %221 = vector.load %arg4[%c6_95, %c0_96, %c0_97] : memref<12x1x64xf32, #tpu.memory_space<vmem>>, vector<1x1x64xf32>
    %222 = vector.shape_cast %221 : vector<1x1x64xf32> to vector<1x64xf32>
    %223 = vector.broadcast %222 : vector<1x64xf32> to vector<32x64xf32>
    %224 = arith.addf %220, %223 : vector<32x64xf32>
    %cst_98 = arith.constant 0.000000e+00 : f32
    %225 = vector.broadcast %cst_98 : f32 to vector<32x64xf32>
    %226 = arith.cmpf ogt, %224, %225 : vector<32x64xf32>
    %cst_99 = arith.constant 2.000000e-01 : f32
    %227 = vector.broadcast %cst_99 : f32 to vector<32x64xf32>
    %228 = arith.mulf %227, %224 : vector<32x64xf32>
    %229 = arith.select %226, %224, %228 : vector<32x64xi1>, vector<32x64xf32>
    %230 = arith.addf %229, %128 : vector<32x64xf32>
    %231 = arith.truncf %230 : vector<32x64xf32> to vector<32x64xbf16>
    %232 = vector.extract_strided_slice %231 {offsets = [0, 0], sizes = [16, 64], strides = [1, 1]} : vector<32x64xbf16> to vector<16x64xbf16>
    %cst_100 = arith.constant 0.000000e+00 : bf16
    %233 = vector.broadcast %cst_100 : bf16 to vector<1x64xbf16>
    %cst_101 = arith.constant 0.000000e+00 : bf16
    %234 = vector.broadcast %cst_101 : bf16 to vector<1x64xbf16>
    %235 = tpu.concatenate %233, %232, %234 in 0 : vector<1x64xbf16>, vector<16x64xbf16>, vector<1x64xbf16> -> vector<18x64xbf16>
    %236 = vector.extract_strided_slice %235 {offsets = [0, 0], sizes = [16, 64], strides = [1, 1]} : vector<18x64xbf16> to vector<16x64xbf16>
    %237 = vector.extract_strided_slice %235 {offsets = [1, 0], sizes = [16, 64], strides = [1, 1]} : vector<18x64xbf16> to vector<16x64xbf16>
    %238 = vector.extract_strided_slice %235 {offsets = [2, 0], sizes = [16, 64], strides = [1, 1]} : vector<18x64xbf16> to vector<16x64xbf16>
    %239 = tpu.concatenate %236, %237, %238 in 1 : vector<16x64xbf16>, vector<16x64xbf16>, vector<16x64xbf16> -> vector<16x192xbf16>
    %240 = vector.extract_strided_slice %231 {offsets = [16, 0], sizes = [16, 64], strides = [1, 1]} : vector<32x64xbf16> to vector<16x64xbf16>
    %cst_102 = arith.constant 0.000000e+00 : bf16
    %241 = vector.broadcast %cst_102 : bf16 to vector<1x64xbf16>
    %cst_103 = arith.constant 0.000000e+00 : bf16
    %242 = vector.broadcast %cst_103 : bf16 to vector<1x64xbf16>
    %243 = tpu.concatenate %241, %240, %242 in 0 : vector<1x64xbf16>, vector<16x64xbf16>, vector<1x64xbf16> -> vector<18x64xbf16>
    %244 = vector.extract_strided_slice %243 {offsets = [0, 0], sizes = [16, 64], strides = [1, 1]} : vector<18x64xbf16> to vector<16x64xbf16>
    %245 = vector.extract_strided_slice %243 {offsets = [1, 0], sizes = [16, 64], strides = [1, 1]} : vector<18x64xbf16> to vector<16x64xbf16>
    %246 = vector.extract_strided_slice %243 {offsets = [2, 0], sizes = [16, 64], strides = [1, 1]} : vector<18x64xbf16> to vector<16x64xbf16>
    %247 = tpu.concatenate %244, %245, %246 in 1 : vector<16x64xbf16>, vector<16x64xbf16>, vector<16x64xbf16> -> vector<16x192xbf16>
    %248 = tpu.concatenate %239, %247 in 0 : vector<16x192xbf16>, vector<16x192xbf16> -> vector<32x192xbf16>
    %c7 = arith.constant 7 : index
    %c0_104 = arith.constant 0 : index
    %c0_105 = arith.constant 0 : index
    %249 = vector.load %arg3[%c7, %c0_104, %c0_105] : memref<12x256x64xbf16, #tpu.memory_space<vmem>>, vector<1x192x64xbf16>
    %250 = vector.shape_cast %249 : vector<1x192x64xbf16> to vector<192x64xbf16>
    %cst_106 = arith.constant dense<0.000000e+00> : vector<32x64xf32>
    %251 = tpu.matmul %248, %250, %cst_106 {dimension_numbers = #tpu.dot_dimension_numbers<[1], [0], [0], [1], [0, 0, 1, 1], [], []>} : vector<32x192xbf16>, vector<192x64xbf16>, vector<32x64xf32> -> vector<32x64xf32>
    %c7_107 = arith.constant 7 : index
    %c0_108 = arith.constant 0 : index
    %c0_109 = arith.constant 0 : index
    %252 = vector.load %arg4[%c7_107, %c0_108, %c0_109] : memref<12x1x64xf32, #tpu.memory_space<vmem>>, vector<1x1x64xf32>
    %253 = vector.shape_cast %252 : vector<1x1x64xf32> to vector<1x64xf32>
    %254 = vector.broadcast %253 : vector<1x64xf32> to vector<32x64xf32>
    %255 = arith.addf %251, %254 : vector<32x64xf32>
    %cst_110 = arith.constant 0.000000e+00 : f32
    %256 = vector.broadcast %cst_110 : f32 to vector<32x64xf32>
    %257 = arith.cmpf ogt, %255, %256 : vector<32x64xf32>
    %cst_111 = arith.constant 2.000000e-01 : f32
    %258 = vector.broadcast %cst_111 : f32 to vector<32x64xf32>
    %259 = arith.mulf %258, %255 : vector<32x64xf32>
    %260 = arith.select %257, %255, %259 : vector<32x64xi1>, vector<32x64xf32>
    %c0_112 = arith.constant 0 : index
    %c0_113 = arith.constant 0 : index
    %261 = vector.load %arg2[%c0_112, %c0_113] : memref<32x16xf32, #tpu.memory_space<vmem>>, vector<32x16xf32>
    %262 = arith.truncf %261 : vector<32x16xf32> to vector<32x16xbf16>
    %263 = vector.extract_strided_slice %262 {offsets = [0, 0], sizes = [16, 16], strides = [1, 1]} : vector<32x16xbf16> to vector<16x16xbf16>
    %cst_114 = arith.constant 0.000000e+00 : bf16
    %264 = vector.broadcast %cst_114 : bf16 to vector<1x16xbf16>
    %cst_115 = arith.constant 0.000000e+00 : bf16
    %265 = vector.broadcast %cst_115 : bf16 to vector<2x16xbf16>
    %266 = tpu.concatenate %264, %263, %265 in 0 : vector<1x16xbf16>, vector<16x16xbf16>, vector<2x16xbf16> -> vector<19x16xbf16>
    %267 = vector.extract_strided_slice %266 {offsets = [0, 0], sizes = [16, 16], strides = [1, 1]} : vector<19x16xbf16> to vector<16x16xbf16>
    %268 = vector.extract_strided_slice %266 {offsets = [1, 0], sizes = [16, 16], strides = [1, 1]} : vector<19x16xbf16> to vector<16x16xbf16>
    %269 = vector.extract_strided_slice %266 {offsets = [2, 0], sizes = [16, 16], strides = [1, 1]} : vector<19x16xbf16> to vector<16x16xbf16>
    %270 = vector.extract_strided_slice %266 {offsets = [3, 0], sizes = [16, 16], strides = [1, 1]} : vector<19x16xbf16> to vector<16x16xbf16>
    %271 = tpu.concatenate %267, %268, %269, %270 in 1 : vector<16x16xbf16>, vector<16x16xbf16>, vector<16x16xbf16>, vector<16x16xbf16> -> vector<16x64xbf16>
    %272 = vector.extract_strided_slice %262 {offsets = [16, 0], sizes = [16, 16], strides = [1, 1]} : vector<32x16xbf16> to vector<16x16xbf16>
    %cst_116 = arith.constant 0.000000e+00 : bf16
    %273 = vector.broadcast %cst_116 : bf16 to vector<1x16xbf16>
    %cst_117 = arith.constant 0.000000e+00 : bf16
    %274 = vector.broadcast %cst_117 : bf16 to vector<2x16xbf16>
    %275 = tpu.concatenate %273, %272, %274 in 0 : vector<1x16xbf16>, vector<16x16xbf16>, vector<2x16xbf16> -> vector<19x16xbf16>
    %276 = vector.extract_strided_slice %275 {offsets = [0, 0], sizes = [16, 16], strides = [1, 1]} : vector<19x16xbf16> to vector<16x16xbf16>
    %277 = vector.extract_strided_slice %275 {offsets = [1, 0], sizes = [16, 16], strides = [1, 1]} : vector<19x16xbf16> to vector<16x16xbf16>
    %278 = vector.extract_strided_slice %275 {offsets = [2, 0], sizes = [16, 16], strides = [1, 1]} : vector<19x16xbf16> to vector<16x16xbf16>
    %279 = vector.extract_strided_slice %275 {offsets = [3, 0], sizes = [16, 16], strides = [1, 1]} : vector<19x16xbf16> to vector<16x16xbf16>
    %280 = tpu.concatenate %276, %277, %278, %279 in 1 : vector<16x16xbf16>, vector<16x16xbf16>, vector<16x16xbf16>, vector<16x16xbf16> -> vector<16x64xbf16>
    %281 = tpu.concatenate %271, %280 in 0 : vector<16x64xbf16>, vector<16x64xbf16> -> vector<32x64xbf16>
    %cst_118 = arith.constant dense<0.000000e+00> : vector<16x64xf32>
    %282 = tpu.matmul %1, %281, %cst_118 {dimension_numbers = #tpu.dot_dimension_numbers<[1], [0], [0], [1], [0, 0, 1, 1], [], []>} : vector<16x32xbf16>, vector<32x64xbf16>, vector<16x64xf32> -> vector<16x64xf32>
    %283 = arith.truncf %282 : vector<16x64xf32> to vector<16x64xbf16>
    %c8 = arith.constant 8 : index
    %c0_119 = arith.constant 0 : index
    %c0_120 = arith.constant 0 : index
    %284 = vector.load %arg3[%c8, %c0_119, %c0_120] : memref<12x256x64xbf16, #tpu.memory_space<vmem>>, vector<1x64x64xbf16>
    %285 = vector.shape_cast %284 : vector<1x64x64xbf16> to vector<64x64xbf16>
    %cst_121 = arith.constant dense<0.000000e+00> : vector<16x64xf32>
    %286 = tpu.matmul %283, %285, %cst_121 {dimension_numbers = #tpu.dot_dimension_numbers<[1], [0], [0], [1], [0, 0, 1, 1], [], []>} : vector<16x64xbf16>, vector<64x64xbf16>, vector<16x64xf32> -> vector<16x64xf32>
    %c8_122 = arith.constant 8 : index
    %c0_123 = arith.constant 0 : index
    %c0_124 = arith.constant 0 : index
    %287 = vector.load %arg4[%c8_122, %c0_123, %c0_124] : memref<12x1x64xf32, #tpu.memory_space<vmem>>, vector<1x1x64xf32>
    %288 = vector.shape_cast %287 : vector<1x1x64xf32> to vector<1x64xf32>
    %289 = vector.broadcast %288 : vector<1x64xf32> to vector<16x64xf32>
    %290 = arith.addf %286, %289 : vector<16x64xf32>
    %cst_125 = arith.constant 0.000000e+00 : f32
    %291 = vector.broadcast %cst_125 : f32 to vector<16x64xf32>
    %292 = arith.cmpf ogt, %290, %291 : vector<16x64xf32>
    %cst_126 = arith.constant 2.000000e-01 : f32
    %293 = vector.broadcast %cst_126 : f32 to vector<16x64xf32>
    %294 = arith.mulf %293, %290 : vector<16x64xf32>
    %295 = arith.select %292, %290, %294 : vector<16x64xi1>, vector<16x64xf32>
    %296 = arith.truncf %295 : vector<16x64xf32> to vector<16x64xbf16>
    %297 = vector.extract_strided_slice %296 {offsets = [0, 0], sizes = [8, 64], strides = [1, 1]} : vector<16x64xbf16> to vector<8x64xbf16>
    %cst_127 = arith.constant 0.000000e+00 : bf16
    %298 = vector.broadcast %cst_127 : bf16 to vector<1x64xbf16>
    %cst_128 = arith.constant 0.000000e+00 : bf16
    %299 = vector.broadcast %cst_128 : bf16 to vector<2x64xbf16>
    %300 = tpu.concatenate %298, %297, %299 in 0 : vector<1x64xbf16>, vector<8x64xbf16>, vector<2x64xbf16> -> vector<11x64xbf16>
    %301 = vector.extract_strided_slice %300 {offsets = [0, 0], sizes = [8, 64], strides = [1, 1]} : vector<11x64xbf16> to vector<8x64xbf16>
    %302 = vector.extract_strided_slice %300 {offsets = [1, 0], sizes = [8, 64], strides = [1, 1]} : vector<11x64xbf16> to vector<8x64xbf16>
    %303 = vector.extract_strided_slice %300 {offsets = [2, 0], sizes = [8, 64], strides = [1, 1]} : vector<11x64xbf16> to vector<8x64xbf16>
    %304 = vector.extract_strided_slice %300 {offsets = [3, 0], sizes = [8, 64], strides = [1, 1]} : vector<11x64xbf16> to vector<8x64xbf16>
    %305 = tpu.concatenate %301, %302, %303, %304 in 1 : vector<8x64xbf16>, vector<8x64xbf16>, vector<8x64xbf16>, vector<8x64xbf16> -> vector<8x256xbf16>
    %306 = vector.extract_strided_slice %296 {offsets = [8, 0], sizes = [8, 64], strides = [1, 1]} : vector<16x64xbf16> to vector<8x64xbf16>
    %cst_129 = arith.constant 0.000000e+00 : bf16
    %307 = vector.broadcast %cst_129 : bf16 to vector<1x64xbf16>
    %cst_130 = arith.constant 0.000000e+00 : bf16
    %308 = vector.broadcast %cst_130 : bf16 to vector<2x64xbf16>
    %309 = tpu.concatenate %307, %306, %308 in 0 : vector<1x64xbf16>, vector<8x64xbf16>, vector<2x64xbf16> -> vector<11x64xbf16>
    %310 = vector.extract_strided_slice %309 {offsets = [0, 0], sizes = [8, 64], strides = [1, 1]} : vector<11x64xbf16> to vector<8x64xbf16>
    %311 = vector.extract_strided_slice %309 {offsets = [1, 0], sizes = [8, 64], strides = [1, 1]} : vector<11x64xbf16> to vector<8x64xbf16>
    %312 = vector.extract_strided_slice %309 {offsets = [2, 0], sizes = [8, 64], strides = [1, 1]} : vector<11x64xbf16> to vector<8x64xbf16>
    %313 = vector.extract_strided_slice %309 {offsets = [3, 0], sizes = [8, 64], strides = [1, 1]} : vector<11x64xbf16> to vector<8x64xbf16>
    %314 = tpu.concatenate %310, %311, %312, %313 in 1 : vector<8x64xbf16>, vector<8x64xbf16>, vector<8x64xbf16>, vector<8x64xbf16> -> vector<8x256xbf16>
    %315 = tpu.concatenate %305, %314 in 0 : vector<8x256xbf16>, vector<8x256xbf16> -> vector<16x256xbf16>
    %cst_131 = arith.constant dense<0.000000e+00> : vector<8x256xf32>
    %316 = tpu.matmul %5, %315, %cst_131 {dimension_numbers = #tpu.dot_dimension_numbers<[1], [0], [0], [1], [0, 0, 1, 1], [], []>} : vector<8x16xbf16>, vector<16x256xbf16>, vector<8x256xf32> -> vector<8x256xf32>
    %317 = arith.truncf %316 : vector<8x256xf32> to vector<8x256xbf16>
    %c9 = arith.constant 9 : index
    %c0_132 = arith.constant 0 : index
    %c0_133 = arith.constant 0 : index
    %318 = vector.load %arg3[%c9, %c0_132, %c0_133] : memref<12x256x64xbf16, #tpu.memory_space<vmem>>, vector<1x256x64xbf16>
    %319 = vector.shape_cast %318 : vector<1x256x64xbf16> to vector<256x64xbf16>
    %cst_134 = arith.constant dense<0.000000e+00> : vector<8x64xf32>
    %320 = tpu.matmul %317, %319, %cst_134 {dimension_numbers = #tpu.dot_dimension_numbers<[1], [0], [0], [1], [0, 0, 1, 1], [], []>} : vector<8x256xbf16>, vector<256x64xbf16>, vector<8x64xf32> -> vector<8x64xf32>
    %c9_135 = arith.constant 9 : index
    %c0_136 = arith.constant 0 : index
    %c0_137 = arith.constant 0 : index
    %321 = vector.load %arg4[%c9_135, %c0_136, %c0_137] : memref<12x1x64xf32, #tpu.memory_space<vmem>>, vector<1x1x64xf32>
    %322 = vector.shape_cast %321 : vector<1x1x64xf32> to vector<1x64xf32>
    %323 = vector.broadcast %322 : vector<1x64xf32> to vector<8x64xf32>
    %324 = arith.addf %320, %323 : vector<8x64xf32>
    %cst_138 = arith.constant 0.000000e+00 : f32
    %325 = vector.broadcast %cst_138 : f32 to vector<8x64xf32>
    %326 = arith.cmpf ogt, %324, %325 : vector<8x64xf32>
    %cst_139 = arith.constant 2.000000e-01 : f32
    %327 = vector.broadcast %cst_139 : f32 to vector<8x64xf32>
    %328 = arith.mulf %327, %324 : vector<8x64xf32>
    %329 = arith.select %326, %324, %328 : vector<8x64xi1>, vector<8x64xf32>
    %330 = arith.truncf %329 : vector<8x64xf32> to vector<8x64xbf16>
    %c0_140 = arith.constant 0 : index
    %c0_141 = arith.constant 0 : index
    %331 = vector.load %arg7[%c0_140, %c0_141] : memref<64x8xbf16, #tpu.memory_space<vmem>>, vector<64x4xbf16>
    %cst_142 = arith.constant dense<0.000000e+00> : vector<8x4xf32>
    %332 = tpu.matmul %330, %331, %cst_142 {dimension_numbers = #tpu.dot_dimension_numbers<[1], [0], [0], [1], [0, 0, 1, 1], [], []>} : vector<8x64xbf16>, vector<64x4xbf16>, vector<8x4xf32> -> vector<8x4xf32>
    %c0_143 = arith.constant 0 : index
    %c0_144 = arith.constant 0 : index
    %333 = vector.load %arg8[%c0_143, %c0_144] : memref<1x8xf32, #tpu.memory_space<vmem>>, vector<1x4xf32>
    %334 = vector.broadcast %333 : vector<1x4xf32> to vector<8x4xf32>
    %335 = arith.addf %332, %334 : vector<8x4xf32>
    %336 = vector.extract_strided_slice %335 {offsets = [0, 0], sizes = [4, 4], strides = [1, 1]} : vector<8x4xf32> to vector<4x4xf32>
    %cst_145 = arith.constant dense<0.000000e+00> : vector<4xf32>
    %337 = vector.multi_reduction <add>, %336, %cst_145 [0] : vector<4x4xf32> to vector<4xf32>
    %338 = vector.shape_cast %337 : vector<4xf32> to vector<1x4xf32>
    %cst_146 = arith.constant 4.000000e+00 : f32
    %339 = vector.broadcast %cst_146 : f32 to vector<1x4xf32>
    %340 = arith.divf %338, %339 : vector<1x4xf32>
    %341 = vector.extract_strided_slice %335 {offsets = [4, 0], sizes = [4, 4], strides = [1, 1]} : vector<8x4xf32> to vector<4x4xf32>
    %cst_147 = arith.constant dense<0.000000e+00> : vector<4xf32>
    %342 = vector.multi_reduction <add>, %341, %cst_147 [0] : vector<4x4xf32> to vector<4xf32>
    %343 = vector.shape_cast %342 : vector<4xf32> to vector<1x4xf32>
    %cst_148 = arith.constant 4.000000e+00 : f32
    %344 = vector.broadcast %cst_148 : f32 to vector<1x4xf32>
    %345 = arith.divf %343, %344 : vector<1x4xf32>
    %346 = tpu.concatenate %340, %345 in 0 : vector<1x4xf32>, vector<1x4xf32> -> vector<2x4xf32>
    %cst_149 = arith.constant dense<0xFF800000> : vector<2xf32>
    %347 = vector.multi_reduction <maximumf>, %346, %cst_149 [1] : vector<2x4xf32> to vector<2xf32>
    %348 = vector.shape_cast %347 : vector<2xf32> to vector<2x1xf32>
    %349 = vector.broadcast %348 : vector<2x1xf32> to vector<2x4xf32>
    %350 = arith.subf %346, %349 : vector<2x4xf32>
    %351 = math.exp %350 : vector<2x4xf32>
    %cst_150 = arith.constant dense<0.000000e+00> : vector<2xf32>
    %352 = vector.multi_reduction <add>, %351, %cst_150 [1] : vector<2x4xf32> to vector<2xf32>
    %353 = vector.shape_cast %352 : vector<2xf32> to vector<2x1xf32>
    %354 = vector.broadcast %353 : vector<2x1xf32> to vector<2x4xf32>
    %355 = arith.divf %351, %354 : vector<2x4xf32>
    %356 = arith.truncf %355 : vector<2x4xf32> to vector<2x4xbf16>
    %c0_151 = arith.constant 0 : index
    %c0_152 = arith.constant 0 : index
    %357 = vector.load %arg11[%c0_151, %c0_152] : memref<4x8xbf16, #tpu.memory_space<vmem>>, vector<4x8xbf16>
    %cst_153 = arith.constant dense<0.000000e+00> : vector<2x8xf32>
    %358 = tpu.matmul %356, %357, %cst_153 {dimension_numbers = #tpu.dot_dimension_numbers<[1], [0], [0], [1], [0, 0, 1, 1], [], []>} : vector<2x4xbf16>, vector<4x8xbf16>, vector<2x8xf32> -> vector<2x8xf32>
    %359 = vector.extract_strided_slice %358 {offsets = [0, 0], sizes = [1, 8], strides = [1, 1]} : vector<2x8xf32> to vector<1x8xf32>
    %360 = vector.shape_cast %359 : vector<1x8xf32> to vector<1x8xf32>
    %361 = vector.broadcast %360 : vector<1x8xf32> to vector<16x8xf32>
    %362 = vector.extract_strided_slice %358 {offsets = [1, 0], sizes = [1, 8], strides = [1, 1]} : vector<2x8xf32> to vector<1x8xf32>
    %363 = vector.shape_cast %362 : vector<1x8xf32> to vector<1x8xf32>
    %364 = vector.broadcast %363 : vector<1x8xf32> to vector<16x8xf32>
    %365 = tpu.concatenate %361, %364 in 0 : vector<16x8xf32>, vector<16x8xf32> -> vector<32x8xf32>
    %366 = tpu.concatenate %260, %365 in 1 : vector<32x64xf32>, vector<32x8xf32> -> vector<32x72xf32>
    %367 = arith.truncf %366 : vector<32x72xf32> to vector<32x72xbf16>
    %368 = vector.extract_strided_slice %367 {offsets = [0, 0], sizes = [16, 72], strides = [1, 1]} : vector<32x72xbf16> to vector<16x72xbf16>
    %cst_154 = arith.constant 0.000000e+00 : bf16
    %369 = vector.broadcast %cst_154 : bf16 to vector<1x72xbf16>
    %cst_155 = arith.constant 0.000000e+00 : bf16
    %370 = vector.broadcast %cst_155 : bf16 to vector<1x72xbf16>
    %371 = tpu.concatenate %369, %368, %370 in 0 : vector<1x72xbf16>, vector<16x72xbf16>, vector<1x72xbf16> -> vector<18x72xbf16>
    %372 = vector.extract_strided_slice %371 {offsets = [0, 0], sizes = [16, 72], strides = [1, 1]} : vector<18x72xbf16> to vector<16x72xbf16>
    %373 = vector.extract_strided_slice %371 {offsets = [1, 0], sizes = [16, 72], strides = [1, 1]} : vector<18x72xbf16> to vector<16x72xbf16>
    %374 = vector.extract_strided_slice %371 {offsets = [2, 0], sizes = [16, 72], strides = [1, 1]} : vector<18x72xbf16> to vector<16x72xbf16>
    %375 = tpu.concatenate %372, %373, %374 in 1 : vector<16x72xbf16>, vector<16x72xbf16>, vector<16x72xbf16> -> vector<16x216xbf16>
    %376 = vector.extract_strided_slice %367 {offsets = [16, 0], sizes = [16, 72], strides = [1, 1]} : vector<32x72xbf16> to vector<16x72xbf16>
    %cst_156 = arith.constant 0.000000e+00 : bf16
    %377 = vector.broadcast %cst_156 : bf16 to vector<1x72xbf16>
    %cst_157 = arith.constant 0.000000e+00 : bf16
    %378 = vector.broadcast %cst_157 : bf16 to vector<1x72xbf16>
    %379 = tpu.concatenate %377, %376, %378 in 0 : vector<1x72xbf16>, vector<16x72xbf16>, vector<1x72xbf16> -> vector<18x72xbf16>
    %380 = vector.extract_strided_slice %379 {offsets = [0, 0], sizes = [16, 72], strides = [1, 1]} : vector<18x72xbf16> to vector<16x72xbf16>
    %381 = vector.extract_strided_slice %379 {offsets = [1, 0], sizes = [16, 72], strides = [1, 1]} : vector<18x72xbf16> to vector<16x72xbf16>
    %382 = vector.extract_strided_slice %379 {offsets = [2, 0], sizes = [16, 72], strides = [1, 1]} : vector<18x72xbf16> to vector<16x72xbf16>
    %383 = tpu.concatenate %380, %381, %382 in 1 : vector<16x72xbf16>, vector<16x72xbf16>, vector<16x72xbf16> -> vector<16x216xbf16>
    %384 = tpu.concatenate %375, %383 in 0 : vector<16x216xbf16>, vector<16x216xbf16> -> vector<32x216xbf16>
    %c10 = arith.constant 10 : index
    %c0_158 = arith.constant 0 : index
    %c0_159 = arith.constant 0 : index
    %385 = vector.load %arg3[%c10, %c0_158, %c0_159] : memref<12x256x64xbf16, #tpu.memory_space<vmem>>, vector<1x216x64xbf16>
    %386 = vector.shape_cast %385 : vector<1x216x64xbf16> to vector<216x64xbf16>
    %cst_160 = arith.constant dense<0.000000e+00> : vector<32x64xf32>
    %387 = tpu.matmul %384, %386, %cst_160 {dimension_numbers = #tpu.dot_dimension_numbers<[1], [0], [0], [1], [0, 0, 1, 1], [], []>} : vector<32x216xbf16>, vector<216x64xbf16>, vector<32x64xf32> -> vector<32x64xf32>
    %c10_161 = arith.constant 10 : index
    %c0_162 = arith.constant 0 : index
    %c0_163 = arith.constant 0 : index
    %388 = vector.load %arg4[%c10_161, %c0_162, %c0_163] : memref<12x1x64xf32, #tpu.memory_space<vmem>>, vector<1x1x64xf32>
    %389 = vector.shape_cast %388 : vector<1x1x64xf32> to vector<1x64xf32>
    %390 = vector.broadcast %389 : vector<1x64xf32> to vector<32x64xf32>
    %391 = arith.addf %387, %390 : vector<32x64xf32>
    %cst_164 = arith.constant 0.000000e+00 : f32
    %392 = vector.broadcast %cst_164 : f32 to vector<32x64xf32>
    %393 = arith.cmpf ogt, %391, %392 : vector<32x64xf32>
    %cst_165 = arith.constant 2.000000e-01 : f32
    %394 = vector.broadcast %cst_165 : f32 to vector<32x64xf32>
    %395 = arith.mulf %394, %391 : vector<32x64xf32>
    %396 = arith.select %393, %391, %395 : vector<32x64xi1>, vector<32x64xf32>
    %397 = arith.truncf %396 : vector<32x64xf32> to vector<32x64xbf16>
    %398 = vector.extract_strided_slice %397 {offsets = [0, 0], sizes = [16, 64], strides = [1, 1]} : vector<32x64xbf16> to vector<16x64xbf16>
    %cst_166 = arith.constant 0.000000e+00 : bf16
    %399 = vector.broadcast %cst_166 : bf16 to vector<1x64xbf16>
    %cst_167 = arith.constant 0.000000e+00 : bf16
    %400 = vector.broadcast %cst_167 : bf16 to vector<1x64xbf16>
    %401 = tpu.concatenate %399, %398, %400 in 0 : vector<1x64xbf16>, vector<16x64xbf16>, vector<1x64xbf16> -> vector<18x64xbf16>
    %402 = vector.extract_strided_slice %401 {offsets = [0, 0], sizes = [16, 64], strides = [1, 1]} : vector<18x64xbf16> to vector<16x64xbf16>
    %403 = vector.extract_strided_slice %401 {offsets = [1, 0], sizes = [16, 64], strides = [1, 1]} : vector<18x64xbf16> to vector<16x64xbf16>
    %404 = vector.extract_strided_slice %401 {offsets = [2, 0], sizes = [16, 64], strides = [1, 1]} : vector<18x64xbf16> to vector<16x64xbf16>
    %405 = tpu.concatenate %402, %403, %404 in 1 : vector<16x64xbf16>, vector<16x64xbf16>, vector<16x64xbf16> -> vector<16x192xbf16>
    %406 = vector.extract_strided_slice %397 {offsets = [16, 0], sizes = [16, 64], strides = [1, 1]} : vector<32x64xbf16> to vector<16x64xbf16>
    %cst_168 = arith.constant 0.000000e+00 : bf16
    %407 = vector.broadcast %cst_168 : bf16 to vector<1x64xbf16>
    %cst_169 = arith.constant 0.000000e+00 : bf16
    %408 = vector.broadcast %cst_169 : bf16 to vector<1x64xbf16>
    %409 = tpu.concatenate %407, %406, %408 in 0 : vector<1x64xbf16>, vector<16x64xbf16>, vector<1x64xbf16> -> vector<18x64xbf16>
    %410 = vector.extract_strided_slice %409 {offsets = [0, 0], sizes = [16, 64], strides = [1, 1]} : vector<18x64xbf16> to vector<16x64xbf16>
    %411 = vector.extract_strided_slice %409 {offsets = [1, 0], sizes = [16, 64], strides = [1, 1]} : vector<18x64xbf16> to vector<16x64xbf16>
    %412 = vector.extract_strided_slice %409 {offsets = [2, 0], sizes = [16, 64], strides = [1, 1]} : vector<18x64xbf16> to vector<16x64xbf16>
    %413 = tpu.concatenate %410, %411, %412 in 1 : vector<16x64xbf16>, vector<16x64xbf16>, vector<16x64xbf16> -> vector<16x192xbf16>
    %414 = tpu.concatenate %405, %413 in 0 : vector<16x192xbf16>, vector<16x192xbf16> -> vector<32x192xbf16>
    %c11 = arith.constant 11 : index
    %c0_170 = arith.constant 0 : index
    %c0_171 = arith.constant 0 : index
    %415 = vector.load %arg3[%c11, %c0_170, %c0_171] : memref<12x256x64xbf16, #tpu.memory_space<vmem>>, vector<1x192x64xbf16>
    %416 = vector.shape_cast %415 : vector<1x192x64xbf16> to vector<192x64xbf16>
    %cst_172 = arith.constant dense<0.000000e+00> : vector<32x64xf32>
    %417 = tpu.matmul %414, %416, %cst_172 {dimension_numbers = #tpu.dot_dimension_numbers<[1], [0], [0], [1], [0, 0, 1, 1], [], []>} : vector<32x192xbf16>, vector<192x64xbf16>, vector<32x64xf32> -> vector<32x64xf32>
    %c11_173 = arith.constant 11 : index
    %c0_174 = arith.constant 0 : index
    %c0_175 = arith.constant 0 : index
    %418 = vector.load %arg4[%c11_173, %c0_174, %c0_175] : memref<12x1x64xf32, #tpu.memory_space<vmem>>, vector<1x1x64xf32>
    %419 = vector.shape_cast %418 : vector<1x1x64xf32> to vector<1x64xf32>
    %420 = vector.broadcast %419 : vector<1x64xf32> to vector<32x64xf32>
    %421 = arith.addf %417, %420 : vector<32x64xf32>
    %cst_176 = arith.constant 0.000000e+00 : f32
    %422 = vector.broadcast %cst_176 : f32 to vector<32x64xf32>
    %423 = arith.cmpf ogt, %421, %422 : vector<32x64xf32>
    %cst_177 = arith.constant 2.000000e-01 : f32
    %424 = vector.broadcast %cst_177 : f32 to vector<32x64xf32>
    %425 = arith.mulf %424, %421 : vector<32x64xf32>
    %426 = arith.select %423, %421, %425 : vector<32x64xi1>, vector<32x64xf32>
    %427 = arith.truncf %426 : vector<32x64xf32> to vector<32x64xbf16>
    %c0_178 = arith.constant 0 : index
    %c4_179 = arith.constant 4 : index
    %428 = vector.load %arg7[%c0_178, %c4_179] : memref<64x8xbf16, #tpu.memory_space<vmem>>, vector<64x4xbf16>
    %cst_180 = arith.constant dense<0.000000e+00> : vector<32x4xf32>
    %429 = tpu.matmul %427, %428, %cst_180 {dimension_numbers = #tpu.dot_dimension_numbers<[1], [0], [0], [1], [0, 0, 1, 1], [], []>} : vector<32x64xbf16>, vector<64x4xbf16>, vector<32x4xf32> -> vector<32x4xf32>
    %c0_181 = arith.constant 0 : index
    %c4_182 = arith.constant 4 : index
    %430 = vector.load %arg8[%c0_181, %c4_182] : memref<1x8xf32, #tpu.memory_space<vmem>>, vector<1x4xf32>
    %431 = vector.broadcast %430 : vector<1x4xf32> to vector<32x4xf32>
    %432 = arith.addf %429, %431 : vector<32x4xf32>
    %cst_183 = arith.constant dense<0xFF800000> : vector<32xf32>
    %433 = vector.multi_reduction <maximumf>, %432, %cst_183 [1] : vector<32x4xf32> to vector<32xf32>
    %434 = vector.shape_cast %433 : vector<32xf32> to vector<32x1xf32>
    %435 = vector.broadcast %434 : vector<32x1xf32> to vector<32x4xf32>
    %436 = arith.subf %432, %435 : vector<32x4xf32>
    %437 = math.exp %436 : vector<32x4xf32>
    %cst_184 = arith.constant dense<0.000000e+00> : vector<32xf32>
    %438 = vector.multi_reduction <add>, %437, %cst_184 [1] : vector<32x4xf32> to vector<32xf32>
    %439 = vector.shape_cast %438 : vector<32xf32> to vector<32x1xf32>
    %440 = vector.broadcast %439 : vector<32x1xf32> to vector<32x4xf32>
    %441 = arith.divf %437, %440 : vector<32x4xf32>
    %c0_185 = arith.constant 0 : index
    %c0_186 = arith.constant 0 : index
    %c0_187 = arith.constant 0 : index
    %442 = vector.load %arg5[%c0_185, %c0_186, %c0_187] : memref<4x768x256xbf16, #tpu.memory_space<vmem>>, vector<1x216x256xbf16>
    %443 = vector.shape_cast %442 : vector<1x216x256xbf16> to vector<216x256xbf16>
    %cst_188 = arith.constant dense<0.000000e+00> : vector<32x256xf32>
    %444 = tpu.matmul %384, %443, %cst_188 {dimension_numbers = #tpu.dot_dimension_numbers<[1], [0], [0], [1], [0, 0, 1, 1], [], []>} : vector<32x216xbf16>, vector<216x256xbf16>, vector<32x256xf32> -> vector<32x256xf32>
    %c0_189 = arith.constant 0 : index
    %c0_190 = arith.constant 0 : index
    %c0_191 = arith.constant 0 : index
    %445 = vector.load %arg6[%c0_189, %c0_190, %c0_191] : memref<4x1x256xf32, #tpu.memory_space<vmem>>, vector<1x1x256xf32>
    %446 = vector.shape_cast %445 : vector<1x1x256xf32> to vector<1x256xf32>
    %447 = vector.broadcast %446 : vector<1x256xf32> to vector<32x256xf32>
    %448 = arith.addf %444, %447 : vector<32x256xf32>
    %cst_192 = arith.constant 0.000000e+00 : f32
    %449 = vector.broadcast %cst_192 : f32 to vector<32x256xf32>
    %450 = arith.cmpf ogt, %448, %449 : vector<32x256xf32>
    %cst_193 = arith.constant 2.000000e-01 : f32
    %451 = vector.broadcast %cst_193 : f32 to vector<32x256xf32>
    %452 = arith.mulf %451, %448 : vector<32x256xf32>
    %453 = arith.select %450, %448, %452 : vector<32x256xi1>, vector<32x256xf32>
    %454 = arith.truncf %453 : vector<32x256xf32> to vector<32x256xbf16>
    %455 = vector.extract_strided_slice %454 {offsets = [0, 0], sizes = [16, 256], strides = [1, 1]} : vector<32x256xbf16> to vector<16x256xbf16>
    %cst_194 = arith.constant 0.000000e+00 : bf16
    %456 = vector.broadcast %cst_194 : bf16 to vector<1x256xbf16>
    %cst_195 = arith.constant 0.000000e+00 : bf16
    %457 = vector.broadcast %cst_195 : bf16 to vector<1x256xbf16>
    %458 = tpu.concatenate %456, %455, %457 in 0 : vector<1x256xbf16>, vector<16x256xbf16>, vector<1x256xbf16> -> vector<18x256xbf16>
    %459 = vector.extract_strided_slice %458 {offsets = [0, 0], sizes = [16, 256], strides = [1, 1]} : vector<18x256xbf16> to vector<16x256xbf16>
    %460 = vector.extract_strided_slice %458 {offsets = [1, 0], sizes = [16, 256], strides = [1, 1]} : vector<18x256xbf16> to vector<16x256xbf16>
    %461 = vector.extract_strided_slice %458 {offsets = [2, 0], sizes = [16, 256], strides = [1, 1]} : vector<18x256xbf16> to vector<16x256xbf16>
    %462 = tpu.concatenate %459, %460, %461 in 1 : vector<16x256xbf16>, vector<16x256xbf16>, vector<16x256xbf16> -> vector<16x768xbf16>
    %463 = vector.extract_strided_slice %454 {offsets = [16, 0], sizes = [16, 256], strides = [1, 1]} : vector<32x256xbf16> to vector<16x256xbf16>
    %cst_196 = arith.constant 0.000000e+00 : bf16
    %464 = vector.broadcast %cst_196 : bf16 to vector<1x256xbf16>
    %cst_197 = arith.constant 0.000000e+00 : bf16
    %465 = vector.broadcast %cst_197 : bf16 to vector<1x256xbf16>
    %466 = tpu.concatenate %464, %463, %465 in 0 : vector<1x256xbf16>, vector<16x256xbf16>, vector<1x256xbf16> -> vector<18x256xbf16>
    %467 = vector.extract_strided_slice %466 {offsets = [0, 0], sizes = [16, 256], strides = [1, 1]} : vector<18x256xbf16> to vector<16x256xbf16>
    %468 = vector.extract_strided_slice %466 {offsets = [1, 0], sizes = [16, 256], strides = [1, 1]} : vector<18x256xbf16> to vector<16x256xbf16>
    %469 = vector.extract_strided_slice %466 {offsets = [2, 0], sizes = [16, 256], strides = [1, 1]} : vector<18x256xbf16> to vector<16x256xbf16>
    %470 = tpu.concatenate %467, %468, %469 in 1 : vector<16x256xbf16>, vector<16x256xbf16>, vector<16x256xbf16> -> vector<16x768xbf16>
    %471 = tpu.concatenate %462, %470 in 0 : vector<16x768xbf16>, vector<16x768xbf16> -> vector<32x768xbf16>
    %c1_198 = arith.constant 1 : index
    %c0_199 = arith.constant 0 : index
    %c0_200 = arith.constant 0 : index
    %472 = vector.load %arg5[%c1_198, %c0_199, %c0_200] : memref<4x768x256xbf16, #tpu.memory_space<vmem>>, vector<1x768x256xbf16>
    %473 = vector.shape_cast %472 : vector<1x768x256xbf16> to vector<768x256xbf16>
    %cst_201 = arith.constant dense<0.000000e+00> : vector<32x256xf32>
    %474 = tpu.matmul %471, %473, %cst_201 {dimension_numbers = #tpu.dot_dimension_numbers<[1], [0], [0], [1], [0, 0, 1, 1], [], []>} : vector<32x768xbf16>, vector<768x256xbf16>, vector<32x256xf32> -> vector<32x256xf32>
    %c1_202 = arith.constant 1 : index
    %c0_203 = arith.constant 0 : index
    %c0_204 = arith.constant 0 : index
    %475 = vector.load %arg6[%c1_202, %c0_203, %c0_204] : memref<4x1x256xf32, #tpu.memory_space<vmem>>, vector<1x1x256xf32>
    %476 = vector.shape_cast %475 : vector<1x1x256xf32> to vector<1x256xf32>
    %477 = vector.broadcast %476 : vector<1x256xf32> to vector<32x256xf32>
    %478 = arith.addf %474, %477 : vector<32x256xf32>
    %cst_205 = arith.constant 0.000000e+00 : f32
    %479 = vector.broadcast %cst_205 : f32 to vector<32x256xf32>
    %480 = arith.cmpf ogt, %478, %479 : vector<32x256xf32>
    %cst_206 = arith.constant 2.000000e-01 : f32
    %481 = vector.broadcast %cst_206 : f32 to vector<32x256xf32>
    %482 = arith.mulf %481, %478 : vector<32x256xf32>
    %483 = arith.select %480, %478, %482 : vector<32x256xi1>, vector<32x256xf32>
    %484 = arith.truncf %483 : vector<32x256xf32> to vector<32x256xbf16>
    %485 = vector.extract_strided_slice %484 {offsets = [0, 0], sizes = [16, 256], strides = [1, 1]} : vector<32x256xbf16> to vector<16x256xbf16>
    %cst_207 = arith.constant 0.000000e+00 : bf16
    %486 = vector.broadcast %cst_207 : bf16 to vector<1x256xbf16>
    %cst_208 = arith.constant 0.000000e+00 : bf16
    %487 = vector.broadcast %cst_208 : bf16 to vector<1x256xbf16>
    %488 = tpu.concatenate %486, %485, %487 in 0 : vector<1x256xbf16>, vector<16x256xbf16>, vector<1x256xbf16> -> vector<18x256xbf16>
    %489 = vector.extract_strided_slice %488 {offsets = [0, 0], sizes = [16, 256], strides = [1, 1]} : vector<18x256xbf16> to vector<16x256xbf16>
    %490 = vector.extract_strided_slice %488 {offsets = [1, 0], sizes = [16, 256], strides = [1, 1]} : vector<18x256xbf16> to vector<16x256xbf16>
    %491 = vector.extract_strided_slice %488 {offsets = [2, 0], sizes = [16, 256], strides = [1, 1]} : vector<18x256xbf16> to vector<16x256xbf16>
    %492 = tpu.concatenate %489, %490, %491 in 1 : vector<16x256xbf16>, vector<16x256xbf16>, vector<16x256xbf16> -> vector<16x768xbf16>
    %493 = vector.extract_strided_slice %484 {offsets = [16, 0], sizes = [16, 256], strides = [1, 1]} : vector<32x256xbf16> to vector<16x256xbf16>
    %cst_209 = arith.constant 0.000000e+00 : bf16
    %494 = vector.broadcast %cst_209 : bf16 to vector<1x256xbf16>
    %cst_210 = arith.constant 0.000000e+00 : bf16
    %495 = vector.broadcast %cst_210 : bf16 to vector<1x256xbf16>
    %496 = tpu.concatenate %494, %493, %495 in 0 : vector<1x256xbf16>, vector<16x256xbf16>, vector<1x256xbf16> -> vector<18x256xbf16>
    %497 = vector.extract_strided_slice %496 {offsets = [0, 0], sizes = [16, 256], strides = [1, 1]} : vector<18x256xbf16> to vector<16x256xbf16>
    %498 = vector.extract_strided_slice %496 {offsets = [1, 0], sizes = [16, 256], strides = [1, 1]} : vector<18x256xbf16> to vector<16x256xbf16>
    %499 = vector.extract_strided_slice %496 {offsets = [2, 0], sizes = [16, 256], strides = [1, 1]} : vector<18x256xbf16> to vector<16x256xbf16>
    %500 = tpu.concatenate %497, %498, %499 in 1 : vector<16x256xbf16>, vector<16x256xbf16>, vector<16x256xbf16> -> vector<16x768xbf16>
    %501 = tpu.concatenate %492, %500 in 0 : vector<16x768xbf16>, vector<16x768xbf16> -> vector<32x768xbf16>
    %c2_211 = arith.constant 2 : index
    %c0_212 = arith.constant 0 : index
    %c0_213 = arith.constant 0 : index
    %502 = vector.load %arg5[%c2_211, %c0_212, %c0_213] : memref<4x768x256xbf16, #tpu.memory_space<vmem>>, vector<1x768x256xbf16>
    %503 = vector.shape_cast %502 : vector<1x768x256xbf16> to vector<768x256xbf16>
    %cst_214 = arith.constant dense<0.000000e+00> : vector<32x256xf32>
    %504 = tpu.matmul %501, %503, %cst_214 {dimension_numbers = #tpu.dot_dimension_numbers<[1], [0], [0], [1], [0, 0, 1, 1], [], []>} : vector<32x768xbf16>, vector<768x256xbf16>, vector<32x256xf32> -> vector<32x256xf32>
    %c2_215 = arith.constant 2 : index
    %c0_216 = arith.constant 0 : index
    %c0_217 = arith.constant 0 : index
    %505 = vector.load %arg6[%c2_215, %c0_216, %c0_217] : memref<4x1x256xf32, #tpu.memory_space<vmem>>, vector<1x1x256xf32>
    %506 = vector.shape_cast %505 : vector<1x1x256xf32> to vector<1x256xf32>
    %507 = vector.broadcast %506 : vector<1x256xf32> to vector<32x256xf32>
    %508 = arith.addf %504, %507 : vector<32x256xf32>
    %cst_218 = arith.constant 0.000000e+00 : f32
    %509 = vector.broadcast %cst_218 : f32 to vector<32x256xf32>
    %510 = arith.cmpf ogt, %508, %509 : vector<32x256xf32>
    %cst_219 = arith.constant 2.000000e-01 : f32
    %511 = vector.broadcast %cst_219 : f32 to vector<32x256xf32>
    %512 = arith.mulf %511, %508 : vector<32x256xf32>
    %513 = arith.select %510, %508, %512 : vector<32x256xi1>, vector<32x256xf32>
    %514 = arith.truncf %513 : vector<32x256xf32> to vector<32x256xbf16>
    %515 = vector.extract_strided_slice %514 {offsets = [0, 0], sizes = [16, 256], strides = [1, 1]} : vector<32x256xbf16> to vector<16x256xbf16>
    %cst_220 = arith.constant 0.000000e+00 : bf16
    %516 = vector.broadcast %cst_220 : bf16 to vector<1x256xbf16>
    %cst_221 = arith.constant 0.000000e+00 : bf16
    %517 = vector.broadcast %cst_221 : bf16 to vector<1x256xbf16>
    %518 = tpu.concatenate %516, %515, %517 in 0 : vector<1x256xbf16>, vector<16x256xbf16>, vector<1x256xbf16> -> vector<18x256xbf16>
    %519 = vector.extract_strided_slice %518 {offsets = [0, 0], sizes = [16, 256], strides = [1, 1]} : vector<18x256xbf16> to vector<16x256xbf16>
    %520 = vector.extract_strided_slice %518 {offsets = [1, 0], sizes = [16, 256], strides = [1, 1]} : vector<18x256xbf16> to vector<16x256xbf16>
    %521 = vector.extract_strided_slice %518 {offsets = [2, 0], sizes = [16, 256], strides = [1, 1]} : vector<18x256xbf16> to vector<16x256xbf16>
    %522 = tpu.concatenate %519, %520, %521 in 1 : vector<16x256xbf16>, vector<16x256xbf16>, vector<16x256xbf16> -> vector<16x768xbf16>
    %523 = vector.extract_strided_slice %514 {offsets = [16, 0], sizes = [16, 256], strides = [1, 1]} : vector<32x256xbf16> to vector<16x256xbf16>
    %cst_222 = arith.constant 0.000000e+00 : bf16
    %524 = vector.broadcast %cst_222 : bf16 to vector<1x256xbf16>
    %cst_223 = arith.constant 0.000000e+00 : bf16
    %525 = vector.broadcast %cst_223 : bf16 to vector<1x256xbf16>
    %526 = tpu.concatenate %524, %523, %525 in 0 : vector<1x256xbf16>, vector<16x256xbf16>, vector<1x256xbf16> -> vector<18x256xbf16>
    %527 = vector.extract_strided_slice %526 {offsets = [0, 0], sizes = [16, 256], strides = [1, 1]} : vector<18x256xbf16> to vector<16x256xbf16>
    %528 = vector.extract_strided_slice %526 {offsets = [1, 0], sizes = [16, 256], strides = [1, 1]} : vector<18x256xbf16> to vector<16x256xbf16>
    %529 = vector.extract_strided_slice %526 {offsets = [2, 0], sizes = [16, 256], strides = [1, 1]} : vector<18x256xbf16> to vector<16x256xbf16>
    %530 = tpu.concatenate %527, %528, %529 in 1 : vector<16x256xbf16>, vector<16x256xbf16>, vector<16x256xbf16> -> vector<16x768xbf16>
    %531 = tpu.concatenate %522, %530 in 0 : vector<16x768xbf16>, vector<16x768xbf16> -> vector<32x768xbf16>
    %c3_224 = arith.constant 3 : index
    %c0_225 = arith.constant 0 : index
    %c0_226 = arith.constant 0 : index
    %532 = vector.load %arg5[%c3_224, %c0_225, %c0_226] : memref<4x768x256xbf16, #tpu.memory_space<vmem>>, vector<1x768x256xbf16>
    %533 = vector.shape_cast %532 : vector<1x768x256xbf16> to vector<768x256xbf16>
    %cst_227 = arith.constant dense<0.000000e+00> : vector<32x256xf32>
    %534 = tpu.matmul %531, %533, %cst_227 {dimension_numbers = #tpu.dot_dimension_numbers<[1], [0], [0], [1], [0, 0, 1, 1], [], []>} : vector<32x768xbf16>, vector<768x256xbf16>, vector<32x256xf32> -> vector<32x256xf32>
    %c3_228 = arith.constant 3 : index
    %c0_229 = arith.constant 0 : index
    %c0_230 = arith.constant 0 : index
    %535 = vector.load %arg6[%c3_228, %c0_229, %c0_230] : memref<4x1x256xf32, #tpu.memory_space<vmem>>, vector<1x1x256xf32>
    %536 = vector.shape_cast %535 : vector<1x1x256xf32> to vector<1x256xf32>
    %537 = vector.broadcast %536 : vector<1x256xf32> to vector<32x256xf32>
    %538 = arith.addf %534, %537 : vector<32x256xf32>
    %cst_231 = arith.constant 0.000000e+00 : f32
    %539 = vector.broadcast %cst_231 : f32 to vector<32x256xf32>
    %540 = arith.cmpf ogt, %538, %539 : vector<32x256xf32>
    %cst_232 = arith.constant 2.000000e-01 : f32
    %541 = vector.broadcast %cst_232 : f32 to vector<32x256xf32>
    %542 = arith.mulf %541, %538 : vector<32x256xf32>
    %543 = arith.select %540, %538, %542 : vector<32x256xi1>, vector<32x256xf32>
    %544 = vector.extract_strided_slice %441 {offsets = [0, 0], sizes = [32, 1], strides = [1, 1]} : vector<32x4xf32> to vector<32x1xf32>
    %545 = vector.shape_cast %544 : vector<32x1xf32> to vector<32x1xf32>
    %546 = vector.broadcast %545 : vector<32x1xf32> to vector<32x64xf32>
    %547 = vector.extract_strided_slice %441 {offsets = [0, 1], sizes = [32, 1], strides = [1, 1]} : vector<32x4xf32> to vector<32x1xf32>
    %548 = vector.shape_cast %547 : vector<32x1xf32> to vector<32x1xf32>
    %549 = vector.broadcast %548 : vector<32x1xf32> to vector<32x64xf32>
    %550 = vector.extract_strided_slice %441 {offsets = [0, 2], sizes = [32, 1], strides = [1, 1]} : vector<32x4xf32> to vector<32x1xf32>
    %551 = vector.shape_cast %550 : vector<32x1xf32> to vector<32x1xf32>
    %552 = vector.broadcast %551 : vector<32x1xf32> to vector<32x64xf32>
    %553 = vector.extract_strided_slice %441 {offsets = [0, 3], sizes = [32, 1], strides = [1, 1]} : vector<32x4xf32> to vector<32x1xf32>
    %554 = vector.shape_cast %553 : vector<32x1xf32> to vector<32x1xf32>
    %555 = vector.broadcast %554 : vector<32x1xf32> to vector<32x64xf32>
    %556 = tpu.concatenate %546, %549, %552, %555 in 1 : vector<32x64xf32>, vector<32x64xf32>, vector<32x64xf32>, vector<32x64xf32> -> vector<32x256xf32>
    %557 = arith.mulf %543, %556 : vector<32x256xf32>
    %558 = arith.truncf %557 : vector<32x256xf32> to vector<32x256xbf16>
    %c0_233 = arith.constant 0 : index
    %c0_234 = arith.constant 0 : index
    %559 = vector.load %arg9[%c0_233, %c0_234] : memref<256x16xbf16, #tpu.memory_space<vmem>>, vector<256x16xbf16>
    %cst_235 = arith.constant dense<0.000000e+00> : vector<32x16xf32>
    %560 = tpu.matmul %558, %559, %cst_235 {dimension_numbers = #tpu.dot_dimension_numbers<[1], [0], [0], [1], [0, 0, 1, 1], [], []>} : vector<32x256xbf16>, vector<256x16xbf16>, vector<32x16xf32> -> vector<32x16xf32>
    %c0_236 = arith.constant 0 : index
    %c0_237 = arith.constant 0 : index
    %561 = vector.load %arg10[%c0_236, %c0_237] : memref<4x16xf32, #tpu.memory_space<vmem>>, vector<4x16xf32>
    %cst_238 = arith.constant dense<0.000000e+00> : vector<32x16xf32>
    %562 = tpu.matmul %441, %561, %cst_238 {dimension_numbers = #tpu.dot_dimension_numbers<[1], [0], [0], [1], [0, 0, 1, 1], [], []>} : vector<32x4xf32>, vector<4x16xf32>, vector<32x16xf32> -> vector<32x16xf32>
    %563 = arith.addf %560, %562 : vector<32x16xf32>
    %564 = arith.truncf %563 : vector<32x16xf32> to vector<32x16xbf16>
    %565 = vector.extract_strided_slice %564 {offsets = [0, 0], sizes = [16, 16], strides = [1, 1]} : vector<32x16xbf16> to vector<16x16xbf16>
    %cst_239 = arith.constant 0.000000e+00 : bf16
    %566 = vector.broadcast %cst_239 : bf16 to vector<1x16xbf16>
    %cst_240 = arith.constant 0.000000e+00 : bf16
    %567 = vector.broadcast %cst_240 : bf16 to vector<2x16xbf16>
    %568 = tpu.concatenate %566, %565, %567 in 0 : vector<1x16xbf16>, vector<16x16xbf16>, vector<2x16xbf16> -> vector<19x16xbf16>
    %569 = vector.extract_strided_slice %568 {offsets = [0, 0], sizes = [16, 16], strides = [1, 1]} : vector<19x16xbf16> to vector<16x16xbf16>
    %570 = vector.extract_strided_slice %568 {offsets = [1, 0], sizes = [16, 16], strides = [1, 1]} : vector<19x16xbf16> to vector<16x16xbf16>
    %571 = vector.extract_strided_slice %568 {offsets = [2, 0], sizes = [16, 16], strides = [1, 1]} : vector<19x16xbf16> to vector<16x16xbf16>
    %572 = vector.extract_strided_slice %568 {offsets = [3, 0], sizes = [16, 16], strides = [1, 1]} : vector<19x16xbf16> to vector<16x16xbf16>
    %573 = tpu.concatenate %569, %570, %571, %572 in 1 : vector<16x16xbf16>, vector<16x16xbf16>, vector<16x16xbf16>, vector<16x16xbf16> -> vector<16x64xbf16>
    %574 = vector.extract_strided_slice %564 {offsets = [16, 0], sizes = [16, 16], strides = [1, 1]} : vector<32x16xbf16> to vector<16x16xbf16>
    %cst_241 = arith.constant 0.000000e+00 : bf16
    %575 = vector.broadcast %cst_241 : bf16 to vector<1x16xbf16>
    %cst_242 = arith.constant 0.000000e+00 : bf16
    %576 = vector.broadcast %cst_242 : bf16 to vector<2x16xbf16>
    %577 = tpu.concatenate %575, %574, %576 in 0 : vector<1x16xbf16>, vector<16x16xbf16>, vector<2x16xbf16> -> vector<19x16xbf16>
    %578 = vector.extract_strided_slice %577 {offsets = [0, 0], sizes = [16, 16], strides = [1, 1]} : vector<19x16xbf16> to vector<16x16xbf16>
    %579 = vector.extract_strided_slice %577 {offsets = [1, 0], sizes = [16, 16], strides = [1, 1]} : vector<19x16xbf16> to vector<16x16xbf16>
    %580 = vector.extract_strided_slice %577 {offsets = [2, 0], sizes = [16, 16], strides = [1, 1]} : vector<19x16xbf16> to vector<16x16xbf16>
    %581 = vector.extract_strided_slice %577 {offsets = [3, 0], sizes = [16, 16], strides = [1, 1]} : vector<19x16xbf16> to vector<16x16xbf16>
    %582 = tpu.concatenate %578, %579, %580, %581 in 1 : vector<16x16xbf16>, vector<16x16xbf16>, vector<16x16xbf16>, vector<16x16xbf16> -> vector<16x64xbf16>
    %583 = tpu.concatenate %573, %582 in 0 : vector<16x64xbf16>, vector<16x64xbf16> -> vector<32x64xbf16>
    %cst_243 = arith.constant dense<0.000000e+00> : vector<16x64xf32>
    %584 = tpu.matmul %1, %583, %cst_243 {dimension_numbers = #tpu.dot_dimension_numbers<[1], [0], [0], [1], [0, 0, 1, 1], [], []>} : vector<16x32xbf16>, vector<32x64xbf16>, vector<16x64xf32> -> vector<16x64xf32>
    %585 = arith.truncf %584 : vector<16x64xf32> to vector<16x64xbf16>
    %c8_244 = arith.constant 8 : index
    %c0_245 = arith.constant 0 : index
    %c0_246 = arith.constant 0 : index
    %586 = vector.load %arg3[%c8_244, %c0_245, %c0_246] : memref<12x256x64xbf16, #tpu.memory_space<vmem>>, vector<1x64x64xbf16>
    %587 = vector.shape_cast %586 : vector<1x64x64xbf16> to vector<64x64xbf16>
    %cst_247 = arith.constant dense<0.000000e+00> : vector<16x64xf32>
    %588 = tpu.matmul %585, %587, %cst_247 {dimension_numbers = #tpu.dot_dimension_numbers<[1], [0], [0], [1], [0, 0, 1, 1], [], []>} : vector<16x64xbf16>, vector<64x64xbf16>, vector<16x64xf32> -> vector<16x64xf32>
    %c8_248 = arith.constant 8 : index
    %c0_249 = arith.constant 0 : index
    %c0_250 = arith.constant 0 : index
    %589 = vector.load %arg4[%c8_248, %c0_249, %c0_250] : memref<12x1x64xf32, #tpu.memory_space<vmem>>, vector<1x1x64xf32>
    %590 = vector.shape_cast %589 : vector<1x1x64xf32> to vector<1x64xf32>
    %591 = vector.broadcast %590 : vector<1x64xf32> to vector<16x64xf32>
    %592 = arith.addf %588, %591 : vector<16x64xf32>
    %cst_251 = arith.constant 0.000000e+00 : f32
    %593 = vector.broadcast %cst_251 : f32 to vector<16x64xf32>
    %594 = arith.cmpf ogt, %592, %593 : vector<16x64xf32>
    %cst_252 = arith.constant 2.000000e-01 : f32
    %595 = vector.broadcast %cst_252 : f32 to vector<16x64xf32>
    %596 = arith.mulf %595, %592 : vector<16x64xf32>
    %597 = arith.select %594, %592, %596 : vector<16x64xi1>, vector<16x64xf32>
    %598 = arith.truncf %597 : vector<16x64xf32> to vector<16x64xbf16>
    %599 = vector.extract_strided_slice %598 {offsets = [0, 0], sizes = [8, 64], strides = [1, 1]} : vector<16x64xbf16> to vector<8x64xbf16>
    %cst_253 = arith.constant 0.000000e+00 : bf16
    %600 = vector.broadcast %cst_253 : bf16 to vector<1x64xbf16>
    %cst_254 = arith.constant 0.000000e+00 : bf16
    %601 = vector.broadcast %cst_254 : bf16 to vector<2x64xbf16>
    %602 = tpu.concatenate %600, %599, %601 in 0 : vector<1x64xbf16>, vector<8x64xbf16>, vector<2x64xbf16> -> vector<11x64xbf16>
    %603 = vector.extract_strided_slice %602 {offsets = [0, 0], sizes = [8, 64], strides = [1, 1]} : vector<11x64xbf16> to vector<8x64xbf16>
    %604 = vector.extract_strided_slice %602 {offsets = [1, 0], sizes = [8, 64], strides = [1, 1]} : vector<11x64xbf16> to vector<8x64xbf16>
    %605 = vector.extract_strided_slice %602 {offsets = [2, 0], sizes = [8, 64], strides = [1, 1]} : vector<11x64xbf16> to vector<8x64xbf16>
    %606 = vector.extract_strided_slice %602 {offsets = [3, 0], sizes = [8, 64], strides = [1, 1]} : vector<11x64xbf16> to vector<8x64xbf16>
    %607 = tpu.concatenate %603, %604, %605, %606 in 1 : vector<8x64xbf16>, vector<8x64xbf16>, vector<8x64xbf16>, vector<8x64xbf16> -> vector<8x256xbf16>
    %608 = vector.extract_strided_slice %598 {offsets = [8, 0], sizes = [8, 64], strides = [1, 1]} : vector<16x64xbf16> to vector<8x64xbf16>
    %cst_255 = arith.constant 0.000000e+00 : bf16
    %609 = vector.broadcast %cst_255 : bf16 to vector<1x64xbf16>
    %cst_256 = arith.constant 0.000000e+00 : bf16
    %610 = vector.broadcast %cst_256 : bf16 to vector<2x64xbf16>
    %611 = tpu.concatenate %609, %608, %610 in 0 : vector<1x64xbf16>, vector<8x64xbf16>, vector<2x64xbf16> -> vector<11x64xbf16>
    %612 = vector.extract_strided_slice %611 {offsets = [0, 0], sizes = [8, 64], strides = [1, 1]} : vector<11x64xbf16> to vector<8x64xbf16>
    %613 = vector.extract_strided_slice %611 {offsets = [1, 0], sizes = [8, 64], strides = [1, 1]} : vector<11x64xbf16> to vector<8x64xbf16>
    %614 = vector.extract_strided_slice %611 {offsets = [2, 0], sizes = [8, 64], strides = [1, 1]} : vector<11x64xbf16> to vector<8x64xbf16>
    %615 = vector.extract_strided_slice %611 {offsets = [3, 0], sizes = [8, 64], strides = [1, 1]} : vector<11x64xbf16> to vector<8x64xbf16>
    %616 = tpu.concatenate %612, %613, %614, %615 in 1 : vector<8x64xbf16>, vector<8x64xbf16>, vector<8x64xbf16>, vector<8x64xbf16> -> vector<8x256xbf16>
    %617 = tpu.concatenate %607, %616 in 0 : vector<8x256xbf16>, vector<8x256xbf16> -> vector<16x256xbf16>
    %cst_257 = arith.constant dense<0.000000e+00> : vector<8x256xf32>
    %618 = tpu.matmul %5, %617, %cst_257 {dimension_numbers = #tpu.dot_dimension_numbers<[1], [0], [0], [1], [0, 0, 1, 1], [], []>} : vector<8x16xbf16>, vector<16x256xbf16>, vector<8x256xf32> -> vector<8x256xf32>
    %619 = arith.truncf %618 : vector<8x256xf32> to vector<8x256xbf16>
    %c9_258 = arith.constant 9 : index
    %c0_259 = arith.constant 0 : index
    %c0_260 = arith.constant 0 : index
    %620 = vector.load %arg3[%c9_258, %c0_259, %c0_260] : memref<12x256x64xbf16, #tpu.memory_space<vmem>>, vector<1x256x64xbf16>
    %621 = vector.shape_cast %620 : vector<1x256x64xbf16> to vector<256x64xbf16>
    %cst_261 = arith.constant dense<0.000000e+00> : vector<8x64xf32>
    %622 = tpu.matmul %619, %621, %cst_261 {dimension_numbers = #tpu.dot_dimension_numbers<[1], [0], [0], [1], [0, 0, 1, 1], [], []>} : vector<8x256xbf16>, vector<256x64xbf16>, vector<8x64xf32> -> vector<8x64xf32>
    %c9_262 = arith.constant 9 : index
    %c0_263 = arith.constant 0 : index
    %c0_264 = arith.constant 0 : index
    %623 = vector.load %arg4[%c9_262, %c0_263, %c0_264] : memref<12x1x64xf32, #tpu.memory_space<vmem>>, vector<1x1x64xf32>
    %624 = vector.shape_cast %623 : vector<1x1x64xf32> to vector<1x64xf32>
    %625 = vector.broadcast %624 : vector<1x64xf32> to vector<8x64xf32>
    %626 = arith.addf %622, %625 : vector<8x64xf32>
    %cst_265 = arith.constant 0.000000e+00 : f32
    %627 = vector.broadcast %cst_265 : f32 to vector<8x64xf32>
    %628 = arith.cmpf ogt, %626, %627 : vector<8x64xf32>
    %cst_266 = arith.constant 2.000000e-01 : f32
    %629 = vector.broadcast %cst_266 : f32 to vector<8x64xf32>
    %630 = arith.mulf %629, %626 : vector<8x64xf32>
    %631 = arith.select %628, %626, %630 : vector<8x64xi1>, vector<8x64xf32>
    %632 = arith.truncf %631 : vector<8x64xf32> to vector<8x64xbf16>
    %c0_267 = arith.constant 0 : index
    %c0_268 = arith.constant 0 : index
    %633 = vector.load %arg7[%c0_267, %c0_268] : memref<64x8xbf16, #tpu.memory_space<vmem>>, vector<64x4xbf16>
    %cst_269 = arith.constant dense<0.000000e+00> : vector<8x4xf32>
    %634 = tpu.matmul %632, %633, %cst_269 {dimension_numbers = #tpu.dot_dimension_numbers<[1], [0], [0], [1], [0, 0, 1, 1], [], []>} : vector<8x64xbf16>, vector<64x4xbf16>, vector<8x4xf32> -> vector<8x4xf32>
    %c0_270 = arith.constant 0 : index
    %c0_271 = arith.constant 0 : index
    %635 = vector.load %arg8[%c0_270, %c0_271] : memref<1x8xf32, #tpu.memory_space<vmem>>, vector<1x4xf32>
    %636 = vector.broadcast %635 : vector<1x4xf32> to vector<8x4xf32>
    %637 = arith.addf %634, %636 : vector<8x4xf32>
    %638 = vector.extract_strided_slice %637 {offsets = [0, 0], sizes = [4, 4], strides = [1, 1]} : vector<8x4xf32> to vector<4x4xf32>
    %cst_272 = arith.constant dense<0.000000e+00> : vector<4xf32>
    %639 = vector.multi_reduction <add>, %638, %cst_272 [0] : vector<4x4xf32> to vector<4xf32>
    %640 = vector.shape_cast %639 : vector<4xf32> to vector<1x4xf32>
    %cst_273 = arith.constant 4.000000e+00 : f32
    %641 = vector.broadcast %cst_273 : f32 to vector<1x4xf32>
    %642 = arith.divf %640, %641 : vector<1x4xf32>
    %643 = vector.extract_strided_slice %637 {offsets = [4, 0], sizes = [4, 4], strides = [1, 1]} : vector<8x4xf32> to vector<4x4xf32>
    %cst_274 = arith.constant dense<0.000000e+00> : vector<4xf32>
    %644 = vector.multi_reduction <add>, %643, %cst_274 [0] : vector<4x4xf32> to vector<4xf32>
    %645 = vector.shape_cast %644 : vector<4xf32> to vector<1x4xf32>
    %cst_275 = arith.constant 4.000000e+00 : f32
    %646 = vector.broadcast %cst_275 : f32 to vector<1x4xf32>
    %647 = arith.divf %645, %646 : vector<1x4xf32>
    %648 = tpu.concatenate %642, %647 in 0 : vector<1x4xf32>, vector<1x4xf32> -> vector<2x4xf32>
    %649 = vector.extract_strided_slice %346 {offsets = [0, 0], sizes = [1, 4], strides = [1, 1]} : vector<2x4xf32> to vector<1x4xf32>
    %650 = vector.shape_cast %649 : vector<1x4xf32> to vector<1x4xf32>
    %651 = vector.broadcast %650 : vector<1x4xf32> to vector<16x4xf32>
    %652 = vector.extract_strided_slice %346 {offsets = [1, 0], sizes = [1, 4], strides = [1, 1]} : vector<2x4xf32> to vector<1x4xf32>
    %653 = vector.shape_cast %652 : vector<1x4xf32> to vector<1x4xf32>
    %654 = vector.broadcast %653 : vector<1x4xf32> to vector<16x4xf32>
    %655 = tpu.concatenate %651, %654 in 0 : vector<16x4xf32>, vector<16x4xf32> -> vector<32x4xf32>
    %656 = vector.extract_strided_slice %648 {offsets = [0, 0], sizes = [1, 4], strides = [1, 1]} : vector<2x4xf32> to vector<1x4xf32>
    %657 = vector.shape_cast %656 : vector<1x4xf32> to vector<1x4xf32>
    %658 = vector.broadcast %657 : vector<1x4xf32> to vector<16x4xf32>
    %659 = vector.extract_strided_slice %648 {offsets = [1, 0], sizes = [1, 4], strides = [1, 1]} : vector<2x4xf32> to vector<1x4xf32>
    %660 = vector.shape_cast %659 : vector<1x4xf32> to vector<1x4xf32>
    %661 = vector.broadcast %660 : vector<1x4xf32> to vector<16x4xf32>
    %662 = tpu.concatenate %658, %661 in 0 : vector<16x4xf32>, vector<16x4xf32> -> vector<32x4xf32>
    %cst_276 = arith.constant 0.000000e+00 : f32
    %663 = vector.broadcast %cst_276 : f32 to vector<32x100xf32>
    %664 = tpu.concatenate %563, %432, %655, %662, %663 in 1 : vector<32x16xf32>, vector<32x4xf32>, vector<32x4xf32>, vector<32x4xf32>, vector<32x100xf32> -> vector<32x128xf32>
    %c0_277 = arith.constant 0 : index
    %c0_278 = arith.constant 0 : index
    %665 = vector.load %arg13[%c0_277, %c0_278] : memref<32x128xf32, #tpu.memory_space<vmem>>, vector<32x128xf32>
    tpu.vector_store %arg13[%c0_277, %c0_278], %664 {strides = array<i32>} : memref<32x128xf32, #tpu.memory_space<vmem>>, vector<32x128xf32>,
    return
  }
  func.func @transform_0(%arg0: i32) -> (i32, i32) {
    %c0_i32 = arith.constant 0 : i32
    %c0_i32_0 = arith.constant 0 : i32
    %c0_i32_1 = arith.constant 0 : i32
    return %c0_i32, %c0_i32_0 : i32, i32
  }
  func.func @transform_1(%arg0: i32) -> (i32, i32) {
    %c0_i32 = arith.constant 0 : i32
    %c0_i32_0 = arith.constant 0 : i32
    %c0_i32_1 = arith.constant 0 : i32
    return %c0_i32, %c0_i32_0 : i32, i32
  }
  func.func @transform_2(%arg0: i32) -> (i32, i32, i32) {
    %c0_i32 = arith.constant 0 : i32
    %c0_i32_0 = arith.constant 0 : i32
    %c0_i32_1 = arith.constant 0 : i32
    %c0_i32_2 = arith.constant 0 : i32
    return %c0_i32, %c0_i32_0, %c0_i32_1 : i32, i32, i32
  }
  func.func @transform_3(%arg0: i32) -> (i32, i32, i32) {
    %c0_i32 = arith.constant 0 : i32
    %c0_i32_0 = arith.constant 0 : i32
    %c0_i32_1 = arith.constant 0 : i32
    %c0_i32_2 = arith.constant 0 : i32
    return %c0_i32, %c0_i32_0, %c0_i32_1 : i32, i32, i32
  }
  func.func @transform_4(%arg0: i32) -> (i32, i32, i32) {
    %c0_i32 = arith.constant 0 : i32
    %c0_i32_0 = arith.constant 0 : i32
    %c0_i32_1 = arith.constant 0 : i32
    %c0_i32_2 = arith.constant 0 : i32
    return %c0_i32, %c0_i32_0, %c0_i32_1 : i32, i32, i32
  }
  func.func @transform_5(%arg0: i32) -> (i32, i32, i32) {
    %c0_i32 = arith.constant 0 : i32
    %c0_i32_0 = arith.constant 0 : i32
    %c0_i32_1 = arith.constant 0 : i32
    %c0_i32_2 = arith.constant 0 : i32
    return %c0_i32, %c0_i32_0, %c0_i32_1 : i32, i32, i32
  }
  func.func @transform_6(%arg0: i32) -> (i32, i32) {
    %c0_i32 = arith.constant 0 : i32
    %c0_i32_0 = arith.constant 0 : i32
    %c0_i32_1 = arith.constant 0 : i32
    return %c0_i32, %c0_i32_0 : i32, i32
  }
  func.func @transform_7(%arg0: i32) -> (i32, i32) {
    %c0_i32 = arith.constant 0 : i32
    %c0_i32_0 = arith.constant 0 : i32
    %c0_i32_1 = arith.constant 0 : i32
    return %c0_i32, %c0_i32_0 : i32, i32
  }
  func.func @transform_8(%arg0: i32) -> (i32, i32) {
    %c0_i32 = arith.constant 0 : i32
    %c0_i32_0 = arith.constant 0 : i32
    %c0_i32_1 = arith.constant 0 : i32
    return %c0_i32, %c0_i32_0 : i32, i32
  }
  func.func @transform_9(%arg0: i32) -> (i32, i32) {
    %c0_i32 = arith.constant 0 : i32
    %c0_i32_0 = arith.constant 0 : i32
    %c0_i32_1 = arith.constant 0 : i32
    return %c0_i32, %c0_i32_0 : i32, i32
  }
  func.func @transform_10(%arg0: i32) -> (i32, i32) {
    %c0_i32 = arith.constant 0 : i32
    %c0_i32_0 = arith.constant 0 : i32
    %c0_i32_1 = arith.constant 0 : i32
    return %c0_i32, %c0_i32_0 : i32, i32
  }
  func.func @transform_11(%arg0: i32) -> (i32, i32, i32) {
    %c0_i32 = arith.constant 0 : i32
    %c0_i32_0 = arith.constant 0 : i32
    %c0_i32_1 = arith.constant 0 : i32
    %c0_i32_2 = arith.constant 0 : i32
    return %c0_i32, %c0_i32_0, %c0_i32_1 : i32, i32, i32
  }
  func.func @transform_12(%arg0: i32) -> (i32, i32) {
    %c0_i32 = arith.constant 0 : i32
    %c0_i32_0 = arith.constant 0 : i32
    %c0_i32_1 = arith.constant 0 : i32
    return %c0_i32, %c0_i32_0 : i32, i32
  }
}

</mosaic_0001>

<llo_original>
// kernel: _lambda_.1
$region0: #{_lambda_.1}
  #allocation0 [shape = 'u32[]', space=smem, size = 0x4, offset = 0x4, fixed_abs, tag = 'smem constant byte address 0x4 - core index']
  #allocation1 [shape = 'u32[144,128]{1,0:T(1,128)}', space=vmem, size = 0x12000, scoped, tag = 'internal scratch']
  %s0 = inlined_call_operand.hbm [shape: f32[32,32], index: 0, kind: input, shape index: {}]
  %s1 = inlined_call_operand.hbm [shape: f32[32,16], index: 1, kind: input, shape index: {}]
  %s2 = inlined_call_operand.vmem [shape: bf16[12,256,64], index: 2, kind: input, shape index: {}]
  %s3 = inlined_call_operand.hbm [shape: f32[12,1,64], index: 3, kind: input, shape index: {}]
  %s4 = inlined_call_operand.hbm [shape: bf16[4,768,256], index: 4, kind: input, shape index: {}]
  %s5 = inlined_call_operand.hbm [shape: f32[4,1,256], index: 5, kind: input, shape index: {}]
  %s6 = inlined_call_operand.vmem [shape: bf16[64,8], index: 6, kind: input, shape index: {}]
  %s7 = inlined_call_operand.hbm [shape: f32[1,8], index: 7, kind: input, shape index: {}]
  %s8 = inlined_call_operand.vmem [shape: bf16[256,16], index: 8, kind: input, shape index: {}]
  %s9 = inlined_call_operand.hbm [shape: f32[4,16], index: 9, kind: input, shape index: {}]
  %s10 = inlined_call_operand.hbm [shape: bf16[4,8], index: 10, kind: input, shape index: {}]
  %s11 = inlined_call_operand.hbm [shape: bf16[4,32,32], index: 11, kind: input, shape index: {}]
  %s12 = inlined_call_operand.vmem [shape: f32[32,128], index: 12, kind: output, shape index: {}]
  %s13 = sld [smem:[#allocation0]]
  $region94: #{_lambda_.1} parent=0
    _
  %s15 = ssub.s32 1, %s13
  %s16 = scalar_select 0, %s15, %s13
  $region1: #{_lambda_.1} parent=0
    #allocation2 [shape = 'u8[16384]{0}', space=vmem, size = 0x4000, scoped, tag = 'input window, operand 0, single buffered']
    #allocation3 [shape = 's32[1]{0}', space=sflag, size = 0x4, scoped, tag = 'scoped memory for _lambda_.1']
    #allocation4 [shape = 'u8[16384]{0}', space=vmem, size = 0x4000, scoped, tag = 'input window, operand 1, single buffered']
    #allocation5 [shape = 's32[1]{0}', space=sflag, size = 0x4, scoped, tag = 'scoped memory for _lambda_.1']
    #allocation6 [shape = 'u8[6144]{0}', space=vmem, size = 0x1800, scoped, tag = 'input window, operand 3, single buffered']
    #allocation7 [shape = 'u8[1572864]{0}', space=vmem, size = 0x180000, scoped, tag = 'input window, operand 4, single buffered']
    #allocation8 [shape = 's32[1]{0}', space=sflag, size = 0x4, scoped, tag = 'scoped memory for _lambda_.1']
    #allocation9 [shape = 'u8[4096]{0}', space=vmem, size = 0x1000, scoped, tag = 'input window, operand 5, single buffered']
    #allocation10 [shape = 'u8[512]{0}', space=vmem, size = 0x400, scoped, tag = 'input window, operand 7, single buffered']
    #allocation11 [shape = 's32[1]{0}', space=sflag, size = 0x4, scoped, tag = 'scoped memory for _lambda_.1']
    #allocation12 [shape = 'u8[2048]{0}', space=vmem, size = 0x800, scoped, tag = 'input window, operand 9, single buffered']
    #allocation13 [shape = 'u8[1024]{0}', space=vmem, size = 0x400, scoped, tag = 'input window, operand 10, single buffered']
    #allocation14 [shape = 's32[1]{0}', space=sflag, size = 0x4, scoped, tag = 'scoped memory for _lambda_.1']
    #allocation15 [shape = 'u8[32768]{0}', space=vmem, size = 0x8000, scoped, tag = 'input window, operand 11, single buffered']
    %17 = vsyncpa [#allocation3], 0
    %18 = vsyncpa [#allocation5], 0
    %19 = vsyncpa [#allocation8], 0
    %20 = vsyncpa [#allocation11], 0
    %21 = vsyncpa [#allocation14], 0
    // Predicated region
    $region2: #{_lambda_.1} parent=1 // pred_check
      _
    $region3: #{_lambda_.1} parent=1 // pred_check_branch
      %23 = sbr.rel (0) target = $region5
    $region4: #{_lambda_.1} parent=1 // pred_region
      %s25 = ssub.s32 512, 512
      %26 = vsyncadd [#allocation3], %s25
      %s27 = sshll.u32 [#allocation2], 4
      %s28 = int_to_ptr.vmem [resolvable:$true] %s27
      %33 = dma.hbm_to_vmem [thread:$0]  %s0, 512, %s28, [#allocation3], 128, 128, 8
    $region5: #{_lambda_.1} parent=1 // pred_fallthru
      _
    // Predicated region
    $region6: #{_lambda_.1} parent=1 // pred_check
      _
    $region7: #{_lambda_.1} parent=1 // pred_check_branch
      %35 = sbr.rel (0) target = $region9
    $region8: #{_lambda_.1} parent=1 // pred_region
      %s37 = ssub.s32 512, 512
      %38 = vsyncadd [#allocation5], %s37
      %s39 = sshll.u32 [#allocation4], 4
      %s40 = int_to_ptr.vmem [resolvable:$true] %s39
      %45 = dma.hbm_to_vmem [thread:$0]  %s1, 512, %s40, [#allocation5], 128, 128, 8
    $region9: #{_lambda_.1} parent=1 // pred_fallthru
      _
    // Predicated region
    $region10: #{_lambda_.1} parent=1 // pred_check
      _
    $region11: #{_lambda_.1} parent=1 // pred_check_branch
      %47 = sbr.rel (0) target = $region13
    $region12: #{_lambda_.1} parent=1 // pred_region
      _
    $region13: #{_lambda_.1} parent=1 // pred_fallthru
      _
    // Predicated region
    $region14: #{_lambda_.1} parent=1 // pred_check
      _
    $region15: #{_lambda_.1} parent=1 // pred_check_branch
      %49 = sbr.rel (0) target = $region17
    $region16: #{_lambda_.1} parent=1 // pred_region
      %s51 = ssub.s32 192, 192
      %52 = vsyncadd [#allocation5], %s51
      %s53 = sshll.u32 [#allocation6], 4
      %s54 = int_to_ptr.vmem [resolvable:$true] %s53
      %59 = dma.hbm_to_vmem [thread:$0]  %s3, 192, %s54, [#allocation5], 16, 16, 1
    $region17: #{_lambda_.1} parent=1 // pred_fallthru
      _
    // Predicated region
    $region18: #{_lambda_.1} parent=1 // pred_check
      _
    $region19: #{_lambda_.1} parent=1 // pred_check_branch
      %61 = sbr.rel (0) target = $region21
    $region20: #{_lambda_.1} parent=1 // pred_region
      %s63 = ssub.s32 49152, 49152
      %64 = vsyncadd [#allocation8], %s63
      %s65 = sshll.u32 [#allocation7], 4
      %s66 = int_to_ptr.vmem [resolvable:$true] %s65
      %71 = dma.hbm_to_vmem [thread:$0]  %s4, 49152, %s66, [#allocation8], 128, 128, 8
    $region21: #{_lambda_.1} parent=1 // pred_fallthru
      _
    // Predicated region
    $region22: #{_lambda_.1} parent=1 // pred_check
      _
    $region23: #{_lambda_.1} parent=1 // pred_check_branch
      %73 = sbr.rel (0) target = $region25
    $region24: #{_lambda_.1} parent=1 // pred_region
      %s75 = ssub.s32 128, 128
      %76 = vsyncadd [#allocation8], %s75
      %s77 = sshll.u32 [#allocation9], 4
      %s78 = int_to_ptr.vmem [resolvable:$true] %s77
      %83 = dma.hbm_to_vmem [thread:$0]  %s5, 128, %s78, [#allocation8], 32, 32, 2
    $region25: #{_lambda_.1} parent=1 // pred_fallthru
      _
    // Predicated region
    $region26: #{_lambda_.1} parent=1 // pred_check
      _
    $region27: #{_lambda_.1} parent=1 // pred_check_branch
      %85 = sbr.rel (0) target = $region29
    $region28: #{_lambda_.1} parent=1 // pred_region
      _
    $region29: #{_lambda_.1} parent=1 // pred_fallthru
      _
    // Predicated region
    $region30: #{_lambda_.1} parent=1 // pred_check
      _
    $region31: #{_lambda_.1} parent=1 // pred_check_branch
      %87 = sbr.rel (0) target = $region33
    $region32: #{_lambda_.1} parent=1 // pred_region
      %s89 = ssub.s32 16, 16
      %90 = vsyncadd [#allocation11], %s89
      %s92 = sshll.u32 [#allocation10], 4
      %s93 = int_to_ptr.vmem [resolvable:$true] %s92
      %95 = dma.hbm_to_vmem [thread:$0]  %s7, 16, %s93, [#allocation11]
    $region33: #{_lambda_.1} parent=1 // pred_fallthru
      _
    // Predicated region
    $region34: #{_lambda_.1} parent=1 // pred_check
      _
    $region35: #{_lambda_.1} parent=1 // pred_check_branch
      %97 = sbr.rel (0) target = $region37
    $region36: #{_lambda_.1} parent=1 // pred_region
      _
    $region37: #{_lambda_.1} parent=1 // pred_fallthru
      _
    // Predicated region
    $region38: #{_lambda_.1} parent=1 // pred_check
      _
    $region39: #{_lambda_.1} parent=1 // pred_check_branch
      %99 = sbr.rel (0) target = $region41
    $region40: #{_lambda_.1} parent=1 // pred_region
      %s101 = ssub.s32 64, 64
      %102 = vsyncadd [#allocation11], %s101
      %s104 = sshll.u32 [#allocation12], 4
      %s105 = int_to_ptr.vmem [resolvable:$true] %s104
      %107 = dma.hbm_to_vmem [thread:$0]  %s9, 64, %s105, [#allocation11]
    $region41: #{_lambda_.1} parent=1 // pred_fallthru
      _
    // Predicated region
    $region42: #{_lambda_.1} parent=1 // pred_check
      _
    $region43: #{_lambda_.1} parent=1 // pred_check_branch
      %109 = sbr.rel (0) target = $region45
    $region44: #{_lambda_.1} parent=1 // pred_region
      %s111 = ssub.s32 32, 32
      %112 = vsyncadd [#allocation14], %s111
      %s114 = sshll.u32 [#allocation13], 4
      %s115 = int_to_ptr.vmem [resolvable:$true] %s114
      %117 = dma.hbm_to_vmem [thread:$0]  %s10, 32, %s115, [#allocation14]
    $region45: #{_lambda_.1} parent=1 // pred_fallthru
      _
    // Predicated region
    $region46: #{_lambda_.1} parent=1 // pred_check
      _
    $region47: #{_lambda_.1} parent=1 // pred_check_branch
      %119 = sbr.rel (0) target = $region49
    $region48: #{_lambda_.1} parent=1 // pred_region
      %s121 = ssub.s32 1024, 1024
      %122 = vsyncadd [#allocation14], %s121
      %s123 = sshll.u32 [#allocation15], 4
      %s124 = int_to_ptr.vmem [resolvable:$true] %s123
      %129 = dma.hbm_to_vmem [thread:$0]  %s11, 1024, %s124, [#allocation14], 64, 64, 4
    $region49: #{_lambda_.1} parent=1 // pred_fallthru
      _
    // Predicated region
    $region50: #{_lambda_.1} parent=1 // pred_check
      _
    $region51: #{_lambda_.1} parent=1 // pred_check_branch
      %131 = sbr.rel (0) target = $region53
    $region52: #{_lambda_.1} parent=1 // pred_region
      %132 = dma.done [#allocation3], 512
    $region53: #{_lambda_.1} parent=1 // pred_fallthru
      _
    // Predicated region
    $region54: #{_lambda_.1} parent=1 // pred_check
      _
    $region55: #{_lambda_.1} parent=1 // pred_check_branch
      %134 = sbr.rel (0) target = $region57
    $region56: #{_lambda_.1} parent=1 // pred_region
      %135 = dma.done [#allocation5], 512
    $region57: #{_lambda_.1} parent=1 // pred_fallthru
      _
    // Predicated region
    $region58: #{_lambda_.1} parent=1 // pred_check
      _
    $region59: #{_lambda_.1} parent=1 // pred_check_branch
      %137 = sbr.rel (0) target = $region61
    $region60: #{_lambda_.1} parent=1 // pred_region
      %138 = dma.done [#allocation5], 192
    $region61: #{_lambda_.1} parent=1 // pred_fallthru
      _
    // Predicated region
    $region62: #{_lambda_.1} parent=1 // pred_check
      _
    $region63: #{_lambda_.1} parent=1 // pred_check_branch
      %140 = sbr.rel (0) target = $region65
    $region64: #{_lambda_.1} parent=1 // pred_region
      %141 = dma.done [#allocation8], 49152
    $region65: #{_lambda_.1} parent=1 // pred_fallthru
      _
    // Predicated region
    $region66: #{_lambda_.1} parent=1 // pred_check
      _
    $region67: #{_lambda_.1} parent=1 // pred_check_branch
      %143 = sbr.rel (0) target = $region69
    $region68: #{_lambda_.1} parent=1 // pred_region
      %144 = dma.done [#allocation8], 128
    $region69: #{_lambda_.1} parent=1 // pred_fallthru
      _
    // Predicated region
    $region70: #{_lambda_.1} parent=1 // pred_check
      _
    $region71: #{_lambda_.1} parent=1 // pred_check_branch
      %146 = sbr.rel (0) target = $region73
    $region72: #{_lambda_.1} parent=1 // pred_region
      %147 = dma.done [#allocation11], 16
    $region73: #{_lambda_.1} parent=1 // pred_fallthru
      _
    // Predicated region
    $region74: #{_lambda_.1} parent=1 // pred_check
      _
    $region75: #{_lambda_.1} parent=1 // pred_check_branch
      %149 = sbr.rel (0) target = $region77
    $region76: #{_lambda_.1} parent=1 // pred_region
      %150 = dma.done [#allocation11], 64
    $region77: #{_lambda_.1} parent=1 // pred_fallthru
      _
    // Predicated region
    $region78: #{_lambda_.1} parent=1 // pred_check
      _
    $region79: #{_lambda_.1} parent=1 // pred_check_branch
      %152 = sbr.rel (0) target = $region81
    $region80: #{_lambda_.1} parent=1 // pred_region
      %153 = dma.done [#allocation14], 32
    $region81: #{_lambda_.1} parent=1 // pred_fallthru
      _
    // Predicated region
    $region82: #{_lambda_.1} parent=1 // pred_check
      _
    $region83: #{_lambda_.1} parent=1 // pred_check_branch
      %155 = sbr.rel (0) target = $region85
    $region84: #{_lambda_.1} parent=1 // pred_region
      %156 = dma.done [#allocation14], 1024
    $region85: #{_lambda_.1} parent=1 // pred_fallthru
      _
    %v158 = vld [vmem:[#allocation15] sm:$0xf]
    %v159 = vld [vmem:[#allocation15 + $0x4] sm:$0xf]
    %s160 = scalar_lea.vmem [#allocation15], 16
    %v161 = vld [vmem:[%s160] sm:$0xf]
    %v162 = vld [vmem:[%s160 + $0x4] sm:$0xf]
    %s163 = scalar_lea.vmem [#allocation15], 32
    %v164 = vld [vmem:[%s163] sm:$0xf]
    %s165 = scalar_lea.vmem [#allocation15], 48
    %v166 = vld [vmem:[%s165] sm:$0xf]
    %v167 = vld [vmem:[%s165 + $0x4] sm:$0xf]
    %v168 = vld [vmem:[%s165 + $0x8] sm:$0xf]
    %v169 = vld [vmem:[%s165 + $0xc] sm:$0xf]
    %v170 = vld [vmem:[#allocation2] sm:$0xff]
    %v171 = vld [vmem:[#allocation2 + $0x8] sm:$0xff]
    %v172 = vld [vmem:[#allocation2 + $0x10] sm:$0xff]
    %v173 = vld [vmem:[#allocation2 + $0x18] sm:$0xff]
    %v174 = vpack.c.bf16 %v171, %v170
    %v175 = vpack.c.bf16 %v173, %v172
    %v177 = vshrl.u32 %v174, 16
    %v179 = vrot.slane %v177, 7
    %v180 = vshll.u32 %v174, 16
    %v182 = vor.u32 %v179, %v180
    %vm185 = vcmask 1040384
    %vm186 = vsmask.f32 256
    %vm187 = vmand %vm185, %vm186
    %v188 = vsel %vm187, 0, %v182
    %v189 = vsel %vm187, %v179, 0
    %vm190 = vsmask.f32 7424
    %v192 = vshrl.u32 %v188, 16
    %v194 = vshll.u32 %v188, 16
    %v196 = vrot.slane %v194, 1
    %v197 = vor.u32 %v192, %v196
    %v199 = vshll.u32 %v189, 16
    %v201 = vrot.slane %v199, 1
    %v202 = vsel %vm190, %v197, %v201
    %203 = vrot.lane.b32.xlu0 %v202, 32
    %v204 = vpop.permute.xlu0 %203
    %vm207 = vcmask 1046528
    %v208 = vrot.slane %v188, 1
    %v209 = vrot.slane %v189, 1
    %v210 = vsel %vm207, %v208, %v209
    %211 = vrot.lane.b32.xlu0 %v210, 64
    %v212 = vpop.permute.xlu0 %211
    %vm213 = vcmask 261120
    %v215 = vsel %vm213, %v188, %v204
    %vm216 = vcmask 523264
    %v218 = vsel %vm216, %v215, %v212
    %v220 = vshrl.u32 %v175, 16
    %v222 = vrot.slane %v220, 7
    %v223 = vshll.u32 %v175, 16
    %v225 = vor.u32 %v222, %v223
    %v228 = vsel %vm187, 0, %v225
    %v229 = vsel %vm187, %v222, 0
    %v231 = vshrl.u32 %v228, 16
    %v233 = vshll.u32 %v228, 16
    %v235 = vrot.slane %v233, 1
    %v236 = vor.u32 %v231, %v235
    %v238 = vshll.u32 %v229, 16
    %v240 = vrot.slane %v238, 1
    %v241 = vsel %vm190, %v236, %v240
    %242 = vrot.lane.b32.xlu0 %v241, 32
    %v243 = vpop.permute.xlu0 %242
    %v246 = vrot.slane %v228, 1
    %v247 = vrot.slane %v229, 1
    %v248 = vsel %vm207, %v246, %v247
    %249 = vrot.lane.b32.xlu0 %v248, 64
    %v250 = vpop.permute.xlu0 %249
    %v252 = vsel %vm213, %v228, %v243
    %v254 = vsel %vm216, %v252, %v250
    %v255 = vld [vmem:[%s2] sm:$0xf]
    %v256 = vld [vmem:[%s2 + $0x4] sm:$0xf]
    %v257 = vld [vmem:[%s2 + $0x8] sm:$0xf]
    %v258 = vld [vmem:[%s2 + $0xc] sm:$0xf]
    %v259 = vld [vmem:[%s2 + $0x10] sm:$0xf]
    %v260 = vld [vmem:[%s2 + $0x14] sm:$0xf]
    %v261 = vld [vmem:[%s2 + $0x18] sm:$0xf]
    %v262 = vld [vmem:[%s2 + $0x1c] sm:$0xf]
    %v263 = vld [vmem:[%s2 + $0x20] sm:$0xf]
    %v264 = vld [vmem:[%s2 + $0x24] sm:$0xf]
    %v265 = vld [vmem:[%s2 + $0x28] sm:$0xf]
    %v266 = vld [vmem:[%s2 + $0x2c] sm:$0xf]
    %v267 = vld [vmem:[#allocation6] sm:$0x1]
    %v269 = vlaneseq
    %v270 = vshrl.u32 %v269, 7
    %v271 = vsub.s32 0, %v270
    %v272 = vrot.slane %v267, %v271
    %v286 = vunpack.c.l.b16 %v255
    %v287 = vunpack.c.l.b16 %v256
    %v288 = vunpack.c.l.b16 %v257
    %v289 = vunpack.c.l.b16 %v258
    %v290 = vunpack.c.l.b16 %v259
    %v291 = vunpack.c.l.b16 %v260
    %v292 = vunpack.c.l.b16 %v261
    %v293 = vunpack.c.l.b16 %v262
    %v294 = vunpack.c.l.b16 %v263
    %v295 = vunpack.c.l.b16 %v264
    %v296 = vunpack.c.l.b16 %v265
    %v297 = vunpack.c.l.b16 %v266
    %v298 = vpack.c.b16 %v287, %v286
    %v299 = vpack.c.b16 %v289, %v288
    %v300 = vpack.c.b16 %v291, %v290
    %v301 = vpack.c.b16 %v293, %v292
    %v302 = vpack.c.b16 %v295, %v294
    %v303 = vpack.c.b16 %v297, %v296
    %vm310 = vcmask 785408
    %v311 = vsel %vm310, %v218, 0
    %v313 = vsel %vm310, %v254, 0
    %315 = vmatprep.subr.bf16.mxu0 0
    %316 = vmatpush1.bf16.msra.mxu0 %v298
    %317 = vmatprep.subr.bf16.mxu0 0
    %318 = vmatpush1.bf16.msra.mxu0 %v299
    %319 = vmatprep.subr.bf16.mxu0 0
    %320 = vmatpush1.bf16.msra.mxu0 %v300
    %321 = vmatprep.subr.bf16.mxu0 0
    %322 = vmatpush1.bf16.msra.mxu0 %v301
    %323 = vmatprep.subr.bf16.mxu0 0
    %324 = vmatpush1.bf16.msra.mxu0 %v302
    %325 = vmatprep.subr.bf16.mxu0 0
    %326 = vmatpush1.bf16.msra.mxu0 %v303
    %327 = vmatprep.subr.bf16.mxu0 0
    %328 = vmatpush1.bf16.msra.mxu0 0
    %329 = vmatprep.subr.bf16.mxu0 0
    %330 = vmatpush1.bf16.msra.mxu0 0
    %331 = vmatprep.subr.bf16.mxu0 0
    %332 = vmatpush1.bf16.msra.mxu0 0
    %333 = vmatprep.subr.bf16.mxu0 0
    %334 = vmatpush1.bf16.msra.mxu0 0
    %335 = vmatprep.subr.bf16.mxu0 0
    %336 = vmatpush1.bf16.msra.mxu0 0
    %337 = vmatprep.subr.bf16.mxu0 0
    %338 = vmatpush1.bf16.msra.mxu0 0
    %339 = vmatprep.subr.bf16.mxu0 0
    %340 = vmatpush1.bf16.msra.mxu0 0
    %341 = vmatprep.subr.bf16.mxu0 0
    %342 = vmatpush1.bf16.msra.mxu0 0
    %343 = vmatprep.subr.bf16.mxu0 0
    %344 = vmatpush1.bf16.msra.mxu0 0
    %345 = vmatprep.subr.bf16.mxu0 0
    %346 = vmatpush1.bf16.msra.mxu0 0
    %347 = vmatprep.mubr.bf16.mxu0 0
    %348 = vmatmul.mubr.bf16.gmra.mrb[0].mxu0 %v311
    %v349 = vpop.f32.mrb[0].mxu0
    %v350 = vadd.f32 %v272, %v349
    %v351 = vpop.f32.mrb[0].mxu0
    %v352 = vpop.f32.mrb[0].mxu0
    %v353 = vadd.f32 %v272, %v352
    %v354 = vpop.f32.mrb[0].mxu0
    %355 = vmatprep.mubr.bf16.mxu0 0
    %356 = vmatmul.mubr.bf16.gmra.mrb[0].mxu0 %v313
    %v357 = vpop.f32.mrb[0].mxu0
    %v358 = vadd.f32 %v272, %v357
    %v359 = vpop.f32.mrb[0].mxu0
    %v360 = vpop.f32.mrb[0].mxu0
    %v361 = vadd.f32 %v272, %v360
    %v362 = vpop.f32.mrb[0].mxu0
    %363 = vdwg.mxu0
    %vm364 = vcmp.gt.f32.partialorder %v350, 0.0
    %vm365 = vcmp.gt.f32.partialorder %v353, 0.0
    %vm366 = vcmp.gt.f32.partialorder %v358, 0.0
    %vm367 = vcmp.gt.f32.partialorder %v361, 0.0
    %v368 = vmul.f32 %v350, 0.2
    %v369 = vmul.f32 %v353, 0.2
    %v370 = vmul.f32 %v358, 0.2
    %v371 = vmul.f32 %v361, 0.2
    %v372 = vsel %vm364, %v350, %v368
    %v373 = vsel %vm365, %v353, %v369
    %v374 = vsel %vm366, %v358, %v370
    %v375 = vsel %vm367, %v361, %v371
    %v376 = vpack.c.bf16 %v373, %v372
    %v377 = vpack.c.bf16 %v375, %v374
    %v379 = vshrl.u32 %v376, 16
    %v381 = vrot.slane %v379, 7
    %v382 = vshll.u32 %v376, 16
    %v384 = vor.u32 %v381, %v382
    %v387 = vsel %vm187, 0, %v384
    %v388 = vsel %vm187, %v381, 0
    %v390 = vshrl.u32 %v387, 16
    %v392 = vshll.u32 %v387, 16
    %v394 = vrot.slane %v392, 1
    %v395 = vor.u32 %v390, %v394
    %v397 = vshll.u32 %v388, 16
    %v399 = vrot.slane %v397, 1
    %v400 = vsel %vm190, %v395, %v399
    %401 = vrot.lane.b32.xlu0 %v400, 64
    %v402 = vpop.permute.xlu0 %401
    %v405 = vrot.slane %v387, 1
    %v406 = vrot.slane %v388, 1
    %v407 = vsel %vm207, %v405, %v406
    %v409 = vsel %vm216, %v387, %v402
    %v412 = vshrl.u32 %v377, 16
    %v414 = vrot.slane %v412, 7
    %v415 = vshll.u32 %v377, 16
    %v417 = vor.u32 %v414, %v415
    %v420 = vsel %vm187, 0, %v417
    %v421 = vsel %vm187, %v414, 0
    %v423 = vshrl.u32 %v420, 16
    %v425 = vshll.u32 %v420, 16
    %v427 = vrot.slane %v425, 1
    %v428 = vor.u32 %v423, %v427
    %v430 = vshll.u32 %v421, 16
    %v432 = vrot.slane %v430, 1
    %v433 = vsel %vm190, %v428, %v432
    %434 = vrot.lane.b32.xlu0 %v433, 64
    %v435 = vpop.permute.xlu0 %434
    %v438 = vrot.slane %v420, 1
    %v439 = vrot.slane %v421, 1
    %v440 = vsel %vm207, %v438, %v439
    %v442 = vsel %vm216, %v420, %v435
    %s444 = scalar_lea.vmem %s2, 128
    %v445 = vld [vmem:[%s444] sm:$0xf]
    %v446 = vld [vmem:[%s444 + $0x4] sm:$0xf]
    %v447 = vld [vmem:[%s444 + $0x8] sm:$0xf]
    %v448 = vld [vmem:[%s444 + $0xc] sm:$0xf]
    %v449 = vld [vmem:[%s444 + $0x10] sm:$0xf]
    %v450 = vld [vmem:[%s444 + $0x14] sm:$0xf]
    %v451 = vld [vmem:[%s444 + $0x18] sm:$0xf]
    %v452 = vld [vmem:[%s444 + $0x1c] sm:$0xf]
    %v453 = vld [vmem:[%s444 + $0x20] sm:$0xf]
    %v454 = vld [vmem:[%s444 + $0x24] sm:$0xf]
    %v455 = vld [vmem:[%s444 + $0x28] sm:$0xf]
    %v456 = vld [vmem:[%s444 + $0x2c] sm:$0xf]
    %v457 = vld [vmem:[%s444 + $0x30] sm:$0xf]
    %v458 = vld [vmem:[%s444 + $0x34] sm:$0xf]
    %v459 = vld [vmem:[%s444 + $0x38] sm:$0xf]
    %v460 = vld [vmem:[%s444 + $0x3c] sm:$0xf]
    %v461 = vld [vmem:[%s444 + $0x40] sm:$0xf]
    %v462 = vld [vmem:[%s444 + $0x44] sm:$0xf]
    %v463 = vld [vmem:[%s444 + $0x48] sm:$0xf]
    %v464 = vld [vmem:[%s444 + $0x4c] sm:$0xf]
    %v465 = vld [vmem:[%s444 + $0x50] sm:$0xf]
    %v466 = vld [vmem:[%s444 + $0x54] sm:$0xf]
    %v467 = vld [vmem:[%s444 + $0x58] sm:$0xf]
    %v468 = vld [vmem:[%s444 + $0x5c] sm:$0xf]
    %s469 = scalar_lea.vmem [#allocation6], 1
    %v470 = vld [vmem:[%s469] sm:$0x1]
    %v472 = vlaneseq
    %v473 = vshrl.u32 %v472, 7
    %v474 = vsub.s32 0, %v473
    %v475 = vrot.slane %v470, %v474
    %v501 = vunpack.c.l.b16 %v445
    %v502 = vunpack.c.l.b16 %v446
    %v503 = vunpack.c.l.b16 %v447
    %v504 = vunpack.c.l.b16 %v448
    %v505 = vunpack.c.l.b16 %v449
    %v506 = vunpack.c.l.b16 %v450
    %v507 = vunpack.c.l.b16 %v451
    %v508 = vunpack.c.l.b16 %v452
    %v509 = vunpack.c.l.b16 %v453
    %v510 = vunpack.c.l.b16 %v454
    %v511 = vunpack.c.l.b16 %v455
    %v512 = vunpack.c.l.b16 %v456
    %v513 = vunpack.c.l.b16 %v457
    %v514 = vunpack.c.l.b16 %v458
    %v515 = vunpack.c.l.b16 %v459
    %v516 = vunpack.c.l.b16 %v460
    %v517 = vunpack.c.l.b16 %v461
    %v518 = vunpack.c.l.b16 %v462
    %v519 = vunpack.c.l.b16 %v463
    %v520 = vunpack.c.l.b16 %v464
    %v521 = vunpack.c.l.b16 %v465
    %v522 = vunpack.c.l.b16 %v466
    %v523 = vunpack.c.l.b16 %v467
    %v524 = vunpack.c.l.b16 %v468
    %v525 = vpack.c.b16 %v502, %v501
    %v526 = vpack.c.b16 %v504, %v503
    %v527 = vpack.c.b16 %v506, %v505
    %v528 = vpack.c.b16 %v508, %v507
    %v529 = vpack.c.b16 %v510, %v509
    %v530 = vpack.c.b16 %v512, %v511
    %v531 = vpack.c.b16 %v514, %v513
    %v532 = vpack.c.b16 %v516, %v515
    %v533 = vpack.c.b16 %v518, %v517
    %v534 = vpack.c.b16 %v520, %v519
    %v535 = vpack.c.b16 %v522, %v521
    %v536 = vpack.c.b16 %v524, %v523
    %v550 = vsel %vm216, %v407, 0
    %v553 = vsel %vm216, %v440, 0
    %555 = vmatprep.subr.bf16.mxu0 0
    %556 = vmatpush1.bf16.msra.mxu0 %v525
    %557 = vmatprep.subr.bf16.mxu0 0
    %558 = vmatpush1.bf16.msra.mxu0 %v526
    %559 = vmatprep.subr.bf16.mxu0 0
    %560 = vmatpush1.bf16.msra.mxu0 %v527
    %561 = vmatprep.subr.bf16.mxu0 0
    %562 = vmatpush1.bf16.msra.mxu0 %v528
    %563 = vmatprep.subr.bf16.mxu0 0
    %564 = vmatpush1.bf16.msra.mxu0 %v529
    %565 = vmatprep.subr.bf16.mxu0 0
    %566 = vmatpush1.bf16.msra.mxu0 %v530
    %567 = vmatprep.subr.bf16.mxu0 0
    %568 = vmatpush1.bf16.msra.mxu0 %v531
    %569 = vmatprep.subr.bf16.mxu0 0
    %570 = vmatpush1.bf16.msra.mxu0 %v532
    %571 = vmatprep.subr.bf16.mxu0 0
    %572 = vmatpush1.bf16.msra.mxu0 %v533
    %573 = vmatprep.subr.bf16.mxu0 0
    %574 = vmatpush1.bf16.msra.mxu0 %v534
    %575 = vmatprep.subr.bf16.mxu0 0
    %576 = vmatpush1.bf16.msra.mxu0 %v535
    %577 = vmatprep.subr.bf16.mxu0 0
    %578 = vmatpush1.bf16.msra.mxu0 %v536
    %579 = vmatprep.subr.bf16.mxu0 0
    %580 = vmatpush1.bf16.msra.mxu0 0
    %581 = vmatprep.subr.bf16.mxu0 0
    %582 = vmatpush1.bf16.msra.mxu0 0
    %583 = vmatprep.subr.bf16.mxu0 0
    %584 = vmatpush1.bf16.msra.mxu0 0
    %585 = vmatprep.subr.bf16.mxu0 0
    %586 = vmatpush1.bf16.msra.mxu0 0
    %587 = vmatprep.mubr.bf16.mxu0 %v550
    %588 = vmatmul.mubr.bf16.gmra.mrb[0].mxu0 %v409
    %v589 = vpop.f32.mrb[0].mxu0
    %v590 = vadd.f32 %v475, %v589
    %v591 = vpop.f32.mrb[0].mxu0
    %v592 = vpop.f32.mrb[0].mxu0
    %v593 = vadd.f32 %v475, %v592
    %v594 = vpop.f32.mrb[0].mxu0
    %595 = vmatprep.mubr.bf16.mxu0 %v553
    %596 = vmatmul.mubr.bf16.gmra.mrb[0].mxu0 %v442
    %v597 = vpop.f32.mrb[0].mxu0
    %v598 = vadd.f32 %v475, %v597
    %v599 = vpop.f32.mrb[0].mxu0
    %v600 = vpop.f32.mrb[0].mxu0
    %v601 = vadd.f32 %v475, %v600
    %v602 = vpop.f32.mrb[0].mxu0
    %603 = vdwg.mxu0
    %vm604 = vcmp.gt.f32.partialorder %v590, 0.0
    %vm605 = vcmp.gt.f32.partialorder %v593, 0.0
    %vm606 = vcmp.gt.f32.partialorder %v598, 0.0
    %vm607 = vcmp.gt.f32.partialorder %v601, 0.0
    %v608 = vmul.f32 %v590, 0.2
    %v609 = vmul.f32 %v593, 0.2
    %v610 = vmul.f32 %v598, 0.2
    %v611 = vmul.f32 %v601, 0.2
    %v612 = vsel %vm604, %v590, %v608
    %v613 = vsel %vm605, %v593, %v609
    %v614 = vsel %vm606, %v598, %v610
    %v615 = vsel %vm607, %v601, %v611
    %v616 = vpack.c.bf16 %v613, %v612
    %v617 = vpack.c.bf16 %v615, %v614
    %v619 = vshrl.u32 %v616, 16
    %v621 = vrot.slane %v619, 7
    %v622 = vshll.u32 %v616, 16
    %v624 = vor.u32 %v621, %v622
    %v627 = vsel %vm187, 0, %v624
    %v628 = vsel %vm187, %v621, 0
    %v630 = vshrl.u32 %v627, 16
    %v632 = vshll.u32 %v627, 16
    %v634 = vrot.slane %v632, 1
    %v635 = vor.u32 %v630, %v634
    %v637 = vshll.u32 %v628, 16
    %v639 = vrot.slane %v637, 1
    %v640 = vsel %vm190, %v635, %v639
    %641 = vrot.lane.b32.xlu0 %v640, 64
    %v642 = vpop.permute.xlu0 %641
    %v645 = vrot.slane %v627, 1
    %v646 = vrot.slane %v628, 1
    %v647 = vsel %vm207, %v645, %v646
    %v649 = vsel %vm216, %v627, %v642
    %v652 = vshrl.u32 %v617, 16
    %v654 = vrot.slane %v652, 7
    %v655 = vshll.u32 %v617, 16
    %v657 = vor.u32 %v654, %v655
    %v660 = vsel %vm187, 0, %v657
    %v661 = vsel %vm187, %v654, 0
    %v663 = vshrl.u32 %v660, 16
    %v665 = vshll.u32 %v660, 16
    %v667 = vrot.slane %v665, 1
    %v668 = vor.u32 %v663, %v667
    %v670 = vshll.u32 %v661, 16
    %v672 = vrot.slane %v670, 1
    %v673 = vsel %vm190, %v668, %v672
    %674 = vrot.lane.b32.xlu0 %v673, 64
    %v675 = vpop.permute.xlu0 %674
    %v678 = vrot.slane %v660, 1
    %v679 = vrot.slane %v661, 1
    %v680 = vsel %vm207, %v678, %v679
    %v682 = vsel %vm216, %v660, %v675
    %s684 = scalar_lea.vmem %s2, 256
    %v685 = vld [vmem:[%s684] sm:$0xf]
    %v686 = vld [vmem:[%s684 + $0x4] sm:$0xf]
    %v687 = vld [vmem:[%s684 + $0x8] sm:$0xf]
    %v688 = vld [vmem:[%s684 + $0xc] sm:$0xf]
    %v689 = vld [vmem:[%s684 + $0x10] sm:$0xf]
    %v690 = vld [vmem:[%s684 + $0x14] sm:$0xf]
    %v691 = vld [vmem:[%s684 + $0x18] sm:$0xf]
    %v692 = vld [vmem:[%s684 + $0x1c] sm:$0xf]
    %v693 = vld [vmem:[%s684 + $0x20] sm:$0xf]
    %v694 = vld [vmem:[%s684 + $0x24] sm:$0xf]
    %v695 = vld [vmem:[%s684 + $0x28] sm:$0xf]
    %v696 = vld [vmem:[%s684 + $0x2c] sm:$0xf]
    %v697 = vld [vmem:[%s684 + $0x30] sm:$0xf]
    %v698 = vld [vmem:[%s684 + $0x34] sm:$0xf]
    %v699 = vld [vmem:[%s684 + $0x38] sm:$0xf]
    %v700 = vld [vmem:[%s684 + $0x3c] sm:$0xf]
    %v701 = vld [vmem:[%s684 + $0x40] sm:$0xf]
    %v702 = vld [vmem:[%s684 + $0x44] sm:$0xf]
    %v703 = vld [vmem:[%s684 + $0x48] sm:$0xf]
    %v704 = vld [vmem:[%s684 + $0x4c] sm:$0xf]
    %v705 = vld [vmem:[%s684 + $0x50] sm:$0xf]
    %v706 = vld [vmem:[%s684 + $0x54] sm:$0xf]
    %v707 = vld [vmem:[%s684 + $0x58] sm:$0xf]
    %v708 = vld [vmem:[%s684 + $0x5c] sm:$0xf]
    %s709 = scalar_lea.vmem [#allocation6], 2
    %v710 = vld [vmem:[%s709] sm:$0x1]
    %v712 = vlaneseq
    %v713 = vshrl.u32 %v712, 7
    %v714 = vsub.s32 0, %v713
    %v715 = vrot.slane %v710, %v714
    %v741 = vunpack.c.l.b16 %v685
    %v742 = vunpack.c.l.b16 %v686
    %v743 = vunpack.c.l.b16 %v687
    %v744 = vunpack.c.l.b16 %v688
    %v745 = vunpack.c.l.b16 %v689
    %v746 = vunpack.c.l.b16 %v690
    %v747 = vunpack.c.l.b16 %v691
    %v748 = vunpack.c.l.b16 %v692
    %v749 = vunpack.c.l.b16 %v693
    %v750 = vunpack.c.l.b16 %v694
    %v751 = vunpack.c.l.b16 %v695
    %v752 = vunpack.c.l.b16 %v696
    %v753 = vunpack.c.l.b16 %v697
    %v754 = vunpack.c.l.b16 %v698
    %v755 = vunpack.c.l.b16 %v699
    %v756 = vunpack.c.l.b16 %v700
    %v757 = vunpack.c.l.b16 %v701
    %v758 = vunpack.c.l.b16 %v702
    %v759 = vunpack.c.l.b16 %v703
    %v760 = vunpack.c.l.b16 %v704
    %v761 = vunpack.c.l.b16 %v705
    %v762 = vunpack.c.l.b16 %v706
    %v763 = vunpack.c.l.b16 %v707
    %v764 = vunpack.c.l.b16 %v708
    %v765 = vpack.c.b16 %v742, %v741
    %v766 = vpack.c.b16 %v744, %v743
    %v767 = vpack.c.b16 %v746, %v745
    %v768 = vpack.c.b16 %v748, %v747
    %v769 = vpack.c.b16 %v750, %v749
    %v770 = vpack.c.b16 %v752, %v751
    %v771 = vpack.c.b16 %v754, %v753
    %v772 = vpack.c.b16 %v756, %v755
    %v773 = vpack.c.b16 %v758, %v757
    %v774 = vpack.c.b16 %v760, %v759
    %v775 = vpack.c.b16 %v762, %v761
    %v776 = vpack.c.b16 %v764, %v763
    %v790 = vsel %vm216, %v647, 0
    %v793 = vsel %vm216, %v680, 0
    %795 = vmatprep.subr.bf16.mxu0 0
    %796 = vmatpush1.bf16.msra.mxu0 %v765
    %797 = vmatprep.subr.bf16.mxu0 0
    %798 = vmatpush1.bf16.msra.mxu0 %v766
    %799 = vmatprep.subr.bf16.mxu0 0
    %800 = vmatpush1.bf16.msra.mxu0 %v767
    %801 = vmatprep.subr.bf16.mxu0 0
    %802 = vmatpush1.bf16.msra.mxu0 %v768
    %803 = vmatprep.subr.bf16.mxu0 0
    %804 = vmatpush1.bf16.msra.mxu0 %v769
    %805 = vmatprep.subr.bf16.mxu0 0
    %806 = vmatpush1.bf16.msra.mxu0 %v770
    %807 = vmatprep.subr.bf16.mxu0 0
    %808 = vmatpush1.bf16.msra.mxu0 %v771
    %809 = vmatprep.subr.bf16.mxu0 0
    %810 = vmatpush1.bf16.msra.mxu0 %v772
    %811 = vmatprep.subr.bf16.mxu0 0
    %812 = vmatpush1.bf16.msra.mxu0 %v773
    %813 = vmatprep.subr.bf16.mxu0 0
    %814 = vmatpush1.bf16.msra.mxu0 %v774
    %815 = vmatprep.subr.bf16.mxu0 0
    %816 = vmatpush1.bf16.msra.mxu0 %v775
    %817 = vmatprep.subr.bf16.mxu0 0
    %818 = vmatpush1.bf16.msra.mxu0 %v776
    %819 = vmatprep.subr.bf16.mxu0 0
    %820 = vmatpush1.bf16.msra.mxu0 0
    %821 = vmatprep.subr.bf16.mxu0 0
    %822 = vmatpush1.bf16.msra.mxu0 0
    %823 = vmatprep.subr.bf16.mxu0 0
    %824 = vmatpush1.bf16.msra.mxu0 0
    %825 = vmatprep.subr.bf16.mxu0 0
    %826 = vmatpush1.bf16.msra.mxu0 0
    %827 = vmatprep.mubr.bf16.mxu0 %v790
    %828 = vmatmul.mubr.bf16.gmra.mrb[0].mxu0 %v649
    %v829 = vpop.f32.mrb[0].mxu0
    %v830 = vadd.f32 %v715, %v829
    %v831 = vpop.f32.mrb[0].mxu0
    %v832 = vpop.f32.mrb[0].mxu0
    %v833 = vadd.f32 %v715, %v832
    %v834 = vpop.f32.mrb[0].mxu0
    %835 = vmatprep.mubr.bf16.mxu0 %v793
    %836 = vmatmul.mubr.bf16.gmra.mrb[0].mxu0 %v682
    %v837 = vpop.f32.mrb[0].mxu0
    %v838 = vadd.f32 %v715, %v837
    %v839 = vpop.f32.mrb[0].mxu0
    %v840 = vpop.f32.mrb[0].mxu0
    %v841 = vadd.f32 %v715, %v840
    %v842 = vpop.f32.mrb[0].mxu0
    %843 = vdwg.mxu0
    %vm844 = vcmp.gt.f32.partialorder %v830, 0.0
    %vm845 = vcmp.gt.f32.partialorder %v833, 0.0
    %vm846 = vcmp.gt.f32.partialorder %v838, 0.0
    %vm847 = vcmp.gt.f32.partialorder %v841, 0.0
    %v848 = vmul.f32 %v830, 0.2
    %v849 = vmul.f32 %v833, 0.2
    %v850 = vmul.f32 %v838, 0.2
    %v851 = vmul.f32 %v841, 0.2
    %v852 = vsel %vm844, %v830, %v848
    %v853 = vsel %vm845, %v833, %v849
    %v854 = vsel %vm846, %v838, %v850
    %v855 = vsel %vm847, %v841, %v851
    %v856 = vpack.c.bf16 %v853, %v852
    %v857 = vpack.c.bf16 %v855, %v854
    %v859 = vshrl.u32 %v856, 16
    %v861 = vrot.slane %v859, 7
    %v862 = vshll.u32 %v856, 16
    %v864 = vor.u32 %v861, %v862
    %v867 = vsel %vm187, 0, %v864
    %v868 = vsel %vm187, %v861, 0
    %v870 = vshrl.u32 %v867, 16
    %v872 = vshll.u32 %v867, 16
    %v874 = vrot.slane %v872, 1
    %v875 = vor.u32 %v870, %v874
    %v877 = vshll.u32 %v868, 16
    %v879 = vrot.slane %v877, 1
    %v880 = vsel %vm190, %v875, %v879
    %881 = vrot.lane.b32.xlu0 %v880, 64
    %v882 = vpop.permute.xlu0 %881
    %v885 = vrot.slane %v867, 1
    %v886 = vrot.slane %v868, 1
    %v887 = vsel %vm207, %v885, %v886
    %v889 = vsel %vm216, %v867, %v882
    %v892 = vshrl.u32 %v857, 16
    %v894 = vrot.slane %v892, 7
    %v895 = vshll.u32 %v857, 16
    %v897 = vor.u32 %v894, %v895
    %v900 = vsel %vm187, 0, %v897
    %v901 = vsel %vm187, %v894, 0
    %v903 = vshrl.u32 %v900, 16
    %v905 = vshll.u32 %v900, 16
    %v907 = vrot.slane %v905, 1
    %v908 = vor.u32 %v903, %v907
    %v910 = vshll.u32 %v901, 16
    %v912 = vrot.slane %v910, 1
    %v913 = vsel %vm190, %v908, %v912
    %914 = vrot.lane.b32.xlu0 %v913, 64
    %v915 = vpop.permute.xlu0 %914
    %v918 = vrot.slane %v900, 1
    %v919 = vrot.slane %v901, 1
    %v920 = vsel %vm207, %v918, %v919
    %v922 = vsel %vm216, %v900, %v915
    %s924 = scalar_lea.vmem %s2, 384
    %v925 = vld [vmem:[%s924] sm:$0xf]
    %v926 = vld [vmem:[%s924 + $0x4] sm:$0xf]
    %v927 = vld [vmem:[%s924 + $0x8] sm:$0xf]
    %v928 = vld [vmem:[%s924 + $0xc] sm:$0xf]
    %v929 = vld [vmem:[%s924 + $0x10] sm:$0xf]
    %v930 = vld [vmem:[%s924 + $0x14] sm:$0xf]
    %v931 = vld [vmem:[%s924 + $0x18] sm:$0xf]
    %v932 = vld [vmem:[%s924 + $0x1c] sm:$0xf]
    %v933 = vld [vmem:[%s924 + $0x20] sm:$0xf]
    %v934 = vld [vmem:[%s924 + $0x24] sm:$0xf]
    %v935 = vld [vmem:[%s924 + $0x28] sm:$0xf]
    %v936 = vld [vmem:[%s924 + $0x2c] sm:$0xf]
    %v937 = vld [vmem:[%s924 + $0x30] sm:$0xf]
    %v938 = vld [vmem:[%s924 + $0x34] sm:$0xf]
    %v939 = vld [vmem:[%s924 + $0x38] sm:$0xf]
    %v940 = vld [vmem:[%s924 + $0x3c] sm:$0xf]
    %v941 = vld [vmem:[%s924 + $0x40] sm:$0xf]
    %v942 = vld [vmem:[%s924 + $0x44] sm:$0xf]
    %v943 = vld [vmem:[%s924 + $0x48] sm:$0xf]
    %v944 = vld [vmem:[%s924 + $0x4c] sm:$0xf]
    %v945 = vld [vmem:[%s924 + $0x50] sm:$0xf]
    %v946 = vld [vmem:[%s924 + $0x54] sm:$0xf]
    %v947 = vld [vmem:[%s924 + $0x58] sm:$0xf]
    %v948 = vld [vmem:[%s924 + $0x5c] sm:$0xf]
    %s949 = scalar_lea.vmem [#allocation6], 3
    %v950 = vld [vmem:[%s949] sm:$0x1]
    %v952 = vlaneseq
    %v953 = vshrl.u32 %v952, 7
    %v954 = vsub.s32 0, %v953
    %v955 = vrot.slane %v950, %v954
    %v981 = vunpack.c.l.b16 %v925
    %v982 = vunpack.c.l.b16 %v926
    %v983 = vunpack.c.l.b16 %v927
    %v984 = vunpack.c.l.b16 %v928
    %v985 = vunpack.c.l.b16 %v929
    %v986 = vunpack.c.l.b16 %v930
    %v987 = vunpack.c.l.b16 %v931
    %v988 = vunpack.c.l.b16 %v932
    %v989 = vunpack.c.l.b16 %v933
    %v990 = vunpack.c.l.b16 %v934
    %v991 = vunpack.c.l.b16 %v935
    %v992 = vunpack.c.l.b16 %v936
    %v993 = vunpack.c.l.b16 %v937
    %v994 = vunpack.c.l.b16 %v938
    %v995 = vunpack.c.l.b16 %v939
    %v996 = vunpack.c.l.b16 %v940
    %v997 = vunpack.c.l.b16 %v941
    %v998 = vunpack.c.l.b16 %v942
    %v999 = vunpack.c.l.b16 %v943
    %v1000 = vunpack.c.l.b16 %v944
    %v1001 = vunpack.c.l.b16 %v945
    %v1002 = vunpack.c.l.b16 %v946
    %v1003 = vunpack.c.l.b16 %v947
    %v1004 = vunpack.c.l.b16 %v948
    %v1005 = vpack.c.b16 %v982, %v981
    %v1006 = vpack.c.b16 %v984, %v983
    %v1007 = vpack.c.b16 %v986, %v985
    %v1008 = vpack.c.b16 %v988, %v987
    %v1009 = vpack.c.b16 %v990, %v989
    %v1010 = vpack.c.b16 %v992, %v991
    %v1011 = vpack.c.b16 %v994, %v993
    %v1012 = vpack.c.b16 %v996, %v995
    %v1013 = vpack.c.b16 %v998, %v997
    %v1014 = vpack.c.b16 %v1000, %v999
    %v1015 = vpack.c.b16 %v1002, %v1001
    %v1016 = vpack.c.b16 %v1004, %v1003
    %v1030 = vsel %vm216, %v887, 0
    %v1033 = vsel %vm216, %v920, 0
    %1035 = vmatprep.subr.bf16.mxu0 0
    %1036 = vmatpush1.bf16.msra.mxu0 %v1005
    %1037 = vmatprep.subr.bf16.mxu0 0
    %1038 = vmatpush1.bf16.msra.mxu0 %v1006
    %1039 = vmatprep.subr.bf16.mxu0 0
    %1040 = vmatpush1.bf16.msra.mxu0 %v1007
    %1041 = vmatprep.subr.bf16.mxu0 0
    %1042 = vmatpush1.bf16.msra.mxu0 %v1008
    %1043 = vmatprep.subr.bf16.mxu0 0
    %1044 = vmatpush1.bf16.msra.mxu0 %v1009
    %1045 = vmatprep.subr.bf16.mxu0 0
    %1046 = vmatpush1.bf16.msra.mxu0 %v1010
    %1047 = vmatprep.subr.bf16.mxu0 0
    %1048 = vmatpush1.bf16.msra.mxu0 %v1011
    %1049 = vmatprep.subr.bf16.mxu0 0
    %1050 = vmatpush1.bf16.msra.mxu0 %v1012
    %1051 = vmatprep.subr.bf16.mxu0 0
    %1052 = vmatpush1.bf16.msra.mxu0 %v1013
    %1053 = vmatprep.subr.bf16.mxu0 0
    %1054 = vmatpush1.bf16.msra.mxu0 %v1014
    %1055 = vmatprep.subr.bf16.mxu0 0
    %1056 = vmatpush1.bf16.msra.mxu0 %v1015
    %1057 = vmatprep.subr.bf16.mxu0 0
    %1058 = vmatpush1.bf16.msra.mxu0 %v1016
    %1059 = vmatprep.subr.bf16.mxu0 0
    %1060 = vmatpush1.bf16.msra.mxu0 0
    %1061 = vmatprep.subr.bf16.mxu0 0
    %1062 = vmatpush1.bf16.msra.mxu0 0
    %1063 = vmatprep.subr.bf16.mxu0 0
    %1064 = vmatpush1.bf16.msra.mxu0 0
    %1065 = vmatprep.subr.bf16.mxu0 0
    %1066 = vmatpush1.bf16.msra.mxu0 0
    %1067 = vmatprep.mubr.bf16.mxu0 %v1030
    %1068 = vmatmul.mubr.bf16.gmra.mrb[0].mxu0 %v889
    %v1069 = vpop.f32.mrb[0].mxu0
    %v1070 = vadd.f32 %v955, %v1069
    %v1071 = vpop.f32.mrb[0].mxu0
    %v1072 = vpop.f32.mrb[0].mxu0
    %v1073 = vadd.f32 %v955, %v1072
    %v1074 = vpop.f32.mrb[0].mxu0
    %1075 = vmatprep.mubr.bf16.mxu0 %v1033
    %1076 = vmatmul.mubr.bf16.gmra.mrb[0].mxu0 %v922
    %v1077 = vpop.f32.mrb[0].mxu0
    %v1078 = vadd.f32 %v955, %v1077
    %v1079 = vpop.f32.mrb[0].mxu0
    %v1080 = vpop.f32.mrb[0].mxu0
    %v1081 = vadd.f32 %v955, %v1080
    %v1082 = vpop.f32.mrb[0].mxu0
    %1083 = vdwg.mxu0
    %vm1084 = vcmp.gt.f32.partialorder %v1070, 0.0
    %vm1085 = vcmp.gt.f32.partialorder %v1073, 0.0
    %vm1086 = vcmp.gt.f32.partialorder %v1078, 0.0
    %vm1087 = vcmp.gt.f32.partialorder %v1081, 0.0
    %v1088 = vmul.f32 %v1070, 0.2
    %v1089 = vmul.f32 %v1073, 0.2
    %v1090 = vmul.f32 %v1078, 0.2
    %v1091 = vmul.f32 %v1081, 0.2
    %v1092 = vsel %vm1084, %v1070, %v1088
    %v1093 = vsel %vm1085, %v1073, %v1089
    %v1094 = vsel %vm1086, %v1078, %v1090
    %v1095 = vsel %vm1087, %v1081, %v1091
    %v1096 = vpack.c.bf16 %v1093, %v1092
    %v1097 = vpack.c.bf16 %v1095, %v1094
    %v1099 = vshrl.u32 %v1096, 16
    %v1101 = vrot.slane %v1099, 7
    %v1102 = vshll.u32 %v1096, 16
    %v1104 = vor.u32 %v1101, %v1102
    %v1107 = vsel %vm187, 0, %v1104
    %v1108 = vsel %vm187, %v1101, 0
    %v1110 = vshrl.u32 %v1107, 16
    %v1112 = vshll.u32 %v1107, 16
    %v1114 = vrot.slane %v1112, 1
    %v1115 = vor.u32 %v1110, %v1114
    %v1117 = vshll.u32 %v1108, 16
    %v1119 = vrot.slane %v1117, 1
    %v1120 = vsel %vm190, %v1115, %v1119
    %1121 = vrot.lane.b32.xlu0 %v1120, 64
    %v1122 = vpop.permute.xlu0 %1121
    %v1125 = vrot.slane %v1107, 1
    %v1126 = vrot.slane %v1108, 1
    %v1127 = vsel %vm207, %v1125, %v1126
    %vm1128 = vsmask.f32 6400
    %v1129 = vrot.slane %v1110, 1
    %v1130 = vrot.slane %v1112, 2
    %v1131 = vor.u32 %v1129, %v1130
    %v1132 = vshrl.u32 %v1108, 16
    %v1134 = vrot.slane %v1132, 1
    %v1135 = vrot.slane %v1117, 2
    %v1136 = vor.u32 %v1134, %v1135
    %v1137 = vsel %vm1128, %v1131, %v1136
    %1138 = vrot.lane.b32.xlu0 %v1137, 64
    %v1139 = vpop.permute.xlu0 %1138
    %v1141 = vsel %vm216, %v1107, %v1122
    %v1145 = vsel %vm216, %v1127, %v1139
    %v1148 = vshrl.u32 %v1097, 16
    %v1150 = vrot.slane %v1148, 7
    %v1151 = vshll.u32 %v1097, 16
    %v1153 = vor.u32 %v1150, %v1151
    %v1156 = vsel %vm187, 0, %v1153
    %v1157 = vsel %vm187, %v1150, 0
    %v1159 = vshrl.u32 %v1156, 16
    %v1161 = vshll.u32 %v1156, 16
    %v1163 = vrot.slane %v1161, 1
    %v1164 = vor.u32 %v1159, %v1163
    %v1166 = vshll.u32 %v1157, 16
    %v1168 = vrot.slane %v1166, 1
    %v1169 = vsel %vm190, %v1164, %v1168
    %1170 = vrot.lane.b32.xlu0 %v1169, 64
    %v1171 = vpop.permute.xlu0 %1170
    %v1174 = vrot.slane %v1156, 1
    %v1175 = vrot.slane %v1157, 1
    %v1176 = vsel %vm207, %v1174, %v1175
    %v1177 = vrot.slane %v1159, 1
    %v1178 = vrot.slane %v1161, 2
    %v1179 = vor.u32 %v1177, %v1178
    %v1180 = vshrl.u32 %v1157, 16
    %v1182 = vrot.slane %v1180, 1
    %v1183 = vrot.slane %v1166, 2
    %v1184 = vor.u32 %v1182, %v1183
    %v1185 = vsel %vm1128, %v1179, %v1184
    %1186 = vrot.lane.b32.xlu0 %v1185, 64
    %v1187 = vpop.permute.xlu0 %1186
    %v1189 = vsel %vm216, %v1156, %v1171
    %v1193 = vsel %vm216, %v1176, %v1187
    %v1197 = vunpack.c.l.b16 %v158
    %v1198 = vunpack.c.l.b16 %v159
    %v1199 = vpack.c.b16 %v1198, %v1197
    %v1201 = vsel %vm213, %v1199, 0
    %1203 = vmatprep.subr.bf16.mxu0 %v1145
    %1204 = vmatpush1.bf16.msra.mxu0 %v1141
    %1205 = vmatprep.subr.bf16.mxu0 %v1193
    %1206 = vmatpush1.bf16.msra.mxu0 %v1189
    %1207 = vmatprep.subr.bf16.mxu0 0
    %1208 = vmatpush1.bf16.msra.mxu0 0
    %1209 = vmatprep.subr.bf16.mxu0 0
    %1210 = vmatpush1.bf16.msra.mxu0 0
    %1211 = vmatprep.subr.bf16.mxu0 0
    %1212 = vmatpush1.bf16.msra.mxu0 0
    %1213 = vmatprep.subr.bf16.mxu0 0
    %1214 = vmatpush1.bf16.msra.mxu0 0
    %1215 = vmatprep.subr.bf16.mxu0 0
    %1216 = vmatpush1.bf16.msra.mxu0 0
    %1217 = vmatprep.subr.bf16.mxu0 0
    %1218 = vmatpush1.bf16.msra.mxu0 0
    %1219 = vmatprep.subr.bf16.mxu0 0
    %1220 = vmatpush1.bf16.msra.mxu0 0
    %1221 = vmatprep.subr.bf16.mxu0 0
    %1222 = vmatpush1.bf16.msra.mxu0 0
    %1223 = vmatprep.subr.bf16.mxu0 0
    %1224 = vmatpush1.bf16.msra.mxu0 0
    %1225 = vmatprep.subr.bf16.mxu0 0
    %1226 = vmatpush1.bf16.msra.mxu0 0
    %1227 = vmatprep.subr.bf16.mxu0 0
    %1228 = vmatpush1.bf16.msra.mxu0 0
    %1229 = vmatprep.subr.bf16.mxu0 0
    %1230 = vmatpush1.bf16.msra.mxu0 0
    %1231 = vmatprep.subr.bf16.mxu0 0
    %1232 = vmatpush1.bf16.msra.mxu0 0
    %1233 = vmatprep.subr.bf16.mxu0 0
    %1234 = vmatpush1.bf16.msra.mxu0 0
    %1235 = vmatprep.mubr.bf16.mxu0 0
    %1236 = vmatmul.mubr.bf16.gmra.mrb[0].mxu0 %v1201
    %v1237 = vpop.f32.mrb[0].mxu0
    %v1238 = vadd.f32 0.0, %v1237
    %v1239 = vpop.f32.mrb[0].mxu0
    %v1240 = vadd.f32 0.0, %v1239
    %v1241 = vpop.f32.mrb[0].mxu0
    %v1242 = vadd.f32 0.0, %v1241
    %v1243 = vpop.f32.mrb[0].mxu0
    %v1244 = vadd.f32 0.0, %v1243
    %1245 = vdwg.mxu0
    %v1246 = vpack.c.bf16 %v1242, %v1238
    %v1247 = vpack.c.bf16 %v1244, %v1240
    %s1248 = scalar_lea.vmem %s2, 512
    %v1249 = vld [vmem:[%s1248] sm:$0xf]
    %v1250 = vld [vmem:[%s1248 + $0x4] sm:$0xf]
    %v1251 = vld [vmem:[%s1248 + $0x8] sm:$0xf]
    %v1252 = vld [vmem:[%s1248 + $0xc] sm:$0xf]
    %v1253 = vld [vmem:[%s1248 + $0x10] sm:$0xf]
    %v1254 = vld [vmem:[%s1248 + $0x14] sm:$0xf]
    %v1255 = vld [vmem:[%s1248 + $0x18] sm:$0xf]
    %v1256 = vld [vmem:[%s1248 + $0x1c] sm:$0xf]
    %v1257 = vld [vmem:[%s1248 + $0x20] sm:$0xf]
    %v1258 = vld [vmem:[%s1248 + $0x24] sm:$0xf]
    %v1259 = vld [vmem:[%s1248 + $0x28] sm:$0xf]
    %v1260 = vld [vmem:[%s1248 + $0x2c] sm:$0xf]
    %v1261 = vld [vmem:[%s1248 + $0x30] sm:$0xf]
    %v1262 = vld [vmem:[%s1248 + $0x34] sm:$0xf]
    %v1263 = vld [vmem:[%s1248 + $0x38] sm:$0xf]
    %v1264 = vld [vmem:[%s1248 + $0x3c] sm:$0xf]
    %v1265 = vld [vmem:[%s1248 + $0x40] sm:$0xf]
    %v1266 = vld [vmem:[%s1248 + $0x44] sm:$0xf]
    %v1267 = vld [vmem:[%s1248 + $0x48] sm:$0xf]
    %v1268 = vld [vmem:[%s1248 + $0x4c] sm:$0xf]
    %v1269 = vld [vmem:[%s1248 + $0x50] sm:$0xf]
    %v1270 = vld [vmem:[%s1248 + $0x54] sm:$0xf]
    %v1271 = vld [vmem:[%s1248 + $0x58] sm:$0xf]
    %v1272 = vld [vmem:[%s1248 + $0x5c] sm:$0xf]
    %v1273 = vld [vmem:[%s1248 + $0x60] sm:$0xf]
    %v1274 = vld [vmem:[%s1248 + $0x64] sm:$0xf]
    %v1275 = vld [vmem:[%s1248 + $0x68] sm:$0xf]
    %v1276 = vld [vmem:[%s1248 + $0x6c] sm:$0xf]
    %v1277 = vld [vmem:[%s1248 + $0x70] sm:$0xf]
    %v1278 = vld [vmem:[%s1248 + $0x74] sm:$0xf]
    %v1279 = vld [vmem:[%s1248 + $0x78] sm:$0xf]
    %v1280 = vld [vmem:[%s1248 + $0x7c] sm:$0xf]
    %s1281 = scalar_lea.vmem [#allocation6], 4
    %v1282 = vld [vmem:[%s1281] sm:$0x1]
    %v1284 = vlaneseq
    %v1285 = vshrl.u32 %v1284, 7
    %v1286 = vsub.s32 0, %v1285
    %v1287 = vrot.slane %v1282, %v1286
    %v1321 = vunpack.c.l.b16 %v1249
    %v1322 = vunpack.c.l.b16 %v1250
    %v1323 = vunpack.c.l.b16 %v1251
    %v1324 = vunpack.c.l.b16 %v1252
    %v1325 = vunpack.c.l.b16 %v1253
    %v1326 = vunpack.c.l.b16 %v1254
    %v1327 = vunpack.c.l.b16 %v1255
    %v1328 = vunpack.c.l.b16 %v1256
    %v1329 = vunpack.c.l.b16 %v1257
    %v1330 = vunpack.c.l.b16 %v1258
    %v1331 = vunpack.c.l.b16 %v1259
    %v1332 = vunpack.c.l.b16 %v1260
    %v1333 = vunpack.c.l.b16 %v1261
    %v1334 = vunpack.c.l.b16 %v1262
    %v1335 = vunpack.c.l.b16 %v1263
    %v1336 = vunpack.c.l.b16 %v1264
    %v1337 = vunpack.c.l.b16 %v1265
    %v1338 = vunpack.c.l.b16 %v1266
    %v1339 = vunpack.c.l.b16 %v1267
    %v1340 = vunpack.c.l.b16 %v1268
    %v1341 = vunpack.c.l.b16 %v1269
    %v1342 = vunpack.c.l.b16 %v1270
    %v1343 = vunpack.c.l.b16 %v1271
    %v1344 = vunpack.c.l.b16 %v1272
    %v1345 = vunpack.c.l.b16 %v1273
    %v1346 = vunpack.c.l.b16 %v1274
    %v1347 = vunpack.c.l.b16 %v1275
    %v1348 = vunpack.c.l.b16 %v1276
    %v1349 = vunpack.c.l.b16 %v1277
    %v1350 = vunpack.c.l.b16 %v1278
    %v1351 = vunpack.c.l.b16 %v1279
    %v1352 = vunpack.c.l.b16 %v1280
    %v1353 = vpack.c.b16 %v1322, %v1321
    %v1354 = vpack.c.b16 %v1324, %v1323
    %v1355 = vpack.c.b16 %v1326, %v1325
    %v1356 = vpack.c.b16 %v1328, %v1327
    %v1357 = vpack.c.b16 %v1330, %v1329
    %v1358 = vpack.c.b16 %v1332, %v1331
    %v1359 = vpack.c.b16 %v1334, %v1333
    %v1360 = vpack.c.b16 %v1336, %v1335
    %v1361 = vpack.c.b16 %v1338, %v1337
    %v1362 = vpack.c.b16 %v1340, %v1339
    %v1363 = vpack.c.b16 %v1342, %v1341
    %v1364 = vpack.c.b16 %v1344, %v1343
    %v1365 = vpack.c.b16 %v1346, %v1345
    %v1366 = vpack.c.b16 %v1348, %v1347
    %v1367 = vpack.c.b16 %v1350, %v1349
    %v1368 = vpack.c.b16 %v1352, %v1351
    %1385 = vmatprep.subr.bf16.mxu0 0
    %1386 = vmatpush1.bf16.msra.mxu0 %v1353
    %1387 = vmatprep.subr.bf16.mxu0 0
    %1388 = vmatpush1.bf16.msra.mxu0 %v1354
    %1389 = vmatprep.subr.bf16.mxu0 0
    %1390 = vmatpush1.bf16.msra.mxu0 %v1355
    %1391 = vmatprep.subr.bf16.mxu0 0
    %1392 = vmatpush1.bf16.msra.mxu0 %v1356
    %1393 = vmatprep.subr.bf16.mxu0 0
    %1394 = vmatpush1.bf16.msra.mxu0 %v1357
    %1395 = vmatprep.subr.bf16.mxu0 0
    %1396 = vmatpush1.bf16.msra.mxu0 %v1358
    %1397 = vmatprep.subr.bf16.mxu0 0
    %1398 = vmatpush1.bf16.msra.mxu0 %v1359
    %1399 = vmatprep.subr.bf16.mxu0 0
    %1400 = vmatpush1.bf16.msra.mxu0 %v1360
    %1401 = vmatprep.subr.bf16.mxu0 0
    %1402 = vmatpush1.bf16.msra.mxu0 %v1361
    %1403 = vmatprep.subr.bf16.mxu0 0
    %1404 = vmatpush1.bf16.msra.mxu0 %v1362
    %1405 = vmatprep.subr.bf16.mxu0 0
    %1406 = vmatpush1.bf16.msra.mxu0 %v1363
    %1407 = vmatprep.subr.bf16.mxu0 0
    %1408 = vmatpush1.bf16.msra.mxu0 %v1364
    %1409 = vmatprep.subr.bf16.mxu0 0
    %1410 = vmatpush1.bf16.msra.mxu0 %v1365
    %1411 = vmatprep.subr.bf16.mxu0 0
    %1412 = vmatpush1.bf16.msra.mxu0 %v1366
    %1413 = vmatprep.subr.bf16.mxu0 0
    %1414 = vmatpush1.bf16.msra.mxu0 %v1367
    %1415 = vmatprep.subr.bf16.mxu0 0
    %1416 = vmatpush1.bf16.msra.mxu0 %v1368
    %1417 = vmatprep.mubr.bf16.mxu0 %v1247
    %1418 = vmatmul.mubr.bf16.gmra.mrb[0].mxu0 %v1246
    %v1419 = vpop.f32.mrb[0].mxu0
    %v1420 = vadd.f32 %v1287, %v1419
    %v1421 = vpop.f32.mrb[0].mxu0
    %v1422 = vpop.f32.mrb[0].mxu0
    %v1423 = vadd.f32 %v1287, %v1422
    %v1424 = vpop.f32.mrb[0].mxu0
    %1425 = vdwg.mxu0
    %vm1426 = vcmp.gt.f32.partialorder %v1420, 0.0
    %vm1427 = vcmp.gt.f32.partialorder %v1423, 0.0
    %v1428 = vmul.f32 %v1420, 0.2
    %v1429 = vmul.f32 %v1423, 0.2
    %v1430 = vsel %vm1426, %v1420, %v1428
    %v1431 = vsel %vm1427, %v1423, %v1429
    %v1432 = vpack.c.bf16 %v1431, %v1430
    %v1434 = vshrl.u32 %v1432, 16
    %v1436 = vrot.slane %v1434, 7
    %v1437 = vshll.u32 %v1432, 16
    %v1439 = vor.u32 %v1436, %v1437
    %v1441 = vsel %vm187, 0, %v1439
    %vm1442 = vcmask 1044480
    %vm1443 = vsmask.f32 4352
    %vm1444 = vmand %vm1442, %vm1443
    %v1445 = vsel %vm1444, %v1441, 0
    %v1447 = vshrl.u32 %v1445, 16
    %v1449 = vshll.u32 %v1445, 16
    %v1451 = vrot.slane %v1449, 1
    %v1452 = vor.u32 %v1447, %v1451
    %1453 = vrot.lane.b32.xlu0 %v1452, 64
    %v1454 = vpop.permute.xlu0 %1453
    %v1456 = vrot.slane %v1445, 1
    %v1457 = vrot.slane %v1447, 1
    %v1458 = vrot.slane %v1449, 2
    %v1459 = vor.u32 %v1457, %v1458
    %1460 = vrot.lane.b32.xlu0 %v1459, 64
    %v1461 = vpop.permute.xlu0 %1460
    %v1463 = vsel %vm216, %v1445, %v1454
    %v1466 = vsel %vm216, %v1456, %v1461
    %v1467 = vrot.slane %v1434, 3
    %v1468 = vrot.slane %v1437, 4
    %v1469 = vor.u32 %v1467, %v1468
    %v1471 = vsel %vm187, 0, %v1469
    %v1472 = vsel %vm1444, %v1471, 0
    %v1474 = vshrl.u32 %v1472, 16
    %v1476 = vshll.u32 %v1472, 16
    %v1478 = vrot.slane %v1476, 1
    %v1479 = vor.u32 %v1474, %v1478
    %1480 = vrot.lane.b32.xlu0 %v1479, 64
    %v1481 = vpop.permute.xlu0 %1480
    %v1483 = vrot.slane %v1472, 1
    %v1484 = vrot.slane %v1474, 1
    %v1485 = vrot.slane %v1476, 2
    %v1486 = vor.u32 %v1484, %v1485
    %1487 = vrot.lane.b32.xlu0 %v1486, 64
    %v1488 = vpop.permute.xlu0 %1487
    %v1490 = vsel %vm216, %v1472, %v1481
    %v1493 = vsel %vm216, %v1483, %v1488
    %v1496 = vrot.slane %v1490, 4
    %v1497 = vrot.slane %v1493, 4
    %vm1498 = vcmask 1043456
    %v1500 = vsel %vm1498, %v1463, %v1496
    %v1503 = vsel %vm1498, %v1466, %v1497
    %v1507 = vunpack.c.l.b16 %v161
    %v1508 = vunpack.c.l.b16 %v162
    %v1509 = vpack.c.b16 %v1508, %v1507
    %vm1510 = vcmask 130048
    %v1512 = vsel %vm1510, %v1509, 0
    %1514 = vmatprep.subr.bf16.mxu0 %v1503
    %1515 = vmatpush1.bf16.msra.mxu0 %v1500
    %1516 = vmatprep.subr.bf16.mxu0 0
    %1517 = vmatpush1.bf16.msra.mxu0 0
    %1518 = vmatprep.subr.bf16.mxu0 0
    %1519 = vmatpush1.bf16.msra.mxu0 0
    %1520 = vmatprep.subr.bf16.mxu0 0
    %1521 = vmatpush1.bf16.msra.mxu0 0
    %1522 = vmatprep.subr.bf16.mxu0 0
    %1523 = vmatpush1.bf16.msra.mxu0 0
    %1524 = vmatprep.subr.bf16.mxu0 0
    %1525 = vmatpush1.bf16.msra.mxu0 0
    %1526 = vmatprep.subr.bf16.mxu0 0
    %1527 = vmatpush1.bf16.msra.mxu0 0
    %1528 = vmatprep.subr.bf16.mxu0 0
    %1529 = vmatpush1.bf16.msra.mxu0 0
    %1530 = vmatprep.subr.bf16.mxu0 0
    %1531 = vmatpush1.bf16.msra.mxu0 0
    %1532 = vmatprep.subr.bf16.mxu0 0
    %1533 = vmatpush1.bf16.msra.mxu0 0
    %1534 = vmatprep.subr.bf16.mxu0 0
    %1535 = vmatpush1.bf16.msra.mxu0 0
    %1536 = vmatprep.subr.bf16.mxu0 0
    %1537 = vmatpush1.bf16.msra.mxu0 0
    %1538 = vmatprep.subr.bf16.mxu0 0
    %1539 = vmatpush1.bf16.msra.mxu0 0
    %1540 = vmatprep.subr.bf16.mxu0 0
    %1541 = vmatpush1.bf16.msra.mxu0 0
    %1542 = vmatprep.subr.bf16.mxu0 0
    %1543 = vmatpush1.bf16.msra.mxu0 0
    %1544 = vmatprep.subr.bf16.mxu0 0
    %1545 = vmatpush1.bf16.msra.mxu0 0
    %1546 = vmatprep.mubr.bf16.mxu0 0
    %1547 = vmatmul.mubr.bf16.gmra.mrb[0].mxu0 %v1512
    %v1548 = vpop.f32.mrb[0].mxu0
    %v1549 = vadd.f32 0.0, %v1548
    %v1550 = vpop.f32.mrb[0].mxu0
    %v1551 = vadd.f32 0.0, %v1550
    %v1552 = vpop.f32.mrb[0].mxu0
    %v1553 = vadd.f32 0.0, %v1552
    %v1554 = vpop.f32.mrb[0].mxu0
    %v1555 = vadd.f32 0.0, %v1554
    %1556 = vdwg.mxu0
    %v1557 = vpack.c.bf16 %v1553, %v1549
    %v1558 = vpack.c.bf16 %v1555, %v1551
    %s1559 = scalar_lea.vmem %s2, 640
    %v1560 = vld [vmem:[%s1559] sm:$0xf]
    %v1561 = vld [vmem:[%s1559 + $0x4] sm:$0xf]
    %v1562 = vld [vmem:[%s1559 + $0x8] sm:$0xf]
    %v1563 = vld [vmem:[%s1559 + $0xc] sm:$0xf]
    %v1564 = vld [vmem:[%s1559 + $0x10] sm:$0xf]
    %v1565 = vld [vmem:[%s1559 + $0x14] sm:$0xf]
    %v1566 = vld [vmem:[%s1559 + $0x18] sm:$0xf]
    %v1567 = vld [vmem:[%s1559 + $0x1c] sm:$0xf]
    %v1568 = vld [vmem:[%s1559 + $0x20] sm:$0xf]
    %v1569 = vld [vmem:[%s1559 + $0x24] sm:$0xf]
    %v1570 = vld [vmem:[%s1559 + $0x28] sm:$0xf]
    %v1571 = vld [vmem:[%s1559 + $0x2c] sm:$0xf]
    %v1572 = vld [vmem:[%s1559 + $0x30] sm:$0xf]
    %v1573 = vld [vmem:[%s1559 + $0x34] sm:$0xf]
    %v1574 = vld [vmem:[%s1559 + $0x38] sm:$0xf]
    %v1575 = vld [vmem:[%s1559 + $0x3c] sm:$0xf]
    %v1576 = vld [vmem:[%s1559 + $0x40] sm:$0xf]
    %v1577 = vld [vmem:[%s1559 + $0x44] sm:$0xf]
    %v1578 = vld [vmem:[%s1559 + $0x48] sm:$0xf]
    %v1579 = vld [vmem:[%s1559 + $0x4c] sm:$0xf]
    %v1580 = vld [vmem:[%s1559 + $0x50] sm:$0xf]
    %v1581 = vld [vmem:[%s1559 + $0x54] sm:$0xf]
    %v1582 = vld [vmem:[%s1559 + $0x58] sm:$0xf]
    %v1583 = vld [vmem:[%s1559 + $0x5c] sm:$0xf]
    %v1584 = vld [vmem:[%s1559 + $0x60] sm:$0xf]
    %v1585 = vld [vmem:[%s1559 + $0x64] sm:$0xf]
    %v1586 = vld [vmem:[%s1559 + $0x68] sm:$0xf]
    %v1587 = vld [vmem:[%s1559 + $0x6c] sm:$0xf]
    %v1588 = vld [vmem:[%s1559 + $0x70] sm:$0xf]
    %v1589 = vld [vmem:[%s1559 + $0x74] sm:$0xf]
    %v1590 = vld [vmem:[%s1559 + $0x78] sm:$0xf]
    %v1591 = vld [vmem:[%s1559 + $0x7c] sm:$0xf]
    %s1592 = scalar_lea.vmem [#allocation6], 5
    %v1593 = vld [vmem:[%s1592] sm:$0x1]
    %v1595 = vlaneseq
    %v1596 = vshrl.u32 %v1595, 7
    %v1597 = vsub.s32 0, %v1596
    %v1598 = vrot.slane %v1593, %v1597
    %v1632 = vunpack.c.l.b16 %v1560
    %v1633 = vunpack.c.l.b16 %v1561
    %v1634 = vunpack.c.l.b16 %v1562
    %v1635 = vunpack.c.l.b16 %v1563
    %v1636 = vunpack.c.l.b16 %v1564
    %v1637 = vunpack.c.l.b16 %v1565
    %v1638 = vunpack.c.l.b16 %v1566
    %v1639 = vunpack.c.l.b16 %v1567
    %v1640 = vunpack.c.l.b16 %v1568
    %v1641 = vunpack.c.l.b16 %v1569
    %v1642 = vunpack.c.l.b16 %v1570
    %v1643 = vunpack.c.l.b16 %v1571
    %v1644 = vunpack.c.l.b16 %v1572
    %v1645 = vunpack.c.l.b16 %v1573
    %v1646 = vunpack.c.l.b16 %v1574
    %v1647 = vunpack.c.l.b16 %v1575
    %v1648 = vunpack.c.l.b16 %v1576
    %v1649 = vunpack.c.l.b16 %v1577
    %v1650 = vunpack.c.l.b16 %v1578
    %v1651 = vunpack.c.l.b16 %v1579
    %v1652 = vunpack.c.l.b16 %v1580
    %v1653 = vunpack.c.l.b16 %v1581
    %v1654 = vunpack.c.l.b16 %v1582
    %v1655 = vunpack.c.l.b16 %v1583
    %v1656 = vunpack.c.l.b16 %v1584
    %v1657 = vunpack.c.l.b16 %v1585
    %v1658 = vunpack.c.l.b16 %v1586
    %v1659 = vunpack.c.l.b16 %v1587
    %v1660 = vunpack.c.l.b16 %v1588
    %v1661 = vunpack.c.l.b16 %v1589
    %v1662 = vunpack.c.l.b16 %v1590
    %v1663 = vunpack.c.l.b16 %v1591
    %v1664 = vpack.c.b16 %v1633, %v1632
    %v1665 = vpack.c.b16 %v1635, %v1634
    %v1666 = vpack.c.b16 %v1637, %v1636
    %v1667 = vpack.c.b16 %v1639, %v1638
    %v1668 = vpack.c.b16 %v1641, %v1640
    %v1669 = vpack.c.b16 %v1643, %v1642
    %v1670 = vpack.c.b16 %v1645, %v1644
    %v1671 = vpack.c.b16 %v1647, %v1646
    %v1672 = vpack.c.b16 %v1649, %v1648
    %v1673 = vpack.c.b16 %v1651, %v1650
    %v1674 = vpack.c.b16 %v1653, %v1652
    %v1675 = vpack.c.b16 %v1655, %v1654
    %v1676 = vpack.c.b16 %v1657, %v1656
    %v1677 = vpack.c.b16 %v1659, %v1658
    %v1678 = vpack.c.b16 %v1661, %v1660
    %v1679 = vpack.c.b16 %v1663, %v1662
    %1696 = vmatprep.subr.bf16.mxu0 0
    %1697 = vmatpush1.bf16.msra.mxu0 %v1664
    %1698 = vmatprep.subr.bf16.mxu0 0
    %1699 = vmatpush1.bf16.msra.mxu0 %v1665
    %1700 = vmatprep.subr.bf16.mxu0 0
    %1701 = vmatpush1.bf16.msra.mxu0 %v1666
    %1702 = vmatprep.subr.bf16.mxu0 0
    %1703 = vmatpush1.bf16.msra.mxu0 %v1667
    %1704 = vmatprep.subr.bf16.mxu0 0
    %1705 = vmatpush1.bf16.msra.mxu0 %v1668
    %1706 = vmatprep.subr.bf16.mxu0 0
    %1707 = vmatpush1.bf16.msra.mxu0 %v1669
    %1708 = vmatprep.subr.bf16.mxu0 0
    %1709 = vmatpush1.bf16.msra.mxu0 %v1670
    %1710 = vmatprep.subr.bf16.mxu0 0
    %1711 = vmatpush1.bf16.msra.mxu0 %v1671
    %1712 = vmatprep.subr.bf16.mxu0 0
    %1713 = vmatpush1.bf16.msra.mxu0 %v1672
    %1714 = vmatprep.subr.bf16.mxu0 0
    %1715 = vmatpush1.bf16.msra.mxu0 %v1673
    %1716 = vmatprep.subr.bf16.mxu0 0
    %1717 = vmatpush1.bf16.msra.mxu0 %v1674
    %1718 = vmatprep.subr.bf16.mxu0 0
    %1719 = vmatpush1.bf16.msra.mxu0 %v1675
    %1720 = vmatprep.subr.bf16.mxu0 0
    %1721 = vmatpush1.bf16.msra.mxu0 %v1676
    %1722 = vmatprep.subr.bf16.mxu0 0
    %1723 = vmatpush1.bf16.msra.mxu0 %v1677
    %1724 = vmatprep.subr.bf16.mxu0 0
    %1725 = vmatpush1.bf16.msra.mxu0 %v1678
    %1726 = vmatprep.subr.bf16.mxu0 0
    %1727 = vmatpush1.bf16.msra.mxu0 %v1679
    %1728 = vmatprep.mubr.bf16.mxu0 %v1558
    %1729 = vmatmul.mubr.bf16.gmra.mrb[0].mxu0 %v1557
    %v1730 = vpop.f32.mrb[0].mxu0
    %v1731 = vadd.f32 %v1598, %v1730
    %v1732 = vpop.f32.mrb[0].mxu0
    %v1733 = vpop.f32.mrb[0].mxu0
    %v1734 = vadd.f32 %v1598, %v1733
    %v1735 = vpop.f32.mrb[0].mxu0
    %1736 = vdwg.mxu0
    %vm1737 = vcmp.gt.f32.partialorder %v1731, 0.0
    %vm1738 = vcmp.gt.f32.partialorder %v1734, 0.0
    %v1739 = vmul.f32 %v1731, 0.2
    %v1740 = vmul.f32 %v1734, 0.2
    %v1741 = vsel %vm1737, %v1731, %v1739
    %v1742 = vsel %vm1738, %v1734, %v1740
    %v1743 = vadd.f32 %v1741, %v1430
    %v1744 = vadd.f32 %v1742, %v1431
    %v1745 = vpack.c.bf16 %v1744, %v1743
    %v1747 = vshrl.u32 %v1745, 16
    %v1749 = vrot.slane %v1747, 7
    %v1750 = vshll.u32 %v1745, 16
    %v1752 = vor.u32 %v1749, %v1750
    %v1754 = vsel %vm187, 0, %v1752
    %v1755 = vsel %vm1444, %v1754, 0
    %v1757 = vshrl.u32 %v1755, 16
    %v1759 = vshll.u32 %v1755, 16
    %v1761 = vrot.slane %v1759, 1
    %v1762 = vor.u32 %v1757, %v1761
    %1763 = vrot.lane.b32.xlu0 %v1762, 64
    %v1764 = vpop.permute.xlu0 %1763
    %v1766 = vrot.slane %v1755, 1
    %v1768 = vsel %vm216, %v1755, %v1764
    %v1769 = vrot.slane %v1747, 3
    %v1770 = vrot.slane %v1750, 4
    %v1771 = vor.u32 %v1769, %v1770
    %v1773 = vsel %vm187, 0, %v1771
    %v1774 = vsel %vm1444, %v1773, 0
    %v1776 = vshrl.u32 %v1774, 16
    %v1778 = vshll.u32 %v1774, 16
    %v1780 = vrot.slane %v1778, 1
    %v1781 = vor.u32 %v1776, %v1780
    %1782 = vrot.lane.b32.xlu0 %v1781, 64
    %v1783 = vpop.permute.xlu0 %1782
    %v1785 = vrot.slane %v1774, 1
    %v1787 = vsel %vm216, %v1774, %v1783
    %v1789 = vrot.slane %v1787, 4
    %v1790 = vrot.slane %v1785, 4
    %v1792 = vsel %vm1498, %v1768, %v1789
    %v1796 = vsel %vm1498, %v1766, %v1790
    %v1802 = vunpack.c.l.b16 %v166
    %v1803 = vunpack.c.l.b16 %v167
    %v1804 = vunpack.c.l.b16 %v168
    %v1805 = vunpack.c.l.b16 %v169
    %v1806 = vpack.c.b16 %v1803, %v1802
    %v1807 = vpack.c.b16 %v1805, %v1804
    %v1809 = vsel %vm1510, %v1806, 0
    %v1812 = vsel %vm1510, %v1807, 0
    %1814 = vmatprep.subr.bf16.mxu0 %v1796
    %1815 = vmatpush1.bf16.msra.mxu0 %v1792
    %1816 = vmatprep.subr.bf16.mxu0 0
    %1817 = vmatpush1.bf16.msra.mxu0 0
    %1818 = vmatprep.subr.bf16.mxu0 0
    %1819 = vmatpush1.bf16.msra.mxu0 0
    %1820 = vmatprep.subr.bf16.mxu0 0
    %1821 = vmatpush1.bf16.msra.mxu0 0
    %1822 = vmatprep.subr.bf16.mxu0 0
    %1823 = vmatpush1.bf16.msra.mxu0 0
    %1824 = vmatprep.subr.bf16.mxu0 0
    %1825 = vmatpush1.bf16.msra.mxu0 0
    %1826 = vmatprep.subr.bf16.mxu0 0
    %1827 = vmatpush1.bf16.msra.mxu0 0
    %1828 = vmatprep.subr.bf16.mxu0 0
    %1829 = vmatpush1.bf16.msra.mxu0 0
    %1830 = vmatprep.subr.bf16.mxu0 0
    %1831 = vmatpush1.bf16.msra.mxu0 0
    %1832 = vmatprep.subr.bf16.mxu0 0
    %1833 = vmatpush1.bf16.msra.mxu0 0
    %1834 = vmatprep.subr.bf16.mxu0 0
    %1835 = vmatpush1.bf16.msra.mxu0 0
    %1836 = vmatprep.subr.bf16.mxu0 0
    %1837 = vmatpush1.bf16.msra.mxu0 0
    %1838 = vmatprep.subr.bf16.mxu0 0
    %1839 = vmatpush1.bf16.msra.mxu0 0
    %1840 = vmatprep.subr.bf16.mxu0 0
    %1841 = vmatpush1.bf16.msra.mxu0 0
    %1842 = vmatprep.subr.bf16.mxu0 0
    %1843 = vmatpush1.bf16.msra.mxu0 0
    %1844 = vmatprep.subr.bf16.mxu0 0
    %1845 = vmatpush1.bf16.msra.mxu0 0
    %1846 = vmatprep.mubr.bf16.mxu0 0
    %1847 = vmatmul.mubr.bf16.gmra.mrb[0].mxu0 %v1809
    %v1848 = vpop.f32.mrb[0].mxu0
    %v1849 = vadd.f32 0.0, %v1848
    %v1850 = vpop.f32.mrb[0].mxu0
    %v1851 = vadd.f32 0.0, %v1850
    %v1852 = vpop.f32.mrb[0].mxu0
    %v1853 = vadd.f32 0.0, %v1852
    %v1854 = vpop.f32.mrb[0].mxu0
    %v1855 = vadd.f32 0.0, %v1854
    %1856 = vmatprep.mubr.bf16.mxu0 0
    %1857 = vmatmul.mubr.bf16.gmra.mrb[0].mxu0 %v1812
    %v1858 = vpop.f32.mrb[0].mxu0
    %v1859 = vadd.f32 0.0, %v1858
    %v1860 = vpop.f32.mrb[0].mxu0
    %v1861 = vadd.f32 0.0, %v1860
    %v1862 = vpop.f32.mrb[0].mxu0
    %v1863 = vadd.f32 0.0, %v1862
    %v1864 = vpop.f32.mrb[0].mxu0
    %v1865 = vadd.f32 0.0, %v1864
    %1866 = vdwg.mxu0
    %v1867 = vpack.c.bf16 %v1853, %v1849
    %v1868 = vpack.c.bf16 %v1855, %v1851
    %v1869 = vpack.c.bf16 %v1863, %v1859
    %v1870 = vpack.c.bf16 %v1865, %v1861
    %s1871 = scalar_lea.vmem %s2, 768
    %v1872 = vld [vmem:[%s1871] sm:$0xf]
    %v1873 = vld [vmem:[%s1871 + $0x4] sm:$0xf]
    %v1874 = vld [vmem:[%s1871 + $0x8] sm:$0xf]
    %v1875 = vld [vmem:[%s1871 + $0xc] sm:$0xf]
    %v1876 = vld [vmem:[%s1871 + $0x10] sm:$0xf]
    %v1877 = vld [vmem:[%s1871 + $0x14] sm:$0xf]
    %v1878 = vld [vmem:[%s1871 + $0x18] sm:$0xf]
    %v1879 = vld [vmem:[%s1871 + $0x1c] sm:$0xf]
    %v1880 = vld [vmem:[%s1871 + $0x20] sm:$0xf]
    %v1881 = vld [vmem:[%s1871 + $0x24] sm:$0xf]
    %v1882 = vld [vmem:[%s1871 + $0x28] sm:$0xf]
    %v1883 = vld [vmem:[%s1871 + $0x2c] sm:$0xf]
    %v1884 = vld [vmem:[%s1871 + $0x30] sm:$0xf]
    %v1885 = vld [vmem:[%s1871 + $0x34] sm:$0xf]
    %v1886 = vld [vmem:[%s1871 + $0x38] sm:$0xf]
    %v1887 = vld [vmem:[%s1871 + $0x3c] sm:$0xf]
    %v1888 = vld [vmem:[%s1871 + $0x40] sm:$0xf]
    %v1889 = vld [vmem:[%s1871 + $0x44] sm:$0xf]
    %v1890 = vld [vmem:[%s1871 + $0x48] sm:$0xf]
    %v1891 = vld [vmem:[%s1871 + $0x4c] sm:$0xf]
    %v1892 = vld [vmem:[%s1871 + $0x50] sm:$0xf]
    %v1893 = vld [vmem:[%s1871 + $0x54] sm:$0xf]
    %v1894 = vld [vmem:[%s1871 + $0x58] sm:$0xf]
    %v1895 = vld [vmem:[%s1871 + $0x5c] sm:$0xf]
    %s1896 = scalar_lea.vmem [#allocation6], 6
    %v1897 = vld [vmem:[%s1896] sm:$0x1]
    %v1899 = vlaneseq
    %v1900 = vshrl.u32 %v1899, 7
    %v1901 = vsub.s32 0, %v1900
    %v1902 = vrot.slane %v1897, %v1901
    %v1928 = vunpack.c.l.b16 %v1872
    %v1929 = vunpack.c.l.b16 %v1873
    %v1930 = vunpack.c.l.b16 %v1874
    %v1931 = vunpack.c.l.b16 %v1875
    %v1932 = vunpack.c.l.b16 %v1876
    %v1933 = vunpack.c.l.b16 %v1877
    %v1934 = vunpack.c.l.b16 %v1878
    %v1935 = vunpack.c.l.b16 %v1879
    %v1936 = vunpack.c.l.b16 %v1880
    %v1937 = vunpack.c.l.b16 %v1881
    %v1938 = vunpack.c.l.b16 %v1882
    %v1939 = vunpack.c.l.b16 %v1883
    %v1940 = vunpack.c.l.b16 %v1884
    %v1941 = vunpack.c.l.b16 %v1885
    %v1942 = vunpack.c.l.b16 %v1886
    %v1943 = vunpack.c.l.b16 %v1887
    %v1944 = vunpack.c.l.b16 %v1888
    %v1945 = vunpack.c.l.b16 %v1889
    %v1946 = vunpack.c.l.b16 %v1890
    %v1947 = vunpack.c.l.b16 %v1891
    %v1948 = vunpack.c.l.b16 %v1892
    %v1949 = vunpack.c.l.b16 %v1893
    %v1950 = vunpack.c.l.b16 %v1894
    %v1951 = vunpack.c.l.b16 %v1895
    %v1952 = vpack.c.b16 %v1929, %v1928
    %v1953 = vpack.c.b16 %v1931, %v1930
    %v1954 = vpack.c.b16 %v1933, %v1932
    %v1955 = vpack.c.b16 %v1935, %v1934
    %v1956 = vpack.c.b16 %v1937, %v1936
    %v1957 = vpack.c.b16 %v1939, %v1938
    %v1958 = vpack.c.b16 %v1941, %v1940
    %v1959 = vpack.c.b16 %v1943, %v1942
    %v1960 = vpack.c.b16 %v1945, %v1944
    %v1961 = vpack.c.b16 %v1947, %v1946
    %v1962 = vpack.c.b16 %v1949, %v1948
    %v1963 = vpack.c.b16 %v1951, %v1950
    %v1977 = vsel %vm216, %v1868, 0
    %v1980 = vsel %vm216, %v1870, 0
    %1982 = vmatprep.subr.bf16.mxu0 0
    %1983 = vmatpush1.bf16.msra.mxu0 %v1952
    %1984 = vmatprep.subr.bf16.mxu0 0
    %1985 = vmatpush1.bf16.msra.mxu0 %v1953
    %1986 = vmatprep.subr.bf16.mxu0 0
    %1987 = vmatpush1.bf16.msra.mxu0 %v1954
    %1988 = vmatprep.subr.bf16.mxu0 0
    %1989 = vmatpush1.bf16.msra.mxu0 %v1955
    %1990 = vmatprep.subr.bf16.mxu0 0
    %1991 = vmatpush1.bf16.msra.mxu0 %v1956
    %1992 = vmatprep.subr.bf16.mxu0 0
    %1993 = vmatpush1.bf16.msra.mxu0 %v1957
    %1994 = vmatprep.subr.bf16.mxu0 0
    %1995 = vmatpush1.bf16.msra.mxu0 %v1958
    %1996 = vmatprep.subr.bf16.mxu0 0
    %1997 = vmatpush1.bf16.msra.mxu0 %v1959
    %1998 = vmatprep.subr.bf16.mxu0 0
    %1999 = vmatpush1.bf16.msra.mxu0 %v1960
    %2000 = vmatprep.subr.bf16.mxu0 0
    %2001 = vmatpush1.bf16.msra.mxu0 %v1961
    %2002 = vmatprep.subr.bf16.mxu0 0
    %2003 = vmatpush1.bf16.msra.mxu0 %v1962
    %2004 = vmatprep.subr.bf16.mxu0 0
    %2005 = vmatpush1.bf16.msra.mxu0 %v1963
    %2006 = vmatprep.subr.bf16.mxu0 0
    %2007 = vmatpush1.bf16.msra.mxu0 0
    %2008 = vmatprep.subr.bf16.mxu0 0
    %2009 = vmatpush1.bf16.msra.mxu0 0
    %2010 = vmatprep.subr.bf16.mxu0 0
    %2011 = vmatpush1.bf16.msra.mxu0 0
    %2012 = vmatprep.subr.bf16.mxu0 0
    %2013 = vmatpush1.bf16.msra.mxu0 0
    %2014 = vmatprep.mubr.bf16.mxu0 %v1977
    %2015 = vmatmul.mubr.bf16.gmra.mrb[0].mxu0 %v1867
    %v2016 = vpop.f32.mrb[0].mxu0
    %v2017 = vadd.f32 %v1902, %v2016
    %v2018 = vpop.f32.mrb[0].mxu0
    %v2019 = vpop.f32.mrb[0].mxu0
    %v2020 = vadd.f32 %v1902, %v2019
    %v2021 = vpop.f32.mrb[0].mxu0
    %2022 = vmatprep.mubr.bf16.mxu0 %v1980
    %2023 = vmatmul.mubr.bf16.gmra.mrb[0].mxu0 %v1869
    %v2024 = vpop.f32.mrb[0].mxu0
    %v2025 = vadd.f32 %v1902, %v2024
    %v2026 = vpop.f32.mrb[0].mxu0
    %v2027 = vpop.f32.mrb[0].mxu0
    %v2028 = vadd.f32 %v1902, %v2027
    %v2029 = vpop.f32.mrb[0].mxu0
    %2030 = vdwg.mxu0
    %vm2031 = vcmp.gt.f32.partialorder %v2017, 0.0
    %vm2032 = vcmp.gt.f32.partialorder %v2020, 0.0
    %vm2033 = vcmp.gt.f32.partialorder %v2025, 0.0
    %vm2034 = vcmp.gt.f32.partialorder %v2028, 0.0
    %v2035 = vmul.f32 %v2017, 0.2
    %v2036 = vmul.f32 %v2020, 0.2
    %v2037 = vmul.f32 %v2025, 0.2
    %v2038 = vmul.f32 %v2028, 0.2
    %v2039 = vsel %vm2031, %v2017, %v2035
    %v2040 = vsel %vm2032, %v2020, %v2036
    %v2041 = vsel %vm2033, %v2025, %v2037
    %v2042 = vsel %vm2034, %v2028, %v2038
    %v2043 = vadd.f32 %v2039, %v1092
    %v2044 = vadd.f32 %v2040, %v1093
    %v2045 = vadd.f32 %v2041, %v1094
    %v2046 = vadd.f32 %v2042, %v1095
    %v2047 = vpack.c.bf16 %v2044, %v2043
    %v2048 = vpack.c.bf16 %v2046, %v2045
    %v2050 = vshrl.u32 %v2047, 16
    %v2052 = vrot.slane %v2050, 7
    %v2053 = vshll.u32 %v2047, 16
    %v2055 = vor.u32 %v2052, %v2053
    %v2058 = vsel %vm187, 0, %v2055
    %v2059 = vsel %vm187, %v2052, 0
    %v2061 = vshrl.u32 %v2058, 16
    %v2063 = vshll.u32 %v2058, 16
    %v2065 = vrot.slane %v2063, 1
    %v2066 = vor.u32 %v2061, %v2065
    %v2068 = vshll.u32 %v2059, 16
    %v2070 = vrot.slane %v2068, 1
    %v2071 = vsel %vm190, %v2066, %v2070
    %2072 = vrot.lane.b32.xlu0 %v2071, 64
    %v2073 = vpop.permute.xlu0 %2072
    %v2076 = vrot.slane %v2058, 1
    %v2077 = vrot.slane %v2059, 1
    %v2078 = vsel %vm207, %v2076, %v2077
    %v2080 = vsel %vm216, %v2058, %v2073
    %v2083 = vshrl.u32 %v2048, 16
    %v2085 = vrot.slane %v2083, 7
    %v2086 = vshll.u32 %v2048, 16
    %v2088 = vor.u32 %v2085, %v2086
    %v2091 = vsel %vm187, 0, %v2088
    %v2092 = vsel %vm187, %v2085, 0
    %v2094 = vshrl.u32 %v2091, 16
    %v2096 = vshll.u32 %v2091, 16
    %v2098 = vrot.slane %v2096, 1
    %v2099 = vor.u32 %v2094, %v2098
    %v2101 = vshll.u32 %v2092, 16
    %v2103 = vrot.slane %v2101, 1
    %v2104 = vsel %vm190, %v2099, %v2103
    %2105 = vrot.lane.b32.xlu0 %v2104, 64
    %v2106 = vpop.permute.xlu0 %2105
    %v2109 = vrot.slane %v2091, 1
    %v2110 = vrot.slane %v2092, 1
    %v2111 = vsel %vm207, %v2109, %v2110
    %v2113 = vsel %vm216, %v2091, %v2106
    %s2115 = scalar_lea.vmem %s2, 896
    %v2116 = vld [vmem:[%s2115] sm:$0xf]
    %v2117 = vld [vmem:[%s2115 + $0x4] sm:$0xf]
    %v2118 = vld [vmem:[%s2115 + $0x8] sm:$0xf]
    %v2119 = vld [vmem:[%s2115 + $0xc] sm:$0xf]
    %v2120 = vld [vmem:[%s2115 + $0x10] sm:$0xf]
    %v2121 = vld [vmem:[%s2115 + $0x14] sm:$0xf]
    %v2122 = vld [vmem:[%s2115 + $0x18] sm:$0xf]
    %v2123 = vld [vmem:[%s2115 + $0x1c] sm:$0xf]
    %v2124 = vld [vmem:[%s2115 + $0x20] sm:$0xf]
    %v2125 = vld [vmem:[%s2115 + $0x24] sm:$0xf]
    %v2126 = vld [vmem:[%s2115 + $0x28] sm:$0xf]
    %v2127 = vld [vmem:[%s2115 + $0x2c] sm:$0xf]
    %v2128 = vld [vmem:[%s2115 + $0x30] sm:$0xf]
    %v2129 = vld [vmem:[%s2115 + $0x34] sm:$0xf]
    %v2130 = vld [vmem:[%s2115 + $0x38] sm:$0xf]
    %v2131 = vld [vmem:[%s2115 + $0x3c] sm:$0xf]
    %v2132 = vld [vmem:[%s2115 + $0x40] sm:$0xf]
    %v2133 = vld [vmem:[%s2115 + $0x44] sm:$0xf]
    %v2134 = vld [vmem:[%s2115 + $0x48] sm:$0xf]
    %v2135 = vld [vmem:[%s2115 + $0x4c] sm:$0xf]
    %v2136 = vld [vmem:[%s2115 + $0x50] sm:$0xf]
    %v2137 = vld [vmem:[%s2115 + $0x54] sm:$0xf]
    %v2138 = vld [vmem:[%s2115 + $0x58] sm:$0xf]
    %v2139 = vld [vmem:[%s2115 + $0x5c] sm:$0xf]
    %s2140 = scalar_lea.vmem [#allocation6], 7
    %v2141 = vld [vmem:[%s2140] sm:$0x1]
    %v2143 = vlaneseq
    %v2144 = vshrl.u32 %v2143, 7
    %v2145 = vsub.s32 0, %v2144
    %v2146 = vrot.slane %v2141, %v2145
    %v2172 = vunpack.c.l.b16 %v2116
    %v2173 = vunpack.c.l.b16 %v2117
    %v2174 = vunpack.c.l.b16 %v2118
    %v2175 = vunpack.c.l.b16 %v2119
    %v2176 = vunpack.c.l.b16 %v2120
    %v2177 = vunpack.c.l.b16 %v2121
    %v2178 = vunpack.c.l.b16 %v2122
    %v2179 = vunpack.c.l.b16 %v2123
    %v2180 = vunpack.c.l.b16 %v2124
    %v2181 = vunpack.c.l.b16 %v2125
    %v2182 = vunpack.c.l.b16 %v2126
    %v2183 = vunpack.c.l.b16 %v2127
    %v2184 = vunpack.c.l.b16 %v2128
    %v2185 = vunpack.c.l.b16 %v2129
    %v2186 = vunpack.c.l.b16 %v2130
    %v2187 = vunpack.c.l.b16 %v2131
    %v2188 = vunpack.c.l.b16 %v2132
    %v2189 = vunpack.c.l.b16 %v2133
    %v2190 = vunpack.c.l.b16 %v2134
    %v2191 = vunpack.c.l.b16 %v2135
    %v2192 = vunpack.c.l.b16 %v2136
    %v2193 = vunpack.c.l.b16 %v2137
    %v2194 = vunpack.c.l.b16 %v2138
    %v2195 = vunpack.c.l.b16 %v2139
    %v2196 = vpack.c.b16 %v2173, %v2172
    %v2197 = vpack.c.b16 %v2175, %v2174
    %v2198 = vpack.c.b16 %v2177, %v2176
    %v2199 = vpack.c.b16 %v2179, %v2178
    %v2200 = vpack.c.b16 %v2181, %v2180
    %v2201 = vpack.c.b16 %v2183, %v2182
    %v2202 = vpack.c.b16 %v2185, %v2184
    %v2203 = vpack.c.b16 %v2187, %v2186
    %v2204 = vpack.c.b16 %v2189, %v2188
    %v2205 = vpack.c.b16 %v2191, %v2190
    %v2206 = vpack.c.b16 %v2193, %v2192
    %v2207 = vpack.c.b16 %v2195, %v2194
    %v2221 = vsel %vm216, %v2078, 0
    %v2224 = vsel %vm216, %v2111, 0
    %2226 = vmatprep.subr.bf16.mxu0 0
    %2227 = vmatpush1.bf16.msra.mxu0 %v2196
    %2228 = vmatprep.subr.bf16.mxu0 0
    %2229 = vmatpush1.bf16.msra.mxu0 %v2197
    %2230 = vmatprep.subr.bf16.mxu0 0
    %2231 = vmatpush1.bf16.msra.mxu0 %v2198
    %2232 = vmatprep.subr.bf16.mxu0 0
    %2233 = vmatpush1.bf16.msra.mxu0 %v2199
    %2234 = vmatprep.subr.bf16.mxu0 0
    %2235 = vmatpush1.bf16.msra.mxu0 %v2200
    %2236 = vmatprep.subr.bf16.mxu0 0
    %2237 = vmatpush1.bf16.msra.mxu0 %v2201
    %2238 = vmatprep.subr.bf16.mxu0 0
    %2239 = vmatpush1.bf16.msra.mxu0 %v2202
    %2240 = vmatprep.subr.bf16.mxu0 0
    %2241 = vmatpush1.bf16.msra.mxu0 %v2203
    %2242 = vmatprep.subr.bf16.mxu0 0
    %2243 = vmatpush1.bf16.msra.mxu0 %v2204
    %2244 = vmatprep.subr.bf16.mxu0 0
    %2245 = vmatpush1.bf16.msra.mxu0 %v2205
    %2246 = vmatprep.subr.bf16.mxu0 0
    %2247 = vmatpush1.bf16.msra.mxu0 %v2206
    %2248 = vmatprep.subr.bf16.mxu0 0
    %2249 = vmatpush1.bf16.msra.mxu0 %v2207
    %2250 = vmatprep.subr.bf16.mxu0 0
    %2251 = vmatpush1.bf16.msra.mxu0 0
    %2252 = vmatprep.subr.bf16.mxu0 0
    %2253 = vmatpush1.bf16.msra.mxu0 0
    %2254 = vmatprep.subr.bf16.mxu0 0
    %2255 = vmatpush1.bf16.msra.mxu0 0
    %2256 = vmatprep.subr.bf16.mxu0 0
    %2257 = vmatpush1.bf16.msra.mxu0 0
    %2258 = vmatprep.mubr.bf16.mxu0 %v2221
    %2259 = vmatmul.mubr.bf16.gmra.mrb[0].mxu0 %v2080
    %v2260 = vpop.f32.mrb[0].mxu0
    %v2261 = vadd.f32 %v2146, %v2260
    %v2262 = vpop.f32.mrb[0].mxu0
    %v2263 = vpop.f32.mrb[0].mxu0
    %v2264 = vadd.f32 %v2146, %v2263
    %v2265 = vpop.f32.mrb[0].mxu0
    %2266 = vmatprep.mubr.bf16.mxu0 %v2224
    %2267 = vmatmul.mubr.bf16.gmra.mrb[0].mxu0 %v2113
    %v2268 = vpop.f32.mrb[0].mxu0
    %v2269 = vadd.f32 %v2146, %v2268
    %v2270 = vpop.f32.mrb[0].mxu0
    %v2271 = vpop.f32.mrb[0].mxu0
    %v2272 = vadd.f32 %v2146, %v2271
    %v2273 = vpop.f32.mrb[0].mxu0
    %2274 = vdwg.mxu0
    %vm2275 = vcmp.gt.f32.partialorder %v2261, 0.0
    %vm2276 = vcmp.gt.f32.partialorder %v2264, 0.0
    %vm2277 = vcmp.gt.f32.partialorder %v2269, 0.0
    %vm2278 = vcmp.gt.f32.partialorder %v2272, 0.0
    %v2279 = vmul.f32 %v2261, 0.2
    %v2280 = vmul.f32 %v2264, 0.2
    %v2281 = vmul.f32 %v2269, 0.2
    %v2282 = vmul.f32 %v2272, 0.2
    %v2283 = vsel %vm2275, %v2261, %v2279
    %v2284 = vsel %vm2276, %v2264, %v2280
    %v2285 = vsel %vm2277, %v2269, %v2281
    %v2286 = vsel %vm2278, %v2272, %v2282
    %v2287 = vld [vmem:[#allocation4] sm:$0xff]
    %v2288 = vld [vmem:[#allocation4 + $0x8] sm:$0xff]
    %v2289 = vld [vmem:[#allocation4 + $0x10] sm:$0xff]
    %v2290 = vld [vmem:[#allocation4 + $0x18] sm:$0xff]
    %v2291 = vpack.c.bf16 %v2288, %v2287
    %v2292 = vpack.c.bf16 %v2290, %v2289
    %v2294 = vshrl.u32 %v2291, 16
    %v2296 = vrot.slane %v2294, 7
    %v2297 = vshll.u32 %v2291, 16
    %v2299 = vor.u32 %v2296, %v2297
    %v2302 = vsel %vm187, 0, %v2299
    %v2303 = vsel %vm187, %v2296, 0
    %v2305 = vshrl.u32 %v2302, 16
    %v2307 = vshll.u32 %v2302, 16
    %v2309 = vrot.slane %v2307, 1
    %v2310 = vor.u32 %v2305, %v2309
    %v2312 = vshll.u32 %v2303, 16
    %v2314 = vrot.slane %v2312, 1
    %v2315 = vsel %vm190, %v2310, %v2314
    %2316 = vrot.lane.b32.xlu0 %v2315, 16
    %v2317 = vpop.permute.xlu0 %2316
    %v2320 = vrot.slane %v2302, 1
    %v2321 = vrot.slane %v2303, 1
    %v2322 = vsel %vm207, %v2320, %v2321
    %2323 = vrot.lane.b32.xlu0 %v2322, 32
    %v2324 = vpop.permute.xlu0 %2323
    %v2325 = vrot.slane %v2305, 1
    %v2326 = vrot.slane %v2307, 2
    %v2327 = vor.u32 %v2325, %v2326
    %v2328 = vshrl.u32 %v2303, 16
    %v2330 = vrot.slane %v2328, 1
    %v2331 = vrot.slane %v2312, 2
    %v2332 = vor.u32 %v2330, %v2331
    %v2333 = vsel %vm1128, %v2327, %v2332
    %2334 = vrot.lane.b32.xlu0 %v2333, 48
    %v2335 = vpop.permute.xlu0 %2334
    %v2337 = vsel %vm1510, %v2302, %v2317
    %v2339 = vsel %vm213, %v2337, %v2324
    %vm2340 = vcmask 392192
    %v2342 = vsel %vm2340, %v2339, %v2335
    %v2345 = vshrl.u32 %v2292, 16
    %v2347 = vrot.slane %v2345, 7
    %v2348 = vshll.u32 %v2292, 16
    %v2350 = vor.u32 %v2347, %v2348
    %v2353 = vsel %vm187, 0, %v2350
    %v2354 = vsel %vm187, %v2347, 0
    %v2356 = vshrl.u32 %v2353, 16
    %v2358 = vshll.u32 %v2353, 16
    %v2360 = vrot.slane %v2358, 1
    %v2361 = vor.u32 %v2356, %v2360
    %v2363 = vshll.u32 %v2354, 16
    %v2365 = vrot.slane %v2363, 1
    %v2366 = vsel %vm190, %v2361, %v2365
    %2367 = vrot.lane.b32.xlu0 %v2366, 16
    %v2368 = vpop.permute.xlu0 %2367
    %v2371 = vrot.slane %v2353, 1
    %v2372 = vrot.slane %v2354, 1
    %v2373 = vsel %vm207, %v2371, %v2372
    %2374 = vrot.lane.b32.xlu0 %v2373, 32
    %v2375 = vpop.permute.xlu0 %2374
    %v2376 = vrot.slane %v2356, 1
    %v2377 = vrot.slane %v2358, 2
    %v2378 = vor.u32 %v2376, %v2377
    %v2379 = vshrl.u32 %v2354, 16
    %v2381 = vrot.slane %v2379, 1
    %v2382 = vrot.slane %v2363, 2
    %v2383 = vor.u32 %v2381, %v2382
    %v2384 = vsel %vm1128, %v2378, %v2383
    %2385 = vrot.lane.b32.xlu0 %v2384, 48
    %v2386 = vpop.permute.xlu0 %2385
    %v2388 = vsel %vm1510, %v2353, %v2368
    %v2390 = vsel %vm213, %v2388, %v2375
    %v2392 = vsel %vm2340, %v2390, %v2386
    %2394 = vmatprep.subr.bf16.mxu0 0
    %2395 = vmatpush1.bf16.msra.mxu0 %v2342
    %2396 = vmatprep.subr.bf16.mxu0 0
    %2397 = vmatpush1.bf16.msra.mxu0 %v2392
    %2398 = vmatprep.subr.bf16.mxu0 0
    %2399 = vmatpush1.bf16.msra.mxu0 0
    %2400 = vmatprep.subr.bf16.mxu0 0
    %2401 = vmatpush1.bf16.msra.mxu0 0
    %2402 = vmatprep.subr.bf16.mxu0 0
    %2403 = vmatpush1.bf16.msra.mxu0 0
    %2404 = vmatprep.subr.bf16.mxu0 0
    %2405 = vmatpush1.bf16.msra.mxu0 0
    %2406 = vmatprep.subr.bf16.mxu0 0
    %2407 = vmatpush1.bf16.msra.mxu0 0
    %2408 = vmatprep.subr.bf16.mxu0 0
    %2409 = vmatpush1.bf16.msra.mxu0 0
    %2410 = vmatprep.subr.bf16.mxu0 0
    %2411 = vmatpush1.bf16.msra.mxu0 0
    %2412 = vmatprep.subr.bf16.mxu0 0
    %2413 = vmatpush1.bf16.msra.mxu0 0
    %2414 = vmatprep.subr.bf16.mxu0 0
    %2415 = vmatpush1.bf16.msra.mxu0 0
    %2416 = vmatprep.subr.bf16.mxu0 0
    %2417 = vmatpush1.bf16.msra.mxu0 0
    %2418 = vmatprep.subr.bf16.mxu0 0
    %2419 = vmatpush1.bf16.msra.mxu0 0
    %2420 = vmatprep.subr.bf16.mxu0 0
    %2421 = vmatpush1.bf16.msra.mxu0 0
    %2422 = vmatprep.subr.bf16.mxu0 0
    %2423 = vmatpush1.bf16.msra.mxu0 0
    %2424 = vmatprep.subr.bf16.mxu0 0
    %2425 = vmatpush1.bf16.msra.mxu0 0
    %2426 = vmatprep.mubr.bf16.mxu0 0
    %2427 = vmatmul.mubr.bf16.gmra.mrb[0].mxu0 %v1201
    %v2428 = vpop.f32.mrb[0].mxu0
    %v2429 = vadd.f32 0.0, %v2428
    %v2430 = vpop.f32.mrb[0].mxu0
    %v2431 = vpop.f32.mrb[0].mxu0
    %v2432 = vadd.f32 0.0, %v2431
    %v2433 = vpop.f32.mrb[0].mxu0
    %2434 = vdwg.mxu0
    %v2435 = vpack.c.bf16 %v2432, %v2429
    %s2436 = scalar_lea.vmem %s2, 1024
    %v2437 = vld [vmem:[%s2436] sm:$0xf]
    %v2438 = vld [vmem:[%s2436 + $0x4] sm:$0xf]
    %v2439 = vld [vmem:[%s2436 + $0x8] sm:$0xf]
    %v2440 = vld [vmem:[%s2436 + $0xc] sm:$0xf]
    %v2441 = vld [vmem:[%s2436 + $0x10] sm:$0xf]
    %v2442 = vld [vmem:[%s2436 + $0x14] sm:$0xf]
    %v2443 = vld [vmem:[%s2436 + $0x18] sm:$0xf]
    %v2444 = vld [vmem:[%s2436 + $0x1c] sm:$0xf]
    %s2445 = scalar_lea.vmem [#allocation6], 8
    %v2446 = vld [vmem:[%s2445] sm:$0x1]
    %v2448 = vlaneseq
    %v2449 = vshrl.u32 %v2448, 7
    %v2450 = vsub.s32 0, %v2449
    %v2451 = vrot.slane %v2446, %v2450
    %v2461 = vunpack.c.l.b16 %v2437
    %v2462 = vunpack.c.l.b16 %v2438
    %v2463 = vunpack.c.l.b16 %v2439
    %v2464 = vunpack.c.l.b16 %v2440
    %v2465 = vunpack.c.l.b16 %v2441
    %v2466 = vunpack.c.l.b16 %v2442
    %v2467 = vunpack.c.l.b16 %v2443
    %v2468 = vunpack.c.l.b16 %v2444
    %v2469 = vpack.c.b16 %v2462, %v2461
    %v2470 = vpack.c.b16 %v2464, %v2463
    %v2471 = vpack.c.b16 %v2466, %v2465
    %v2472 = vpack.c.b16 %v2468, %v2467
    %v2478 = vsel %vm216, %v2435, 0
    %2480 = vmatprep.subr.bf16.mxu0 0
    %2481 = vmatpush1.bf16.msra.mxu0 %v2469
    %2482 = vmatprep.subr.bf16.mxu0 0
    %2483 = vmatpush1.bf16.msra.mxu0 %v2470
    %2484 = vmatprep.subr.bf16.mxu0 0
    %2485 = vmatpush1.bf16.msra.mxu0 %v2471
    %2486 = vmatprep.subr.bf16.mxu0 0
    %2487 = vmatpush1.bf16.msra.mxu0 %v2472
    %2488 = vmatprep.subr.bf16.mxu0 0
    %2489 = vmatpush1.bf16.msra.mxu0 0
    %2490 = vmatprep.subr.bf16.mxu0 0
    %2491 = vmatpush1.bf16.msra.mxu0 0
    %2492 = vmatprep.subr.bf16.mxu0 0
    %2493 = vmatpush1.bf16.msra.mxu0 0
    %2494 = vmatprep.subr.bf16.mxu0 0
    %2495 = vmatpush1.bf16.msra.mxu0 0
    %2496 = vmatprep.subr.bf16.mxu0 0
    %2497 = vmatpush1.bf16.msra.mxu0 0
    %2498 = vmatprep.subr.bf16.mxu0 0
    %2499 = vmatpush1.bf16.msra.mxu0 0
    %2500 = vmatprep.subr.bf16.mxu0 0
    %2501 = vmatpush1.bf16.msra.mxu0 0
    %2502 = vmatprep.subr.bf16.mxu0 0
    %2503 = vmatpush1.bf16.msra.mxu0 0
    %2504 = vmatprep.subr.bf16.mxu0 0
    %2505 = vmatpush1.bf16.msra.mxu0 0
    %2506 = vmatprep.subr.bf16.mxu0 0
    %2507 = vmatpush1.bf16.msra.mxu0 0
    %2508 = vmatprep.subr.bf16.mxu0 0
    %2509 = vmatpush1.bf16.msra.mxu0 0
    %2510 = vmatprep.subr.bf16.mxu0 0
    %2511 = vmatpush1.bf16.msra.mxu0 0
    %2512 = vmatprep.mubr.bf16.mxu0 0
    %2513 = vmatmul.mubr.bf16.gmra.mrb[0].mxu0 %v2478
    %v2514 = vpop.f32.mrb[0].mxu0
    %v2515 = vadd.f32 %v2451, %v2514
    %v2516 = vpop.f32.mrb[0].mxu0
    %v2517 = vpop.f32.mrb[0].mxu0
    %v2518 = vadd.f32 %v2451, %v2517
    %v2519 = vpop.f32.mrb[0].mxu0
    %2520 = vdwg.mxu0
    %vm2521 = vcmp.gt.f32.partialorder %v2515, 0.0
    %vm2522 = vcmp.gt.f32.partialorder %v2518, 0.0
    %v2523 = vmul.f32 %v2515, 0.2
    %v2524 = vmul.f32 %v2518, 0.2
    %v2525 = vsel %vm2521, %v2515, %v2523
    %v2526 = vsel %vm2522, %v2518, %v2524
    %v2527 = vpack.c.bf16 %v2526, %v2525
    %v2529 = vshrl.u32 %v2527, 16
    %v2531 = vrot.slane %v2529, 7
    %v2532 = vshll.u32 %v2527, 16
    %v2534 = vor.u32 %v2531, %v2532
    %v2536 = vsel %vm187, 0, %v2534
    %v2537 = vsel %vm1444, %v2536, 0
    %v2539 = vshrl.u32 %v2537, 16
    %v2541 = vshll.u32 %v2537, 16
    %v2543 = vrot.slane %v2541, 1
    %v2544 = vor.u32 %v2539, %v2543
    %2545 = vrot.lane.b32.xlu0 %v2544, 64
    %v2546 = vpop.permute.xlu0 %2545
    %v2548 = vrot.slane %v2537, 1
    %v2549 = vrot.slane %v2539, 1
    %v2550 = vrot.slane %v2541, 2
    %v2551 = vor.u32 %v2549, %v2550
    %2552 = vrot.lane.b32.xlu0 %v2551, 64
    %v2553 = vpop.permute.xlu0 %2552
    %v2555 = vsel %vm216, %v2537, %v2546
    %v2558 = vsel %vm216, %v2548, %v2553
    %v2559 = vrot.slane %v2529, 3
    %v2560 = vrot.slane %v2532, 4
    %v2561 = vor.u32 %v2559, %v2560
    %v2563 = vsel %vm187, 0, %v2561
    %v2564 = vsel %vm1444, %v2563, 0
    %v2566 = vshrl.u32 %v2564, 16
    %v2568 = vshll.u32 %v2564, 16
    %v2570 = vrot.slane %v2568, 1
    %v2571 = vor.u32 %v2566, %v2570
    %2572 = vrot.lane.b32.xlu0 %v2571, 64
    %v2573 = vpop.permute.xlu0 %2572
    %v2575 = vrot.slane %v2564, 1
    %v2576 = vrot.slane %v2566, 1
    %v2577 = vrot.slane %v2568, 2
    %v2578 = vor.u32 %v2576, %v2577
    %2579 = vrot.lane.b32.xlu0 %v2578, 64
    %v2580 = vpop.permute.xlu0 %2579
    %v2582 = vsel %vm216, %v2564, %v2573
    %v2585 = vsel %vm216, %v2575, %v2580
    %v2588 = vrot.slane %v2582, 4
    %v2589 = vrot.slane %v2585, 4
    %v2591 = vsel %vm1498, %v2555, %v2588
    %v2594 = vsel %vm1498, %v2558, %v2589
    %v2597 = vsel %vm1510, %v164, 0
    %2599 = vmatprep.subr.bf16.mxu0 %v2594
    %2600 = vmatpush1.bf16.msra.mxu0 %v2591
    %2601 = vmatprep.subr.bf16.mxu0 0
    %2602 = vmatpush1.bf16.msra.mxu0 0
    %2603 = vmatprep.subr.bf16.mxu0 0
    %2604 = vmatpush1.bf16.msra.mxu0 0
    %2605 = vmatprep.subr.bf16.mxu0 0
    %2606 = vmatpush1.bf16.msra.mxu0 0
    %2607 = vmatprep.subr.bf16.mxu0 0
    %2608 = vmatpush1.bf16.msra.mxu0 0
    %2609 = vmatprep.subr.bf16.mxu0 0
    %2610 = vmatpush1.bf16.msra.mxu0 0
    %2611 = vmatprep.subr.bf16.mxu0 0
    %2612 = vmatpush1.bf16.msra.mxu0 0
    %2613 = vmatprep.subr.bf16.mxu0 0
    %2614 = vmatpush1.bf16.msra.mxu0 0
    %2615 = vmatprep.subr.bf16.mxu0 0
    %2616 = vmatpush1.bf16.msra.mxu0 0
    %2617 = vmatprep.subr.bf16.mxu0 0
    %2618 = vmatpush1.bf16.msra.mxu0 0
    %2619 = vmatprep.subr.bf16.mxu0 0
    %2620 = vmatpush1.bf16.msra.mxu0 0
    %2621 = vmatprep.subr.bf16.mxu0 0
    %2622 = vmatpush1.bf16.msra.mxu0 0
    %2623 = vmatprep.subr.bf16.mxu0 0
    %2624 = vmatpush1.bf16.msra.mxu0 0
    %2625 = vmatprep.subr.bf16.mxu0 0
    %2626 = vmatpush1.bf16.msra.mxu0 0
    %2627 = vmatprep.subr.bf16.mxu0 0
    %2628 = vmatpush1.bf16.msra.mxu0 0
    %2629 = vmatprep.subr.bf16.mxu0 0
    %2630 = vmatpush1.bf16.msra.mxu0 0
    %2631 = vmatprep.mubr.bf16.mxu0 0
    %2632 = vmatmul.mubr.bf16.gmra.mrb[0].mxu0 %v2597
    %v2633 = vpop.f32.mrb[0].mxu0
    %v2634 = vadd.f32 0.0, %v2633
    %v2635 = vpop.f32.mrb[0].mxu0
    %v2636 = vadd.f32 0.0, %v2635
    %v2637 = vpop.f32.mrb[0].mxu0
    %v2638 = vpop.f32.mrb[0].mxu0
    %2639 = vdwg.mxu0
    %v2640 = vpack.c.bf16 %v2634, %v2634
    %v2641 = vpack.c.bf16 %v2636, %v2636
    %s2642 = scalar_lea.vmem %s2, 1152
    %v2643 = vld [vmem:[%s2642] sm:$0xf]
    %v2644 = vld [vmem:[%s2642 + $0x4] sm:$0xf]
    %v2645 = vld [vmem:[%s2642 + $0x8] sm:$0xf]
    %v2646 = vld [vmem:[%s2642 + $0xc] sm:$0xf]
    %v2647 = vld [vmem:[%s2642 + $0x10] sm:$0xf]
    %v2648 = vld [vmem:[%s2642 + $0x14] sm:$0xf]
    %v2649 = vld [vmem:[%s2642 + $0x18] sm:$0xf]
    %v2650 = vld [vmem:[%s2642 + $0x1c] sm:$0xf]
    %v2651 = vld [vmem:[%s2642 + $0x20] sm:$0xf]
    %v2652 = vld [vmem:[%s2642 + $0x24] sm:$0xf]
    %v2653 = vld [vmem:[%s2642 + $0x28] sm:$0xf]
    %v2654 = vld [vmem:[%s2642 + $0x2c] sm:$0xf]
    %v2655 = vld [vmem:[%s2642 + $0x30] sm:$0xf]
    %v2656 = vld [vmem:[%s2642 + $0x34] sm:$0xf]
    %v2657 = vld [vmem:[%s2642 + $0x38] sm:$0xf]
    %v2658 = vld [vmem:[%s2642 + $0x3c] sm:$0xf]
    %v2659 = vld [vmem:[%s2642 + $0x40] sm:$0xf]
    %v2660 = vld [vmem:[%s2642 + $0x44] sm:$0xf]
    %v2661 = vld [vmem:[%s2642 + $0x48] sm:$0xf]
    %v2662 = vld [vmem:[%s2642 + $0x4c] sm:$0xf]
    %v2663 = vld [vmem:[%s2642 + $0x50] sm:$0xf]
    %v2664 = vld [vmem:[%s2642 + $0x54] sm:$0xf]
    %v2665 = vld [vmem:[%s2642 + $0x58] sm:$0xf]
    %v2666 = vld [vmem:[%s2642 + $0x5c] sm:$0xf]
    %v2667 = vld [vmem:[%s2642 + $0x60] sm:$0xf]
    %v2668 = vld [vmem:[%s2642 + $0x64] sm:$0xf]
    %v2669 = vld [vmem:[%s2642 + $0x68] sm:$0xf]
    %v2670 = vld [vmem:[%s2642 + $0x6c] sm:$0xf]
    %v2671 = vld [vmem:[%s2642 + $0x70] sm:$0xf]
    %v2672 = vld [vmem:[%s2642 + $0x74] sm:$0xf]
    %v2673 = vld [vmem:[%s2642 + $0x78] sm:$0xf]
    %v2674 = vld [vmem:[%s2642 + $0x7c] sm:$0xf]
    %s2675 = scalar_lea.vmem [#allocation6], 9
    %v2676 = vld [vmem:[%s2675] sm:$0x1]
    %v2678 = vlaneseq
    %v2679 = vshrl.u32 %v2678, 7
    %v2680 = vsub.s32 0, %v2679
    %v2681 = vrot.slane %v2676, %v2680
    %v2715 = vunpack.c.l.b16 %v2643
    %v2716 = vunpack.c.l.b16 %v2644
    %v2717 = vunpack.c.l.b16 %v2645
    %v2718 = vunpack.c.l.b16 %v2646
    %v2719 = vunpack.c.l.b16 %v2647
    %v2720 = vunpack.c.l.b16 %v2648
    %v2721 = vunpack.c.l.b16 %v2649
    %v2722 = vunpack.c.l.b16 %v2650
    %v2723 = vunpack.c.l.b16 %v2651
    %v2724 = vunpack.c.l.b16 %v2652
    %v2725 = vunpack.c.l.b16 %v2653
    %v2726 = vunpack.c.l.b16 %v2654
    %v2727 = vunpack.c.l.b16 %v2655
    %v2728 = vunpack.c.l.b16 %v2656
    %v2729 = vunpack.c.l.b16 %v2657
    %v2730 = vunpack.c.l.b16 %v2658
    %v2731 = vunpack.c.l.b16 %v2659
    %v2732 = vunpack.c.l.b16 %v2660
    %v2733 = vunpack.c.l.b16 %v2661
    %v2734 = vunpack.c.l.b16 %v2662
    %v2735 = vunpack.c.l.b16 %v2663
    %v2736 = vunpack.c.l.b16 %v2664
    %v2737 = vunpack.c.l.b16 %v2665
    %v2738 = vunpack.c.l.b16 %v2666
    %v2739 = vunpack.c.l.b16 %v2667
    %v2740 = vunpack.c.l.b16 %v2668
    %v2741 = vunpack.c.l.b16 %v2669
    %v2742 = vunpack.c.l.b16 %v2670
    %v2743 = vunpack.c.l.b16 %v2671
    %v2744 = vunpack.c.l.b16 %v2672
    %v2745 = vunpack.c.l.b16 %v2673
    %v2746 = vunpack.c.l.b16 %v2674
    %v2747 = vpack.c.b16 %v2716, %v2715
    %v2748 = vpack.c.b16 %v2718, %v2717
    %v2749 = vpack.c.b16 %v2720, %v2719
    %v2750 = vpack.c.b16 %v2722, %v2721
    %v2751 = vpack.c.b16 %v2724, %v2723
    %v2752 = vpack.c.b16 %v2726, %v2725
    %v2753 = vpack.c.b16 %v2728, %v2727
    %v2754 = vpack.c.b16 %v2730, %v2729
    %v2755 = vpack.c.b16 %v2732, %v2731
    %v2756 = vpack.c.b16 %v2734, %v2733
    %v2757 = vpack.c.b16 %v2736, %v2735
    %v2758 = vpack.c.b16 %v2738, %v2737
    %v2759 = vpack.c.b16 %v2740, %v2739
    %v2760 = vpack.c.b16 %v2742, %v2741
    %v2761 = vpack.c.b16 %v2744, %v2743
    %v2762 = vpack.c.b16 %v2746, %v2745
    %2779 = vmatprep.subr.bf16.mxu0 0
    %2780 = vmatpush1.bf16.msra.mxu0 %v2747
    %2781 = vmatprep.subr.bf16.mxu0 0
    %2782 = vmatpush1.bf16.msra.mxu0 %v2748
    %2783 = vmatprep.subr.bf16.mxu0 0
    %2784 = vmatpush1.bf16.msra.mxu0 %v2749
    %2785 = vmatprep.subr.bf16.mxu0 0
    %2786 = vmatpush1.bf16.msra.mxu0 %v2750
    %2787 = vmatprep.subr.bf16.mxu0 0
    %2788 = vmatpush1.bf16.msra.mxu0 %v2751
    %2789 = vmatprep.subr.bf16.mxu0 0
    %2790 = vmatpush1.bf16.msra.mxu0 %v2752
    %2791 = vmatprep.subr.bf16.mxu0 0
    %2792 = vmatpush1.bf16.msra.mxu0 %v2753
    %2793 = vmatprep.subr.bf16.mxu0 0
    %2794 = vmatpush1.bf16.msra.mxu0 %v2754
    %2795 = vmatprep.subr.bf16.mxu0 0
    %2796 = vmatpush1.bf16.msra.mxu0 %v2755
    %2797 = vmatprep.subr.bf16.mxu0 0
    %2798 = vmatpush1.bf16.msra.mxu0 %v2756
    %2799 = vmatprep.subr.bf16.mxu0 0
    %2800 = vmatpush1.bf16.msra.mxu0 %v2757
    %2801 = vmatprep.subr.bf16.mxu0 0
    %2802 = vmatpush1.bf16.msra.mxu0 %v2758
    %2803 = vmatprep.subr.bf16.mxu0 0
    %2804 = vmatpush1.bf16.msra.mxu0 %v2759
    %2805 = vmatprep.subr.bf16.mxu0 0
    %2806 = vmatpush1.bf16.msra.mxu0 %v2760
    %2807 = vmatprep.subr.bf16.mxu0 0
    %2808 = vmatpush1.bf16.msra.mxu0 %v2761
    %2809 = vmatprep.subr.bf16.mxu0 0
    %2810 = vmatpush1.bf16.msra.mxu0 %v2762
    %2811 = vmatprep.mubr.bf16.mxu0 %v2641
    %2812 = vmatmul.mubr.bf16.gmra.mrb[0].mxu0 %v2640
    %v2813 = vpop.f32.mrb[0].mxu0
    %v2814 = vadd.f32 %v2681, %v2813
    %v2815 = vpop.f32.mrb[0].mxu0
    %v2816 = vpop.f32.mrb[0].mxu0
    %v2817 = vpop.f32.mrb[0].mxu0
    %2818 = vdwg.mxu0
    %vm2819 = vcmp.gt.f32.partialorder %v2814, 0.0
    %v2820 = vmul.f32 %v2814, 0.2
    %v2821 = vsel %vm2819, %v2814, %v2820
    %v2822 = vpack.c.bf16 %v2821, %v2821
    %v2823 = vld [vmem:[%s6] sm:$0xf]
    %v2824 = vld [vmem:[%s6 + $0x4] sm:$0xf]
    %v2825 = vld [vmem:[%s6 + $0x8] sm:$0xf]
    %v2826 = vld [vmem:[%s6 + $0xc] sm:$0xf]
    %v2827 = vld [vmem:[%s6 + $0x10] sm:$0xf]
    %v2828 = vld [vmem:[%s6 + $0x14] sm:$0xf]
    %v2829 = vld [vmem:[%s6 + $0x18] sm:$0xf]
    %v2830 = vld [vmem:[%s6 + $0x1c] sm:$0xf]
    %v2831 = vld [vmem:[#allocation10] sm:$0x1]
    %v2833 = vlaneseq
    %v2834 = vshrl.u32 %v2833, 7
    %v2835 = vsub.s32 0, %v2834
    %v2836 = vrot.slane %v2831, %v2835
    %v2846 = vunpack.c.l.b16 %v2823
    %v2847 = vunpack.c.l.b16 %v2824
    %v2848 = vunpack.c.l.b16 %v2825
    %v2849 = vunpack.c.l.b16 %v2826
    %v2850 = vunpack.c.l.b16 %v2827
    %v2851 = vunpack.c.l.b16 %v2828
    %v2852 = vunpack.c.l.b16 %v2829
    %v2853 = vunpack.c.l.b16 %v2830
    %v2854 = vpack.c.b16 %v2847, %v2846
    %v2855 = vpack.c.b16 %v2849, %v2848
    %v2856 = vpack.c.b16 %v2851, %v2850
    %v2857 = vpack.c.b16 %v2853, %v2852
    %v2863 = vsel %vm216, %v2822, 0
    %2865 = vmatprep.subr.bf16.mxu0 0
    %2866 = vmatpush1.bf16.msra.mxu0 %v2854
    %2867 = vmatprep.subr.bf16.mxu0 0
    %2868 = vmatpush1.bf16.msra.mxu0 %v2855
    %2869 = vmatprep.subr.bf16.mxu0 0
    %2870 = vmatpush1.bf16.msra.mxu0 %v2856
    %2871 = vmatprep.subr.bf16.mxu0 0
    %2872 = vmatpush1.bf16.msra.mxu0 %v2857
    %2873 = vmatprep.subr.bf16.mxu0 0
    %2874 = vmatpush1.bf16.msra.mxu0 0
    %2875 = vmatprep.subr.bf16.mxu0 0
    %2876 = vmatpush1.bf16.msra.mxu0 0
    %2877 = vmatprep.subr.bf16.mxu0 0
    %2878 = vmatpush1.bf16.msra.mxu0 0
    %2879 = vmatprep.subr.bf16.mxu0 0
    %2880 = vmatpush1.bf16.msra.mxu0 0
    %2881 = vmatprep.subr.bf16.mxu0 0
    %2882 = vmatpush1.bf16.msra.mxu0 0
    %2883 = vmatprep.subr.bf16.mxu0 0
    %2884 = vmatpush1.bf16.msra.mxu0 0
    %2885 = vmatprep.subr.bf16.mxu0 0
    %2886 = vmatpush1.bf16.msra.mxu0 0
    %2887 = vmatprep.subr.bf16.mxu0 0
    %2888 = vmatpush1.bf16.msra.mxu0 0
    %2889 = vmatprep.subr.bf16.mxu0 0
    %2890 = vmatpush1.bf16.msra.mxu0 0
    %2891 = vmatprep.subr.bf16.mxu0 0
    %2892 = vmatpush1.bf16.msra.mxu0 0
    %2893 = vmatprep.subr.bf16.mxu0 0
    %2894 = vmatpush1.bf16.msra.mxu0 0
    %2895 = vmatprep.subr.bf16.mxu0 0
    %2896 = vmatpush1.bf16.msra.mxu0 0
    %2897 = vmatprep.mubr.bf16.mxu0 0
    %2898 = vmatmul.mubr.bf16.gmra.mrb[0].mxu0 %v2863
    %v2899 = vpop.f32.mrb[0].mxu0
    %v2900 = vadd.f32 %v2836, %v2899
    %v2901 = vpop.f32.mrb[0].mxu0
    %v2902 = vpop.f32.mrb[0].mxu0
    %v2903 = vpop.f32.mrb[0].mxu0
    %2904 = vdwg.mxu0
    %vm2905 = vcmask 27648
    %v2906 = vsel %vm2905, %v2900, 0.0
    %v2907 = vrot.slane %v2906, 4
    %v2908 = vadd.f32 %v2906, %v2907
    %v2909 = vrot.slane %v2908, 2
    %v2910 = vadd.f32 %v2908, %v2909
    %v2911 = vrot.slane %v2910, 1
    %v2912 = vadd.f32 %v2910, %v2911
    %v2913 = vrcp.pop 4.0
    %v2914 = vmul.f32 %v2912, %v2913
    %v2916 = vrot.slane %v2900, 4
    %v2918 = vsel %vm2905, %v2916, 0.0
    %v2919 = vrot.slane %v2918, 4
    %v2920 = vadd.f32 %v2918, %v2919
    %v2921 = vrot.slane %v2920, 2
    %v2922 = vadd.f32 %v2920, %v2921
    %v2923 = vrot.slane %v2922, 1
    %v2924 = vadd.f32 %v2922, %v2923
    %v2925 = vmul.f32 %v2924, %v2913
    %vm2926 = vcmask 1040384
    %v2927 = vsel %vm2926, %v2914, %v2925
    %vm2928 = vcmask 25600
    %v2929 = vsel %vm2928, %v2927, -inf
    %2930 = vmax.xlane.f32.xlu0 %v2929
    %v2931 = vpop.xlane.xlu0 %2930
    %v2932 = vsub.f32 %v2927, %v2931
    %v2933 = vmul.f32 %v2932, 1.442695
    %v2934 = vpow.pop %v2933
    %v2935 = vsel %vm2928, %v2934, 0.0
    %2936 = vadd.xlane.f32.xlu0 %v2935
    %v2937 = vpop.xlane.xlu0 %2936
    %v2938 = vrcp.pop %v2937
    %v2939 = vmul.f32 %v2934, %v2938
    %v2940 = vpack.c.bf16 %v2939, %v2939
    %v2941 = vld [vmem:[#allocation13] sm:$0x3]
    %vm2942 = vcmask 31744
    %v2944 = vsel %vm2942, %v2940, 0
    %vm2946 = vcmask 1041408
    %v2948 = vsel %vm2946, %v2941, 0
    %2950 = vmatprep.subr.bf16.mxu0 0
    %2951 = vmatpush1.bf16.msra.mxu0 %v2948
    %2952 = vmatprep.subr.bf16.mxu0 0
    %2953 = vmatpush1.bf16.msra.mxu0 0
    %2954 = vmatprep.subr.bf16.mxu0 0
    %2955 = vmatpush1.bf16.msra.mxu0 0
    %2956 = vmatprep.subr.bf16.mxu0 0
    %2957 = vmatpush1.bf16.msra.mxu0 0
    %2958 = vmatprep.subr.bf16.mxu0 0
    %2959 = vmatpush1.bf16.msra.mxu0 0
    %2960 = vmatprep.subr.bf16.mxu0 0
    %2961 = vmatpush1.bf16.msra.mxu0 0
    %2962 = vmatprep.subr.bf16.mxu0 0
    %2963 = vmatpush1.bf16.msra.mxu0 0
    %2964 = vmatprep.subr.bf16.mxu0 0
    %2965 = vmatpush1.bf16.msra.mxu0 0
    %2966 = vmatprep.subr.bf16.mxu0 0
    %2967 = vmatpush1.bf16.msra.mxu0 0
    %2968 = vmatprep.subr.bf16.mxu0 0
    %2969 = vmatpush1.bf16.msra.mxu0 0
    %2970 = vmatprep.subr.bf16.mxu0 0
    %2971 = vmatpush1.bf16.msra.mxu0 0
    %2972 = vmatprep.subr.bf16.mxu0 0
    %2973 = vmatpush1.bf16.msra.mxu0 0
    %2974 = vmatprep.subr.bf16.mxu0 0
    %2975 = vmatpush1.bf16.msra.mxu0 0
    %2976 = vmatprep.subr.bf16.mxu0 0
    %2977 = vmatpush1.bf16.msra.mxu0 0
    %2978 = vmatprep.subr.bf16.mxu0 0
    %2979 = vmatpush1.bf16.msra.mxu0 0
    %2980 = vmatprep.subr.bf16.mxu0 0
    %2981 = vmatpush1.bf16.msra.mxu0 0
    %2982 = vmatprep.mubr.bf16.mxu0 0
    %2983 = vmatmul.mubr.bf16.gmra.mrb[0].mxu0 %v2944
    %v2984 = vpop.f32.mrb[0].mxu0
    %v2985 = vadd.f32 0.0, %v2984
    %v2986 = vpop.f32.mrb[0].mxu0
    %v2987 = vpop.f32.mrb[0].mxu0
    %v2988 = vpop.f32.mrb[0].mxu0
    %2989 = vdwg.mxu0
    %v2990 = vlaneseq
    %v2991 = vshrl.u32 %v2990, 7
    %v2992 = vsub.s32 0, %v2991
    %v2993 = vrot.slane %v2985, %v2992
    %v2994 = vlaneseq
    %v2995 = vshrl.u32 %v2994, 7
    %v2996 = vsub.s32 1, %v2995
    %v2997 = vrot.slane %v2985, %v2996
    %3000 = vrot.lane.b32.xlu0 %v2993, 64
    %v3001 = vpop.permute.xlu0 %3000
    %3002 = vrot.lane.b32.xlu0 %v2997, 64
    %v3003 = vpop.permute.xlu0 %3002
    %v3006 = vsel %vm216, %v2283, %v3001
    %v3007 = vsel %vm216, %v2284, %v3001
    %v3008 = vsel %vm216, %v2285, %v3003
    %v3009 = vsel %vm216, %v2286, %v3003
    %v3010 = vpack.c.bf16 %v3007, %v3006
    %v3011 = vpack.c.bf16 %v3009, %v3008
    %v3013 = vshrl.u32 %v3010, 16
    %v3015 = vrot.slane %v3013, 7
    %v3016 = vshll.u32 %v3010, 16
    %v3018 = vor.u32 %v3015, %v3016
    %v3021 = vsel %vm187, 0, %v3018
    %v3022 = vsel %vm187, %v3015, 0
    %v3024 = vshrl.u32 %v3021, 16
    %v3026 = vshll.u32 %v3021, 16
    %v3028 = vrot.slane %v3026, 1
    %v3029 = vor.u32 %v3024, %v3028
    %v3031 = vshll.u32 %v3022, 16
    %v3033 = vrot.slane %v3031, 1
    %v3034 = vsel %vm190, %v3029, %v3033
    %3035 = vrot.lane.b32.xlu0 %v3034, 72
    %v3036 = vpop.permute.xlu0 %3035
    %v3039 = vrot.slane %v3021, 1
    %v3040 = vrot.slane %v3022, 1
    %v3041 = vsel %vm207, %v3039, %v3040
    %3042 = vrot.lane.b32.xlu0 %v3041, 16
    %v3043 = vpop.permute.xlu0 %3042
    %vm3044 = vcmask 588800
    %v3046 = vsel %vm3044, %v3021, %v3036
    %v3049 = vsel %vm1510, %v3036, %v3043
    %v3051 = vshrl.u32 %v3011, 16
    %v3053 = vrot.slane %v3051, 7
    %v3054 = vshll.u32 %v3011, 16
    %v3056 = vor.u32 %v3053, %v3054
    %v3059 = vsel %vm187, 0, %v3056
    %v3060 = vsel %vm187, %v3053, 0
    %v3062 = vshrl.u32 %v3059, 16
    %v3064 = vshll.u32 %v3059, 16
    %v3066 = vrot.slane %v3064, 1
    %v3067 = vor.u32 %v3062, %v3066
    %v3069 = vshll.u32 %v3060, 16
    %v3071 = vrot.slane %v3069, 1
    %v3072 = vsel %vm190, %v3067, %v3071
    %3073 = vrot.lane.b32.xlu0 %v3072, 72
    %v3074 = vpop.permute.xlu0 %3073
    %v3077 = vrot.slane %v3059, 1
    %v3078 = vrot.slane %v3060, 1
    %v3079 = vsel %vm207, %v3077, %v3078
    %3080 = vrot.lane.b32.xlu0 %v3079, 16
    %v3081 = vpop.permute.xlu0 %3080
    %v3083 = vsel %vm3044, %v3059, %v3074
    %v3086 = vsel %vm1510, %v3074, %v3081
    %s3087 = scalar_lea.vmem %s2, 1280
    %v3088 = vld [vmem:[%s3087] sm:$0xf]
    %v3089 = vld [vmem:[%s3087 + $0x4] sm:$0xf]
    %v3090 = vld [vmem:[%s3087 + $0x8] sm:$0xf]
    %v3091 = vld [vmem:[%s3087 + $0xc] sm:$0xf]
    %v3092 = vld [vmem:[%s3087 + $0x10] sm:$0xf]
    %v3093 = vld [vmem:[%s3087 + $0x14] sm:$0xf]
    %v3094 = vld [vmem:[%s3087 + $0x18] sm:$0xf]
    %v3095 = vld [vmem:[%s3087 + $0x1c] sm:$0xf]
    %v3096 = vld [vmem:[%s3087 + $0x20] sm:$0xf]
    %v3097 = vld [vmem:[%s3087 + $0x24] sm:$0xf]
    %v3098 = vld [vmem:[%s3087 + $0x28] sm:$0xf]
    %v3099 = vld [vmem:[%s3087 + $0x2c] sm:$0xf]
    %v3100 = vld [vmem:[%s3087 + $0x30] sm:$0xf]
    %v3101 = vld [vmem:[%s3087 + $0x34] sm:$0xf]
    %v3102 = vld [vmem:[%s3087 + $0x38] sm:$0xf]
    %v3103 = vld [vmem:[%s3087 + $0x3c] sm:$0xf]
    %v3104 = vld [vmem:[%s3087 + $0x40] sm:$0xf]
    %v3105 = vld [vmem:[%s3087 + $0x44] sm:$0xf]
    %v3106 = vld [vmem:[%s3087 + $0x48] sm:$0xf]
    %v3107 = vld [vmem:[%s3087 + $0x4c] sm:$0xf]
    %v3108 = vld [vmem:[%s3087 + $0x50] sm:$0xf]
    %v3109 = vld [vmem:[%s3087 + $0x54] sm:$0xf]
    %v3110 = vld [vmem:[%s3087 + $0x58] sm:$0xf]
    %v3111 = vld [vmem:[%s3087 + $0x5c] sm:$0xf]
    %v3112 = vld [vmem:[%s3087 + $0x60] sm:$0xf]
    %v3113 = vld [vmem:[%s3087 + $0x64] sm:$0xf]
    %v3114 = vld [vmem:[%s3087 + $0x68] sm:$0xf]
    %s3115 = scalar_lea.vmem [#allocation6], 10
    %v3116 = vld [vmem:[%s3115] sm:$0x1]
    %v3118 = vlaneseq
    %v3119 = vshrl.u32 %v3118, 7
    %v3120 = vsub.s32 0, %v3119
    %v3121 = vrot.slane %v3116, %v3120
    %v3150 = vunpack.c.l.b16 %v3088
    %v3151 = vunpack.c.l.b16 %v3089
    %v3152 = vunpack.c.l.b16 %v3090
    %v3153 = vunpack.c.l.b16 %v3091
    %v3154 = vunpack.c.l.b16 %v3092
    %v3155 = vunpack.c.l.b16 %v3093
    %v3156 = vunpack.c.l.b16 %v3094
    %v3157 = vunpack.c.l.b16 %v3095
    %v3158 = vunpack.c.l.b16 %v3096
    %v3159 = vunpack.c.l.b16 %v3097
    %v3160 = vunpack.c.l.b16 %v3098
    %v3161 = vunpack.c.l.b16 %v3099
    %v3162 = vunpack.c.l.b16 %v3100
    %v3163 = vunpack.c.l.b16 %v3101
    %v3164 = vunpack.c.l.b16 %v3102
    %v3165 = vunpack.c.l.b16 %v3103
    %v3166 = vunpack.c.l.b16 %v3104
    %v3167 = vunpack.c.l.b16 %v3105
    %v3168 = vunpack.c.l.b16 %v3106
    %v3169 = vunpack.c.l.b16 %v3107
    %v3170 = vunpack.c.l.b16 %v3108
    %v3171 = vunpack.c.l.b16 %v3109
    %v3172 = vunpack.c.l.b16 %v3110
    %v3173 = vunpack.c.l.b16 %v3111
    %v3174 = vunpack.c.l.b16 %v3112
    %v3175 = vunpack.c.l.b16 %v3113
    %v3176 = vunpack.c.l.b16 %v3114
    %v3177 = vpack.c.b16 %v3151, %v3150
    %v3178 = vpack.c.b16 %v3153, %v3152
    %v3179 = vpack.c.b16 %v3155, %v3154
    %v3180 = vpack.c.b16 %v3157, %v3156
    %v3181 = vpack.c.b16 %v3159, %v3158
    %v3182 = vpack.c.b16 %v3161, %v3160
    %v3183 = vpack.c.b16 %v3163, %v3162
    %v3184 = vpack.c.b16 %v3165, %v3164
    %v3185 = vpack.c.b16 %v3167, %v3166
    %v3186 = vpack.c.b16 %v3169, %v3168
    %v3187 = vpack.c.b16 %v3171, %v3170
    %v3188 = vpack.c.b16 %v3173, %v3172
    %v3189 = vpack.c.b16 %v3175, %v3174
    %v3190 = vpack.c.b16 %v3176, %v3176
    %vm3204 = vcmask 719872
    %v3205 = vsel %vm3204, %v3049, 0
    %v3207 = vsel %vm3204, %v3086, 0
    %v3210 = vsel %vm1498, %v3190, 0
    %3212 = vmatprep.subr.bf16.mxu0 0
    %3213 = vmatpush1.bf16.msra.mxu0 %v3177
    %3214 = vmatprep.subr.bf16.mxu0 0
    %3215 = vmatpush1.bf16.msra.mxu0 %v3178
    %3216 = vmatprep.subr.bf16.mxu0 0
    %3217 = vmatpush1.bf16.msra.mxu0 %v3179
    %3218 = vmatprep.subr.bf16.mxu0 0
    %3219 = vmatpush1.bf16.msra.mxu0 %v3180
    %3220 = vmatprep.subr.bf16.mxu0 0
    %3221 = vmatpush1.bf16.msra.mxu0 %v3181
    %3222 = vmatprep.subr.bf16.mxu0 0
    %3223 = vmatpush1.bf16.msra.mxu0 %v3182
    %3224 = vmatprep.subr.bf16.mxu0 0
    %3225 = vmatpush1.bf16.msra.mxu0 %v3183
    %3226 = vmatprep.subr.bf16.mxu0 0
    %3227 = vmatpush1.bf16.msra.mxu0 %v3184
    %3228 = vmatprep.subr.bf16.mxu0 0
    %3229 = vmatpush1.bf16.msra.mxu0 %v3185
    %3230 = vmatprep.subr.bf16.mxu0 0
    %3231 = vmatpush1.bf16.msra.mxu0 %v3186
    %3232 = vmatprep.subr.bf16.mxu0 0
    %3233 = vmatpush1.bf16.msra.mxu0 %v3187
    %3234 = vmatprep.subr.bf16.mxu0 0
    %3235 = vmatpush1.bf16.msra.mxu0 %v3188
    %3236 = vmatprep.subr.bf16.mxu0 0
    %3237 = vmatpush1.bf16.msra.mxu0 %v3189
    %3238 = vmatprep.subr.bf16.mxu0 0
    %3239 = vmatpush1.bf16.msra.mxu0 %v3210
    %3240 = vmatprep.subr.bf16.mxu0 0
    %3241 = vmatpush1.bf16.msra.mxu0 0
    %3242 = vmatprep.subr.bf16.mxu0 0
    %3243 = vmatpush1.bf16.msra.mxu0 0
    %3244 = vmatprep.mubr.bf16.mxu0 %v3205
    %3245 = vmatmul.mubr.bf16.gmra.mrb[0].mxu0 %v3046
    %v3246 = vpop.f32.mrb[0].mxu0
    %v3247 = vadd.f32 %v3121, %v3246
    %v3248 = vpop.f32.mrb[0].mxu0
    %v3249 = vpop.f32.mrb[0].mxu0
    %v3250 = vadd.f32 %v3121, %v3249
    %v3251 = vpop.f32.mrb[0].mxu0
    %3252 = vmatprep.mubr.bf16.mxu0 %v3207
    %3253 = vmatmul.mubr.bf16.gmra.mrb[0].mxu0 %v3083
    %v3254 = vpop.f32.mrb[0].mxu0
    %v3255 = vadd.f32 %v3121, %v3254
    %v3256 = vpop.f32.mrb[0].mxu0
    %v3257 = vpop.f32.mrb[0].mxu0
    %v3258 = vadd.f32 %v3121, %v3257
    %v3259 = vpop.f32.mrb[0].mxu0
    %3260 = vdwg.mxu0
    %vm3261 = vcmp.gt.f32.partialorder %v3247, 0.0
    %vm3262 = vcmp.gt.f32.partialorder %v3250, 0.0
    %vm3263 = vcmp.gt.f32.partialorder %v3255, 0.0
    %vm3264 = vcmp.gt.f32.partialorder %v3258, 0.0
    %v3265 = vmul.f32 %v3247, 0.2
    %v3266 = vmul.f32 %v3250, 0.2
    %v3267 = vmul.f32 %v3255, 0.2
    %v3268 = vmul.f32 %v3258, 0.2
    %v3269 = vsel %vm3261, %v3247, %v3265
    %v3270 = vsel %vm3262, %v3250, %v3266
    %v3271 = vsel %vm3263, %v3255, %v3267
    %v3272 = vsel %vm3264, %v3258, %v3268
    %v3273 = vpack.c.bf16 %v3270, %v3269
    %v3274 = vpack.c.bf16 %v3272, %v3271
    %v3276 = vshrl.u32 %v3273, 16
    %v3278 = vrot.slane %v3276, 7
    %v3279 = vshll.u32 %v3273, 16
    %v3281 = vor.u32 %v3278, %v3279
    %v3284 = vsel %vm187, 0, %v3281
    %v3285 = vsel %vm187, %v3278, 0
    %v3287 = vshrl.u32 %v3284, 16
    %v3289 = vshll.u32 %v3284, 16
    %v3291 = vrot.slane %v3289, 1
    %v3292 = vor.u32 %v3287, %v3291
    %v3294 = vshll.u32 %v3285, 16
    %v3296 = vrot.slane %v3294, 1
    %v3297 = vsel %vm190, %v3292, %v3296
    %3298 = vrot.lane.b32.xlu0 %v3297, 64
    %v3299 = vpop.permute.xlu0 %3298
    %v3302 = vrot.slane %v3284, 1
    %v3303 = vrot.slane %v3285, 1
    %v3304 = vsel %vm207, %v3302, %v3303
    %v3306 = vsel %vm216, %v3284, %v3299
    %v3309 = vshrl.u32 %v3274, 16
    %v3311 = vrot.slane %v3309, 7
    %v3312 = vshll.u32 %v3274, 16
    %v3314 = vor.u32 %v3311, %v3312
    %v3317 = vsel %vm187, 0, %v3314
    %v3318 = vsel %vm187, %v3311, 0
    %v3320 = vshrl.u32 %v3317, 16
    %v3322 = vshll.u32 %v3317, 16
    %v3324 = vrot.slane %v3322, 1
    %v3325 = vor.u32 %v3320, %v3324
    %v3327 = vshll.u32 %v3318, 16
    %v3329 = vrot.slane %v3327, 1
    %v3330 = vsel %vm190, %v3325, %v3329
    %3331 = vrot.lane.b32.xlu0 %v3330, 64
    %v3332 = vpop.permute.xlu0 %3331
    %v3335 = vrot.slane %v3317, 1
    %v3336 = vrot.slane %v3318, 1
    %v3337 = vsel %vm207, %v3335, %v3336
    %v3339 = vsel %vm216, %v3317, %v3332
    %s3341 = scalar_lea.vmem %s2, 1408
    %v3342 = vld [vmem:[%s3341] sm:$0xf]
    %v3343 = vld [vmem:[%s3341 + $0x4] sm:$0xf]
    %v3344 = vld [vmem:[%s3341 + $0x8] sm:$0xf]
    %v3345 = vld [vmem:[%s3341 + $0xc] sm:$0xf]
    %v3346 = vld [vmem:[%s3341 + $0x10] sm:$0xf]
    %v3347 = vld [vmem:[%s3341 + $0x14] sm:$0xf]
    %v3348 = vld [vmem:[%s3341 + $0x18] sm:$0xf]
    %v3349 = vld [vmem:[%s3341 + $0x1c] sm:$0xf]
    %v3350 = vld [vmem:[%s3341 + $0x20] sm:$0xf]
    %v3351 = vld [vmem:[%s3341 + $0x24] sm:$0xf]
    %v3352 = vld [vmem:[%s3341 + $0x28] sm:$0xf]
    %v3353 = vld [vmem:[%s3341 + $0x2c] sm:$0xf]
    %v3354 = vld [vmem:[%s3341 + $0x30] sm:$0xf]
    %v3355 = vld [vmem:[%s3341 + $0x34] sm:$0xf]
    %v3356 = vld [vmem:[%s3341 + $0x38] sm:$0xf]
    %v3357 = vld [vmem:[%s3341 + $0x3c] sm:$0xf]
    %v3358 = vld [vmem:[%s3341 + $0x40] sm:$0xf]
    %v3359 = vld [vmem:[%s3341 + $0x44] sm:$0xf]
    %v3360 = vld [vmem:[%s3341 + $0x48] sm:$0xf]
    %v3361 = vld [vmem:[%s3341 + $0x4c] sm:$0xf]
    %v3362 = vld [vmem:[%s3341 + $0x50] sm:$0xf]
    %v3363 = vld [vmem:[%s3341 + $0x54] sm:$0xf]
    %v3364 = vld [vmem:[%s3341 + $0x58] sm:$0xf]
    %v3365 = vld [vmem:[%s3341 + $0x5c] sm:$0xf]
    %s3366 = scalar_lea.vmem [#allocation6], 11
    %v3367 = vld [vmem:[%s3366] sm:$0x1]
    %v3369 = vlaneseq
    %v3370 = vshrl.u32 %v3369, 7
    %v3371 = vsub.s32 0, %v3370
    %v3372 = vrot.slane %v3367, %v3371
    %v3398 = vunpack.c.l.b16 %v3342
    %v3399 = vunpack.c.l.b16 %v3343
    %v3400 = vunpack.c.l.b16 %v3344
    %v3401 = vunpack.c.l.b16 %v3345
    %v3402 = vunpack.c.l.b16 %v3346
    %v3403 = vunpack.c.l.b16 %v3347
    %v3404 = vunpack.c.l.b16 %v3348
    %v3405 = vunpack.c.l.b16 %v3349
    %v3406 = vunpack.c.l.b16 %v3350
    %v3407 = vunpack.c.l.b16 %v3351
    %v3408 = vunpack.c.l.b16 %v3352
    %v3409 = vunpack.c.l.b16 %v3353
    %v3410 = vunpack.c.l.b16 %v3354
    %v3411 = vunpack.c.l.b16 %v3355
    %v3412 = vunpack.c.l.b16 %v3356
    %v3413 = vunpack.c.l.b16 %v3357
    %v3414 = vunpack.c.l.b16 %v3358
    %v3415 = vunpack.c.l.b16 %v3359
    %v3416 = vunpack.c.l.b16 %v3360
    %v3417 = vunpack.c.l.b16 %v3361
    %v3418 = vunpack.c.l.b16 %v3362
    %v3419 = vunpack.c.l.b16 %v3363
    %v3420 = vunpack.c.l.b16 %v3364
    %v3421 = vunpack.c.l.b16 %v3365
    %v3422 = vpack.c.b16 %v3399, %v3398
    %v3423 = vpack.c.b16 %v3401, %v3400
    %v3424 = vpack.c.b16 %v3403, %v3402
    %v3425 = vpack.c.b16 %v3405, %v3404
    %v3426 = vpack.c.b16 %v3407, %v3406
    %v3427 = vpack.c.b16 %v3409, %v3408
    %v3428 = vpack.c.b16 %v3411, %v3410
    %v3429 = vpack.c.b16 %v3413, %v3412
    %v3430 = vpack.c.b16 %v3415, %v3414
    %v3431 = vpack.c.b16 %v3417, %v3416
    %v3432 = vpack.c.b16 %v3419, %v3418
    %v3433 = vpack.c.b16 %v3421, %v3420
    %v3447 = vsel %vm216, %v3304, 0
    %v3450 = vsel %vm216, %v3337, 0
    %3452 = vmatprep.subr.bf16.mxu0 0
    %3453 = vmatpush1.bf16.msra.mxu0 %v3422
    %3454 = vmatprep.subr.bf16.mxu0 0
    %3455 = vmatpush1.bf16.msra.mxu0 %v3423
    %3456 = vmatprep.subr.bf16.mxu0 0
    %3457 = vmatpush1.bf16.msra.mxu0 %v3424
    %3458 = vmatprep.subr.bf16.mxu0 0
    %3459 = vmatpush1.bf16.msra.mxu0 %v3425
    %3460 = vmatprep.subr.bf16.mxu0 0
    %3461 = vmatpush1.bf16.msra.mxu0 %v3426
    %3462 = vmatprep.subr.bf16.mxu0 0
    %3463 = vmatpush1.bf16.msra.mxu0 %v3427
    %3464 = vmatprep.subr.bf16.mxu0 0
    %3465 = vmatpush1.bf16.msra.mxu0 %v3428
    %3466 = vmatprep.subr.bf16.mxu0 0
    %3467 = vmatpush1.bf16.msra.mxu0 %v3429
    %3468 = vmatprep.subr.bf16.mxu0 0
    %3469 = vmatpush1.bf16.msra.mxu0 %v3430
    %3470 = vmatprep.subr.bf16.mxu0 0
    %3471 = vmatpush1.bf16.msra.mxu0 %v3431
    %3472 = vmatprep.subr.bf16.mxu0 0
    %3473 = vmatpush1.bf16.msra.mxu0 %v3432
    %3474 = vmatprep.subr.bf16.mxu0 0
    %3475 = vmatpush1.bf16.msra.mxu0 %v3433
    %3476 = vmatprep.subr.bf16.mxu0 0
    %3477 = vmatpush1.bf16.msra.mxu0 0
    %3478 = vmatprep.subr.bf16.mxu0 0
    %3479 = vmatpush1.bf16.msra.mxu0 0
    %3480 = vmatprep.subr.bf16.mxu0 0
    %3481 = vmatpush1.bf16.msra.mxu0 0
    %3482 = vmatprep.subr.bf16.mxu0 0
    %3483 = vmatpush1.bf16.msra.mxu0 0
    %3484 = vmatprep.mubr.bf16.mxu0 %v3447
    %3485 = vmatmul.mubr.bf16.gmra.mrb[0].mxu0 %v3306
    %v3486 = vpop.f32.mrb[0].mxu0
    %v3487 = vadd.f32 %v3372, %v3486
    %v3488 = vpop.f32.mrb[0].mxu0
    %v3489 = vpop.f32.mrb[0].mxu0
    %v3490 = vadd.f32 %v3372, %v3489
    %v3491 = vpop.f32.mrb[0].mxu0
    %3492 = vmatprep.mubr.bf16.mxu0 %v3450
    %3493 = vmatmul.mubr.bf16.gmra.mrb[0].mxu0 %v3339
    %v3494 = vpop.f32.mrb[0].mxu0
    %v3495 = vadd.f32 %v3372, %v3494
    %v3496 = vpop.f32.mrb[0].mxu0
    %v3497 = vpop.f32.mrb[0].mxu0
    %v3498 = vadd.f32 %v3372, %v3497
    %v3499 = vpop.f32.mrb[0].mxu0
    %3500 = vdwg.mxu0
    %vm3501 = vcmp.gt.f32.partialorder %v3487, 0.0
    %vm3502 = vcmp.gt.f32.partialorder %v3490, 0.0
    %vm3503 = vcmp.gt.f32.partialorder %v3495, 0.0
    %vm3504 = vcmp.gt.f32.partialorder %v3498, 0.0
    %v3505 = vmul.f32 %v3487, 0.2
    %v3506 = vmul.f32 %v3490, 0.2
    %v3507 = vmul.f32 %v3495, 0.2
    %v3508 = vmul.f32 %v3498, 0.2
    %v3509 = vsel %vm3501, %v3487, %v3505
    %v3510 = vsel %vm3502, %v3490, %v3506
    %v3511 = vsel %vm3503, %v3495, %v3507
    %v3512 = vsel %vm3504, %v3498, %v3508
    %v3513 = vpack.c.bf16 %v3510, %v3509
    %v3514 = vpack.c.bf16 %v3512, %v3511
    %3515 = vrot.lane.b32.xlu0 %v2854, 124
    %v3516 = vpop.permute.xlu0 %3515
    %3517 = vrot.lane.b32.xlu0 %v2855, 124
    %v3518 = vpop.permute.xlu0 %3517
    %3519 = vrot.lane.b32.xlu0 %v2856, 124
    %v3520 = vpop.permute.xlu0 %3519
    %3521 = vrot.lane.b32.xlu0 %v2857, 124
    %v3522 = vpop.permute.xlu0 %3521
    %3527 = vrot.lane.b32.xlu0 %v2836, 124
    %v3528 = vpop.permute.xlu0 %3527
    %v3531 = vsel %vm216, %v3513, 0
    %v3534 = vsel %vm216, %v3514, 0
    %3536 = vmatprep.subr.bf16.mxu0 0
    %3537 = vmatpush1.bf16.msra.mxu0 %v3516
    %3538 = vmatprep.subr.bf16.mxu0 0
    %3539 = vmatpush1.bf16.msra.mxu0 %v3518
    %3540 = vmatprep.subr.bf16.mxu0 0
    %3541 = vmatpush1.bf16.msra.mxu0 %v3520
    %3542 = vmatprep.subr.bf16.mxu0 0
    %3543 = vmatpush1.bf16.msra.mxu0 %v3522
    %3544 = vmatprep.subr.bf16.mxu0 0
    %3545 = vmatpush1.bf16.msra.mxu0 0
    %3546 = vmatprep.subr.bf16.mxu0 0
    %3547 = vmatpush1.bf16.msra.mxu0 0
    %3548 = vmatprep.subr.bf16.mxu0 0
    %3549 = vmatpush1.bf16.msra.mxu0 0
    %3550 = vmatprep.subr.bf16.mxu0 0
    %3551 = vmatpush1.bf16.msra.mxu0 0
    %3552 = vmatprep.subr.bf16.mxu0 0
    %3553 = vmatpush1.bf16.msra.mxu0 0
    %3554 = vmatprep.subr.bf16.mxu0 0
    %3555 = vmatpush1.bf16.msra.mxu0 0
    %3556 = vmatprep.subr.bf16.mxu0 0
    %3557 = vmatpush1.bf16.msra.mxu0 0
    %3558 = vmatprep.subr.bf16.mxu0 0
    %3559 = vmatpush1.bf16.msra.mxu0 0
    %3560 = vmatprep.subr.bf16.mxu0 0
    %3561 = vmatpush1.bf16.msra.mxu0 0
    %3562 = vmatprep.subr.bf16.mxu0 0
    %3563 = vmatpush1.bf16.msra.mxu0 0
    %3564 = vmatprep.subr.bf16.mxu0 0
    %3565 = vmatpush1.bf16.msra.mxu0 0
    %3566 = vmatprep.subr.bf16.mxu0 0
    %3567 = vmatpush1.bf16.msra.mxu0 0
    %3568 = vmatprep.mubr.bf16.mxu0 0
    %3569 = vmatmul.mubr.bf16.gmra.mrb[0].mxu0 %v3531
    %v3570 = vpop.f32.mrb[0].mxu0
    %v3571 = vadd.f32 %v3528, %v3570
    %v3572 = vpop.f32.mrb[0].mxu0
    %v3573 = vpop.f32.mrb[0].mxu0
    %v3574 = vadd.f32 %v3528, %v3573
    %v3575 = vpop.f32.mrb[0].mxu0
    %3576 = vmatprep.mubr.bf16.mxu0 0
    %3577 = vmatmul.mubr.bf16.gmra.mrb[0].mxu0 %v3534
    %v3578 = vpop.f32.mrb[0].mxu0
    %v3579 = vadd.f32 %v3528, %v3578
    %v3580 = vpop.f32.mrb[0].mxu0
    %v3581 = vpop.f32.mrb[0].mxu0
    %v3582 = vadd.f32 %v3528, %v3581
    %v3583 = vpop.f32.mrb[0].mxu0
    %3584 = vdwg.mxu0
    %v3585 = vsel %vm2942, %v3571, -inf
    %3586 = vmax.xlane.f32.xlu0 %v3585
    %v3587 = vpop.xlane.xlu0 %3586
    %v3588 = vsel %vm2942, %v3574, -inf
    %3589 = vmax.xlane.f32.xlu0 %v3588
    %v3590 = vpop.xlane.xlu0 %3589
    %v3591 = vsel %vm2942, %v3579, -inf
    %3592 = vmax.xlane.f32.xlu0 %v3591
    %v3593 = vpop.xlane.xlu0 %3592
    %v3594 = vsel %vm2942, %v3582, -inf
    %3595 = vmax.xlane.f32.xlu0 %v3594
    %v3596 = vpop.xlane.xlu0 %3595
    %v3597 = vsub.f32 %v3571, %v3587
    %v3598 = vsub.f32 %v3574, %v3590
    %v3599 = vsub.f32 %v3579, %v3593
    %v3600 = vsub.f32 %v3582, %v3596
    %v3601 = vmul.f32 %v3597, 1.442695
    %v3602 = vpow.pop %v3601
    %v3603 = vmul.f32 %v3598, 1.442695
    %v3604 = vpow.pop %v3603
    %v3605 = vmul.f32 %v3599, 1.442695
    %v3606 = vpow.pop %v3605
    %v3607 = vmul.f32 %v3600, 1.442695
    %v3608 = vpow.pop %v3607
    %v3609 = vsel %vm2942, %v3602, 0.0
    %3610 = vadd.xlane.f32.xlu0 %v3609
    %v3611 = vpop.xlane.xlu0 %3610
    %v3612 = vsel %vm2942, %v3604, 0.0
    %3613 = vadd.xlane.f32.xlu0 %v3612
    %v3614 = vpop.xlane.xlu0 %3613
    %v3615 = vsel %vm2942, %v3606, 0.0
    %3616 = vadd.xlane.f32.xlu0 %v3615
    %v3617 = vpop.xlane.xlu0 %3616
    %v3618 = vsel %vm2942, %v3608, 0.0
    %3619 = vadd.xlane.f32.xlu0 %v3618
    %v3620 = vpop.xlane.xlu0 %3619
    %v3621 = vrcp.pop %v3611
    %v3622 = vmul.f32 %v3602, %v3621
    %v3623 = vrcp.pop %v3614
    %v3624 = vmul.f32 %v3604, %v3623
    %v3625 = vrcp.pop %v3617
    %v3626 = vmul.f32 %v3606, %v3625
    %v3627 = vrcp.pop %v3620
    %v3628 = vmul.f32 %v3608, %v3627
    %v3629 = vld [vmem:[#allocation7] sm:$0xff]
    %v3630 = vld [vmem:[#allocation7 + $0x8] sm:$0xff]
    %v3631 = vld [vmem:[#allocation7 + $0x10] sm:$0xff]
    %v3632 = vld [vmem:[#allocation7 + $0x18] sm:$0xff]
    %v3633 = vld [vmem:[#allocation7 + $0x20] sm:$0xff]
    %v3634 = vld [vmem:[#allocation7 + $0x28] sm:$0xff]
    %v3635 = vld [vmem:[#allocation7 + $0x30] sm:$0xff]
    %v3636 = vld [vmem:[#allocation7 + $0x38] sm:$0xff]
    %v3637 = vld [vmem:[#allocation7 + $0x40] sm:$0xff]
    %v3638 = vld [vmem:[#allocation7 + $0x48] sm:$0xff]
    %v3639 = vld [vmem:[#allocation7 + $0x50] sm:$0xff]
    %v3640 = vld [vmem:[#allocation7 + $0x58] sm:$0xff]
    %v3641 = vld [vmem:[#allocation7 + $0x60] sm:$0xff]
    %v3642 = vld [vmem:[#allocation7 + $0x68] sm:$0xff]
    %v3643 = vld [vmem:[#allocation7 + $0x70] sm:$0xff]
    %v3644 = vld [vmem:[#allocation7 + $0x78] sm:$0xff]
    %v3645 = vld [vmem:[#allocation7 + $0x80] sm:$0xff]
    %v3646 = vld [vmem:[#allocation7 + $0x88] sm:$0xff]
    %v3647 = vld [vmem:[#allocation7 + $0x90] sm:$0xff]
    %v3648 = vld [vmem:[#allocation7 + $0x98] sm:$0xff]
    %v3649 = vld [vmem:[#allocation7 + $0xa0] sm:$0xff]
    %v3650 = vld [vmem:[#allocation7 + $0xa8] sm:$0xff]
    %v3651 = vld [vmem:[#allocation7 + $0xb0] sm:$0xff]
    %v3652 = vld [vmem:[#allocation7 + $0xb8] sm:$0xff]
    %v3653 = vld [vmem:[#allocation7 + $0xc0] sm:$0xff]
    %v3654 = vld [vmem:[#allocation7 + $0xc8] sm:$0xff]
    %v3655 = vld [vmem:[#allocation7 + $0xd0] sm:$0xff]
    %v3656 = vld [vmem:[#allocation9] sm:$0x3]
    %v3658 = vlaneseq
    %v3659 = vshrl.u32 %v3658, 7
    %v3660 = vsub.s32 0, %v3659
    %v3661 = vrot.slane %v3656, %v3660
    %v3662 = vlaneseq
    %v3663 = vshrl.u32 %v3662, 7
    %v3664 = vsub.s32 1, %v3663
    %v3665 = vrot.slane %v3656, %v3664
    %v3695 = vunpack.c.l.b16 %v3629
    %v3696 = vunpack.c.h.b16 %v3629
    %v3697 = vunpack.c.l.b16 %v3630
    %v3698 = vunpack.c.h.b16 %v3630
    %v3699 = vunpack.c.l.b16 %v3631
    %v3700 = vunpack.c.h.b16 %v3631
    %v3701 = vunpack.c.l.b16 %v3632
    %v3702 = vunpack.c.h.b16 %v3632
    %v3703 = vunpack.c.l.b16 %v3633
    %v3704 = vunpack.c.h.b16 %v3633
    %v3705 = vunpack.c.l.b16 %v3634
    %v3706 = vunpack.c.h.b16 %v3634
    %v3707 = vunpack.c.l.b16 %v3635
    %v3708 = vunpack.c.h.b16 %v3635
    %v3709 = vunpack.c.l.b16 %v3636
    %v3710 = vunpack.c.h.b16 %v3636
    %v3711 = vunpack.c.l.b16 %v3637
    %v3712 = vunpack.c.h.b16 %v3637
    %v3713 = vunpack.c.l.b16 %v3638
    %v3714 = vunpack.c.h.b16 %v3638
    %v3715 = vunpack.c.l.b16 %v3639
    %v3716 = vunpack.c.h.b16 %v3639
    %v3717 = vunpack.c.l.b16 %v3640
    %v3718 = vunpack.c.h.b16 %v3640
    %v3719 = vunpack.c.l.b16 %v3641
    %v3720 = vunpack.c.h.b16 %v3641
    %v3721 = vunpack.c.l.b16 %v3642
    %v3722 = vunpack.c.h.b16 %v3642
    %v3723 = vunpack.c.l.b16 %v3643
    %v3724 = vunpack.c.h.b16 %v3643
    %v3725 = vunpack.c.l.b16 %v3644
    %v3726 = vunpack.c.h.b16 %v3644
    %v3727 = vunpack.c.l.b16 %v3645
    %v3728 = vunpack.c.h.b16 %v3645
    %v3729 = vunpack.c.l.b16 %v3646
    %v3730 = vunpack.c.h.b16 %v3646
    %v3731 = vunpack.c.l.b16 %v3647
    %v3732 = vunpack.c.h.b16 %v3647
    %v3733 = vunpack.c.l.b16 %v3648
    %v3734 = vunpack.c.h.b16 %v3648
    %v3735 = vunpack.c.l.b16 %v3649
    %v3736 = vunpack.c.h.b16 %v3649
    %v3737 = vunpack.c.l.b16 %v3650
    %v3738 = vunpack.c.h.b16 %v3650
    %v3739 = vunpack.c.l.b16 %v3651
    %v3740 = vunpack.c.h.b16 %v3651
    %v3741 = vunpack.c.l.b16 %v3652
    %v3742 = vunpack.c.h.b16 %v3652
    %v3743 = vunpack.c.l.b16 %v3653
    %v3744 = vunpack.c.h.b16 %v3653
    %v3745 = vunpack.c.l.b16 %v3654
    %v3746 = vunpack.c.h.b16 %v3654
    %v3747 = vunpack.c.l.b16 %v3655
    %v3748 = vunpack.c.h.b16 %v3655
    %v3749 = vpack.c.b16 %v3697, %v3695
    %v3750 = vpack.c.b16 %v3698, %v3696
    %v3751 = vpack.c.b16 %v3701, %v3699
    %v3752 = vpack.c.b16 %v3702, %v3700
    %v3753 = vpack.c.b16 %v3705, %v3703
    %v3754 = vpack.c.b16 %v3706, %v3704
    %v3755 = vpack.c.b16 %v3709, %v3707
    %v3756 = vpack.c.b16 %v3710, %v3708
    %v3757 = vpack.c.b16 %v3713, %v3711
    %v3758 = vpack.c.b16 %v3714, %v3712
    %v3759 = vpack.c.b16 %v3717, %v3715
    %v3760 = vpack.c.b16 %v3718, %v3716
    %v3761 = vpack.c.b16 %v3721, %v3719
    %v3762 = vpack.c.b16 %v3722, %v3720
    %v3763 = vpack.c.b16 %v3725, %v3723
    %v3764 = vpack.c.b16 %v3726, %v3724
    %v3765 = vpack.c.b16 %v3729, %v3727
    %v3766 = vpack.c.b16 %v3730, %v3728
    %v3767 = vpack.c.b16 %v3733, %v3731
    %v3768 = vpack.c.b16 %v3734, %v3732
    %v3769 = vpack.c.b16 %v3737, %v3735
    %v3770 = vpack.c.b16 %v3738, %v3736
    %v3771 = vpack.c.b16 %v3741, %v3739
    %v3772 = vpack.c.b16 %v3742, %v3740
    %v3773 = vpack.c.b16 %v3745, %v3743
    %v3774 = vpack.c.b16 %v3746, %v3744
    %v3775 = vpack.c.b16 %v3747, %v3747
    %v3776 = vpack.c.b16 %v3748, %v3748
    %v3804 = vsel %vm1498, %v3775, 0
    %v3807 = vsel %vm1498, %v3776, 0
    %3809 = vmatprep.subr.bf16.mxu0 %v3750
    %3810 = vmatpush1.bf16.msra.mxu0 %v3749
    %3811 = vmatprep.subr.bf16.mxu0 %v3752
    %3812 = vmatpush1.bf16.msra.mxu0 %v3751
    %3813 = vmatprep.subr.bf16.mxu0 %v3754
    %3814 = vmatpush1.bf16.msra.mxu0 %v3753
    %3815 = vmatprep.subr.bf16.mxu0 %v3756
    %3816 = vmatpush1.bf16.msra.mxu0 %v3755
    %3817 = vmatprep.subr.bf16.mxu0 %v3758
    %3818 = vmatpush1.bf16.msra.mxu0 %v3757
    %3819 = vmatprep.subr.bf16.mxu0 %v3760
    %3820 = vmatpush1.bf16.msra.mxu0 %v3759
    %3821 = vmatprep.subr.bf16.mxu0 %v3762
    %3822 = vmatpush1.bf16.msra.mxu0 %v3761
    %3823 = vmatprep.subr.bf16.mxu0 %v3764
    %3824 = vmatpush1.bf16.msra.mxu0 %v3763
    %3825 = vmatprep.subr.bf16.mxu0 %v3766
    %3826 = vmatpush1.bf16.msra.mxu0 %v3765
    %3827 = vmatprep.subr.bf16.mxu0 %v3768
    %3828 = vmatpush1.bf16.msra.mxu0 %v3767
    %3829 = vmatprep.subr.bf16.mxu0 %v3770
    %3830 = vmatpush1.bf16.msra.mxu0 %v3769
    %3831 = vmatprep.subr.bf16.mxu0 %v3772
    %3832 = vmatpush1.bf16.msra.mxu0 %v3771
    %3833 = vmatprep.subr.bf16.mxu0 %v3774
    %3834 = vmatpush1.bf16.msra.mxu0 %v3773
    %3835 = vmatprep.subr.bf16.mxu0 %v3807
    %3836 = vmatpush1.bf16.msra.mxu0 %v3804
    %3837 = vmatprep.subr.bf16.mxu0 0
    %3838 = vmatpush1.bf16.msra.mxu0 0
    %3839 = vmatprep.subr.bf16.mxu0 0
    %3840 = vmatpush1.bf16.msra.mxu0 0
    %3841 = vmatprep.mubr.bf16.mxu0 %v3205
    %3842 = vmatmul.mubr.bf16.gmra.mrb[0].mxu0 %v3046
    %v3843 = vpop.f32.mrb[0].mxu0
    %v3844 = vadd.f32 %v3661, %v3843
    %v3845 = vpop.f32.mrb[0].mxu0
    %v3846 = vadd.f32 %v3665, %v3845
    %v3847 = vpop.f32.mrb[0].mxu0
    %v3848 = vadd.f32 %v3661, %v3847
    %v3849 = vpop.f32.mrb[0].mxu0
    %v3850 = vadd.f32 %v3665, %v3849
    %3851 = vmatprep.mubr.bf16.mxu0 %v3207
    %3852 = vmatmul.mubr.bf16.gmra.mrb[0].mxu0 %v3083
    %v3853 = vpop.f32.mrb[0].mxu0
    %v3854 = vadd.f32 %v3661, %v3853
    %v3855 = vpop.f32.mrb[0].mxu0
    %v3856 = vadd.f32 %v3665, %v3855
    %v3857 = vpop.f32.mrb[0].mxu0
    %v3858 = vadd.f32 %v3661, %v3857
    %v3859 = vpop.f32.mrb[0].mxu0
    %v3860 = vadd.f32 %v3665, %v3859
    %3861 = vdwg.mxu0
    %vm3862 = vcmp.gt.f32.partialorder %v3844, 0.0
    %vm3863 = vcmp.gt.f32.partialorder %v3846, 0.0
    %vm3864 = vcmp.gt.f32.partialorder %v3848, 0.0
    %vm3865 = vcmp.gt.f32.partialorder %v3850, 0.0
    %vm3866 = vcmp.gt.f32.partialorder %v3854, 0.0
    %vm3867 = vcmp.gt.f32.partialorder %v3856, 0.0
    %vm3868 = vcmp.gt.f32.partialorder %v3858, 0.0
    %vm3869 = vcmp.gt.f32.partialorder %v3860, 0.0
    %v3870 = vmul.f32 %v3844, 0.2
    %v3871 = vmul.f32 %v3846, 0.2
    %v3872 = vmul.f32 %v3848, 0.2
    %v3873 = vmul.f32 %v3850, 0.2
    %v3874 = vmul.f32 %v3854, 0.2
    %v3875 = vmul.f32 %v3856, 0.2
    %v3876 = vmul.f32 %v3858, 0.2
    %v3877 = vmul.f32 %v3860, 0.2
    %v3878 = vsel %vm3862, %v3844, %v3870
    %v3879 = vsel %vm3863, %v3846, %v3871
    %v3880 = vsel %vm3864, %v3848, %v3872
    %v3881 = vsel %vm3865, %v3850, %v3873
    %v3882 = vsel %vm3866, %v3854, %v3874
    %v3883 = vsel %vm3867, %v3856, %v3875
    %v3884 = vsel %vm3868, %v3858, %v3876
    %v3885 = vsel %vm3869, %v3860, %v3877
    %v3886 = vpack.c.bf16 %v3880, %v3878
    %v3887 = vpack.c.bf16 %v3881, %v3879
    %v3888 = vpack.c.bf16 %v3884, %v3882
    %v3889 = vpack.c.bf16 %v3885, %v3883
    %v3891 = vshrl.u32 %v3886, 16
    %v3893 = vrot.slane %v3891, 7
    %v3894 = vshll.u32 %v3886, 16
    %v3896 = vor.u32 %v3893, %v3894
    %v3898 = vshrl.u32 %v3887, 16
    %v3900 = vrot.slane %v3898, 7
    %v3901 = vshll.u32 %v3887, 16
    %v3903 = vor.u32 %v3900, %v3901
    %v3908 = vsel %vm187, 0, %v3896
    %v3909 = vsel %vm187, 0, %v3903
    %v3910 = vsel %vm187, %v3893, 0
    %v3911 = vsel %vm187, %v3900, 0
    %v3913 = vshrl.u32 %v3908, 16
    %v3915 = vshll.u32 %v3908, 16
    %v3917 = vrot.slane %v3915, 1
    %v3918 = vor.u32 %v3913, %v3917
    %v3920 = vshll.u32 %v3910, 16
    %v3922 = vrot.slane %v3920, 1
    %v3923 = vsel %vm190, %v3918, %v3922
    %v3925 = vshrl.u32 %v3909, 16
    %v3927 = vshll.u32 %v3909, 16
    %v3929 = vrot.slane %v3927, 1
    %v3930 = vor.u32 %v3925, %v3929
    %v3932 = vshll.u32 %v3911, 16
    %v3934 = vrot.slane %v3932, 1
    %v3935 = vsel %vm190, %v3930, %v3934
    %v3942 = vrot.slane %v3908, 1
    %v3943 = vrot.slane %v3910, 1
    %v3944 = vsel %vm207, %v3942, %v3943
    %v3945 = vrot.slane %v3909, 1
    %v3946 = vrot.slane %v3911, 1
    %v3947 = vsel %vm207, %v3945, %v3946
    %v3951 = vshrl.u32 %v3888, 16
    %v3953 = vrot.slane %v3951, 7
    %v3954 = vshll.u32 %v3888, 16
    %v3956 = vor.u32 %v3953, %v3954
    %v3958 = vshrl.u32 %v3889, 16
    %v3960 = vrot.slane %v3958, 7
    %v3961 = vshll.u32 %v3889, 16
    %v3963 = vor.u32 %v3960, %v3961
    %v3968 = vsel %vm187, 0, %v3956
    %v3969 = vsel %vm187, 0, %v3963
    %v3970 = vsel %vm187, %v3953, 0
    %v3971 = vsel %vm187, %v3960, 0
    %v3973 = vshrl.u32 %v3968, 16
    %v3975 = vshll.u32 %v3968, 16
    %v3977 = vrot.slane %v3975, 1
    %v3978 = vor.u32 %v3973, %v3977
    %v3980 = vshll.u32 %v3970, 16
    %v3982 = vrot.slane %v3980, 1
    %v3983 = vsel %vm190, %v3978, %v3982
    %v3985 = vshrl.u32 %v3969, 16
    %v3987 = vshll.u32 %v3969, 16
    %v3989 = vrot.slane %v3987, 1
    %v3990 = vor.u32 %v3985, %v3989
    %v3992 = vshll.u32 %v3971, 16
    %v3994 = vrot.slane %v3992, 1
    %v3995 = vsel %vm190, %v3990, %v3994
    %v4002 = vrot.slane %v3968, 1
    %v4003 = vrot.slane %v3970, 1
    %v4004 = vsel %vm207, %v4002, %v4003
    %v4005 = vrot.slane %v3969, 1
    %v4006 = vrot.slane %v3971, 1
    %v4007 = vsel %vm207, %v4005, %v4006
    %s4010 = scalar_lea.vmem [#allocation7], 768
    %v4011 = vld [vmem:[%s4010] sm:$0xff]
    %v4012 = vld [vmem:[%s4010 + $0x8] sm:$0xff]
    %v4013 = vld [vmem:[%s4010 + $0x10] sm:$0xff]
    %v4014 = vld [vmem:[%s4010 + $0x18] sm:$0xff]
    %v4015 = vld [vmem:[%s4010 + $0x20] sm:$0xff]
    %v4016 = vld [vmem:[%s4010 + $0x28] sm:$0xff]
    %v4017 = vld [vmem:[%s4010 + $0x30] sm:$0xff]
    %v4018 = vld [vmem:[%s4010 + $0x38] sm:$0xff]
    %v4019 = vld [vmem:[%s4010 + $0x40] sm:$0xff]
    %v4020 = vld [vmem:[%s4010 + $0x48] sm:$0xff]
    %v4021 = vld [vmem:[%s4010 + $0x50] sm:$0xff]
    %v4022 = vld [vmem:[%s4010 + $0x58] sm:$0xff]
    %v4023 = vld [vmem:[%s4010 + $0x60] sm:$0xff]
    %v4024 = vld [vmem:[%s4010 + $0x68] sm:$0xff]
    %v4025 = vld [vmem:[%s4010 + $0x70] sm:$0xff]
    %v4026 = vld [vmem:[%s4010 + $0x78] sm:$0xff]
    %v4027 = vld [vmem:[%s4010 + $0x80] sm:$0xff]
    %v4028 = vld [vmem:[%s4010 + $0x88] sm:$0xff]
    %v4029 = vld [vmem:[%s4010 + $0x90] sm:$0xff]
    %v4030 = vld [vmem:[%s4010 + $0x98] sm:$0xff]
    %v4031 = vld [vmem:[%s4010 + $0xa0] sm:$0xff]
    %v4032 = vld [vmem:[%s4010 + $0xa8] sm:$0xff]
    %v4033 = vld [vmem:[%s4010 + $0xb0] sm:$0xff]
    %v4034 = vld [vmem:[%s4010 + $0xb8] sm:$0xff]
    %v4035 = vld [vmem:[%s4010 + $0xc0] sm:$0xff]
    %v4036 = vld [vmem:[%s4010 + $0xc8] sm:$0xff]
    %v4037 = vld [vmem:[%s4010 + $0xd0] sm:$0xff]
    %v4038 = vld [vmem:[%s4010 + $0xd8] sm:$0xff]
    %v4039 = vld [vmem:[%s4010 + $0xe0] sm:$0xff]
    %v4040 = vld [vmem:[%s4010 + $0xe8] sm:$0xff]
    %v4041 = vld [vmem:[%s4010 + $0xf0] sm:$0xff]
    %v4042 = vld [vmem:[%s4010 + $0xf8] sm:$0xff]
    %v4043 = vld [vmem:[%s4010 + $0x100] sm:$0xff]
    %v4044 = vld [vmem:[%s4010 + $0x108] sm:$0xff]
    %v4045 = vld [vmem:[%s4010 + $0x110] sm:$0xff]
    %v4046 = vld [vmem:[%s4010 + $0x118] sm:$0xff]
    %v4047 = vld [vmem:[%s4010 + $0x120] sm:$0xff]
    %v4048 = vld [vmem:[%s4010 + $0x128] sm:$0xff]
    %v4049 = vld [vmem:[%s4010 + $0x130] sm:$0xff]
    %v4050 = vld [vmem:[%s4010 + $0x138] sm:$0xff]
    %v4051 = vld [vmem:[%s4010 + $0x140] sm:$0xff]
    %v4052 = vld [vmem:[%s4010 + $0x148] sm:$0xff]
    %v4053 = vld [vmem:[%s4010 + $0x150] sm:$0xff]
    %v4054 = vld [vmem:[%s4010 + $0x158] sm:$0xff]
    %v4055 = vld [vmem:[%s4010 + $0x160] sm:$0xff]
    %v4056 = vld [vmem:[%s4010 + $0x168] sm:$0xff]
    %v4057 = vld [vmem:[%s4010 + $0x170] sm:$0xff]
    %v4058 = vld [vmem:[%s4010 + $0x178] sm:$0xff]
    %v4059 = vld [vmem:[%s4010 + $0x180] sm:$0xff]
    %v4060 = vld [vmem:[%s4010 + $0x188] sm:$0xff]
    %v4061 = vld [vmem:[%s4010 + $0x190] sm:$0xff]
    %v4062 = vld [vmem:[%s4010 + $0x198] sm:$0xff]
    %v4063 = vld [vmem:[%s4010 + $0x1a0] sm:$0xff]
    %v4064 = vld [vmem:[%s4010 + $0x1a8] sm:$0xff]
    %v4065 = vld [vmem:[%s4010 + $0x1b0] sm:$0xff]
    %v4066 = vld [vmem:[%s4010 + $0x1b8] sm:$0xff]
    %v4067 = vld [vmem:[%s4010 + $0x1c0] sm:$0xff]
    %v4068 = vld [vmem:[%s4010 + $0x1c8] sm:$0xff]
    %v4069 = vld [vmem:[%s4010 + $0x1d0] sm:$0xff]
    %v4070 = vld [vmem:[%s4010 + $0x1d8] sm:$0xff]
    %v4071 = vld [vmem:[%s4010 + $0x1e0] sm:$0xff]
    %v4072 = vld [vmem:[%s4010 + $0x1e8] sm:$0xff]
    %v4073 = vld [vmem:[%s4010 + $0x1f0] sm:$0xff]
    %v4074 = vld [vmem:[%s4010 + $0x1f8] sm:$0xff]
    %v4075 = vld [vmem:[%s4010 + $0x200] sm:$0xff]
    %v4076 = vld [vmem:[%s4010 + $0x208] sm:$0xff]
    %v4077 = vld [vmem:[%s4010 + $0x210] sm:$0xff]
    %v4078 = vld [vmem:[%s4010 + $0x218] sm:$0xff]
    %v4079 = vld [vmem:[%s4010 + $0x220] sm:$0xff]
    %v4080 = vld [vmem:[%s4010 + $0x228] sm:$0xff]
    %v4081 = vld [vmem:[%s4010 + $0x230] sm:$0xff]
    %v4082 = vld [vmem:[%s4010 + $0x238] sm:$0xff]
    %v4083 = vld [vmem:[%s4010 + $0x240] sm:$0xff]
    %v4084 = vld [vmem:[%s4010 + $0x248] sm:$0xff]
    %v4085 = vld [vmem:[%s4010 + $0x250] sm:$0xff]
    %v4086 = vld [vmem:[%s4010 + $0x258] sm:$0xff]
    %v4087 = vld [vmem:[%s4010 + $0x260] sm:$0xff]
    %v4088 = vld [vmem:[%s4010 + $0x268] sm:$0xff]
    %v4089 = vld [vmem:[%s4010 + $0x270] sm:$0xff]
    %v4090 = vld [vmem:[%s4010 + $0x278] sm:$0xff]
    %v4091 = vld [vmem:[%s4010 + $0x280] sm:$0xff]
    %v4092 = vld [vmem:[%s4010 + $0x288] sm:$0xff]
    %v4093 = vld [vmem:[%s4010 + $0x290] sm:$0xff]
    %v4094 = vld [vmem:[%s4010 + $0x298] sm:$0xff]
    %v4095 = vld [vmem:[%s4010 + $0x2a0] sm:$0xff]
    %v4096 = vld [vmem:[%s4010 + $0x2a8] sm:$0xff]
    %v4097 = vld [vmem:[%s4010 + $0x2b0] sm:$0xff]
    %v4098 = vld [vmem:[%s4010 + $0x2b8] sm:$0xff]
    %v4099 = vld [vmem:[%s4010 + $0x2c0] sm:$0xff]
    %v4100 = vld [vmem:[%s4010 + $0x2c8] sm:$0xff]
    %v4101 = vld [vmem:[%s4010 + $0x2d0] sm:$0xff]
    %v4102 = vld [vmem:[%s4010 + $0x2d8] sm:$0xff]
    %v4103 = vld [vmem:[%s4010 + $0x2e0] sm:$0xff]
    %v4104 = vld [vmem:[%s4010 + $0x2e8] sm:$0xff]
    %v4105 = vld [vmem:[%s4010 + $0x2f0] sm:$0xff]
    %v4106 = vld [vmem:[%s4010 + $0x2f8] sm:$0xff]
    %s4107 = scalar_lea.vmem [#allocation9], 2
    %v4108 = vld [vmem:[%s4107] sm:$0x3]
    %v4110 = vlaneseq
    %v4111 = vshrl.u32 %v4110, 7
    %v4112 = vsub.s32 0, %v4111
    %v4113 = vrot.slane %v4108, %v4112
    %v4114 = vlaneseq
    %v4115 = vshrl.u32 %v4114, 7
    %v4116 = vsub.s32 1, %v4115
    %v4117 = vrot.slane %v4108, %v4116
    %v4216 = vunpack.c.l.b16 %v4011
    %v4217 = vunpack.c.h.b16 %v4011
    %v4218 = vunpack.c.l.b16 %v4012
    %v4219 = vunpack.c.h.b16 %v4012
    %v4220 = vunpack.c.l.b16 %v4013
    %v4221 = vunpack.c.h.b16 %v4013
    %v4222 = vunpack.c.l.b16 %v4014
    %v4223 = vunpack.c.h.b16 %v4014
    %v4224 = vunpack.c.l.b16 %v4015
    %v4225 = vunpack.c.h.b16 %v4015
    %v4226 = vunpack.c.l.b16 %v4016
    %v4227 = vunpack.c.h.b16 %v4016
    %v4228 = vunpack.c.l.b16 %v4017
    %v4229 = vunpack.c.h.b16 %v4017
    %v4230 = vunpack.c.l.b16 %v4018
    %v4231 = vunpack.c.h.b16 %v4018
    %v4232 = vunpack.c.l.b16 %v4019
    %v4233 = vunpack.c.h.b16 %v4019
    %v4234 = vunpack.c.l.b16 %v4020
    %v4235 = vunpack.c.h.b16 %v4020
    %v4236 = vunpack.c.l.b16 %v4021
    %v4237 = vunpack.c.h.b16 %v4021
    %v4238 = vunpack.c.l.b16 %v4022
    %v4239 = vunpack.c.h.b16 %v4022
    %v4240 = vunpack.c.l.b16 %v4023
    %v4241 = vunpack.c.h.b16 %v4023
    %v4242 = vunpack.c.l.b16 %v4024
    %v4243 = vunpack.c.h.b16 %v4024
    %v4244 = vunpack.c.l.b16 %v4025
    %v4245 = vunpack.c.h.b16 %v4025
    %v4246 = vunpack.c.l.b16 %v4026
    %v4247 = vunpack.c.h.b16 %v4026
    %v4248 = vunpack.c.l.b16 %v4027
    %v4249 = vunpack.c.h.b16 %v4027
    %v4250 = vunpack.c.l.b16 %v4028
    %v4251 = vunpack.c.h.b16 %v4028
    %v4252 = vunpack.c.l.b16 %v4029
    %v4253 = vunpack.c.h.b16 %v4029
    %v4254 = vunpack.c.l.b16 %v4030
    %v4255 = vunpack.c.h.b16 %v4030
    %v4256 = vunpack.c.l.b16 %v4031
    %v4257 = vunpack.c.h.b16 %v4031
    %v4258 = vunpack.c.l.b16 %v4032
    %v4259 = vunpack.c.h.b16 %v4032
    %v4260 = vunpack.c.l.b16 %v4033
    %v4261 = vunpack.c.h.b16 %v4033
    %v4262 = vunpack.c.l.b16 %v4034
    %v4263 = vunpack.c.h.b16 %v4034
    %v4264 = vunpack.c.l.b16 %v4035
    %v4265 = vunpack.c.h.b16 %v4035
    %v4266 = vunpack.c.l.b16 %v4036
    %v4267 = vunpack.c.h.b16 %v4036
    %v4268 = vunpack.c.l.b16 %v4037
    %v4269 = vunpack.c.h.b16 %v4037
    %v4270 = vunpack.c.l.b16 %v4038
    %v4271 = vunpack.c.h.b16 %v4038
    %v4272 = vunpack.c.l.b16 %v4039
    %v4273 = vunpack.c.h.b16 %v4039
    %v4274 = vunpack.c.l.b16 %v4040
    %v4275 = vunpack.c.h.b16 %v4040
    %v4276 = vunpack.c.l.b16 %v4041
    %v4277 = vunpack.c.h.b16 %v4041
    %v4278 = vunpack.c.l.b16 %v4042
    %v4279 = vunpack.c.h.b16 %v4042
    %v4280 = vunpack.c.l.b16 %v4043
    %v4281 = vunpack.c.h.b16 %v4043
    %v4282 = vunpack.c.l.b16 %v4044
    %v4283 = vunpack.c.h.b16 %v4044
    %v4284 = vunpack.c.l.b16 %v4045
    %v4285 = vunpack.c.h.b16 %v4045
    %v4286 = vunpack.c.l.b16 %v4046
    %v4287 = vunpack.c.h.b16 %v4046
    %v4288 = vunpack.c.l.b16 %v4047
    %v4289 = vunpack.c.h.b16 %v4047
    %v4290 = vunpack.c.l.b16 %v4048
    %v4291 = vunpack.c.h.b16 %v4048
    %v4292 = vunpack.c.l.b16 %v4049
    %v4293 = vunpack.c.h.b16 %v4049
    %v4294 = vunpack.c.l.b16 %v4050
    %v4295 = vunpack.c.h.b16 %v4050
    %v4296 = vunpack.c.l.b16 %v4051
    %v4297 = vunpack.c.h.b16 %v4051
    %v4298 = vunpack.c.l.b16 %v4052
    %v4299 = vunpack.c.h.b16 %v4052
    %v4300 = vunpack.c.l.b16 %v4053
    %v4301 = vunpack.c.h.b16 %v4053
    %v4302 = vunpack.c.l.b16 %v4054
    %v4303 = vunpack.c.h.b16 %v4054
    %v4304 = vunpack.c.l.b16 %v4055
    %v4305 = vunpack.c.h.b16 %v4055
    %v4306 = vunpack.c.l.b16 %v4056
    %v4307 = vunpack.c.h.b16 %v4056
    %v4308 = vunpack.c.l.b16 %v4057
    %v4309 = vunpack.c.h.b16 %v4057
    %v4310 = vunpack.c.l.b16 %v4058
    %v4311 = vunpack.c.h.b16 %v4058
    %v4312 = vunpack.c.l.b16 %v4059
    %v4313 = vunpack.c.h.b16 %v4059
    %v4314 = vunpack.c.l.b16 %v4060
    %v4315 = vunpack.c.h.b16 %v4060
    %v4316 = vunpack.c.l.b16 %v4061
    %v4317 = vunpack.c.h.b16 %v4061
    %v4318 = vunpack.c.l.b16 %v4062
    %v4319 = vunpack.c.h.b16 %v4062
    %v4320 = vunpack.c.l.b16 %v4063
    %v4321 = vunpack.c.h.b16 %v4063
    %v4322 = vunpack.c.l.b16 %v4064
    %v4323 = vunpack.c.h.b16 %v4064
    %v4324 = vunpack.c.l.b16 %v4065
    %v4325 = vunpack.c.h.b16 %v4065
    %v4326 = vunpack.c.l.b16 %v4066
    %v4327 = vunpack.c.h.b16 %v4066
    %v4328 = vunpack.c.l.b16 %v4067
    %v4329 = vunpack.c.h.b16 %v4067
    %v4330 = vunpack.c.l.b16 %v4068
    %v4331 = vunpack.c.h.b16 %v4068
    %v4332 = vunpack.c.l.b16 %v4069
    %v4333 = vunpack.c.h.b16 %v4069
    %v4334 = vunpack.c.l.b16 %v4070
    %v4335 = vunpack.c.h.b16 %v4070
    %v4336 = vunpack.c.l.b16 %v4071
    %v4337 = vunpack.c.h.b16 %v4071
    %v4338 = vunpack.c.l.b16 %v4072
    %v4339 = vunpack.c.h.b16 %v4072
    %v4340 = vunpack.c.l.b16 %v4073
    %v4341 = vunpack.c.h.b16 %v4073
    %v4342 = vunpack.c.l.b16 %v4074
    %v4343 = vunpack.c.h.b16 %v4074
    %v4344 = vunpack.c.l.b16 %v4075
    %v4345 = vunpack.c.h.b16 %v4075
    %v4346 = vunpack.c.l.b16 %v4076
    %v4347 = vunpack.c.h.b16 %v4076
    %v4348 = vunpack.c.l.b16 %v4077
    %v4349 = vunpack.c.h.b16 %v4077
    %v4350 = vunpack.c.l.b16 %v4078
    %v4351 = vunpack.c.h.b16 %v4078
    %v4352 = vunpack.c.l.b16 %v4079
    %v4353 = vunpack.c.h.b16 %v4079
    %v4354 = vunpack.c.l.b16 %v4080
    %v4355 = vunpack.c.h.b16 %v4080
    %v4356 = vunpack.c.l.b16 %v4081
    %v4357 = vunpack.c.h.b16 %v4081
    %v4358 = vunpack.c.l.b16 %v4082
    %v4359 = vunpack.c.h.b16 %v4082
    %v4360 = vunpack.c.l.b16 %v4083
    %v4361 = vunpack.c.h.b16 %v4083
    %v4362 = vunpack.c.l.b16 %v4084
    %v4363 = vunpack.c.h.b16 %v4084
    %v4364 = vunpack.c.l.b16 %v4085
    %v4365 = vunpack.c.h.b16 %v4085
    %v4366 = vunpack.c.l.b16 %v4086
    %v4367 = vunpack.c.h.b16 %v4086
    %v4368 = vunpack.c.l.b16 %v4087
    %v4369 = vunpack.c.h.b16 %v4087
    %v4370 = vunpack.c.l.b16 %v4088
    %v4371 = vunpack.c.h.b16 %v4088
    %v4372 = vunpack.c.l.b16 %v4089
    %v4373 = vunpack.c.h.b16 %v4089
    %v4374 = vunpack.c.l.b16 %v4090
    %v4375 = vunpack.c.h.b16 %v4090
    %v4376 = vunpack.c.l.b16 %v4091
    %v4377 = vunpack.c.h.b16 %v4091
    %v4378 = vunpack.c.l.b16 %v4092
    %v4379 = vunpack.c.h.b16 %v4092
    %v4380 = vunpack.c.l.b16 %v4093
    %v4381 = vunpack.c.h.b16 %v4093
    %v4382 = vunpack.c.l.b16 %v4094
    %v4383 = vunpack.c.h.b16 %v4094
    %v4384 = vunpack.c.l.b16 %v4095
    %v4385 = vunpack.c.h.b16 %v4095
    %v4386 = vunpack.c.l.b16 %v4096
    %v4387 = vunpack.c.h.b16 %v4096
    %v4388 = vunpack.c.l.b16 %v4097
    %v4389 = vunpack.c.h.b16 %v4097
    %v4390 = vunpack.c.l.b16 %v4098
    %v4391 = vunpack.c.h.b16 %v4098
    %v4392 = vunpack.c.l.b16 %v4099
    %v4393 = vunpack.c.h.b16 %v4099
    %v4394 = vunpack.c.l.b16 %v4100
    %v4395 = vunpack.c.h.b16 %v4100
    %v4396 = vunpack.c.l.b16 %v4101
    %v4397 = vunpack.c.h.b16 %v4101
    %v4398 = vunpack.c.l.b16 %v4102
    %v4399 = vunpack.c.h.b16 %v4102
    %v4400 = vunpack.c.l.b16 %v4103
    %v4401 = vunpack.c.h.b16 %v4103
    %v4402 = vunpack.c.l.b16 %v4104
    %v4403 = vunpack.c.h.b16 %v4104
    %v4404 = vunpack.c.l.b16 %v4105
    %v4405 = vunpack.c.h.b16 %v4105
    %v4406 = vunpack.c.l.b16 %v4106
    %v4407 = vunpack.c.h.b16 %v4106
    %v4408 = vpack.c.b16 %v4218, %v4216
    %v4409 = vpack.c.b16 %v4219, %v4217
    %v4410 = vpack.c.b16 %v4222, %v4220
    %v4411 = vpack.c.b16 %v4223, %v4221
    %v4412 = vpack.c.b16 %v4226, %v4224
    %v4413 = vpack.c.b16 %v4227, %v4225
    %v4414 = vpack.c.b16 %v4230, %v4228
    %v4415 = vpack.c.b16 %v4231, %v4229
    %v4416 = vpack.c.b16 %v4234, %v4232
    %v4417 = vpack.c.b16 %v4235, %v4233
    %v4418 = vpack.c.b16 %v4238, %v4236
    %v4419 = vpack.c.b16 %v4239, %v4237
    %v4420 = vpack.c.b16 %v4242, %v4240
    %v4421 = vpack.c.b16 %v4243, %v4241
    %v4422 = vpack.c.b16 %v4246, %v4244
    %v4423 = vpack.c.b16 %v4247, %v4245
    %v4424 = vpack.c.b16 %v4250, %v4248
    %v4425 = vpack.c.b16 %v4251, %v4249
    %v4426 = vpack.c.b16 %v4254, %v4252
    %v4427 = vpack.c.b16 %v4255, %v4253
    %v4428 = vpack.c.b16 %v4258, %v4256
    %v4429 = vpack.c.b16 %v4259, %v4257
    %v4430 = vpack.c.b16 %v4262, %v4260
    %v4431 = vpack.c.b16 %v4263, %v4261
    %v4432 = vpack.c.b16 %v4266, %v4264
    %v4433 = vpack.c.b16 %v4267, %v4265
    %v4434 = vpack.c.b16 %v4270, %v4268
    %v4435 = vpack.c.b16 %v4271, %v4269
    %v4436 = vpack.c.b16 %v4274, %v4272
    %v4437 = vpack.c.b16 %v4275, %v4273
    %v4438 = vpack.c.b16 %v4278, %v4276
    %v4439 = vpack.c.b16 %v4279, %v4277
    %v4440 = vpack.c.b16 %v4282, %v4280
    %v4441 = vpack.c.b16 %v4283, %v4281
    %v4442 = vpack.c.b16 %v4286, %v4284
    %v4443 = vpack.c.b16 %v4287, %v4285
    %v4444 = vpack.c.b16 %v4290, %v4288
    %v4445 = vpack.c.b16 %v4291, %v4289
    %v4446 = vpack.c.b16 %v4294, %v4292
    %v4447 = vpack.c.b16 %v4295, %v4293
    %v4448 = vpack.c.b16 %v4298, %v4296
    %v4449 = vpack.c.b16 %v4299, %v4297
    %v4450 = vpack.c.b16 %v4302, %v4300
    %v4451 = vpack.c.b16 %v4303, %v4301
    %v4452 = vpack.c.b16 %v4306, %v4304
    %v4453 = vpack.c.b16 %v4307, %v4305
    %v4454 = vpack.c.b16 %v4310, %v4308
    %v4455 = vpack.c.b16 %v4311, %v4309
    %v4456 = vpack.c.b16 %v4314, %v4312
    %v4457 = vpack.c.b16 %v4315, %v4313
    %v4458 = vpack.c.b16 %v4318, %v4316
    %v4459 = vpack.c.b16 %v4319, %v4317
    %v4460 = vpack.c.b16 %v4322, %v4320
    %v4461 = vpack.c.b16 %v4323, %v4321
    %v4462 = vpack.c.b16 %v4326, %v4324
    %v4463 = vpack.c.b16 %v4327, %v4325
    %v4464 = vpack.c.b16 %v4330, %v4328
    %v4465 = vpack.c.b16 %v4331, %v4329
    %v4466 = vpack.c.b16 %v4334, %v4332
    %v4467 = vpack.c.b16 %v4335, %v4333
    %v4468 = vpack.c.b16 %v4338, %v4336
    %v4469 = vpack.c.b16 %v4339, %v4337
    %v4470 = vpack.c.b16 %v4342, %v4340
    %v4471 = vpack.c.b16 %v4343, %v4341
    %v4472 = vpack.c.b16 %v4346, %v4344
    %v4473 = vpack.c.b16 %v4347, %v4345
    %v4474 = vpack.c.b16 %v4350, %v4348
    %v4475 = vpack.c.b16 %v4351, %v4349
    %v4476 = vpack.c.b16 %v4354, %v4352
    %v4477 = vpack.c.b16 %v4355, %v4353
    %v4478 = vpack.c.b16 %v4358, %v4356
    %v4479 = vpack.c.b16 %v4359, %v4357
    %v4480 = vpack.c.b16 %v4362, %v4360
    %v4481 = vpack.c.b16 %v4363, %v4361
    %v4482 = vpack.c.b16 %v4366, %v4364
    %v4483 = vpack.c.b16 %v4367, %v4365
    %v4484 = vpack.c.b16 %v4370, %v4368
    %v4485 = vpack.c.b16 %v4371, %v4369
    %v4486 = vpack.c.b16 %v4374, %v4372
    %v4487 = vpack.c.b16 %v4375, %v4373
    %v4488 = vpack.c.b16 %v4378, %v4376
    %v4489 = vpack.c.b16 %v4379, %v4377
    %v4490 = vpack.c.b16 %v4382, %v4380
    %v4491 = vpack.c.b16 %v4383, %v4381
    %v4492 = vpack.c.b16 %v4386, %v4384
    %v4493 = vpack.c.b16 %v4387, %v4385
    %v4494 = vpack.c.b16 %v4390, %v4388
    %v4495 = vpack.c.b16 %v4391, %v4389
    %v4496 = vpack.c.b16 %v4394, %v4392
    %v4497 = vpack.c.b16 %v4395, %v4393
    %v4498 = vpack.c.b16 %v4398, %v4396
    %v4499 = vpack.c.b16 %v4399, %v4397
    %v4500 = vpack.c.b16 %v4402, %v4400
    %v4501 = vpack.c.b16 %v4403, %v4401
    %v4502 = vpack.c.b16 %v4406, %v4404
    %v4503 = vpack.c.b16 %v4407, %v4405
    %4600 = vmatprep.subr.bf16.mxu0 %v4409
    %4601 = vmatpush1.bf16.msra.mxu0 %v4408
    %4602 = vmatprep.subr.bf16.mxu0 %v4411
    %4603 = vmatpush1.bf16.msra.mxu0 %v4410
    %4604 = vmatprep.subr.bf16.mxu0 %v4413
    %4605 = vmatpush1.bf16.msra.mxu0 %v4412
    %4606 = vmatprep.subr.bf16.mxu0 %v4415
    %4607 = vmatpush1.bf16.msra.mxu0 %v4414
    %4608 = vmatprep.subr.bf16.mxu0 %v4417
    %4609 = vmatpush1.bf16.msra.mxu0 %v4416
    %4610 = vmatprep.subr.bf16.mxu0 %v4419
    %4611 = vmatpush1.bf16.msra.mxu0 %v4418
    %4612 = vmatprep.subr.bf16.mxu0 %v4421
    %4613 = vmatpush1.bf16.msra.mxu0 %v4420
    %4614 = vmatprep.subr.bf16.mxu0 %v4423
    %4615 = vmatpush1.bf16.msra.mxu0 %v4422
    %4616 = vmatprep.subr.bf16.mxu0 %v4425
    %4617 = vmatpush1.bf16.msra.mxu0 %v4424
    %4618 = vmatprep.subr.bf16.mxu0 %v4427
    %4619 = vmatpush1.bf16.msra.mxu0 %v4426
    %4620 = vmatprep.subr.bf16.mxu0 %v4429
    %4621 = vmatpush1.bf16.msra.mxu0 %v4428
    %4622 = vmatprep.subr.bf16.mxu0 %v4431
    %4623 = vmatpush1.bf16.msra.mxu0 %v4430
    %4624 = vmatprep.subr.bf16.mxu0 %v4433
    %4625 = vmatpush1.bf16.msra.mxu0 %v4432
    %4626 = vmatprep.subr.bf16.mxu0 %v4435
    %4627 = vmatpush1.bf16.msra.mxu0 %v4434
    %4628 = vmatprep.subr.bf16.mxu0 %v4437
    %4629 = vmatpush1.bf16.msra.mxu0 %v4436
    %4630 = vmatprep.subr.bf16.mxu0 %v4439
    %4631 = vmatpush1.bf16.msra.mxu0 %v4438
    %4632 = vmatprep.mubr.bf16.mxu0 %v3909
    %4633 = vmatmul.mubr.bf16.gmra.mrb[0].mxu0 %v3908
    %v4634 = vpop.f32.mrb[0].mxu0
    %v4635 = vadd.f32 %v4113, %v4634
    %v4636 = vpop.f32.mrb[0].mxu0
    %v4637 = vadd.f32 %v4117, %v4636
    %v4638 = vpop.f32.mrb[0].mxu0
    %v4639 = vadd.f32 %v4113, %v4638
    %v4640 = vpop.f32.mrb[0].mxu0
    %v4641 = vadd.f32 %v4117, %v4640
    %4642 = vmatprep.mubr.bf16.mxu0 %v3969
    %4643 = vmatmul.mubr.bf16.gmra.mrb[0].mxu0 %v3968
    %v4644 = vpop.f32.mrb[0].mxu0
    %v4645 = vadd.f32 %v4113, %v4644
    %v4646 = vpop.f32.mrb[0].mxu0
    %v4647 = vadd.f32 %v4117, %v4646
    %v4648 = vpop.f32.mrb[0].mxu0
    %v4649 = vadd.f32 %v4113, %v4648
    %v4650 = vpop.f32.mrb[0].mxu0
    %v4651 = vadd.f32 %v4117, %v4650
    %4652 = vdwg.mxu0
    %4653 = vmatprep.subr.bf16.mxu0 %v4441
    %4654 = vmatpush1.bf16.msra.mxu0 %v4440
    %4655 = vmatprep.subr.bf16.mxu0 %v4443
    %4656 = vmatpush1.bf16.msra.mxu0 %v4442
    %4657 = vmatprep.subr.bf16.mxu0 %v4445
    %4658 = vmatpush1.bf16.msra.mxu0 %v4444
    %4659 = vmatprep.subr.bf16.mxu0 %v4447
    %4660 = vmatpush1.bf16.msra.mxu0 %v4446
    %4661 = vmatprep.subr.bf16.mxu0 %v4449
    %4662 = vmatpush1.bf16.msra.mxu0 %v4448
    %4663 = vmatprep.subr.bf16.mxu0 %v4451
    %4664 = vmatpush1.bf16.msra.mxu0 %v4450
    %4665 = vmatprep.subr.bf16.mxu0 %v4453
    %4666 = vmatpush1.bf16.msra.mxu0 %v4452
    %4667 = vmatprep.subr.bf16.mxu0 %v4455
    %4668 = vmatpush1.bf16.msra.mxu0 %v4454
    %4669 = vmatprep.subr.bf16.mxu0 %v4457
    %4670 = vmatpush1.bf16.msra.mxu0 %v4456
    %4671 = vmatprep.subr.bf16.mxu0 %v4459
    %4672 = vmatpush1.bf16.msra.mxu0 %v4458
    %4673 = vmatprep.subr.bf16.mxu0 %v4461
    %4674 = vmatpush1.bf16.msra.mxu0 %v4460
    %4675 = vmatprep.subr.bf16.mxu0 %v4463
    %4676 = vmatpush1.bf16.msra.mxu0 %v4462
    %4677 = vmatprep.subr.bf16.mxu0 %v4465
    %4678 = vmatpush1.bf16.msra.mxu0 %v4464
    %4679 = vmatprep.subr.bf16.mxu0 %v4467
    %4680 = vmatpush1.bf16.msra.mxu0 %v4466
    %4681 = vmatprep.subr.bf16.mxu0 %v4469
    %4682 = vmatpush1.bf16.msra.mxu0 %v4468
    %4683 = vmatprep.subr.bf16.mxu0 %v4471
    %4684 = vmatpush1.bf16.msra.mxu0 %v4470
    %4685 = vmatprep.mubr.bf16.mxu0 %v3935
    %4686 = vmatmul.mubr.bf16.gmra.mrb[0].mxu0 %v3923
    %v4687 = vpop.f32.mrb[0].mxu0
    %v4688 = vadd.f32 %v4635, %v4687
    %v4689 = vpop.f32.mrb[0].mxu0
    %v4690 = vadd.f32 %v4637, %v4689
    %v4691 = vpop.f32.mrb[0].mxu0
    %v4692 = vadd.f32 %v4639, %v4691
    %v4693 = vpop.f32.mrb[0].mxu0
    %v4694 = vadd.f32 %v4641, %v4693
    %4695 = vmatprep.mubr.bf16.mxu0 %v3995
    %4696 = vmatmul.mubr.bf16.gmra.mrb[0].mxu0 %v3983
    %v4697 = vpop.f32.mrb[0].mxu0
    %v4698 = vadd.f32 %v4645, %v4697
    %v4699 = vpop.f32.mrb[0].mxu0
    %v4700 = vadd.f32 %v4647, %v4699
    %v4701 = vpop.f32.mrb[0].mxu0
    %v4702 = vadd.f32 %v4649, %v4701
    %v4703 = vpop.f32.mrb[0].mxu0
    %v4704 = vadd.f32 %v4651, %v4703
    %4705 = vdwg.mxu0
    %4706 = vmatprep.subr.bf16.mxu0 %v4473
    %4707 = vmatpush1.bf16.msra.mxu0 %v4472
    %4708 = vmatprep.subr.bf16.mxu0 %v4475
    %4709 = vmatpush1.bf16.msra.mxu0 %v4474
    %4710 = vmatprep.subr.bf16.mxu0 %v4477
    %4711 = vmatpush1.bf16.msra.mxu0 %v4476
    %4712 = vmatprep.subr.bf16.mxu0 %v4479
    %4713 = vmatpush1.bf16.msra.mxu0 %v4478
    %4714 = vmatprep.subr.bf16.mxu0 %v4481
    %4715 = vmatpush1.bf16.msra.mxu0 %v4480
    %4716 = vmatprep.subr.bf16.mxu0 %v4483
    %4717 = vmatpush1.bf16.msra.mxu0 %v4482
    %4718 = vmatprep.subr.bf16.mxu0 %v4485
    %4719 = vmatpush1.bf16.msra.mxu0 %v4484
    %4720 = vmatprep.subr.bf16.mxu0 %v4487
    %4721 = vmatpush1.bf16.msra.mxu0 %v4486
    %4722 = vmatprep.subr.bf16.mxu0 %v4489
    %4723 = vmatpush1.bf16.msra.mxu0 %v4488
    %4724 = vmatprep.subr.bf16.mxu0 %v4491
    %4725 = vmatpush1.bf16.msra.mxu0 %v4490
    %4726 = vmatprep.subr.bf16.mxu0 %v4493
    %4727 = vmatpush1.bf16.msra.mxu0 %v4492
    %4728 = vmatprep.subr.bf16.mxu0 %v4495
    %4729 = vmatpush1.bf16.msra.mxu0 %v4494
    %4730 = vmatprep.subr.bf16.mxu0 %v4497
    %4731 = vmatpush1.bf16.msra.mxu0 %v4496
    %4732 = vmatprep.subr.bf16.mxu0 %v4499
    %4733 = vmatpush1.bf16.msra.mxu0 %v4498
    %4734 = vmatprep.subr.bf16.mxu0 %v4501
    %4735 = vmatpush1.bf16.msra.mxu0 %v4500
    %4736 = vmatprep.subr.bf16.mxu0 %v4503
    %4737 = vmatpush1.bf16.msra.mxu0 %v4502
    %4738 = vmatprep.mubr.bf16.mxu0 %v3947
    %4739 = vmatmul.mubr.bf16.gmra.mrb[0].mxu0 %v3944
    %v4740 = vpop.f32.mrb[0].mxu0
    %v4741 = vadd.f32 %v4688, %v4740
    %v4742 = vpop.f32.mrb[0].mxu0
    %v4743 = vadd.f32 %v4690, %v4742
    %v4744 = vpop.f32.mrb[0].mxu0
    %v4745 = vadd.f32 %v4692, %v4744
    %v4746 = vpop.f32.mrb[0].mxu0
    %v4747 = vadd.f32 %v4694, %v4746
    %4748 = vmatprep.mubr.bf16.mxu0 %v4007
    %4749 = vmatmul.mubr.bf16.gmra.mrb[0].mxu0 %v4004
    %v4750 = vpop.f32.mrb[0].mxu0
    %v4751 = vadd.f32 %v4698, %v4750
    %v4752 = vpop.f32.mrb[0].mxu0
    %v4753 = vadd.f32 %v4700, %v4752
    %v4754 = vpop.f32.mrb[0].mxu0
    %v4755 = vadd.f32 %v4702, %v4754
    %v4756 = vpop.f32.mrb[0].mxu0
    %v4757 = vadd.f32 %v4704, %v4756
    %4758 = vdwg.mxu0
    %vm4759 = vcmp.gt.f32.partialorder %v4741, 0.0
    %vm4760 = vcmp.gt.f32.partialorder %v4743, 0.0
    %vm4761 = vcmp.gt.f32.partialorder %v4745, 0.0
    %vm4762 = vcmp.gt.f32.partialorder %v4747, 0.0
    %vm4763 = vcmp.gt.f32.partialorder %v4751, 0.0
    %vm4764 = vcmp.gt.f32.partialorder %v4753, 0.0
    %vm4765 = vcmp.gt.f32.partialorder %v4755, 0.0
    %vm4766 = vcmp.gt.f32.partialorder %v4757, 0.0
    %v4767 = vmul.f32 %v4741, 0.2
    %v4768 = vmul.f32 %v4743, 0.2
    %v4769 = vmul.f32 %v4745, 0.2
    %v4770 = vmul.f32 %v4747, 0.2
    %v4771 = vmul.f32 %v4751, 0.2
    %v4772 = vmul.f32 %v4753, 0.2
    %v4773 = vmul.f32 %v4755, 0.2
    %v4774 = vmul.f32 %v4757, 0.2
    %v4775 = vsel %vm4759, %v4741, %v4767
    %v4776 = vsel %vm4760, %v4743, %v4768
    %v4777 = vsel %vm4761, %v4745, %v4769
    %v4778 = vsel %vm4762, %v4747, %v4770
    %v4779 = vsel %vm4763, %v4751, %v4771
    %v4780 = vsel %vm4764, %v4753, %v4772
    %v4781 = vsel %vm4765, %v4755, %v4773
    %v4782 = vsel %vm4766, %v4757, %v4774
    %v4783 = vpack.c.bf16 %v4777, %v4775
    %v4784 = vpack.c.bf16 %v4778, %v4776
    %v4785 = vpack.c.bf16 %v4781, %v4779
    %v4786 = vpack.c.bf16 %v4782, %v4780
    %v4788 = vshrl.u32 %v4783, 16
    %v4790 = vrot.slane %v4788, 7
    %v4791 = vshll.u32 %v4783, 16
    %v4793 = vor.u32 %v4790, %v4791
    %v4795 = vshrl.u32 %v4784, 16
    %v4797 = vrot.slane %v4795, 7
    %v4798 = vshll.u32 %v4784, 16
    %v4800 = vor.u32 %v4797, %v4798
    %v4805 = vsel %vm187, 0, %v4793
    %v4806 = vsel %vm187, 0, %v4800
    %v4807 = vsel %vm187, %v4790, 0
    %v4808 = vsel %vm187, %v4797, 0
    %v4810 = vshrl.u32 %v4805, 16
    %v4812 = vshll.u32 %v4805, 16
    %v4814 = vrot.slane %v4812, 1
    %v4815 = vor.u32 %v4810, %v4814
    %v4817 = vshll.u32 %v4807, 16
    %v4819 = vrot.slane %v4817, 1
    %v4820 = vsel %vm190, %v4815, %v4819
    %v4822 = vshrl.u32 %v4806, 16
    %v4824 = vshll.u32 %v4806, 16
    %v4826 = vrot.slane %v4824, 1
    %v4827 = vor.u32 %v4822, %v4826
    %v4829 = vshll.u32 %v4808, 16
    %v4831 = vrot.slane %v4829, 1
    %v4832 = vsel %vm190, %v4827, %v4831
    %v4839 = vrot.slane %v4805, 1
    %v4840 = vrot.slane %v4807, 1
    %v4841 = vsel %vm207, %v4839, %v4840
    %v4842 = vrot.slane %v4806, 1
    %v4843 = vrot.slane %v4808, 1
    %v4844 = vsel %vm207, %v4842, %v4843
    %v4848 = vshrl.u32 %v4785, 16
    %v4850 = vrot.slane %v4848, 7
    %v4851 = vshll.u32 %v4785, 16
    %v4853 = vor.u32 %v4850, %v4851
    %v4855 = vshrl.u32 %v4786, 16
    %v4857 = vrot.slane %v4855, 7
    %v4858 = vshll.u32 %v4786, 16
    %v4860 = vor.u32 %v4857, %v4858
    %v4865 = vsel %vm187, 0, %v4853
    %v4866 = vsel %vm187, 0, %v4860
    %v4867 = vsel %vm187, %v4850, 0
    %v4868 = vsel %vm187, %v4857, 0
    %v4870 = vshrl.u32 %v4865, 16
    %v4872 = vshll.u32 %v4865, 16
    %v4874 = vrot.slane %v4872, 1
    %v4875 = vor.u32 %v4870, %v4874
    %v4877 = vshll.u32 %v4867, 16
    %v4879 = vrot.slane %v4877, 1
    %v4880 = vsel %vm190, %v4875, %v4879
    %v4882 = vshrl.u32 %v4866, 16
    %v4884 = vshll.u32 %v4866, 16
    %v4886 = vrot.slane %v4884, 1
    %v4887 = vor.u32 %v4882, %v4886
    %v4889 = vshll.u32 %v4868, 16
    %v4891 = vrot.slane %v4889, 1
    %v4892 = vsel %vm190, %v4887, %v4891
    %v4899 = vrot.slane %v4865, 1
    %v4900 = vrot.slane %v4867, 1
    %v4901 = vsel %vm207, %v4899, %v4900
    %v4902 = vrot.slane %v4866, 1
    %v4903 = vrot.slane %v4868, 1
    %v4904 = vsel %vm207, %v4902, %v4903
    %s4907 = scalar_lea.vmem [#allocation7], 1536
    %v4908 = vld [vmem:[%s4907] sm:$0xff]
    %v4909 = vld [vmem:[%s4907 + $0x8] sm:$0xff]
    %v4910 = vld [vmem:[%s4907 + $0x10] sm:$0xff]
    %v4911 = vld [vmem:[%s4907 + $0x18] sm:$0xff]
    %v4912 = vld [vmem:[%s4907 + $0x20] sm:$0xff]
    %v4913 = vld [vmem:[%s4907 + $0x28] sm:$0xff]
    %v4914 = vld [vmem:[%s4907 + $0x30] sm:$0xff]
    %v4915 = vld [vmem:[%s4907 + $0x38] sm:$0xff]
    %v4916 = vld [vmem:[%s4907 + $0x40] sm:$0xff]
    %v4917 = vld [vmem:[%s4907 + $0x48] sm:$0xff]
    %v4918 = vld [vmem:[%s4907 + $0x50] sm:$0xff]
    %v4919 = vld [vmem:[%s4907 + $0x58] sm:$0xff]
    %v4920 = vld [vmem:[%s4907 + $0x60] sm:$0xff]
    %v4921 = vld [vmem:[%s4907 + $0x68] sm:$0xff]
    %v4922 = vld [vmem:[%s4907 + $0x70] sm:$0xff]
    %v4923 = vld [vmem:[%s4907 + $0x78] sm:$0xff]
    %v4924 = vld [vmem:[%s4907 + $0x80] sm:$0xff]
    %v4925 = vld [vmem:[%s4907 + $0x88] sm:$0xff]
    %v4926 = vld [vmem:[%s4907 + $0x90] sm:$0xff]
    %v4927 = vld [vmem:[%s4907 + $0x98] sm:$0xff]
    %v4928 = vld [vmem:[%s4907 + $0xa0] sm:$0xff]
    %v4929 = vld [vmem:[%s4907 + $0xa8] sm:$0xff]
    %v4930 = vld [vmem:[%s4907 + $0xb0] sm:$0xff]
    %v4931 = vld [vmem:[%s4907 + $0xb8] sm:$0xff]
    %v4932 = vld [vmem:[%s4907 + $0xc0] sm:$0xff]
    %v4933 = vld [vmem:[%s4907 + $0xc8] sm:$0xff]
    %v4934 = vld [vmem:[%s4907 + $0xd0] sm:$0xff]
    %v4935 = vld [vmem:[%s4907 + $0xd8] sm:$0xff]
    %v4936 = vld [vmem:[%s4907 + $0xe0] sm:$0xff]
    %v4937 = vld [vmem:[%s4907 + $0xe8] sm:$0xff]
    %v4938 = vld [vmem:[%s4907 + $0xf0] sm:$0xff]
    %v4939 = vld [vmem:[%s4907 + $0xf8] sm:$0xff]
    %v4940 = vld [vmem:[%s4907 + $0x100] sm:$0xff]
    %v4941 = vld [vmem:[%s4907 + $0x108] sm:$0xff]
    %v4942 = vld [vmem:[%s4907 + $0x110] sm:$0xff]
    %v4943 = vld [vmem:[%s4907 + $0x118] sm:$0xff]
    %v4944 = vld [vmem:[%s4907 + $0x120] sm:$0xff]
    %v4945 = vld [vmem:[%s4907 + $0x128] sm:$0xff]
    %v4946 = vld [vmem:[%s4907 + $0x130] sm:$0xff]
    %v4947 = vld [vmem:[%s4907 + $0x138] sm:$0xff]
    %v4948 = vld [vmem:[%s4907 + $0x140] sm:$0xff]
    %v4949 = vld [vmem:[%s4907 + $0x148] sm:$0xff]
    %v4950 = vld [vmem:[%s4907 + $0x150] sm:$0xff]
    %v4951 = vld [vmem:[%s4907 + $0x158] sm:$0xff]
    %v4952 = vld [vmem:[%s4907 + $0x160] sm:$0xff]
    %v4953 = vld [vmem:[%s4907 + $0x168] sm:$0xff]
    %v4954 = vld [vmem:[%s4907 + $0x170] sm:$0xff]
    %v4955 = vld [vmem:[%s4907 + $0x178] sm:$0xff]
    %v4956 = vld [vmem:[%s4907 + $0x180] sm:$0xff]
    %v4957 = vld [vmem:[%s4907 + $0x188] sm:$0xff]
    %v4958 = vld [vmem:[%s4907 + $0x190] sm:$0xff]
    %v4959 = vld [vmem:[%s4907 + $0x198] sm:$0xff]
    %v4960 = vld [vmem:[%s4907 + $0x1a0] sm:$0xff]
    %v4961 = vld [vmem:[%s4907 + $0x1a8] sm:$0xff]
    %v4962 = vld [vmem:[%s4907 + $0x1b0] sm:$0xff]
    %v4963 = vld [vmem:[%s4907 + $0x1b8] sm:$0xff]
    %v4964 = vld [vmem:[%s4907 + $0x1c0] sm:$0xff]
    %v4965 = vld [vmem:[%s4907 + $0x1c8] sm:$0xff]
    %v4966 = vld [vmem:[%s4907 + $0x1d0] sm:$0xff]
    %v4967 = vld [vmem:[%s4907 + $0x1d8] sm:$0xff]
    %v4968 = vld [vmem:[%s4907 + $0x1e0] sm:$0xff]
    %v4969 = vld [vmem:[%s4907 + $0x1e8] sm:$0xff]
    %v4970 = vld [vmem:[%s4907 + $0x1f0] sm:$0xff]
    %v4971 = vld [vmem:[%s4907 + $0x1f8] sm:$0xff]
    %v4972 = vld [vmem:[%s4907 + $0x200] sm:$0xff]
    %v4973 = vld [vmem:[%s4907 + $0x208] sm:$0xff]
    %v4974 = vld [vmem:[%s4907 + $0x210] sm:$0xff]
    %v4975 = vld [vmem:[%s4907 + $0x218] sm:$0xff]
    %v4976 = vld [vmem:[%s4907 + $0x220] sm:$0xff]
    %v4977 = vld [vmem:[%s4907 + $0x228] sm:$0xff]
    %v4978 = vld [vmem:[%s4907 + $0x230] sm:$0xff]
    %v4979 = vld [vmem:[%s4907 + $0x238] sm:$0xff]
    %v4980 = vld [vmem:[%s4907 + $0x240] sm:$0xff]
    %v4981 = vld [vmem:[%s4907 + $0x248] sm:$0xff]
    %v4982 = vld [vmem:[%s4907 + $0x250] sm:$0xff]
    %v4983 = vld [vmem:[%s4907 + $0x258] sm:$0xff]
    %v4984 = vld [vmem:[%s4907 + $0x260] sm:$0xff]
    %v4985 = vld [vmem:[%s4907 + $0x268] sm:$0xff]
    %v4986 = vld [vmem:[%s4907 + $0x270] sm:$0xff]
    %v4987 = vld [vmem:[%s4907 + $0x278] sm:$0xff]
    %v4988 = vld [vmem:[%s4907 + $0x280] sm:$0xff]
    %v4989 = vld [vmem:[%s4907 + $0x288] sm:$0xff]
    %v4990 = vld [vmem:[%s4907 + $0x290] sm:$0xff]
    %v4991 = vld [vmem:[%s4907 + $0x298] sm:$0xff]
    %v4992 = vld [vmem:[%s4907 + $0x2a0] sm:$0xff]
    %v4993 = vld [vmem:[%s4907 + $0x2a8] sm:$0xff]
    %v4994 = vld [vmem:[%s4907 + $0x2b0] sm:$0xff]
    %v4995 = vld [vmem:[%s4907 + $0x2b8] sm:$0xff]
    %v4996 = vld [vmem:[%s4907 + $0x2c0] sm:$0xff]
    %v4997 = vld [vmem:[%s4907 + $0x2c8] sm:$0xff]
    %v4998 = vld [vmem:[%s4907 + $0x2d0] sm:$0xff]
    %v4999 = vld [vmem:[%s4907 + $0x2d8] sm:$0xff]
    %v5000 = vld [vmem:[%s4907 + $0x2e0] sm:$0xff]
    %v5001 = vld [vmem:[%s4907 + $0x2e8] sm:$0xff]
    %v5002 = vld [vmem:[%s4907 + $0x2f0] sm:$0xff]
    %v5003 = vld [vmem:[%s4907 + $0x2f8] sm:$0xff]
    %s5004 = scalar_lea.vmem [#allocation9], 4
    %v5005 = vld [vmem:[%s5004] sm:$0x3]
    %v5007 = vlaneseq
    %v5008 = vshrl.u32 %v5007, 7
    %v5009 = vsub.s32 0, %v5008
    %v5010 = vrot.slane %v5005, %v5009
    %v5011 = vlaneseq
    %v5012 = vshrl.u32 %v5011, 7
    %v5013 = vsub.s32 1, %v5012
    %v5014 = vrot.slane %v5005, %v5013
    %v5113 = vunpack.c.l.b16 %v4908
    %v5114 = vunpack.c.h.b16 %v4908
    %v5115 = vunpack.c.l.b16 %v4909
    %v5116 = vunpack.c.h.b16 %v4909
    %v5117 = vunpack.c.l.b16 %v4910
    %v5118 = vunpack.c.h.b16 %v4910
    %v5119 = vunpack.c.l.b16 %v4911
    %v5120 = vunpack.c.h.b16 %v4911
    %v5121 = vunpack.c.l.b16 %v4912
    %v5122 = vunpack.c.h.b16 %v4912
    %v5123 = vunpack.c.l.b16 %v4913
    %v5124 = vunpack.c.h.b16 %v4913
    %v5125 = vunpack.c.l.b16 %v4914
    %v5126 = vunpack.c.h.b16 %v4914
    %v5127 = vunpack.c.l.b16 %v4915
    %v5128 = vunpack.c.h.b16 %v4915
    %v5129 = vunpack.c.l.b16 %v4916
    %v5130 = vunpack.c.h.b16 %v4916
    %v5131 = vunpack.c.l.b16 %v4917
    %v5132 = vunpack.c.h.b16 %v4917
    %v5133 = vunpack.c.l.b16 %v4918
    %v5134 = vunpack.c.h.b16 %v4918
    %v5135 = vunpack.c.l.b16 %v4919
    %v5136 = vunpack.c.h.b16 %v4919
    %v5137 = vunpack.c.l.b16 %v4920
    %v5138 = vunpack.c.h.b16 %v4920
    %v5139 = vunpack.c.l.b16 %v4921
    %v5140 = vunpack.c.h.b16 %v4921
    %v5141 = vunpack.c.l.b16 %v4922
    %v5142 = vunpack.c.h.b16 %v4922
    %v5143 = vunpack.c.l.b16 %v4923
    %v5144 = vunpack.c.h.b16 %v4923
    %v5145 = vunpack.c.l.b16 %v4924
    %v5146 = vunpack.c.h.b16 %v4924
    %v5147 = vunpack.c.l.b16 %v4925
    %v5148 = vunpack.c.h.b16 %v4925
    %v5149 = vunpack.c.l.b16 %v4926
    %v5150 = vunpack.c.h.b16 %v4926
    %v5151 = vunpack.c.l.b16 %v4927
    %v5152 = vunpack.c.h.b16 %v4927
    %v5153 = vunpack.c.l.b16 %v4928
    %v5154 = vunpack.c.h.b16 %v4928
    %v5155 = vunpack.c.l.b16 %v4929
    %v5156 = vunpack.c.h.b16 %v4929
    %v5157 = vunpack.c.l.b16 %v4930
    %v5158 = vunpack.c.h.b16 %v4930
    %v5159 = vunpack.c.l.b16 %v4931
    %v5160 = vunpack.c.h.b16 %v4931
    %v5161 = vunpack.c.l.b16 %v4932
    %v5162 = vunpack.c.h.b16 %v4932
    %v5163 = vunpack.c.l.b16 %v4933
    %v5164 = vunpack.c.h.b16 %v4933
    %v5165 = vunpack.c.l.b16 %v4934
    %v5166 = vunpack.c.h.b16 %v4934
    %v5167 = vunpack.c.l.b16 %v4935
    %v5168 = vunpack.c.h.b16 %v4935
    %v5169 = vunpack.c.l.b16 %v4936
    %v5170 = vunpack.c.h.b16 %v4936
    %v5171 = vunpack.c.l.b16 %v4937
    %v5172 = vunpack.c.h.b16 %v4937
    %v5173 = vunpack.c.l.b16 %v4938
    %v5174 = vunpack.c.h.b16 %v4938
    %v5175 = vunpack.c.l.b16 %v4939
    %v5176 = vunpack.c.h.b16 %v4939
    %v5177 = vunpack.c.l.b16 %v4940
    %v5178 = vunpack.c.h.b16 %v4940
    %v5179 = vunpack.c.l.b16 %v4941
    %v5180 = vunpack.c.h.b16 %v4941
    %v5181 = vunpack.c.l.b16 %v4942
    %v5182 = vunpack.c.h.b16 %v4942
    %v5183 = vunpack.c.l.b16 %v4943
    %v5184 = vunpack.c.h.b16 %v4943
    %v5185 = vunpack.c.l.b16 %v4944
    %v5186 = vunpack.c.h.b16 %v4944
    %v5187 = vunpack.c.l.b16 %v4945
    %v5188 = vunpack.c.h.b16 %v4945
    %v5189 = vunpack.c.l.b16 %v4946
    %v5190 = vunpack.c.h.b16 %v4946
    %v5191 = vunpack.c.l.b16 %v4947
    %v5192 = vunpack.c.h.b16 %v4947
    %v5193 = vunpack.c.l.b16 %v4948
    %v5194 = vunpack.c.h.b16 %v4948
    %v5195 = vunpack.c.l.b16 %v4949
    %v5196 = vunpack.c.h.b16 %v4949
    %v5197 = vunpack.c.l.b16 %v4950
    %v5198 = vunpack.c.h.b16 %v4950
    %v5199 = vunpack.c.l.b16 %v4951
    %v5200 = vunpack.c.h.b16 %v4951
    %v5201 = vunpack.c.l.b16 %v4952
    %v5202 = vunpack.c.h.b16 %v4952
    %v5203 = vunpack.c.l.b16 %v4953
    %v5204 = vunpack.c.h.b16 %v4953
    %v5205 = vunpack.c.l.b16 %v4954
    %v5206 = vunpack.c.h.b16 %v4954
    %v5207 = vunpack.c.l.b16 %v4955
    %v5208 = vunpack.c.h.b16 %v4955
    %v5209 = vunpack.c.l.b16 %v4956
    %v5210 = vunpack.c.h.b16 %v4956
    %v5211 = vunpack.c.l.b16 %v4957
    %v5212 = vunpack.c.h.b16 %v4957
    %v5213 = vunpack.c.l.b16 %v4958
    %v5214 = vunpack.c.h.b16 %v4958
    %v5215 = vunpack.c.l.b16 %v4959
    %v5216 = vunpack.c.h.b16 %v4959
    %v5217 = vunpack.c.l.b16 %v4960
    %v5218 = vunpack.c.h.b16 %v4960
    %v5219 = vunpack.c.l.b16 %v4961
    %v5220 = vunpack.c.h.b16 %v4961
    %v5221 = vunpack.c.l.b16 %v4962
    %v5222 = vunpack.c.h.b16 %v4962
    %v5223 = vunpack.c.l.b16 %v4963
    %v5224 = vunpack.c.h.b16 %v4963
    %v5225 = vunpack.c.l.b16 %v4964
    %v5226 = vunpack.c.h.b16 %v4964
    %v5227 = vunpack.c.l.b16 %v4965
    %v5228 = vunpack.c.h.b16 %v4965
    %v5229 = vunpack.c.l.b16 %v4966
    %v5230 = vunpack.c.h.b16 %v4966
    %v5231 = vunpack.c.l.b16 %v4967
    %v5232 = vunpack.c.h.b16 %v4967
    %v5233 = vunpack.c.l.b16 %v4968
    %v5234 = vunpack.c.h.b16 %v4968
    %v5235 = vunpack.c.l.b16 %v4969
    %v5236 = vunpack.c.h.b16 %v4969
    %v5237 = vunpack.c.l.b16 %v4970
    %v5238 = vunpack.c.h.b16 %v4970
    %v5239 = vunpack.c.l.b16 %v4971
    %v5240 = vunpack.c.h.b16 %v4971
    %v5241 = vunpack.c.l.b16 %v4972
    %v5242 = vunpack.c.h.b16 %v4972
    %v5243 = vunpack.c.l.b16 %v4973
    %v5244 = vunpack.c.h.b16 %v4973
    %v5245 = vunpack.c.l.b16 %v4974
    %v5246 = vunpack.c.h.b16 %v4974
    %v5247 = vunpack.c.l.b16 %v4975
    %v5248 = vunpack.c.h.b16 %v4975
    %v5249 = vunpack.c.l.b16 %v4976
    %v5250 = vunpack.c.h.b16 %v4976
    %v5251 = vunpack.c.l.b16 %v4977
    %v5252 = vunpack.c.h.b16 %v4977
    %v5253 = vunpack.c.l.b16 %v4978
    %v5254 = vunpack.c.h.b16 %v4978
    %v5255 = vunpack.c.l.b16 %v4979
    %v5256 = vunpack.c.h.b16 %v4979
    %v5257 = vunpack.c.l.b16 %v4980
    %v5258 = vunpack.c.h.b16 %v4980
    %v5259 = vunpack.c.l.b16 %v4981
    %v5260 = vunpack.c.h.b16 %v4981
    %v5261 = vunpack.c.l.b16 %v4982
    %v5262 = vunpack.c.h.b16 %v4982
    %v5263 = vunpack.c.l.b16 %v4983
    %v5264 = vunpack.c.h.b16 %v4983
    %v5265 = vunpack.c.l.b16 %v4984
    %v5266 = vunpack.c.h.b16 %v4984
    %v5267 = vunpack.c.l.b16 %v4985
    %v5268 = vunpack.c.h.b16 %v4985
    %v5269 = vunpack.c.l.b16 %v4986
    %v5270 = vunpack.c.h.b16 %v4986
    %v5271 = vunpack.c.l.b16 %v4987
    %v5272 = vunpack.c.h.b16 %v4987
    %v5273 = vunpack.c.l.b16 %v4988
    %v5274 = vunpack.c.h.b16 %v4988
    %v5275 = vunpack.c.l.b16 %v4989
    %v5276 = vunpack.c.h.b16 %v4989
    %v5277 = vunpack.c.l.b16 %v4990
    %v5278 = vunpack.c.h.b16 %v4990
    %v5279 = vunpack.c.l.b16 %v4991
    %v5280 = vunpack.c.h.b16 %v4991
    %v5281 = vunpack.c.l.b16 %v4992
    %v5282 = vunpack.c.h.b16 %v4992
    %v5283 = vunpack.c.l.b16 %v4993
    %v5284 = vunpack.c.h.b16 %v4993
    %v5285 = vunpack.c.l.b16 %v4994
    %v5286 = vunpack.c.h.b16 %v4994
    %v5287 = vunpack.c.l.b16 %v4995
    %v5288 = vunpack.c.h.b16 %v4995
    %v5289 = vunpack.c.l.b16 %v4996
    %v5290 = vunpack.c.h.b16 %v4996
    %v5291 = vunpack.c.l.b16 %v4997
    %v5292 = vunpack.c.h.b16 %v4997
    %v5293 = vunpack.c.l.b16 %v4998
    %v5294 = vunpack.c.h.b16 %v4998
    %v5295 = vunpack.c.l.b16 %v4999
    %v5296 = vunpack.c.h.b16 %v4999
    %v5297 = vunpack.c.l.b16 %v5000
    %v5298 = vunpack.c.h.b16 %v5000
    %v5299 = vunpack.c.l.b16 %v5001
    %v5300 = vunpack.c.h.b16 %v5001
    %v5301 = vunpack.c.l.b16 %v5002
    %v5302 = vunpack.c.h.b16 %v5002
    %v5303 = vunpack.c.l.b16 %v5003
    %v5304 = vunpack.c.h.b16 %v5003
    %v5305 = vpack.c.b16 %v5115, %v5113
    %v5306 = vpack.c.b16 %v5116, %v5114
    %v5307 = vpack.c.b16 %v5119, %v5117
    %v5308 = vpack.c.b16 %v5120, %v5118
    %v5309 = vpack.c.b16 %v5123, %v5121
    %v5310 = vpack.c.b16 %v5124, %v5122
    %v5311 = vpack.c.b16 %v5127, %v5125
    %v5312 = vpack.c.b16 %v5128, %v5126
    %v5313 = vpack.c.b16 %v5131, %v5129
    %v5314 = vpack.c.b16 %v5132, %v5130
    %v5315 = vpack.c.b16 %v5135, %v5133
    %v5316 = vpack.c.b16 %v5136, %v5134
    %v5317 = vpack.c.b16 %v5139, %v5137
    %v5318 = vpack.c.b16 %v5140, %v5138
    %v5319 = vpack.c.b16 %v5143, %v5141
    %v5320 = vpack.c.b16 %v5144, %v5142
    %v5321 = vpack.c.b16 %v5147, %v5145
    %v5322 = vpack.c.b16 %v5148, %v5146
    %v5323 = vpack.c.b16 %v5151, %v5149
    %v5324 = vpack.c.b16 %v5152, %v5150
    %v5325 = vpack.c.b16 %v5155, %v5153
    %v5326 = vpack.c.b16 %v5156, %v5154
    %v5327 = vpack.c.b16 %v5159, %v5157
    %v5328 = vpack.c.b16 %v5160, %v5158
    %v5329 = vpack.c.b16 %v5163, %v5161
    %v5330 = vpack.c.b16 %v5164, %v5162
    %v5331 = vpack.c.b16 %v5167, %v5165
    %v5332 = vpack.c.b16 %v5168, %v5166
    %v5333 = vpack.c.b16 %v5171, %v5169
    %v5334 = vpack.c.b16 %v5172, %v5170
    %v5335 = vpack.c.b16 %v5175, %v5173
    %v5336 = vpack.c.b16 %v5176, %v5174
    %v5337 = vpack.c.b16 %v5179, %v5177
    %v5338 = vpack.c.b16 %v5180, %v5178
    %v5339 = vpack.c.b16 %v5183, %v5181
    %v5340 = vpack.c.b16 %v5184, %v5182
    %v5341 = vpack.c.b16 %v5187, %v5185
    %v5342 = vpack.c.b16 %v5188, %v5186
    %v5343 = vpack.c.b16 %v5191, %v5189
    %v5344 = vpack.c.b16 %v5192, %v5190
    %v5345 = vpack.c.b16 %v5195, %v5193
    %v5346 = vpack.c.b16 %v5196, %v5194
    %v5347 = vpack.c.b16 %v5199, %v5197
    %v5348 = vpack.c.b16 %v5200, %v5198
    %v5349 = vpack.c.b16 %v5203, %v5201
    %v5350 = vpack.c.b16 %v5204, %v5202
    %v5351 = vpack.c.b16 %v5207, %v5205
    %v5352 = vpack.c.b16 %v5208, %v5206
    %v5353 = vpack.c.b16 %v5211, %v5209
    %v5354 = vpack.c.b16 %v5212, %v5210
    %v5355 = vpack.c.b16 %v5215, %v5213
    %v5356 = vpack.c.b16 %v5216, %v5214
    %v5357 = vpack.c.b16 %v5219, %v5217
    %v5358 = vpack.c.b16 %v5220, %v5218
    %v5359 = vpack.c.b16 %v5223, %v5221
    %v5360 = vpack.c.b16 %v5224, %v5222
    %v5361 = vpack.c.b16 %v5227, %v5225
    %v5362 = vpack.c.b16 %v5228, %v5226
    %v5363 = vpack.c.b16 %v5231, %v5229
    %v5364 = vpack.c.b16 %v5232, %v5230
    %v5365 = vpack.c.b16 %v5235, %v5233
    %v5366 = vpack.c.b16 %v5236, %v5234
    %v5367 = vpack.c.b16 %v5239, %v5237
    %v5368 = vpack.c.b16 %v5240, %v5238
    %v5369 = vpack.c.b16 %v5243, %v5241
    %v5370 = vpack.c.b16 %v5244, %v5242
    %v5371 = vpack.c.b16 %v5247, %v5245
    %v5372 = vpack.c.b16 %v5248, %v5246
    %v5373 = vpack.c.b16 %v5251, %v5249
    %v5374 = vpack.c.b16 %v5252, %v5250
    %v5375 = vpack.c.b16 %v5255, %v5253
    %v5376 = vpack.c.b16 %v5256, %v5254
    %v5377 = vpack.c.b16 %v5259, %v5257
    %v5378 = vpack.c.b16 %v5260, %v5258
    %v5379 = vpack.c.b16 %v5263, %v5261
    %v5380 = vpack.c.b16 %v5264, %v5262
    %v5381 = vpack.c.b16 %v5267, %v5265
    %v5382 = vpack.c.b16 %v5268, %v5266
    %v5383 = vpack.c.b16 %v5271, %v5269
    %v5384 = vpack.c.b16 %v5272, %v5270
    %v5385 = vpack.c.b16 %v5275, %v5273
    %v5386 = vpack.c.b16 %v5276, %v5274
    %v5387 = vpack.c.b16 %v5279, %v5277
    %v5388 = vpack.c.b16 %v5280, %v5278
    %v5389 = vpack.c.b16 %v5283, %v5281
    %v5390 = vpack.c.b16 %v5284, %v5282
    %v5391 = vpack.c.b16 %v5287, %v5285
    %v5392 = vpack.c.b16 %v5288, %v5286
    %v5393 = vpack.c.b16 %v5291, %v5289
    %v5394 = vpack.c.b16 %v5292, %v5290
    %v5395 = vpack.c.b16 %v5295, %v5293
    %v5396 = vpack.c.b16 %v5296, %v5294
    %v5397 = vpack.c.b16 %v5299, %v5297
    %v5398 = vpack.c.b16 %v5300, %v5298
    %v5399 = vpack.c.b16 %v5303, %v5301
    %v5400 = vpack.c.b16 %v5304, %v5302
    %5497 = vmatprep.subr.bf16.mxu0 %v5306
    %5498 = vmatpush1.bf16.msra.mxu0 %v5305
    %5499 = vmatprep.subr.bf16.mxu0 %v5308
    %5500 = vmatpush1.bf16.msra.mxu0 %v5307
    %5501 = vmatprep.subr.bf16.mxu0 %v5310
    %5502 = vmatpush1.bf16.msra.mxu0 %v5309
    %5503 = vmatprep.subr.bf16.mxu0 %v5312
    %5504 = vmatpush1.bf16.msra.mxu0 %v5311
    %5505 = vmatprep.subr.bf16.mxu0 %v5314
    %5506 = vmatpush1.bf16.msra.mxu0 %v5313
    %5507 = vmatprep.subr.bf16.mxu0 %v5316
    %5508 = vmatpush1.bf16.msra.mxu0 %v5315
    %5509 = vmatprep.subr.bf16.mxu0 %v5318
    %5510 = vmatpush1.bf16.msra.mxu0 %v5317
    %5511 = vmatprep.subr.bf16.mxu0 %v5320
    %5512 = vmatpush1.bf16.msra.mxu0 %v5319
    %5513 = vmatprep.subr.bf16.mxu0 %v5322
    %5514 = vmatpush1.bf16.msra.mxu0 %v5321
    %5515 = vmatprep.subr.bf16.mxu0 %v5324
    %5516 = vmatpush1.bf16.msra.mxu0 %v5323
    %5517 = vmatprep.subr.bf16.mxu0 %v5326
    %5518 = vmatpush1.bf16.msra.mxu0 %v5325
    %5519 = vmatprep.subr.bf16.mxu0 %v5328
    %5520 = vmatpush1.bf16.msra.mxu0 %v5327
    %5521 = vmatprep.subr.bf16.mxu0 %v5330
    %5522 = vmatpush1.bf16.msra.mxu0 %v5329
    %5523 = vmatprep.subr.bf16.mxu0 %v5332
    %5524 = vmatpush1.bf16.msra.mxu0 %v5331
    %5525 = vmatprep.subr.bf16.mxu0 %v5334
    %5526 = vmatpush1.bf16.msra.mxu0 %v5333
    %5527 = vmatprep.subr.bf16.mxu0 %v5336
    %5528 = vmatpush1.bf16.msra.mxu0 %v5335
    %5529 = vmatprep.mubr.bf16.mxu0 %v4806
    %5530 = vmatmul.mubr.bf16.gmra.mrb[0].mxu0 %v4805
    %v5531 = vpop.f32.mrb[0].mxu0
    %v5532 = vadd.f32 %v5010, %v5531
    %v5533 = vpop.f32.mrb[0].mxu0
    %v5534 = vadd.f32 %v5014, %v5533
    %v5535 = vpop.f32.mrb[0].mxu0
    %v5536 = vadd.f32 %v5010, %v5535
    %v5537 = vpop.f32.mrb[0].mxu0
    %v5538 = vadd.f32 %v5014, %v5537
    %5539 = vmatprep.mubr.bf16.mxu0 %v4866
    %5540 = vmatmul.mubr.bf16.gmra.mrb[0].mxu0 %v4865
    %v5541 = vpop.f32.mrb[0].mxu0
    %v5542 = vadd.f32 %v5010, %v5541
    %v5543 = vpop.f32.mrb[0].mxu0
    %v5544 = vadd.f32 %v5014, %v5543
    %v5545 = vpop.f32.mrb[0].mxu0
    %v5546 = vadd.f32 %v5010, %v5545
    %v5547 = vpop.f32.mrb[0].mxu0
    %v5548 = vadd.f32 %v5014, %v5547
    %5549 = vdwg.mxu0
    %5550 = vmatprep.subr.bf16.mxu0 %v5338
    %5551 = vmatpush1.bf16.msra.mxu0 %v5337
    %5552 = vmatprep.subr.bf16.mxu0 %v5340
    %5553 = vmatpush1.bf16.msra.mxu0 %v5339
    %5554 = vmatprep.subr.bf16.mxu0 %v5342
    %5555 = vmatpush1.bf16.msra.mxu0 %v5341
    %5556 = vmatprep.subr.bf16.mxu0 %v5344
    %5557 = vmatpush1.bf16.msra.mxu0 %v5343
    %5558 = vmatprep.subr.bf16.mxu0 %v5346
    %5559 = vmatpush1.bf16.msra.mxu0 %v5345
    %5560 = vmatprep.subr.bf16.mxu0 %v5348
    %5561 = vmatpush1.bf16.msra.mxu0 %v5347
    %5562 = vmatprep.subr.bf16.mxu0 %v5350
    %5563 = vmatpush1.bf16.msra.mxu0 %v5349
    %5564 = vmatprep.subr.bf16.mxu0 %v5352
    %5565 = vmatpush1.bf16.msra.mxu0 %v5351
    %5566 = vmatprep.subr.bf16.mxu0 %v5354
    %5567 = vmatpush1.bf16.msra.mxu0 %v5353
    %5568 = vmatprep.subr.bf16.mxu0 %v5356
    %5569 = vmatpush1.bf16.msra.mxu0 %v5355
    %5570 = vmatprep.subr.bf16.mxu0 %v5358
    %5571 = vmatpush1.bf16.msra.mxu0 %v5357
    %5572 = vmatprep.subr.bf16.mxu0 %v5360
    %5573 = vmatpush1.bf16.msra.mxu0 %v5359
    %5574 = vmatprep.subr.bf16.mxu0 %v5362
    %5575 = vmatpush1.bf16.msra.mxu0 %v5361
    %5576 = vmatprep.subr.bf16.mxu0 %v5364
    %5577 = vmatpush1.bf16.msra.mxu0 %v5363
    %5578 = vmatprep.subr.bf16.mxu0 %v5366
    %5579 = vmatpush1.bf16.msra.mxu0 %v5365
    %5580 = vmatprep.subr.bf16.mxu0 %v5368
    %5581 = vmatpush1.bf16.msra.mxu0 %v5367
    %5582 = vmatprep.mubr.bf16.mxu0 %v4832
    %5583 = vmatmul.mubr.bf16.gmra.mrb[0].mxu0 %v4820
    %v5584 = vpop.f32.mrb[0].mxu0
    %v5585 = vadd.f32 %v5532, %v5584
    %v5586 = vpop.f32.mrb[0].mxu0
    %v5587 = vadd.f32 %v5534, %v5586
    %v5588 = vpop.f32.mrb[0].mxu0
    %v5589 = vadd.f32 %v5536, %v5588
    %v5590 = vpop.f32.mrb[0].mxu0
    %v5591 = vadd.f32 %v5538, %v5590
    %5592 = vmatprep.mubr.bf16.mxu0 %v4892
    %5593 = vmatmul.mubr.bf16.gmra.mrb[0].mxu0 %v4880
    %v5594 = vpop.f32.mrb[0].mxu0
    %v5595 = vadd.f32 %v5542, %v5594
    %v5596 = vpop.f32.mrb[0].mxu0
    %v5597 = vadd.f32 %v5544, %v5596
    %v5598 = vpop.f32.mrb[0].mxu0
    %v5599 = vadd.f32 %v5546, %v5598
    %v5600 = vpop.f32.mrb[0].mxu0
    %v5601 = vadd.f32 %v5548, %v5600
    %5602 = vdwg.mxu0
    %5603 = vmatprep.subr.bf16.mxu0 %v5370
    %5604 = vmatpush1.bf16.msra.mxu0 %v5369
    %5605 = vmatprep.subr.bf16.mxu0 %v5372
    %5606 = vmatpush1.bf16.msra.mxu0 %v5371
    %5607 = vmatprep.subr.bf16.mxu0 %v5374
    %5608 = vmatpush1.bf16.msra.mxu0 %v5373
    %5609 = vmatprep.subr.bf16.mxu0 %v5376
    %5610 = vmatpush1.bf16.msra.mxu0 %v5375
    %5611 = vmatprep.subr.bf16.mxu0 %v5378
    %5612 = vmatpush1.bf16.msra.mxu0 %v5377
    %5613 = vmatprep.subr.bf16.mxu0 %v5380
    %5614 = vmatpush1.bf16.msra.mxu0 %v5379
    %5615 = vmatprep.subr.bf16.mxu0 %v5382
    %5616 = vmatpush1.bf16.msra.mxu0 %v5381
    %5617 = vmatprep.subr.bf16.mxu0 %v5384
    %5618 = vmatpush1.bf16.msra.mxu0 %v5383
    %5619 = vmatprep.subr.bf16.mxu0 %v5386
    %5620 = vmatpush1.bf16.msra.mxu0 %v5385
    %5621 = vmatprep.subr.bf16.mxu0 %v5388
    %5622 = vmatpush1.bf16.msra.mxu0 %v5387
    %5623 = vmatprep.subr.bf16.mxu0 %v5390
    %5624 = vmatpush1.bf16.msra.mxu0 %v5389
    %5625 = vmatprep.subr.bf16.mxu0 %v5392
    %5626 = vmatpush1.bf16.msra.mxu0 %v5391
    %5627 = vmatprep.subr.bf16.mxu0 %v5394
    %5628 = vmatpush1.bf16.msra.mxu0 %v5393
    %5629 = vmatprep.subr.bf16.mxu0 %v5396
    %5630 = vmatpush1.bf16.msra.mxu0 %v5395
    %5631 = vmatprep.subr.bf16.mxu0 %v5398
    %5632 = vmatpush1.bf16.msra.mxu0 %v5397
    %5633 = vmatprep.subr.bf16.mxu0 %v5400
    %5634 = vmatpush1.bf16.msra.mxu0 %v5399
    %5635 = vmatprep.mubr.bf16.mxu0 %v4844
    %5636 = vmatmul.mubr.bf16.gmra.mrb[0].mxu0 %v4841
    %v5637 = vpop.f32.mrb[0].mxu0
    %v5638 = vadd.f32 %v5585, %v5637
    %v5639 = vpop.f32.mrb[0].mxu0
    %v5640 = vadd.f32 %v5587, %v5639
    %v5641 = vpop.f32.mrb[0].mxu0
    %v5642 = vadd.f32 %v5589, %v5641
    %v5643 = vpop.f32.mrb[0].mxu0
    %v5644 = vadd.f32 %v5591, %v5643
    %5645 = vmatprep.mubr.bf16.mxu0 %v4904
    %5646 = vmatmul.mubr.bf16.gmra.mrb[0].mxu0 %v4901
    %v5647 = vpop.f32.mrb[0].mxu0
    %v5648 = vadd.f32 %v5595, %v5647
    %v5649 = vpop.f32.mrb[0].mxu0
    %v5650 = vadd.f32 %v5597, %v5649
    %v5651 = vpop.f32.mrb[0].mxu0
    %v5652 = vadd.f32 %v5599, %v5651
    %v5653 = vpop.f32.mrb[0].mxu0
    %v5654 = vadd.f32 %v5601, %v5653
    %5655 = vdwg.mxu0
    %vm5656 = vcmp.gt.f32.partialorder %v5638, 0.0
    %vm5657 = vcmp.gt.f32.partialorder %v5640, 0.0
    %vm5658 = vcmp.gt.f32.partialorder %v5642, 0.0
    %vm5659 = vcmp.gt.f32.partialorder %v5644, 0.0
    %vm5660 = vcmp.gt.f32.partialorder %v5648, 0.0
    %vm5661 = vcmp.gt.f32.partialorder %v5650, 0.0
    %vm5662 = vcmp.gt.f32.partialorder %v5652, 0.0
    %vm5663 = vcmp.gt.f32.partialorder %v5654, 0.0
    %v5664 = vmul.f32 %v5638, 0.2
    %v5665 = vmul.f32 %v5640, 0.2
    %v5666 = vmul.f32 %v5642, 0.2
    %v5667 = vmul.f32 %v5644, 0.2
    %v5668 = vmul.f32 %v5648, 0.2
    %v5669 = vmul.f32 %v5650, 0.2
    %v5670 = vmul.f32 %v5652, 0.2
    %v5671 = vmul.f32 %v5654, 0.2
    %v5672 = vsel %vm5656, %v5638, %v5664
    %v5673 = vsel %vm5657, %v5640, %v5665
    %v5674 = vsel %vm5658, %v5642, %v5666
    %v5675 = vsel %vm5659, %v5644, %v5667
    %v5676 = vsel %vm5660, %v5648, %v5668
    %v5677 = vsel %vm5661, %v5650, %v5669
    %v5678 = vsel %vm5662, %v5652, %v5670
    %v5679 = vsel %vm5663, %v5654, %v5671
    %v5680 = vpack.c.bf16 %v5674, %v5672
    %v5681 = vpack.c.bf16 %v5675, %v5673
    %v5682 = vpack.c.bf16 %v5678, %v5676
    %v5683 = vpack.c.bf16 %v5679, %v5677
    %v5685 = vshrl.u32 %v5680, 16
    %v5687 = vrot.slane %v5685, 7
    %v5688 = vshll.u32 %v5680, 16
    %v5690 = vor.u32 %v5687, %v5688
    %v5692 = vshrl.u32 %v5681, 16
    %v5694 = vrot.slane %v5692, 7
    %v5695 = vshll.u32 %v5681, 16
    %v5697 = vor.u32 %v5694, %v5695
    %v5702 = vsel %vm187, 0, %v5690
    %v5703 = vsel %vm187, 0, %v5697
    %v5704 = vsel %vm187, %v5687, 0
    %v5705 = vsel %vm187, %v5694, 0
    %v5707 = vshrl.u32 %v5702, 16
    %v5709 = vshll.u32 %v5702, 16
    %v5711 = vrot.slane %v5709, 1
    %v5712 = vor.u32 %v5707, %v5711
    %v5714 = vshll.u32 %v5704, 16
    %v5716 = vrot.slane %v5714, 1
    %v5717 = vsel %vm190, %v5712, %v5716
    %v5719 = vshrl.u32 %v5703, 16
    %v5721 = vshll.u32 %v5703, 16
    %v5723 = vrot.slane %v5721, 1
    %v5724 = vor.u32 %v5719, %v5723
    %v5726 = vshll.u32 %v5705, 16
    %v5728 = vrot.slane %v5726, 1
    %v5729 = vsel %vm190, %v5724, %v5728
    %v5736 = vrot.slane %v5702, 1
    %v5737 = vrot.slane %v5704, 1
    %v5738 = vsel %vm207, %v5736, %v5737
    %v5739 = vrot.slane %v5703, 1
    %v5740 = vrot.slane %v5705, 1
    %v5741 = vsel %vm207, %v5739, %v5740
    %v5745 = vshrl.u32 %v5682, 16
    %v5747 = vrot.slane %v5745, 7
    %v5748 = vshll.u32 %v5682, 16
    %v5750 = vor.u32 %v5747, %v5748
    %v5752 = vshrl.u32 %v5683, 16
    %v5754 = vrot.slane %v5752, 7
    %v5755 = vshll.u32 %v5683, 16
    %v5757 = vor.u32 %v5754, %v5755
    %v5762 = vsel %vm187, 0, %v5750
    %v5763 = vsel %vm187, 0, %v5757
    %v5764 = vsel %vm187, %v5747, 0
    %v5765 = vsel %vm187, %v5754, 0
    %v5767 = vshrl.u32 %v5762, 16
    %v5769 = vshll.u32 %v5762, 16
    %v5771 = vrot.slane %v5769, 1
    %v5772 = vor.u32 %v5767, %v5771
    %v5774 = vshll.u32 %v5764, 16
    %v5776 = vrot.slane %v5774, 1
    %v5777 = vsel %vm190, %v5772, %v5776
    %v5779 = vshrl.u32 %v5763, 16
    %v5781 = vshll.u32 %v5763, 16
    %v5783 = vrot.slane %v5781, 1
    %v5784 = vor.u32 %v5779, %v5783
    %v5786 = vshll.u32 %v5765, 16
    %v5788 = vrot.slane %v5786, 1
    %v5789 = vsel %vm190, %v5784, %v5788
    %v5796 = vrot.slane %v5762, 1
    %v5797 = vrot.slane %v5764, 1
    %v5798 = vsel %vm207, %v5796, %v5797
    %v5799 = vrot.slane %v5763, 1
    %v5800 = vrot.slane %v5765, 1
    %v5801 = vsel %vm207, %v5799, %v5800
    %s5804 = scalar_lea.vmem [#allocation7], 2304
    %v5805 = vld [vmem:[%s5804] sm:$0xff]
    %v5806 = vld [vmem:[%s5804 + $0x8] sm:$0xff]
    %v5807 = vld [vmem:[%s5804 + $0x10] sm:$0xff]
    %v5808 = vld [vmem:[%s5804 + $0x18] sm:$0xff]
    %v5809 = vld [vmem:[%s5804 + $0x20] sm:$0xff]
    %v5810 = vld [vmem:[%s5804 + $0x28] sm:$0xff]
    %v5811 = vld [vmem:[%s5804 + $0x30] sm:$0xff]
    %v5812 = vld [vmem:[%s5804 + $0x38] sm:$0xff]
    %v5813 = vld [vmem:[%s5804 + $0x40] sm:$0xff]
    %v5814 = vld [vmem:[%s5804 + $0x48] sm:$0xff]
    %v5815 = vld [vmem:[%s5804 + $0x50] sm:$0xff]
    %v5816 = vld [vmem:[%s5804 + $0x58] sm:$0xff]
    %v5817 = vld [vmem:[%s5804 + $0x60] sm:$0xff]
    %v5818 = vld [vmem:[%s5804 + $0x68] sm:$0xff]
    %v5819 = vld [vmem:[%s5804 + $0x70] sm:$0xff]
    %v5820 = vld [vmem:[%s5804 + $0x78] sm:$0xff]
    %v5821 = vld [vmem:[%s5804 + $0x80] sm:$0xff]
    %v5822 = vld [vmem:[%s5804 + $0x88] sm:$0xff]
    %v5823 = vld [vmem:[%s5804 + $0x90] sm:$0xff]
    %v5824 = vld [vmem:[%s5804 + $0x98] sm:$0xff]
    %v5825 = vld [vmem:[%s5804 + $0xa0] sm:$0xff]
    %v5826 = vld [vmem:[%s5804 + $0xa8] sm:$0xff]
    %v5827 = vld [vmem:[%s5804 + $0xb0] sm:$0xff]
    %v5828 = vld [vmem:[%s5804 + $0xb8] sm:$0xff]
    %v5829 = vld [vmem:[%s5804 + $0xc0] sm:$0xff]
    %v5830 = vld [vmem:[%s5804 + $0xc8] sm:$0xff]
    %v5831 = vld [vmem:[%s5804 + $0xd0] sm:$0xff]
    %v5832 = vld [vmem:[%s5804 + $0xd8] sm:$0xff]
    %v5833 = vld [vmem:[%s5804 + $0xe0] sm:$0xff]
    %v5834 = vld [vmem:[%s5804 + $0xe8] sm:$0xff]
    %v5835 = vld [vmem:[%s5804 + $0xf0] sm:$0xff]
    %v5836 = vld [vmem:[%s5804 + $0xf8] sm:$0xff]
    %v5837 = vld [vmem:[%s5804 + $0x100] sm:$0xff]
    %v5838 = vld [vmem:[%s5804 + $0x108] sm:$0xff]
    %v5839 = vld [vmem:[%s5804 + $0x110] sm:$0xff]
    %v5840 = vld [vmem:[%s5804 + $0x118] sm:$0xff]
    %v5841 = vld [vmem:[%s5804 + $0x120] sm:$0xff]
    %v5842 = vld [vmem:[%s5804 + $0x128] sm:$0xff]
    %v5843 = vld [vmem:[%s5804 + $0x130] sm:$0xff]
    %v5844 = vld [vmem:[%s5804 + $0x138] sm:$0xff]
    %v5845 = vld [vmem:[%s5804 + $0x140] sm:$0xff]
    %v5846 = vld [vmem:[%s5804 + $0x148] sm:$0xff]
    %v5847 = vld [vmem:[%s5804 + $0x150] sm:$0xff]
    %v5848 = vld [vmem:[%s5804 + $0x158] sm:$0xff]
    %v5849 = vld [vmem:[%s5804 + $0x160] sm:$0xff]
    %v5850 = vld [vmem:[%s5804 + $0x168] sm:$0xff]
    %v5851 = vld [vmem:[%s5804 + $0x170] sm:$0xff]
    %v5852 = vld [vmem:[%s5804 + $0x178] sm:$0xff]
    %v5853 = vld [vmem:[%s5804 + $0x180] sm:$0xff]
    %v5854 = vld [vmem:[%s5804 + $0x188] sm:$0xff]
    %v5855 = vld [vmem:[%s5804 + $0x190] sm:$0xff]
    %v5856 = vld [vmem:[%s5804 + $0x198] sm:$0xff]
    %v5857 = vld [vmem:[%s5804 + $0x1a0] sm:$0xff]
    %v5858 = vld [vmem:[%s5804 + $0x1a8] sm:$0xff]
    %v5859 = vld [vmem:[%s5804 + $0x1b0] sm:$0xff]
    %v5860 = vld [vmem:[%s5804 + $0x1b8] sm:$0xff]
    %v5861 = vld [vmem:[%s5804 + $0x1c0] sm:$0xff]
    %v5862 = vld [vmem:[%s5804 + $0x1c8] sm:$0xff]
    %v5863 = vld [vmem:[%s5804 + $0x1d0] sm:$0xff]
    %v5864 = vld [vmem:[%s5804 + $0x1d8] sm:$0xff]
    %v5865 = vld [vmem:[%s5804 + $0x1e0] sm:$0xff]
    %v5866 = vld [vmem:[%s5804 + $0x1e8] sm:$0xff]
    %v5867 = vld [vmem:[%s5804 + $0x1f0] sm:$0xff]
    %v5868 = vld [vmem:[%s5804 + $0x1f8] sm:$0xff]
    %v5869 = vld [vmem:[%s5804 + $0x200] sm:$0xff]
    %v5870 = vld [vmem:[%s5804 + $0x208] sm:$0xff]
    %v5871 = vld [vmem:[%s5804 + $0x210] sm:$0xff]
    %v5872 = vld [vmem:[%s5804 + $0x218] sm:$0xff]
    %v5873 = vld [vmem:[%s5804 + $0x220] sm:$0xff]
    %v5874 = vld [vmem:[%s5804 + $0x228] sm:$0xff]
    %v5875 = vld [vmem:[%s5804 + $0x230] sm:$0xff]
    %v5876 = vld [vmem:[%s5804 + $0x238] sm:$0xff]
    %v5877 = vld [vmem:[%s5804 + $0x240] sm:$0xff]
    %v5878 = vld [vmem:[%s5804 + $0x248] sm:$0xff]
    %v5879 = vld [vmem:[%s5804 + $0x250] sm:$0xff]
    %v5880 = vld [vmem:[%s5804 + $0x258] sm:$0xff]
    %v5881 = vld [vmem:[%s5804 + $0x260] sm:$0xff]
    %v5882 = vld [vmem:[%s5804 + $0x268] sm:$0xff]
    %v5883 = vld [vmem:[%s5804 + $0x270] sm:$0xff]
    %v5884 = vld [vmem:[%s5804 + $0x278] sm:$0xff]
    %v5885 = vld [vmem:[%s5804 + $0x280] sm:$0xff]
    %v5886 = vld [vmem:[%s5804 + $0x288] sm:$0xff]
    %v5887 = vld [vmem:[%s5804 + $0x290] sm:$0xff]
    %v5888 = vld [vmem:[%s5804 + $0x298] sm:$0xff]
    %v5889 = vld [vmem:[%s5804 + $0x2a0] sm:$0xff]
    %v5890 = vld [vmem:[%s5804 + $0x2a8] sm:$0xff]
    %v5891 = vld [vmem:[%s5804 + $0x2b0] sm:$0xff]
    %v5892 = vld [vmem:[%s5804 + $0x2b8] sm:$0xff]
    %v5893 = vld [vmem:[%s5804 + $0x2c0] sm:$0xff]
    %v5894 = vld [vmem:[%s5804 + $0x2c8] sm:$0xff]
    %v5895 = vld [vmem:[%s5804 + $0x2d0] sm:$0xff]
    %v5896 = vld [vmem:[%s5804 + $0x2d8] sm:$0xff]
    %v5897 = vld [vmem:[%s5804 + $0x2e0] sm:$0xff]
    %v5898 = vld [vmem:[%s5804 + $0x2e8] sm:$0xff]
    %v5899 = vld [vmem:[%s5804 + $0x2f0] sm:$0xff]
    %v5900 = vld [vmem:[%s5804 + $0x2f8] sm:$0xff]
    %s5901 = scalar_lea.vmem [#allocation9], 6
    %v5902 = vld [vmem:[%s5901] sm:$0x3]
    %v5904 = vlaneseq
    %v5905 = vshrl.u32 %v5904, 7
    %v5906 = vsub.s32 0, %v5905
    %v5907 = vrot.slane %v5902, %v5906
    %v5908 = vlaneseq
    %v5909 = vshrl.u32 %v5908, 7
    %v5910 = vsub.s32 1, %v5909
    %v5911 = vrot.slane %v5902, %v5910
    %v6010 = vunpack.c.l.b16 %v5805
    %v6011 = vunpack.c.h.b16 %v5805
    %v6012 = vunpack.c.l.b16 %v5806
    %v6013 = vunpack.c.h.b16 %v5806
    %v6014 = vunpack.c.l.b16 %v5807
    %v6015 = vunpack.c.h.b16 %v5807
    %v6016 = vunpack.c.l.b16 %v5808
    %v6017 = vunpack.c.h.b16 %v5808
    %v6018 = vunpack.c.l.b16 %v5809
    %v6019 = vunpack.c.h.b16 %v5809
    %v6020 = vunpack.c.l.b16 %v5810
    %v6021 = vunpack.c.h.b16 %v5810
    %v6022 = vunpack.c.l.b16 %v5811
    %v6023 = vunpack.c.h.b16 %v5811
    %v6024 = vunpack.c.l.b16 %v5812
    %v6025 = vunpack.c.h.b16 %v5812
    %v6026 = vunpack.c.l.b16 %v5813
    %v6027 = vunpack.c.h.b16 %v5813
    %v6028 = vunpack.c.l.b16 %v5814
    %v6029 = vunpack.c.h.b16 %v5814
    %v6030 = vunpack.c.l.b16 %v5815
    %v6031 = vunpack.c.h.b16 %v5815
    %v6032 = vunpack.c.l.b16 %v5816
    %v6033 = vunpack.c.h.b16 %v5816
    %v6034 = vunpack.c.l.b16 %v5817
    %v6035 = vunpack.c.h.b16 %v5817
    %v6036 = vunpack.c.l.b16 %v5818
    %v6037 = vunpack.c.h.b16 %v5818
    %v6038 = vunpack.c.l.b16 %v5819
    %v6039 = vunpack.c.h.b16 %v5819
    %v6040 = vunpack.c.l.b16 %v5820
    %v6041 = vunpack.c.h.b16 %v5820
    %v6042 = vunpack.c.l.b16 %v5821
    %v6043 = vunpack.c.h.b16 %v5821
    %v6044 = vunpack.c.l.b16 %v5822
    %v6045 = vunpack.c.h.b16 %v5822
    %v6046 = vunpack.c.l.b16 %v5823
    %v6047 = vunpack.c.h.b16 %v5823
    %v6048 = vunpack.c.l.b16 %v5824
    %v6049 = vunpack.c.h.b16 %v5824
    %v6050 = vunpack.c.l.b16 %v5825
    %v6051 = vunpack.c.h.b16 %v5825
    %v6052 = vunpack.c.l.b16 %v5826
    %v6053 = vunpack.c.h.b16 %v5826
    %v6054 = vunpack.c.l.b16 %v5827
    %v6055 = vunpack.c.h.b16 %v5827
    %v6056 = vunpack.c.l.b16 %v5828
    %v6057 = vunpack.c.h.b16 %v5828
    %v6058 = vunpack.c.l.b16 %v5829
    %v6059 = vunpack.c.h.b16 %v5829
    %v6060 = vunpack.c.l.b16 %v5830
    %v6061 = vunpack.c.h.b16 %v5830
    %v6062 = vunpack.c.l.b16 %v5831
    %v6063 = vunpack.c.h.b16 %v5831
    %v6064 = vunpack.c.l.b16 %v5832
    %v6065 = vunpack.c.h.b16 %v5832
    %v6066 = vunpack.c.l.b16 %v5833
    %v6067 = vunpack.c.h.b16 %v5833
    %v6068 = vunpack.c.l.b16 %v5834
    %v6069 = vunpack.c.h.b16 %v5834
    %v6070 = vunpack.c.l.b16 %v5835
    %v6071 = vunpack.c.h.b16 %v5835
    %v6072 = vunpack.c.l.b16 %v5836
    %v6073 = vunpack.c.h.b16 %v5836
    %v6074 = vunpack.c.l.b16 %v5837
    %v6075 = vunpack.c.h.b16 %v5837
    %v6076 = vunpack.c.l.b16 %v5838
    %v6077 = vunpack.c.h.b16 %v5838
    %v6078 = vunpack.c.l.b16 %v5839
    %v6079 = vunpack.c.h.b16 %v5839
    %v6080 = vunpack.c.l.b16 %v5840
    %v6081 = vunpack.c.h.b16 %v5840
    %v6082 = vunpack.c.l.b16 %v5841
    %v6083 = vunpack.c.h.b16 %v5841
    %v6084 = vunpack.c.l.b16 %v5842
    %v6085 = vunpack.c.h.b16 %v5842
    %v6086 = vunpack.c.l.b16 %v5843
    %v6087 = vunpack.c.h.b16 %v5843
    %v6088 = vunpack.c.l.b16 %v5844
    %v6089 = vunpack.c.h.b16 %v5844
    %v6090 = vunpack.c.l.b16 %v5845
    %v6091 = vunpack.c.h.b16 %v5845
    %v6092 = vunpack.c.l.b16 %v5846
    %v6093 = vunpack.c.h.b16 %v5846
    %v6094 = vunpack.c.l.b16 %v5847
    %v6095 = vunpack.c.h.b16 %v5847
    %v6096 = vunpack.c.l.b16 %v5848
    %v6097 = vunpack.c.h.b16 %v5848
    %v6098 = vunpack.c.l.b16 %v5849
    %v6099 = vunpack.c.h.b16 %v5849
    %v6100 = vunpack.c.l.b16 %v5850
    %v6101 = vunpack.c.h.b16 %v5850
    %v6102 = vunpack.c.l.b16 %v5851
    %v6103 = vunpack.c.h.b16 %v5851
    %v6104 = vunpack.c.l.b16 %v5852
    %v6105 = vunpack.c.h.b16 %v5852
    %v6106 = vunpack.c.l.b16 %v5853
    %v6107 = vunpack.c.h.b16 %v5853
    %v6108 = vunpack.c.l.b16 %v5854
    %v6109 = vunpack.c.h.b16 %v5854
    %v6110 = vunpack.c.l.b16 %v5855
    %v6111 = vunpack.c.h.b16 %v5855
    %v6112 = vunpack.c.l.b16 %v5856
    %v6113 = vunpack.c.h.b16 %v5856
    %v6114 = vunpack.c.l.b16 %v5857
    %v6115 = vunpack.c.h.b16 %v5857
    %v6116 = vunpack.c.l.b16 %v5858
    %v6117 = vunpack.c.h.b16 %v5858
    %v6118 = vunpack.c.l.b16 %v5859
    %v6119 = vunpack.c.h.b16 %v5859
    %v6120 = vunpack.c.l.b16 %v5860
    %v6121 = vunpack.c.h.b16 %v5860
    %v6122 = vunpack.c.l.b16 %v5861
    %v6123 = vunpack.c.h.b16 %v5861
    %v6124 = vunpack.c.l.b16 %v5862
    %v6125 = vunpack.c.h.b16 %v5862
    %v6126 = vunpack.c.l.b16 %v5863
    %v6127 = vunpack.c.h.b16 %v5863
    %v6128 = vunpack.c.l.b16 %v5864
    %v6129 = vunpack.c.h.b16 %v5864
    %v6130 = vunpack.c.l.b16 %v5865
    %v6131 = vunpack.c.h.b16 %v5865
    %v6132 = vunpack.c.l.b16 %v5866
    %v6133 = vunpack.c.h.b16 %v5866
    %v6134 = vunpack.c.l.b16 %v5867
    %v6135 = vunpack.c.h.b16 %v5867
    %v6136 = vunpack.c.l.b16 %v5868
    %v6137 = vunpack.c.h.b16 %v5868
    %v6138 = vunpack.c.l.b16 %v5869
    %v6139 = vunpack.c.h.b16 %v5869
    %v6140 = vunpack.c.l.b16 %v5870
    %v6141 = vunpack.c.h.b16 %v5870
    %v6142 = vunpack.c.l.b16 %v5871
    %v6143 = vunpack.c.h.b16 %v5871
    %v6144 = vunpack.c.l.b16 %v5872
    %v6145 = vunpack.c.h.b16 %v5872
    %v6146 = vunpack.c.l.b16 %v5873
    %v6147 = vunpack.c.h.b16 %v5873
    %v6148 = vunpack.c.l.b16 %v5874
    %v6149 = vunpack.c.h.b16 %v5874
    %v6150 = vunpack.c.l.b16 %v5875
    %v6151 = vunpack.c.h.b16 %v5875
    %v6152 = vunpack.c.l.b16 %v5876
    %v6153 = vunpack.c.h.b16 %v5876
    %v6154 = vunpack.c.l.b16 %v5877
    %v6155 = vunpack.c.h.b16 %v5877
    %v6156 = vunpack.c.l.b16 %v5878
    %v6157 = vunpack.c.h.b16 %v5878
    %v6158 = vunpack.c.l.b16 %v5879
    %v6159 = vunpack.c.h.b16 %v5879
    %v6160 = vunpack.c.l.b16 %v5880
    %v6161 = vunpack.c.h.b16 %v5880
    %v6162 = vunpack.c.l.b16 %v5881
    %v6163 = vunpack.c.h.b16 %v5881
    %v6164 = vunpack.c.l.b16 %v5882
    %v6165 = vunpack.c.h.b16 %v5882
    %v6166 = vunpack.c.l.b16 %v5883
    %v6167 = vunpack.c.h.b16 %v5883
    %v6168 = vunpack.c.l.b16 %v5884
    %v6169 = vunpack.c.h.b16 %v5884
    %v6170 = vunpack.c.l.b16 %v5885
    %v6171 = vunpack.c.h.b16 %v5885
    %v6172 = vunpack.c.l.b16 %v5886
    %v6173 = vunpack.c.h.b16 %v5886
    %v6174 = vunpack.c.l.b16 %v5887
    %v6175 = vunpack.c.h.b16 %v5887
    %v6176 = vunpack.c.l.b16 %v5888
    %v6177 = vunpack.c.h.b16 %v5888
    %v6178 = vunpack.c.l.b16 %v5889
    %v6179 = vunpack.c.h.b16 %v5889
    %v6180 = vunpack.c.l.b16 %v5890
    %v6181 = vunpack.c.h.b16 %v5890
    %v6182 = vunpack.c.l.b16 %v5891
    %v6183 = vunpack.c.h.b16 %v5891
    %v6184 = vunpack.c.l.b16 %v5892
    %v6185 = vunpack.c.h.b16 %v5892
    %v6186 = vunpack.c.l.b16 %v5893
    %v6187 = vunpack.c.h.b16 %v5893
    %v6188 = vunpack.c.l.b16 %v5894
    %v6189 = vunpack.c.h.b16 %v5894
    %v6190 = vunpack.c.l.b16 %v5895
    %v6191 = vunpack.c.h.b16 %v5895
    %v6192 = vunpack.c.l.b16 %v5896
    %v6193 = vunpack.c.h.b16 %v5896
    %v6194 = vunpack.c.l.b16 %v5897
    %v6195 = vunpack.c.h.b16 %v5897
    %v6196 = vunpack.c.l.b16 %v5898
    %v6197 = vunpack.c.h.b16 %v5898
    %v6198 = vunpack.c.l.b16 %v5899
    %v6199 = vunpack.c.h.b16 %v5899
    %v6200 = vunpack.c.l.b16 %v5900
    %v6201 = vunpack.c.h.b16 %v5900
    %v6202 = vpack.c.b16 %v6012, %v6010
    %v6203 = vpack.c.b16 %v6013, %v6011
    %v6204 = vpack.c.b16 %v6016, %v6014
    %v6205 = vpack.c.b16 %v6017, %v6015
    %v6206 = vpack.c.b16 %v6020, %v6018
    %v6207 = vpack.c.b16 %v6021, %v6019
    %v6208 = vpack.c.b16 %v6024, %v6022
    %v6209 = vpack.c.b16 %v6025, %v6023
    %v6210 = vpack.c.b16 %v6028, %v6026
    %v6211 = vpack.c.b16 %v6029, %v6027
    %v6212 = vpack.c.b16 %v6032, %v6030
    %v6213 = vpack.c.b16 %v6033, %v6031
    %v6214 = vpack.c.b16 %v6036, %v6034
    %v6215 = vpack.c.b16 %v6037, %v6035
    %v6216 = vpack.c.b16 %v6040, %v6038
    %v6217 = vpack.c.b16 %v6041, %v6039
    %v6218 = vpack.c.b16 %v6044, %v6042
    %v6219 = vpack.c.b16 %v6045, %v6043
    %v6220 = vpack.c.b16 %v6048, %v6046
    %v6221 = vpack.c.b16 %v6049, %v6047
    %v6222 = vpack.c.b16 %v6052, %v6050
    %v6223 = vpack.c.b16 %v6053, %v6051
    %v6224 = vpack.c.b16 %v6056, %v6054
    %v6225 = vpack.c.b16 %v6057, %v6055
    %v6226 = vpack.c.b16 %v6060, %v6058
    %v6227 = vpack.c.b16 %v6061, %v6059
    %v6228 = vpack.c.b16 %v6064, %v6062
    %v6229 = vpack.c.b16 %v6065, %v6063
    %v6230 = vpack.c.b16 %v6068, %v6066
    %v6231 = vpack.c.b16 %v6069, %v6067
    %v6232 = vpack.c.b16 %v6072, %v6070
    %v6233 = vpack.c.b16 %v6073, %v6071
    %v6234 = vpack.c.b16 %v6076, %v6074
    %v6235 = vpack.c.b16 %v6077, %v6075
    %v6236 = vpack.c.b16 %v6080, %v6078
    %v6237 = vpack.c.b16 %v6081, %v6079
    %v6238 = vpack.c.b16 %v6084, %v6082
    %v6239 = vpack.c.b16 %v6085, %v6083
    %v6240 = vpack.c.b16 %v6088, %v6086
    %v6241 = vpack.c.b16 %v6089, %v6087
    %v6242 = vpack.c.b16 %v6092, %v6090
    %v6243 = vpack.c.b16 %v6093, %v6091
    %v6244 = vpack.c.b16 %v6096, %v6094
    %v6245 = vpack.c.b16 %v6097, %v6095
    %v6246 = vpack.c.b16 %v6100, %v6098
    %v6247 = vpack.c.b16 %v6101, %v6099
    %v6248 = vpack.c.b16 %v6104, %v6102
    %v6249 = vpack.c.b16 %v6105, %v6103
    %v6250 = vpack.c.b16 %v6108, %v6106
    %v6251 = vpack.c.b16 %v6109, %v6107
    %v6252 = vpack.c.b16 %v6112, %v6110
    %v6253 = vpack.c.b16 %v6113, %v6111
    %v6254 = vpack.c.b16 %v6116, %v6114
    %v6255 = vpack.c.b16 %v6117, %v6115
    %v6256 = vpack.c.b16 %v6120, %v6118
    %v6257 = vpack.c.b16 %v6121, %v6119
    %v6258 = vpack.c.b16 %v6124, %v6122
    %v6259 = vpack.c.b16 %v6125, %v6123
    %v6260 = vpack.c.b16 %v6128, %v6126
    %v6261 = vpack.c.b16 %v6129, %v6127
    %v6262 = vpack.c.b16 %v6132, %v6130
    %v6263 = vpack.c.b16 %v6133, %v6131
    %v6264 = vpack.c.b16 %v6136, %v6134
    %v6265 = vpack.c.b16 %v6137, %v6135
    %v6266 = vpack.c.b16 %v6140, %v6138
    %v6267 = vpack.c.b16 %v6141, %v6139
    %v6268 = vpack.c.b16 %v6144, %v6142
    %v6269 = vpack.c.b16 %v6145, %v6143
    %v6270 = vpack.c.b16 %v6148, %v6146
    %v6271 = vpack.c.b16 %v6149, %v6147
    %v6272 = vpack.c.b16 %v6152, %v6150
    %v6273 = vpack.c.b16 %v6153, %v6151
    %v6274 = vpack.c.b16 %v6156, %v6154
    %v6275 = vpack.c.b16 %v6157, %v6155
    %v6276 = vpack.c.b16 %v6160, %v6158
    %v6277 = vpack.c.b16 %v6161, %v6159
    %v6278 = vpack.c.b16 %v6164, %v6162
    %v6279 = vpack.c.b16 %v6165, %v6163
    %v6280 = vpack.c.b16 %v6168, %v6166
    %v6281 = vpack.c.b16 %v6169, %v6167
    %v6282 = vpack.c.b16 %v6172, %v6170
    %v6283 = vpack.c.b16 %v6173, %v6171
    %v6284 = vpack.c.b16 %v6176, %v6174
    %v6285 = vpack.c.b16 %v6177, %v6175
    %v6286 = vpack.c.b16 %v6180, %v6178
    %v6287 = vpack.c.b16 %v6181, %v6179
    %v6288 = vpack.c.b16 %v6184, %v6182
    %v6289 = vpack.c.b16 %v6185, %v6183
    %v6290 = vpack.c.b16 %v6188, %v6186
    %v6291 = vpack.c.b16 %v6189, %v6187
    %v6292 = vpack.c.b16 %v6192, %v6190
    %v6293 = vpack.c.b16 %v6193, %v6191
    %v6294 = vpack.c.b16 %v6196, %v6194
    %v6295 = vpack.c.b16 %v6197, %v6195
    %v6296 = vpack.c.b16 %v6200, %v6198
    %v6297 = vpack.c.b16 %v6201, %v6199
    %6394 = vmatprep.subr.bf16.mxu0 %v6203
    %6395 = vmatpush1.bf16.msra.mxu0 %v6202
    %6396 = vmatprep.subr.bf16.mxu0 %v6205
    %6397 = vmatpush1.bf16.msra.mxu0 %v6204
    %6398 = vmatprep.subr.bf16.mxu0 %v6207
    %6399 = vmatpush1.bf16.msra.mxu0 %v6206
    %6400 = vmatprep.subr.bf16.mxu0 %v6209
    %6401 = vmatpush1.bf16.msra.mxu0 %v6208
    %6402 = vmatprep.subr.bf16.mxu0 %v6211
    %6403 = vmatpush1.bf16.msra.mxu0 %v6210
    %6404 = vmatprep.subr.bf16.mxu0 %v6213
    %6405 = vmatpush1.bf16.msra.mxu0 %v6212
    %6406 = vmatprep.subr.bf16.mxu0 %v6215
    %6407 = vmatpush1.bf16.msra.mxu0 %v6214
    %6408 = vmatprep.subr.bf16.mxu0 %v6217
    %6409 = vmatpush1.bf16.msra.mxu0 %v6216
    %6410 = vmatprep.subr.bf16.mxu0 %v6219
    %6411 = vmatpush1.bf16.msra.mxu0 %v6218
    %6412 = vmatprep.subr.bf16.mxu0 %v6221
    %6413 = vmatpush1.bf16.msra.mxu0 %v6220
    %6414 = vmatprep.subr.bf16.mxu0 %v6223
    %6415 = vmatpush1.bf16.msra.mxu0 %v6222
    %6416 = vmatprep.subr.bf16.mxu0 %v6225
    %6417 = vmatpush1.bf16.msra.mxu0 %v6224
    %6418 = vmatprep.subr.bf16.mxu0 %v6227
    %6419 = vmatpush1.bf16.msra.mxu0 %v6226
    %6420 = vmatprep.subr.bf16.mxu0 %v6229
    %6421 = vmatpush1.bf16.msra.mxu0 %v6228
    %6422 = vmatprep.subr.bf16.mxu0 %v6231
    %6423 = vmatpush1.bf16.msra.mxu0 %v6230
    %6424 = vmatprep.subr.bf16.mxu0 %v6233
    %6425 = vmatpush1.bf16.msra.mxu0 %v6232
    %6426 = vmatprep.mubr.bf16.mxu0 %v5703
    %6427 = vmatmul.mubr.bf16.gmra.mrb[0].mxu0 %v5702
    %v6428 = vpop.f32.mrb[0].mxu0
    %v6429 = vadd.f32 %v5907, %v6428
    %v6430 = vpop.f32.mrb[0].mxu0
    %v6431 = vadd.f32 %v5911, %v6430
    %v6432 = vpop.f32.mrb[0].mxu0
    %v6433 = vadd.f32 %v5907, %v6432
    %v6434 = vpop.f32.mrb[0].mxu0
    %v6435 = vadd.f32 %v5911, %v6434
    %6436 = vmatprep.mubr.bf16.mxu0 %v5763
    %6437 = vmatmul.mubr.bf16.gmra.mrb[0].mxu0 %v5762
    %v6438 = vpop.f32.mrb[0].mxu0
    %v6439 = vadd.f32 %v5907, %v6438
    %v6440 = vpop.f32.mrb[0].mxu0
    %v6441 = vadd.f32 %v5911, %v6440
    %v6442 = vpop.f32.mrb[0].mxu0
    %v6443 = vadd.f32 %v5907, %v6442
    %v6444 = vpop.f32.mrb[0].mxu0
    %v6445 = vadd.f32 %v5911, %v6444
    %6446 = vdwg.mxu0
    %6447 = vmatprep.subr.bf16.mxu0 %v6235
    %6448 = vmatpush1.bf16.msra.mxu0 %v6234
    %6449 = vmatprep.subr.bf16.mxu0 %v6237
    %6450 = vmatpush1.bf16.msra.mxu0 %v6236
    %6451 = vmatprep.subr.bf16.mxu0 %v6239
    %6452 = vmatpush1.bf16.msra.mxu0 %v6238
    %6453 = vmatprep.subr.bf16.mxu0 %v6241
    %6454 = vmatpush1.bf16.msra.mxu0 %v6240
    %6455 = vmatprep.subr.bf16.mxu0 %v6243
    %6456 = vmatpush1.bf16.msra.mxu0 %v6242
    %6457 = vmatprep.subr.bf16.mxu0 %v6245
    %6458 = vmatpush1.bf16.msra.mxu0 %v6244
    %6459 = vmatprep.subr.bf16.mxu0 %v6247
    %6460 = vmatpush1.bf16.msra.mxu0 %v6246
    %6461 = vmatprep.subr.bf16.mxu0 %v6249
    %6462 = vmatpush1.bf16.msra.mxu0 %v6248
    %6463 = vmatprep.subr.bf16.mxu0 %v6251
    %6464 = vmatpush1.bf16.msra.mxu0 %v6250
    %6465 = vmatprep.subr.bf16.mxu0 %v6253
    %6466 = vmatpush1.bf16.msra.mxu0 %v6252
    %6467 = vmatprep.subr.bf16.mxu0 %v6255
    %6468 = vmatpush1.bf16.msra.mxu0 %v6254
    %6469 = vmatprep.subr.bf16.mxu0 %v6257
    %6470 = vmatpush1.bf16.msra.mxu0 %v6256
    %6471 = vmatprep.subr.bf16.mxu0 %v6259
    %6472 = vmatpush1.bf16.msra.mxu0 %v6258
    %6473 = vmatprep.subr.bf16.mxu0 %v6261
    %6474 = vmatpush1.bf16.msra.mxu0 %v6260
    %6475 = vmatprep.subr.bf16.mxu0 %v6263
    %6476 = vmatpush1.bf16.msra.mxu0 %v6262
    %6477 = vmatprep.subr.bf16.mxu0 %v6265
    %6478 = vmatpush1.bf16.msra.mxu0 %v6264
    %6479 = vmatprep.mubr.bf16.mxu0 %v5729
    %6480 = vmatmul.mubr.bf16.gmra.mrb[0].mxu0 %v5717
    %v6481 = vpop.f32.mrb[0].mxu0
    %v6482 = vadd.f32 %v6429, %v6481
    %v6483 = vpop.f32.mrb[0].mxu0
    %v6484 = vadd.f32 %v6431, %v6483
    %v6485 = vpop.f32.mrb[0].mxu0
    %v6486 = vadd.f32 %v6433, %v6485
    %v6487 = vpop.f32.mrb[0].mxu0
    %v6488 = vadd.f32 %v6435, %v6487
    %6489 = vmatprep.mubr.bf16.mxu0 %v5789
    %6490 = vmatmul.mubr.bf16.gmra.mrb[0].mxu0 %v5777
    %v6491 = vpop.f32.mrb[0].mxu0
    %v6492 = vadd.f32 %v6439, %v6491
    %v6493 = vpop.f32.mrb[0].mxu0
    %v6494 = vadd.f32 %v6441, %v6493
    %v6495 = vpop.f32.mrb[0].mxu0
    %v6496 = vadd.f32 %v6443, %v6495
    %v6497 = vpop.f32.mrb[0].mxu0
    %v6498 = vadd.f32 %v6445, %v6497
    %6499 = vdwg.mxu0
    %6500 = vmatprep.subr.bf16.mxu0 %v6267
    %6501 = vmatpush1.bf16.msra.mxu0 %v6266
    %6502 = vmatprep.subr.bf16.mxu0 %v6269
    %6503 = vmatpush1.bf16.msra.mxu0 %v6268
    %6504 = vmatprep.subr.bf16.mxu0 %v6271
    %6505 = vmatpush1.bf16.msra.mxu0 %v6270
    %6506 = vmatprep.subr.bf16.mxu0 %v6273
    %6507 = vmatpush1.bf16.msra.mxu0 %v6272
    %6508 = vmatprep.subr.bf16.mxu0 %v6275
    %6509 = vmatpush1.bf16.msra.mxu0 %v6274
    %6510 = vmatprep.subr.bf16.mxu0 %v6277
    %6511 = vmatpush1.bf16.msra.mxu0 %v6276
    %6512 = vmatprep.subr.bf16.mxu0 %v6279
    %6513 = vmatpush1.bf16.msra.mxu0 %v6278
    %6514 = vmatprep.subr.bf16.mxu0 %v6281
    %6515 = vmatpush1.bf16.msra.mxu0 %v6280
    %6516 = vmatprep.subr.bf16.mxu0 %v6283
    %6517 = vmatpush1.bf16.msra.mxu0 %v6282
    %6518 = vmatprep.subr.bf16.mxu0 %v6285
    %6519 = vmatpush1.bf16.msra.mxu0 %v6284
    %6520 = vmatprep.subr.bf16.mxu0 %v6287
    %6521 = vmatpush1.bf16.msra.mxu0 %v6286
    %6522 = vmatprep.subr.bf16.mxu0 %v6289
    %6523 = vmatpush1.bf16.msra.mxu0 %v6288
    %6524 = vmatprep.subr.bf16.mxu0 %v6291
    %6525 = vmatpush1.bf16.msra.mxu0 %v6290
    %6526 = vmatprep.subr.bf16.mxu0 %v6293
    %6527 = vmatpush1.bf16.msra.mxu0 %v6292
    %6528 = vmatprep.subr.bf16.mxu0 %v6295
    %6529 = vmatpush1.bf16.msra.mxu0 %v6294
    %6530 = vmatprep.subr.bf16.mxu0 %v6297
    %6531 = vmatpush1.bf16.msra.mxu0 %v6296
    %6532 = vmatprep.mubr.bf16.mxu0 %v5741
    %6533 = vmatmul.mubr.bf16.gmra.mrb[0].mxu0 %v5738
    %v6534 = vpop.f32.mrb[0].mxu0
    %v6535 = vadd.f32 %v6482, %v6534
    %v6536 = vpop.f32.mrb[0].mxu0
    %v6537 = vadd.f32 %v6484, %v6536
    %v6538 = vpop.f32.mrb[0].mxu0
    %v6539 = vadd.f32 %v6486, %v6538
    %v6540 = vpop.f32.mrb[0].mxu0
    %v6541 = vadd.f32 %v6488, %v6540
    %6542 = vmatprep.mubr.bf16.mxu0 %v5801
    %6543 = vmatmul.mubr.bf16.gmra.mrb[0].mxu0 %v5798
    %v6544 = vpop.f32.mrb[0].mxu0
    %v6545 = vadd.f32 %v6492, %v6544
    %v6546 = vpop.f32.mrb[0].mxu0
    %v6547 = vadd.f32 %v6494, %v6546
    %v6548 = vpop.f32.mrb[0].mxu0
    %v6549 = vadd.f32 %v6496, %v6548
    %v6550 = vpop.f32.mrb[0].mxu0
    %v6551 = vadd.f32 %v6498, %v6550
    %6552 = vdwg.mxu0
    %vm6553 = vcmp.gt.f32.partialorder %v6535, 0.0
    %vm6554 = vcmp.gt.f32.partialorder %v6537, 0.0
    %vm6555 = vcmp.gt.f32.partialorder %v6539, 0.0
    %vm6556 = vcmp.gt.f32.partialorder %v6541, 0.0
    %vm6557 = vcmp.gt.f32.partialorder %v6545, 0.0
    %vm6558 = vcmp.gt.f32.partialorder %v6547, 0.0
    %vm6559 = vcmp.gt.f32.partialorder %v6549, 0.0
    %vm6560 = vcmp.gt.f32.partialorder %v6551, 0.0
    %v6561 = vmul.f32 %v6535, 0.2
    %v6562 = vmul.f32 %v6537, 0.2
    %v6563 = vmul.f32 %v6539, 0.2
    %v6564 = vmul.f32 %v6541, 0.2
    %v6565 = vmul.f32 %v6545, 0.2
    %v6566 = vmul.f32 %v6547, 0.2
    %v6567 = vmul.f32 %v6549, 0.2
    %v6568 = vmul.f32 %v6551, 0.2
    %v6569 = vsel %vm6553, %v6535, %v6561
    %v6570 = vsel %vm6554, %v6537, %v6562
    %v6571 = vsel %vm6555, %v6539, %v6563
    %v6572 = vsel %vm6556, %v6541, %v6564
    %v6573 = vsel %vm6557, %v6545, %v6565
    %v6574 = vsel %vm6558, %v6547, %v6566
    %v6575 = vsel %vm6559, %v6549, %v6567
    %v6576 = vsel %vm6560, %v6551, %v6568
    %6578 = vset.pattern.permute.xlu0 0
    %6579 = vperm.xlu0 %6578, %v3622
    %v6580 = vpop.permute.xlu0 %6579
    %6583 = vset.pattern.permute.xlu0 0
    %6584 = vperm.xlu0 %6583, %v3624
    %v6585 = vpop.permute.xlu0 %6584
    %6588 = vset.pattern.permute.xlu0 0
    %6589 = vperm.xlu0 %6588, %v3626
    %v6590 = vpop.permute.xlu0 %6589
    %6593 = vset.pattern.permute.xlu0 0
    %6594 = vperm.xlu0 %6593, %v3628
    %v6595 = vpop.permute.xlu0 %6594
    %6597 = vset.pattern.permute.xlu0 1
    %6598 = vperm.xlu0 %6597, %v3622
    %v6599 = vpop.permute.xlu0 %6598
    %6601 = vset.pattern.permute.xlu0 1
    %6602 = vperm.xlu0 %6601, %v3624
    %v6603 = vpop.permute.xlu0 %6602
    %6605 = vset.pattern.permute.xlu0 1
    %6606 = vperm.xlu0 %6605, %v3626
    %v6607 = vpop.permute.xlu0 %6606
    %6609 = vset.pattern.permute.xlu0 1
    %6610 = vperm.xlu0 %6609, %v3628
    %v6611 = vpop.permute.xlu0 %6610
    %6613 = vset.pattern.permute.xlu0 2
    %6614 = vperm.xlu0 %6613, %v3622
    %v6615 = vpop.permute.xlu0 %6614
    %6617 = vset.pattern.permute.xlu0 2
    %6618 = vperm.xlu0 %6617, %v3624
    %v6619 = vpop.permute.xlu0 %6618
    %6621 = vset.pattern.permute.xlu0 2
    %6622 = vperm.xlu0 %6621, %v3626
    %v6623 = vpop.permute.xlu0 %6622
    %6625 = vset.pattern.permute.xlu0 2
    %6626 = vperm.xlu0 %6625, %v3628
    %v6627 = vpop.permute.xlu0 %6626
    %6629 = vset.pattern.permute.xlu0 3
    %6630 = vperm.xlu0 %6629, %v3622
    %v6631 = vpop.permute.xlu0 %6630
    %6633 = vset.pattern.permute.xlu0 3
    %6634 = vperm.xlu0 %6633, %v3624
    %v6635 = vpop.permute.xlu0 %6634
    %6637 = vset.pattern.permute.xlu0 3
    %6638 = vperm.xlu0 %6637, %v3626
    %v6639 = vpop.permute.xlu0 %6638
    %6641 = vset.pattern.permute.xlu0 3
    %6642 = vperm.xlu0 %6641, %v3628
    %v6643 = vpop.permute.xlu0 %6642
    %v6645 = vsel %vm216, %v6580, %v6599
    %v6646 = vsel %vm216, %v6585, %v6603
    %v6647 = vsel %vm216, %v6590, %v6607
    %v6648 = vsel %vm216, %v6595, %v6611
    %v6649 = vsel %vm216, %v6615, %v6631
    %v6650 = vsel %vm216, %v6619, %v6635
    %v6651 = vsel %vm216, %v6623, %v6639
    %v6652 = vsel %vm216, %v6627, %v6643
    %v6653 = vmul.f32 %v6569, %v6645
    %v6654 = vmul.f32 %v6570, %v6649
    %v6655 = vmul.f32 %v6571, %v6646
    %v6656 = vmul.f32 %v6572, %v6650
    %v6657 = vmul.f32 %v6573, %v6647
    %v6658 = vmul.f32 %v6574, %v6651
    %v6659 = vmul.f32 %v6575, %v6648
    %v6660 = vmul.f32 %v6576, %v6652
    %v6661 = vpack.c.bf16 %v6655, %v6653
    %v6662 = vpack.c.bf16 %v6656, %v6654
    %v6663 = vpack.c.bf16 %v6659, %v6657
    %v6664 = vpack.c.bf16 %v6660, %v6658
    %v6665 = vld [vmem:[%s8] sm:$0xf]
    %v6666 = vld [vmem:[%s8 + $0x4] sm:$0xf]
    %v6667 = vld [vmem:[%s8 + $0x8] sm:$0xf]
    %v6668 = vld [vmem:[%s8 + $0xc] sm:$0xf]
    %v6669 = vld [vmem:[%s8 + $0x10] sm:$0xf]
    %v6670 = vld [vmem:[%s8 + $0x14] sm:$0xf]
    %v6671 = vld [vmem:[%s8 + $0x18] sm:$0xf]
    %v6672 = vld [vmem:[%s8 + $0x1c] sm:$0xf]
    %v6673 = vld [vmem:[%s8 + $0x20] sm:$0xf]
    %v6674 = vld [vmem:[%s8 + $0x24] sm:$0xf]
    %v6675 = vld [vmem:[%s8 + $0x28] sm:$0xf]
    %v6676 = vld [vmem:[%s8 + $0x2c] sm:$0xf]
    %v6677 = vld [vmem:[%s8 + $0x30] sm:$0xf]
    %v6678 = vld [vmem:[%s8 + $0x34] sm:$0xf]
    %v6679 = vld [vmem:[%s8 + $0x38] sm:$0xf]
    %v6680 = vld [vmem:[%s8 + $0x3c] sm:$0xf]
    %v6681 = vld [vmem:[%s8 + $0x40] sm:$0xf]
    %v6682 = vld [vmem:[%s8 + $0x44] sm:$0xf]
    %v6683 = vld [vmem:[%s8 + $0x48] sm:$0xf]
    %v6684 = vld [vmem:[%s8 + $0x4c] sm:$0xf]
    %v6685 = vld [vmem:[%s8 + $0x50] sm:$0xf]
    %v6686 = vld [vmem:[%s8 + $0x54] sm:$0xf]
    %v6687 = vld [vmem:[%s8 + $0x58] sm:$0xf]
    %v6688 = vld [vmem:[%s8 + $0x5c] sm:$0xf]
    %v6689 = vld [vmem:[%s8 + $0x60] sm:$0xf]
    %v6690 = vld [vmem:[%s8 + $0x64] sm:$0xf]
    %v6691 = vld [vmem:[%s8 + $0x68] sm:$0xf]
    %v6692 = vld [vmem:[%s8 + $0x6c] sm:$0xf]
    %v6693 = vld [vmem:[%s8 + $0x70] sm:$0xf]
    %v6694 = vld [vmem:[%s8 + $0x74] sm:$0xf]
    %v6695 = vld [vmem:[%s8 + $0x78] sm:$0xf]
    %v6696 = vld [vmem:[%s8 + $0x7c] sm:$0xf]
    %v6697 = vld [vmem:[#allocation12] sm:$0xf]
    %v6698 = vsel %vm2942, %v3622, 0
    %v6700 = vsel %vm2942, %v3624, 0
    %v6702 = vsel %vm2942, %v3626, 0
    %v6704 = vsel %vm2942, %v3628, 0
    %v6707 = vsel %vm1498, %v6697, 0
    %6709 = vmatprep.subr.mxu0 0.0
    %6710 = vmatpush1.msra.mxu0 %v6707
    %6711 = vmatprep.subr.mxu0 0.0
    %6712 = vmatpush1.msra.mxu0 0.0
    %6713 = vmatprep.subr.mxu0 0.0
    %6714 = vmatpush1.msra.mxu0 0.0
    %6715 = vmatprep.subr.mxu0 0.0
    %6716 = vmatpush1.msra.mxu0 0.0
    %6717 = vmatprep.subr.mxu0 0.0
    %6718 = vmatpush1.msra.mxu0 0.0
    %6719 = vmatprep.subr.mxu0 0.0
    %6720 = vmatpush1.msra.mxu0 0.0
    %6721 = vmatprep.subr.mxu0 0.0
    %6722 = vmatpush1.msra.mxu0 0.0
    %6723 = vmatprep.subr.mxu0 0.0
    %6724 = vmatpush1.msra.mxu0 0.0
    %6725 = vmatprep.subr.mxu0 0.0
    %6726 = vmatpush1.msra.mxu0 0.0
    %6727 = vmatprep.subr.mxu0 0.0
    %6728 = vmatpush1.msra.mxu0 0.0
    %6729 = vmatprep.subr.mxu0 0.0
    %6730 = vmatpush1.msra.mxu0 0.0
    %6731 = vmatprep.subr.mxu0 0.0
    %6732 = vmatpush1.msra.mxu0 0.0
    %6733 = vmatprep.subr.mxu0 0.0
    %6734 = vmatpush1.msra.mxu0 0.0
    %6735 = vmatprep.subr.mxu0 0.0
    %6736 = vmatpush1.msra.mxu0 0.0
    %6737 = vmatprep.subr.mxu0 0.0
    %6738 = vmatpush1.msra.mxu0 0.0
    %6739 = vmatprep.subr.mxu0 0.0
    %6740 = vmatpush1.msra.mxu0 0.0
    %6741 = vmatprep.subr.mxu0 0.0
    %6742 = vmatpush1.msra.mxu0 0.0
    %6743 = vmatprep.subr.mxu0 0.0
    %6744 = vmatpush1.msra.mxu0 0.0
    %6745 = vmatprep.subr.mxu0 0.0
    %6746 = vmatpush1.msra.mxu0 0.0
    %6747 = vmatprep.subr.mxu0 0.0
    %6748 = vmatpush1.msra.mxu0 0.0
    %6749 = vmatprep.subr.mxu0 0.0
    %6750 = vmatpush1.msra.mxu0 0.0
    %6751 = vmatprep.subr.mxu0 0.0
    %6752 = vmatpush1.msra.mxu0 0.0
    %6753 = vmatprep.subr.mxu0 0.0
    %6754 = vmatpush1.msra.mxu0 0.0
    %6755 = vmatprep.subr.mxu0 0.0
    %6756 = vmatpush1.msra.mxu0 0.0
    %6757 = vmatprep.subr.mxu0 0.0
    %6758 = vmatpush1.msra.mxu0 0.0
    %6759 = vmatprep.subr.mxu0 0.0
    %6760 = vmatpush1.msra.mxu0 0.0
    %6761 = vmatprep.subr.mxu0 0.0
    %6762 = vmatpush1.msra.mxu0 0.0
    %6763 = vmatprep.subr.mxu0 0.0
    %6764 = vmatpush1.msra.mxu0 0.0
    %6765 = vmatprep.subr.mxu0 0.0
    %6766 = vmatpush1.msra.mxu0 0.0
    %6767 = vmatprep.subr.mxu0 0.0
    %6768 = vmatpush1.msra.mxu0 0.0
    %6769 = vmatprep.subr.mxu0 0.0
    %6770 = vmatpush1.msra.mxu0 0.0
    %6771 = vmatprep.subr.mxu0 0.0
    %6772 = vmatpush1.msra.mxu0 0.0
    %6773 = vmatprep.mubr.f32.mxu0 0.0
    %6774 = vmatmul.mubr.f32.gmra.mrb[0].mxu0 %v6698
    %v6775 = vpop.f32.mrb[0].mxu0
    %v6776 = vadd.f32 0.0, %v6775
    %v6777 = vpop.f32.mrb[0].mxu0
    %6778 = vmatprep.mubr.f32.mxu0 0.0
    %6779 = vmatmul.mubr.f32.gmra.mrb[0].mxu0 %v6700
    %v6780 = vpop.f32.mrb[0].mxu0
    %v6781 = vadd.f32 0.0, %v6780
    %v6782 = vpop.f32.mrb[0].mxu0
    %6783 = vmatprep.mubr.f32.mxu0 0.0
    %6784 = vmatmul.mubr.f32.gmra.mrb[0].mxu0 %v6702
    %v6785 = vpop.f32.mrb[0].mxu0
    %v6786 = vadd.f32 0.0, %v6785
    %v6787 = vpop.f32.mrb[0].mxu0
    %6788 = vmatprep.mubr.f32.mxu0 0.0
    %6789 = vmatmul.mubr.f32.gmra.mrb[0].mxu0 %v6704
    %v6790 = vpop.f32.mrb[0].mxu0
    %v6791 = vadd.f32 0.0, %v6790
    %v6792 = vpop.f32.mrb[0].mxu0
    %6793 = vdwg.mxu0
    %v6826 = vunpack.c.l.b16 %v6665
    %v6827 = vunpack.c.l.b16 %v6666
    %v6828 = vunpack.c.l.b16 %v6667
    %v6829 = vunpack.c.l.b16 %v6668
    %v6830 = vunpack.c.l.b16 %v6669
    %v6831 = vunpack.c.l.b16 %v6670
    %v6832 = vunpack.c.l.b16 %v6671
    %v6833 = vunpack.c.l.b16 %v6672
    %v6834 = vunpack.c.l.b16 %v6673
    %v6835 = vunpack.c.l.b16 %v6674
    %v6836 = vunpack.c.l.b16 %v6675
    %v6837 = vunpack.c.l.b16 %v6676
    %v6838 = vunpack.c.l.b16 %v6677
    %v6839 = vunpack.c.l.b16 %v6678
    %v6840 = vunpack.c.l.b16 %v6679
    %v6841 = vunpack.c.l.b16 %v6680
    %v6842 = vunpack.c.l.b16 %v6681
    %v6843 = vunpack.c.l.b16 %v6682
    %v6844 = vunpack.c.l.b16 %v6683
    %v6845 = vunpack.c.l.b16 %v6684
    %v6846 = vunpack.c.l.b16 %v6685
    %v6847 = vunpack.c.l.b16 %v6686
    %v6848 = vunpack.c.l.b16 %v6687
    %v6849 = vunpack.c.l.b16 %v6688
    %v6850 = vunpack.c.l.b16 %v6689
    %v6851 = vunpack.c.l.b16 %v6690
    %v6852 = vunpack.c.l.b16 %v6691
    %v6853 = vunpack.c.l.b16 %v6692
    %v6854 = vunpack.c.l.b16 %v6693
    %v6855 = vunpack.c.l.b16 %v6694
    %v6856 = vunpack.c.l.b16 %v6695
    %v6857 = vunpack.c.l.b16 %v6696
    %v6858 = vpack.c.b16 %v6827, %v6826
    %v6859 = vpack.c.b16 %v6829, %v6828
    %v6860 = vpack.c.b16 %v6831, %v6830
    %v6861 = vpack.c.b16 %v6833, %v6832
    %v6862 = vpack.c.b16 %v6835, %v6834
    %v6863 = vpack.c.b16 %v6837, %v6836
    %v6864 = vpack.c.b16 %v6839, %v6838
    %v6865 = vpack.c.b16 %v6841, %v6840
    %v6866 = vpack.c.b16 %v6843, %v6842
    %v6867 = vpack.c.b16 %v6845, %v6844
    %v6868 = vpack.c.b16 %v6847, %v6846
    %v6869 = vpack.c.b16 %v6849, %v6848
    %v6870 = vpack.c.b16 %v6851, %v6850
    %v6871 = vpack.c.b16 %v6853, %v6852
    %v6872 = vpack.c.b16 %v6855, %v6854
    %v6873 = vpack.c.b16 %v6857, %v6856
    %6890 = vmatprep.subr.bf16.mxu0 0
    %6891 = vmatpush1.bf16.msra.mxu0 %v6858
    %6892 = vmatprep.subr.bf16.mxu0 0
    %6893 = vmatpush1.bf16.msra.mxu0 %v6859
    %6894 = vmatprep.subr.bf16.mxu0 0
    %6895 = vmatpush1.bf16.msra.mxu0 %v6860
    %6896 = vmatprep.subr.bf16.mxu0 0
    %6897 = vmatpush1.bf16.msra.mxu0 %v6861
    %6898 = vmatprep.subr.bf16.mxu0 0
    %6899 = vmatpush1.bf16.msra.mxu0 %v6862
    %6900 = vmatprep.subr.bf16.mxu0 0
    %6901 = vmatpush1.bf16.msra.mxu0 %v6863
    %6902 = vmatprep.subr.bf16.mxu0 0
    %6903 = vmatpush1.bf16.msra.mxu0 %v6864
    %6904 = vmatprep.subr.bf16.mxu0 0
    %6905 = vmatpush1.bf16.msra.mxu0 %v6865
    %6906 = vmatprep.subr.bf16.mxu0 0
    %6907 = vmatpush1.bf16.msra.mxu0 %v6866
    %6908 = vmatprep.subr.bf16.mxu0 0
    %6909 = vmatpush1.bf16.msra.mxu0 %v6867
    %6910 = vmatprep.subr.bf16.mxu0 0
    %6911 = vmatpush1.bf16.msra.mxu0 %v6868
    %6912 = vmatprep.subr.bf16.mxu0 0
    %6913 = vmatpush1.bf16.msra.mxu0 %v6869
    %6914 = vmatprep.subr.bf16.mxu0 0
    %6915 = vmatpush1.bf16.msra.mxu0 %v6870
    %6916 = vmatprep.subr.bf16.mxu0 0
    %6917 = vmatpush1.bf16.msra.mxu0 %v6871
    %6918 = vmatprep.subr.bf16.mxu0 0
    %6919 = vmatpush1.bf16.msra.mxu0 %v6872
    %6920 = vmatprep.subr.bf16.mxu0 0
    %6921 = vmatpush1.bf16.msra.mxu0 %v6873
    %6922 = vmatprep.mubr.bf16.mxu0 %v6662
    %6923 = vmatmul.mubr.bf16.gmra.mrb[0].mxu0 %v6661
    %v6924 = vpop.f32.mrb[0].mxu0
    %v6925 = vadd.f32 %v6776, %v6924
    %v6926 = vpop.f32.mrb[0].mxu0
    %v6927 = vpop.f32.mrb[0].mxu0
    %v6928 = vadd.f32 %v6781, %v6927
    %v6929 = vpop.f32.mrb[0].mxu0
    %6930 = vmatprep.mubr.bf16.mxu0 %v6664
    %6931 = vmatmul.mubr.bf16.gmra.mrb[0].mxu0 %v6663
    %v6932 = vpop.f32.mrb[0].mxu0
    %v6933 = vadd.f32 %v6786, %v6932
    %v6934 = vpop.f32.mrb[0].mxu0
    %v6935 = vpop.f32.mrb[0].mxu0
    %v6936 = vadd.f32 %v6791, %v6935
    %v6937 = vpop.f32.mrb[0].mxu0
    %6938 = vdwg.mxu0
    %v6939 = vpack.c.bf16 %v6928, %v6925
    %v6940 = vpack.c.bf16 %v6936, %v6933
    %v6942 = vshrl.u32 %v6939, 16
    %v6944 = vrot.slane %v6942, 7
    %v6945 = vshll.u32 %v6939, 16
    %v6947 = vor.u32 %v6944, %v6945
    %v6950 = vsel %vm187, 0, %v6947
    %v6951 = vsel %vm187, %v6944, 0
    %v6953 = vshrl.u32 %v6950, 16
    %v6955 = vshll.u32 %v6950, 16
    %v6957 = vrot.slane %v6955, 1
    %v6958 = vor.u32 %v6953, %v6957
    %v6960 = vshll.u32 %v6951, 16
    %v6962 = vrot.slane %v6960, 1
    %v6963 = vsel %vm190, %v6958, %v6962
    %6964 = vrot.lane.b32.xlu0 %v6963, 16
    %v6965 = vpop.permute.xlu0 %6964
    %v6968 = vrot.slane %v6950, 1
    %v6969 = vrot.slane %v6951, 1
    %v6970 = vsel %vm207, %v6968, %v6969
    %6971 = vrot.lane.b32.xlu0 %v6970, 32
    %v6972 = vpop.permute.xlu0 %6971
    %v6973 = vrot.slane %v6953, 1
    %v6974 = vrot.slane %v6955, 2
    %v6975 = vor.u32 %v6973, %v6974
    %v6976 = vshrl.u32 %v6951, 16
    %v6978 = vrot.slane %v6976, 1
    %v6979 = vrot.slane %v6960, 2
    %v6980 = vor.u32 %v6978, %v6979
    %v6981 = vsel %vm1128, %v6975, %v6980
    %6982 = vrot.lane.b32.xlu0 %v6981, 48
    %v6983 = vpop.permute.xlu0 %6982
    %v6985 = vsel %vm1510, %v6950, %v6965
    %v6987 = vsel %vm213, %v6985, %v6972
    %v6989 = vsel %vm2340, %v6987, %v6983
    %v6992 = vshrl.u32 %v6940, 16
    %v6994 = vrot.slane %v6992, 7
    %v6995 = vshll.u32 %v6940, 16
    %v6997 = vor.u32 %v6994, %v6995
    %v7000 = vsel %vm187, 0, %v6997
    %v7001 = vsel %vm187, %v6994, 0
    %v7003 = vshrl.u32 %v7000, 16
    %v7005 = vshll.u32 %v7000, 16
    %v7007 = vrot.slane %v7005, 1
    %v7008 = vor.u32 %v7003, %v7007
    %v7010 = vshll.u32 %v7001, 16
    %v7012 = vrot.slane %v7010, 1
    %v7013 = vsel %vm190, %v7008, %v7012
    %7014 = vrot.lane.b32.xlu0 %v7013, 16
    %v7015 = vpop.permute.xlu0 %7014
    %v7018 = vrot.slane %v7000, 1
    %v7019 = vrot.slane %v7001, 1
    %v7020 = vsel %vm207, %v7018, %v7019
    %7021 = vrot.lane.b32.xlu0 %v7020, 32
    %v7022 = vpop.permute.xlu0 %7021
    %v7023 = vrot.slane %v7003, 1
    %v7024 = vrot.slane %v7005, 2
    %v7025 = vor.u32 %v7023, %v7024
    %v7026 = vshrl.u32 %v7001, 16
    %v7028 = vrot.slane %v7026, 1
    %v7029 = vrot.slane %v7010, 2
    %v7030 = vor.u32 %v7028, %v7029
    %v7031 = vsel %vm1128, %v7025, %v7030
    %7032 = vrot.lane.b32.xlu0 %v7031, 48
    %v7033 = vpop.permute.xlu0 %7032
    %v7035 = vsel %vm1510, %v7000, %v7015
    %v7037 = vsel %vm213, %v7035, %v7022
    %v7039 = vsel %vm2340, %v7037, %v7033
    %7041 = vmatprep.subr.bf16.mxu0 0
    %7042 = vmatpush1.bf16.msra.mxu0 %v6989
    %7043 = vmatprep.subr.bf16.mxu0 0
    %7044 = vmatpush1.bf16.msra.mxu0 %v7039
    %7045 = vmatprep.subr.bf16.mxu0 0
    %7046 = vmatpush1.bf16.msra.mxu0 0
    %7047 = vmatprep.subr.bf16.mxu0 0
    %7048 = vmatpush1.bf16.msra.mxu0 0
    %7049 = vmatprep.subr.bf16.mxu0 0
    %7050 = vmatpush1.bf16.msra.mxu0 0
    %7051 = vmatprep.subr.bf16.mxu0 0
    %7052 = vmatpush1.bf16.msra.mxu0 0
    %7053 = vmatprep.subr.bf16.mxu0 0
    %7054 = vmatpush1.bf16.msra.mxu0 0
    %7055 = vmatprep.subr.bf16.mxu0 0
    %7056 = vmatpush1.bf16.msra.mxu0 0
    %7057 = vmatprep.subr.bf16.mxu0 0
    %7058 = vmatpush1.bf16.msra.mxu0 0
    %7059 = vmatprep.subr.bf16.mxu0 0
    %7060 = vmatpush1.bf16.msra.mxu0 0
    %7061 = vmatprep.subr.bf16.mxu0 0
    %7062 = vmatpush1.bf16.msra.mxu0 0
    %7063 = vmatprep.subr.bf16.mxu0 0
    %7064 = vmatpush1.bf16.msra.mxu0 0
    %7065 = vmatprep.subr.bf16.mxu0 0
    %7066 = vmatpush1.bf16.msra.mxu0 0
    %7067 = vmatprep.subr.bf16.mxu0 0
    %7068 = vmatpush1.bf16.msra.mxu0 0
    %7069 = vmatprep.subr.bf16.mxu0 0
    %7070 = vmatpush1.bf16.msra.mxu0 0
    %7071 = vmatprep.subr.bf16.mxu0 0
    %7072 = vmatpush1.bf16.msra.mxu0 0
    %7073 = vmatprep.mubr.bf16.mxu0 0
    %7074 = vmatmul.mubr.bf16.gmra.mrb[0].mxu0 %v1201
    %v7075 = vpop.f32.mrb[0].mxu0
    %v7076 = vadd.f32 0.0, %v7075
    %v7077 = vpop.f32.mrb[0].mxu0
    %v7078 = vpop.f32.mrb[0].mxu0
    %v7079 = vadd.f32 0.0, %v7078
    %v7080 = vpop.f32.mrb[0].mxu0
    %7081 = vdwg.mxu0
    %v7082 = vpack.c.bf16 %v7079, %v7076
    %v7084 = vsel %vm216, %v7082, 0
    %7086 = vmatprep.subr.bf16.mxu0 0
    %7087 = vmatpush1.bf16.msra.mxu0 %v2469
    %7088 = vmatprep.subr.bf16.mxu0 0
    %7089 = vmatpush1.bf16.msra.mxu0 %v2470
    %7090 = vmatprep.subr.bf16.mxu0 0
    %7091 = vmatpush1.bf16.msra.mxu0 %v2471
    %7092 = vmatprep.subr.bf16.mxu0 0
    %7093 = vmatpush1.bf16.msra.mxu0 %v2472
    %7094 = vmatprep.subr.bf16.mxu0 0
    %7095 = vmatpush1.bf16.msra.mxu0 0
    %7096 = vmatprep.subr.bf16.mxu0 0
    %7097 = vmatpush1.bf16.msra.mxu0 0
    %7098 = vmatprep.subr.bf16.mxu0 0
    %7099 = vmatpush1.bf16.msra.mxu0 0
    %7100 = vmatprep.subr.bf16.mxu0 0
    %7101 = vmatpush1.bf16.msra.mxu0 0
    %7102 = vmatprep.subr.bf16.mxu0 0
    %7103 = vmatpush1.bf16.msra.mxu0 0
    %7104 = vmatprep.subr.bf16.mxu0 0
    %7105 = vmatpush1.bf16.msra.mxu0 0
    %7106 = vmatprep.subr.bf16.mxu0 0
    %7107 = vmatpush1.bf16.msra.mxu0 0
    %7108 = vmatprep.subr.bf16.mxu0 0
    %7109 = vmatpush1.bf16.msra.mxu0 0
    %7110 = vmatprep.subr.bf16.mxu0 0
    %7111 = vmatpush1.bf16.msra.mxu0 0
    %7112 = vmatprep.subr.bf16.mxu0 0
    %7113 = vmatpush1.bf16.msra.mxu0 0
    %7114 = vmatprep.subr.bf16.mxu0 0
    %7115 = vmatpush1.bf16.msra.mxu0 0
    %7116 = vmatprep.subr.bf16.mxu0 0
    %7117 = vmatpush1.bf16.msra.mxu0 0
    %7118 = vmatprep.mubr.bf16.mxu0 0
    %7119 = vmatmul.mubr.bf16.gmra.mrb[0].mxu0 %v7084
    %v7120 = vpop.f32.mrb[0].mxu0
    %v7121 = vadd.f32 %v2451, %v7120
    %v7122 = vpop.f32.mrb[0].mxu0
    %v7123 = vpop.f32.mrb[0].mxu0
    %v7124 = vadd.f32 %v2451, %v7123
    %v7125 = vpop.f32.mrb[0].mxu0
    %7126 = vdwg.mxu0
    %vm7127 = vcmp.gt.f32.partialorder %v7121, 0.0
    %vm7128 = vcmp.gt.f32.partialorder %v7124, 0.0
    %v7129 = vmul.f32 %v7121, 0.2
    %v7130 = vmul.f32 %v7124, 0.2
    %v7131 = vsel %vm7127, %v7121, %v7129
    %v7132 = vsel %vm7128, %v7124, %v7130
    %v7133 = vpack.c.bf16 %v7132, %v7131
    %v7135 = vshrl.u32 %v7133, 16
    %v7137 = vrot.slane %v7135, 7
    %v7138 = vshll.u32 %v7133, 16
    %v7140 = vor.u32 %v7137, %v7138
    %v7142 = vsel %vm187, 0, %v7140
    %v7143 = vsel %vm1444, %v7142, 0
    %v7145 = vshrl.u32 %v7143, 16
    %v7147 = vshll.u32 %v7143, 16
    %v7149 = vrot.slane %v7147, 1
    %v7150 = vor.u32 %v7145, %v7149
    %7151 = vrot.lane.b32.xlu0 %v7150, 64
    %v7152 = vpop.permute.xlu0 %7151
    %v7154 = vrot.slane %v7143, 1
    %v7155 = vrot.slane %v7145, 1
    %v7156 = vrot.slane %v7147, 2
    %v7157 = vor.u32 %v7155, %v7156
    %7158 = vrot.lane.b32.xlu0 %v7157, 64
    %v7159 = vpop.permute.xlu0 %7158
    %v7161 = vsel %vm216, %v7143, %v7152
    %v7164 = vsel %vm216, %v7154, %v7159
    %v7165 = vrot.slane %v7135, 3
    %v7166 = vrot.slane %v7138, 4
    %v7167 = vor.u32 %v7165, %v7166
    %v7169 = vsel %vm187, 0, %v7167
    %v7170 = vsel %vm1444, %v7169, 0
    %v7172 = vshrl.u32 %v7170, 16
    %v7174 = vshll.u32 %v7170, 16
    %v7176 = vrot.slane %v7174, 1
    %v7177 = vor.u32 %v7172, %v7176
    %7178 = vrot.lane.b32.xlu0 %v7177, 64
    %v7179 = vpop.permute.xlu0 %7178
    %v7181 = vrot.slane %v7170, 1
    %v7182 = vrot.slane %v7172, 1
    %v7183 = vrot.slane %v7174, 2
    %v7184 = vor.u32 %v7182, %v7183
    %7185 = vrot.lane.b32.xlu0 %v7184, 64
    %v7186 = vpop.permute.xlu0 %7185
    %v7188 = vsel %vm216, %v7170, %v7179
    %v7191 = vsel %vm216, %v7181, %v7186
    %v7194 = vrot.slane %v7188, 4
    %v7195 = vrot.slane %v7191, 4
    %v7197 = vsel %vm1498, %v7161, %v7194
    %v7200 = vsel %vm1498, %v7164, %v7195
    %7202 = vmatprep.subr.bf16.mxu0 %v7200
    %7203 = vmatpush1.bf16.msra.mxu0 %v7197
    %7204 = vmatprep.subr.bf16.mxu0 0
    %7205 = vmatpush1.bf16.msra.mxu0 0
    %7206 = vmatprep.subr.bf16.mxu0 0
    %7207 = vmatpush1.bf16.msra.mxu0 0
    %7208 = vmatprep.subr.bf16.mxu0 0
    %7209 = vmatpush1.bf16.msra.mxu0 0
    %7210 = vmatprep.subr.bf16.mxu0 0
    %7211 = vmatpush1.bf16.msra.mxu0 0
    %7212 = vmatprep.subr.bf16.mxu0 0
    %7213 = vmatpush1.bf16.msra.mxu0 0
    %7214 = vmatprep.subr.bf16.mxu0 0
    %7215 = vmatpush1.bf16.msra.mxu0 0
    %7216 = vmatprep.subr.bf16.mxu0 0
    %7217 = vmatpush1.bf16.msra.mxu0 0
    %7218 = vmatprep.subr.bf16.mxu0 0
    %7219 = vmatpush1.bf16.msra.mxu0 0
    %7220 = vmatprep.subr.bf16.mxu0 0
    %7221 = vmatpush1.bf16.msra.mxu0 0
    %7222 = vmatprep.subr.bf16.mxu0 0
    %7223 = vmatpush1.bf16.msra.mxu0 0
    %7224 = vmatprep.subr.bf16.mxu0 0
    %7225 = vmatpush1.bf16.msra.mxu0 0
    %7226 = vmatprep.subr.bf16.mxu0 0
    %7227 = vmatpush1.bf16.msra.mxu0 0
    %7228 = vmatprep.subr.bf16.mxu0 0
    %7229 = vmatpush1.bf16.msra.mxu0 0
    %7230 = vmatprep.subr.bf16.mxu0 0
    %7231 = vmatpush1.bf16.msra.mxu0 0
    %7232 = vmatprep.subr.bf16.mxu0 0
    %7233 = vmatpush1.bf16.msra.mxu0 0
    %7234 = vmatprep.mubr.bf16.mxu0 0
    %7235 = vmatmul.mubr.bf16.gmra.mrb[0].mxu0 %v2597
    %v7236 = vpop.f32.mrb[0].mxu0
    %v7237 = vadd.f32 0.0, %v7236
    %v7238 = vpop.f32.mrb[0].mxu0
    %v7239 = vadd.f32 0.0, %v7238
    %v7240 = vpop.f32.mrb[0].mxu0
    %v7241 = vpop.f32.mrb[0].mxu0
    %7242 = vdwg.mxu0
    %v7243 = vpack.c.bf16 %v7237, %v7237
    %v7244 = vpack.c.bf16 %v7239, %v7239
    %7245 = vmatprep.subr.bf16.mxu0 0
    %7246 = vmatpush1.bf16.msra.mxu0 %v2747
    %7247 = vmatprep.subr.bf16.mxu0 0
    %7248 = vmatpush1.bf16.msra.mxu0 %v2748
    %7249 = vmatprep.subr.bf16.mxu0 0
    %7250 = vmatpush1.bf16.msra.mxu0 %v2749
    %7251 = vmatprep.subr.bf16.mxu0 0
    %7252 = vmatpush1.bf16.msra.mxu0 %v2750
    %7253 = vmatprep.subr.bf16.mxu0 0
    %7254 = vmatpush1.bf16.msra.mxu0 %v2751
    %7255 = vmatprep.subr.bf16.mxu0 0
    %7256 = vmatpush1.bf16.msra.mxu0 %v2752
    %7257 = vmatprep.subr.bf16.mxu0 0
    %7258 = vmatpush1.bf16.msra.mxu0 %v2753
    %7259 = vmatprep.subr.bf16.mxu0 0
    %7260 = vmatpush1.bf16.msra.mxu0 %v2754
    %7261 = vmatprep.subr.bf16.mxu0 0
    %7262 = vmatpush1.bf16.msra.mxu0 %v2755
    %7263 = vmatprep.subr.bf16.mxu0 0
    %7264 = vmatpush1.bf16.msra.mxu0 %v2756
    %7265 = vmatprep.subr.bf16.mxu0 0
    %7266 = vmatpush1.bf16.msra.mxu0 %v2757
    %7267 = vmatprep.subr.bf16.mxu0 0
    %7268 = vmatpush1.bf16.msra.mxu0 %v2758
    %7269 = vmatprep.subr.bf16.mxu0 0
    %7270 = vmatpush1.bf16.msra.mxu0 %v2759
    %7271 = vmatprep.subr.bf16.mxu0 0
    %7272 = vmatpush1.bf16.msra.mxu0 %v2760
    %7273 = vmatprep.subr.bf16.mxu0 0
    %7274 = vmatpush1.bf16.msra.mxu0 %v2761
    %7275 = vmatprep.subr.bf16.mxu0 0
    %7276 = vmatpush1.bf16.msra.mxu0 %v2762
    %7277 = vmatprep.mubr.bf16.mxu0 %v7244
    %7278 = vmatmul.mubr.bf16.gmra.mrb[0].mxu0 %v7243
    %v7279 = vpop.f32.mrb[0].mxu0
    %v7280 = vadd.f32 %v2681, %v7279
    %v7281 = vpop.f32.mrb[0].mxu0
    %v7282 = vpop.f32.mrb[0].mxu0
    %v7283 = vpop.f32.mrb[0].mxu0
    %7284 = vdwg.mxu0
    %vm7285 = vcmp.gt.f32.partialorder %v7280, 0.0
    %v7286 = vmul.f32 %v7280, 0.2
    %v7287 = vsel %vm7285, %v7280, %v7286
    %v7288 = vpack.c.bf16 %v7287, %v7287
    %v7290 = vsel %vm216, %v7288, 0
    %7292 = vmatprep.subr.bf16.mxu0 0
    %7293 = vmatpush1.bf16.msra.mxu0 %v2854
    %7294 = vmatprep.subr.bf16.mxu0 0
    %7295 = vmatpush1.bf16.msra.mxu0 %v2855
    %7296 = vmatprep.subr.bf16.mxu0 0
    %7297 = vmatpush1.bf16.msra.mxu0 %v2856
    %7298 = vmatprep.subr.bf16.mxu0 0
    %7299 = vmatpush1.bf16.msra.mxu0 %v2857
    %7300 = vmatprep.subr.bf16.mxu0 0
    %7301 = vmatpush1.bf16.msra.mxu0 0
    %7302 = vmatprep.subr.bf16.mxu0 0
    %7303 = vmatpush1.bf16.msra.mxu0 0
    %7304 = vmatprep.subr.bf16.mxu0 0
    %7305 = vmatpush1.bf16.msra.mxu0 0
    %7306 = vmatprep.subr.bf16.mxu0 0
    %7307 = vmatpush1.bf16.msra.mxu0 0
    %7308 = vmatprep.subr.bf16.mxu0 0
    %7309 = vmatpush1.bf16.msra.mxu0 0
    %7310 = vmatprep.subr.bf16.mxu0 0
    %7311 = vmatpush1.bf16.msra.mxu0 0
    %7312 = vmatprep.subr.bf16.mxu0 0
    %7313 = vmatpush1.bf16.msra.mxu0 0
    %7314 = vmatprep.subr.bf16.mxu0 0
    %7315 = vmatpush1.bf16.msra.mxu0 0
    %7316 = vmatprep.subr.bf16.mxu0 0
    %7317 = vmatpush1.bf16.msra.mxu0 0
    %7318 = vmatprep.subr.bf16.mxu0 0
    %7319 = vmatpush1.bf16.msra.mxu0 0
    %7320 = vmatprep.subr.bf16.mxu0 0
    %7321 = vmatpush1.bf16.msra.mxu0 0
    %7322 = vmatprep.subr.bf16.mxu0 0
    %7323 = vmatpush1.bf16.msra.mxu0 0
    %7324 = vmatprep.mubr.bf16.mxu0 0
    %7325 = vmatmul.mubr.bf16.gmra.mrb[0].mxu0 %v7290
    %v7326 = vpop.f32.mrb[0].mxu0
    %v7327 = vadd.f32 %v2836, %v7326
    %v7328 = vpop.f32.mrb[0].mxu0
    %v7329 = vpop.f32.mrb[0].mxu0
    %v7330 = vpop.f32.mrb[0].mxu0
    %7331 = vdwg.mxu0
    %v7332 = vsel %vm2905, %v7327, 0.0
    %v7333 = vrot.slane %v7332, 4
    %v7334 = vadd.f32 %v7332, %v7333
    %v7335 = vrot.slane %v7334, 2
    %v7336 = vadd.f32 %v7334, %v7335
    %v7337 = vrot.slane %v7336, 1
    %v7338 = vadd.f32 %v7336, %v7337
    %v7339 = vmul.f32 %v7338, %v2913
    %v7341 = vrot.slane %v7327, 4
    %v7343 = vsel %vm2905, %v7341, 0.0
    %v7344 = vrot.slane %v7343, 4
    %v7345 = vadd.f32 %v7343, %v7344
    %v7346 = vrot.slane %v7345, 2
    %v7347 = vadd.f32 %v7345, %v7346
    %v7348 = vrot.slane %v7347, 1
    %v7349 = vadd.f32 %v7347, %v7348
    %v7350 = vmul.f32 %v7349, %v2913
    %v7351 = vsel %vm2926, %v7339, %v7350
    %v7352 = vlaneseq
    %v7353 = vshrl.u32 %v7352, 7
    %v7354 = vsub.s32 0, %v7353
    %v7355 = vrot.slane %v2927, %v7354
    %v7356 = vlaneseq
    %v7357 = vshrl.u32 %v7356, 7
    %v7358 = vsub.s32 1, %v7357
    %v7359 = vrot.slane %v2927, %v7358
    %v7362 = vlaneseq
    %v7363 = vshrl.u32 %v7362, 7
    %v7364 = vsub.s32 0, %v7363
    %v7365 = vrot.slane %v7351, %v7364
    %v7366 = vlaneseq
    %v7367 = vshrl.u32 %v7366, 7
    %v7368 = vsub.s32 1, %v7367
    %v7369 = vrot.slane %v7351, %v7368
    %7376 = vrot.lane.b32.xlu0 %v3571, 16
    %v7377 = vpop.permute.xlu0 %7376
    %7378 = vrot.lane.b32.xlu0 %v3574, 16
    %v7379 = vpop.permute.xlu0 %7378
    %7380 = vrot.lane.b32.xlu0 %v3579, 16
    %v7381 = vpop.permute.xlu0 %7380
    %7382 = vrot.lane.b32.xlu0 %v3582, 16
    %v7383 = vpop.permute.xlu0 %7382
    %7388 = vrot.lane.b32.xlu0 %v7355, 20
    %v7389 = vpop.permute.xlu0 %7388
    %7390 = vrot.lane.b32.xlu0 %v7359, 20
    %v7391 = vpop.permute.xlu0 %7390
    %7394 = vrot.lane.b32.xlu0 %v7365, 24
    %v7395 = vpop.permute.xlu0 %7394
    %7396 = vrot.lane.b32.xlu0 %v7369, 24
    %v7397 = vpop.permute.xlu0 %7396
    %v7400 = vsel %vm1510, %v6925, %v7377
    %v7401 = vsel %vm1510, %v6928, %v7379
    %v7402 = vsel %vm1510, %v6933, %v7381
    %v7403 = vsel %vm1510, %v6936, %v7383
    %vm7404 = vcmask 162816
    %v7405 = vsel %vm7404, %v7400, %v7389
    %v7406 = vsel %vm7404, %v7401, %v7389
    %v7407 = vsel %vm7404, %v7402, %v7391
    %v7408 = vsel %vm7404, %v7403, %v7391
    %vm7409 = vcmask 195584
    %v7410 = vsel %vm7409, %v7405, %v7395
    %v7411 = vsel %vm7409, %v7406, %v7395
    %v7412 = vsel %vm7409, %v7407, %v7397
    %v7413 = vsel %vm7409, %v7408, %v7397
    %vm7414 = vcmask 228352
    %v7415 = vsel %vm7414, %v7410, 0.0
    %v7416 = vsel %vm7414, %v7411, 0.0
    %v7417 = vsel %vm7414, %v7412, 0.0
    %v7418 = vsel %vm7414, %v7413, 0.0
    %7419 = vst [vmem:[%s12] sm:$0xff] %v7415
    %7420 = vst [vmem:[%s12 + $0x8] sm:$0xff] %v7416
    %7421 = vst [vmem:[%s12 + $0x10] sm:$0xff] %v7417
    %7422 = vst [vmem:[%s12 + $0x18] sm:$0xff] %v7418
    // Predicated region
    $region86: #{_lambda_.1} parent=1 // pred_check
      _
    $region87: #{_lambda_.1} parent=1 // pred_check_branch
      %7424 = sbr.rel (0) target = $region89
    $region88: #{_lambda_.1} parent=1 // pred_region
      _
    $region89: #{_lambda_.1} parent=1 // pred_fallthru
      _
    // Predicated region
    $region90: #{_lambda_.1} parent=1 // pred_check
      _
    $region91: #{_lambda_.1} parent=1 // pred_check_branch
      %7426 = sbr.rel (0) target = $region93
    $region92: #{_lambda_.1} parent=1 // pred_region
      _
    $region93: #{_lambda_.1} parent=1 // pred_fallthru
      _
    %7427 = vsyncpa [#allocation3], 1
    %7428 = vsyncpa [#allocation5], 1
    %7429 = vsyncpa [#allocation8], 1
    %7430 = vsyncpa [#allocation11], 1
    %7431 = vsyncpa [#allocation14], 1

</llo_original>
